<compile_context>
chip_gen: v7x
topology: tpu7x:2x2x1
jax: 0.10.0
libtpu: 0.0.40
codegen_flags: <defaults>
</compile_context>

<pallas_src>
import functools

import numpy as np
import jax
import jax.numpy as jnp
from jax import lax
from jax.experimental import pallas as pl
from jax.experimental.pallas import tpu as pltpu

_MIB = 1024 * 1024


def _vmem_limit(block_bytes):
    """Explicit scoped-VMEM limit: generous headroom over the per-step blocks,
    floored above v5e's 16 MiB default, capped at v7x's 64 MiB physical."""
    return int(min(64 * _MIB, max(32 * _MIB, 4 * int(block_bytes))))


# ---------------------------------------------------------------------------
# In-kernel helpers: strided window read and single-dot tap GEMM
# ---------------------------------------------------------------------------

def _window(ref, y0, x0, oh, ow, stride):
    if stride == 1:
        return ref[pl.ds(y0, oh), pl.ds(x0, ow), :]
    return ref[pl.ds(y0, oh, stride=stride), pl.ds(x0, ow, stride=stride), :]


def _tap_gemm(pad_ref, w, oh, ow, cin, stride):
    """3x3 conv on the zero-padded VMEM scratch as ONE MXU dot with K=9*cin.

    The 9 shifted windows are concatenated along the channel (lane) axis in
    VMEM, so there is a single result pop and no per-tap f32 accumulator adds.
    Weights are packed (dy, dx, cin)-major to match the concat order.
    """
    taps = [_window(pad_ref, dy, dx, oh, ow, stride)
            for dy in range(3) for dx in range(3)]
    lhs = jnp.concatenate(taps, axis=-1).reshape(oh * ow, 9 * cin)   # bf16
    return jnp.dot(lhs, w, preferred_element_type=jnp.float32)       # (oh*ow, cout) f32


# ---------------------------------------------------------------------------
# K1: conv1 (3x3, stride, pad 1) [+ fused 1x1 shortcut], BN partials fused
# ---------------------------------------------------------------------------

def _make_conv1_kernel(H, W, Cin, stride, OH, OW, with_shortcut):
    def kernel(*refs):
        if with_shortcut:
            (x_ref, w_ref, ws_ref, bs_ref,
             y_ref, s_ref, q_ref, res_ref, pad_ref) = refs
        else:
            x_ref, w_ref, y_ref, s_ref, q_ref, pad_ref = refs

        # bf16 cast + zero padding entirely in VMEM (no host jnp.pad, no padded
        # HBM copy).  The border is re-zeroed every step so the kernel stays
        # correct when the "parallel" grid axis is split across TensorCores.
        pad_ref[...] = jnp.zeros_like(pad_ref)
        pad_ref[pl.ds(1, H), pl.ds(1, W), :] = x_ref[...].astype(jnp.bfloat16)

        z = _tap_gemm(pad_ref, w_ref[...], OH, OW, Cin, stride)      # f32
        y_ref[...] = z
        # BN batch-stat partials on the bias-free conv output (the conv bias
        # cancels exactly inside training-mode BN, so it is never added).
        s_ref[...] = jnp.sum(z, axis=0, keepdims=True)
        q_ref[...] = jnp.sum(z * z, axis=0, keepdims=True)

        if with_shortcut:
            # 1x1 stride-s conv fused in: reuse the bf16 image already in VMEM.
            xs = _window(pad_ref, 1, 1, OH, OW, stride)              # (OH, OW, Cin)
            rs = jnp.dot(xs.reshape(OH * OW, Cin), ws_ref[...],
                         preferred_element_type=jnp.float32)
            res_ref[...] = rs + bs_ref[...]                          # bias kept (no BN)
    return kernel


def conv1_and_shortcut(x_nhwc, w1, ws=None, bs=None, *, stride, OH, OW):
    N, H, W, Cin = x_nhwc.shape
    KKC, Cout = w1.shape                       # KKC = 9*Cin
    Hp, Wp = H + 2, W + 2
    with_sc = ws is not None
    kernel = _make_conv1_kernel(H, W, Cin, stride, OH, OW, with_sc)

    inputs = [x_nhwc, w1]
    in_specs = [pl.BlockSpec((None, H, W, Cin), lambda n: (n, 0, 0, 0)),
                pl.BlockSpec((KKC, Cout), lambda n: (0, 0))]
    out_shape = [jax.ShapeDtypeStruct((N, OH * OW, Cout), jnp.float32),
                 jax.ShapeDtypeStruct((N, 1, Cout), jnp.float32),
                 jax.ShapeDtypeStruct((N, 1, Cout), jnp.float32)]
    out_specs = [pl.BlockSpec((None, OH * OW, Cout), lambda n: (n, 0, 0)),
                 pl.BlockSpec((None, 1, Cout), lambda n: (n, 0, 0)),
                 pl.BlockSpec((None, 1, Cout), lambda n: (n, 0, 0))]
    if with_sc:
        inputs += [ws, bs]
        in_specs += [pl.BlockSpec((Cin, Cout), lambda n: (0, 0)),
                     pl.BlockSpec((1, Cout), lambda n: (0, 0))]
        out_shape.append(jax.ShapeDtypeStruct((N, OH * OW, Cout), jnp.float32))
        out_specs.append(pl.BlockSpec((None, OH * OW, Cout), lambda n: (n, 0, 0)))

    block_bytes = (H * W * Cin * 4 + KKC * Cout * 2 + Hp * Wp * Cin * 2
                   + (2 + int(with_sc)) * OH * OW * Cout * 4)
    return pl.pallas_call(
        kernel,
        out_shape=tuple(out_shape),
        grid=(N,),           # TODO(synk): add a spatial output-row tile axis.
        in_specs=in_specs,
        out_specs=tuple(out_specs),
        scratch_shapes=[pltpu.VMEM((Hp, Wp, Cin), jnp.bfloat16)],
        compiler_params=pltpu.CompilerParams(
            dimension_semantics=("parallel",),
            vmem_limit_bytes=_vmem_limit(block_bytes)),
    )(*inputs)


# ---------------------------------------------------------------------------
# K2: bn1-affine + ReLU + conv2 (3x3, stride 1, pad 1), fused; BN partials
# ---------------------------------------------------------------------------

def _make_conv2_kernel(OH, OW, C):
    def kernel(y1_ref, sc_ref, sh_ref, w_ref, y2_ref, s_ref, q_ref, pad_ref):
        # Fused bn1 affine + ReLU + bf16 cast + zero padding, all in VMEM:
        # the conv1 activation never makes an extra HBM round trip.
        h = jnp.maximum(y1_ref[...] * sc_ref[...] + sh_ref[...], 0.0)
        pad_ref[...] = jnp.zeros_like(pad_ref)
        pad_ref[pl.ds(1, OH), pl.ds(1, OW), :] = (
            h.astype(jnp.bfloat16).reshape(OH, OW, C))

        z = _tap_gemm(pad_ref, w_ref[...], OH, OW, C, 1)             # f32
        y2_ref[...] = z
        s_ref[...] = jnp.sum(z, axis=0, keepdims=True)
        q_ref[...] = jnp.sum(z * z, axis=0, keepdims=True)
    return kernel


def conv2_fused_bn1_relu(y1, sc1, sh1, w2, *, OH, OW):
    N, M, C = y1.shape                          # M == OH*OW, C == Cout
    KKC, Cout = w2.shape
    kernel = _make_conv2_kernel(OH, OW, C)
    block_bytes = (M * C * 4 + KKC * Cout * 2 + (OH + 2) * (OW + 2) * C * 2
                   + 2 * M * Cout * 4)
    return pl.pallas_call(
        kernel,
        out_shape=(jax.ShapeDtypeStruct((N, M, Cout), jnp.float32),
                   jax.ShapeDtypeStruct((N, 1, Cout), jnp.float32),
                   jax.ShapeDtypeStruct((N, 1, Cout), jnp.float32)),
        grid=(N,),
        in_specs=[pl.BlockSpec((None, M, C), lambda n: (n, 0, 0)),
                  pl.BlockSpec((1, C), lambda n: (0, 0)),
                  pl.BlockSpec((1, C), lambda n: (0, 0)),
                  pl.BlockSpec((KKC, Cout), lambda n: (0, 0))],
        out_specs=(pl.BlockSpec((None, M, Cout), lambda n: (n, 0, 0)),
                   pl.BlockSpec((None, 1, Cout), lambda n: (n, 0, 0)),
                   pl.BlockSpec((None, 1, Cout), lambda n: (n, 0, 0))),
        scratch_shapes=[pltpu.VMEM((OH + 2, OW + 2, C), jnp.bfloat16)],
        compiler_params=pltpu.CompilerParams(
            dimension_semantics=("parallel",),
            vmem_limit_bytes=_vmem_limit(block_bytes)),
    )(y1, sc1, sh1, w2)


# ---------------------------------------------------------------------------
# K3: bn2-affine + shortcut add + ReLU (row-tiled elementwise)
# ---------------------------------------------------------------------------

def _affine_add_relu_kernel(y_ref, r_ref, sc_ref, sh_ref, o_ref):
    o_ref[...] = jnp.maximum(
        y_ref[...] * sc_ref[...] + sh_ref[...] + r_ref[...], 0.0
    ).astype(o_ref.dtype)


def _row_tile(m, c, *, budget_bytes=2 * _MIB):
    """Row tile from a bytes budget (y + res + out streams, f32); multiple of 8
    with a pl.cdiv grid + masked tail, never a single oversized block."""
    per_row = 3 * 4 * max(int(c), 1)
    rows = (budget_bytes // per_row) // 8 * 8
    rows = max(8, rows)
    return int(min(rows, m))


def affine_add_relu(y, res, scale, shift, out_dtype=jnp.float32):
    M, C = y.shape
    tm = _row_tile(M, C)
    # TODO(synk): for C < 128 a lane-dense (M*C/128, 128) repack of the streams
    # would turn the masked vst into full-lane stores; skipped to keep one path.
    return pl.pallas_call(
        _affine_add_relu_kernel,
        out_shape=jax.ShapeDtypeStruct((M, C), out_dtype),
        grid=(pl.cdiv(M, tm),),
        in_specs=[pl.BlockSpec((tm, C), lambda i: (i, 0)),
                  pl.BlockSpec((tm, C), lambda i: (i, 0)),
                  pl.BlockSpec((1, C), lambda i: (0, 0)),
                  pl.BlockSpec((1, C), lambda i: (0, 0))],
        out_specs=pl.BlockSpec((tm, C), lambda i: (i, 0)),
        compiler_params=pltpu.CompilerParams(
            dimension_semantics=("parallel",),
            vmem_limit_bytes=_vmem_limit(3 * tm * C * 4)),
    )(y, res, scale, shift)


# ---------------------------------------------------------------------------
# BatchNorm (training mode) scale/shift from the fused conv partials
# ---------------------------------------------------------------------------

def _bn_scale_shift(col_sum, col_sumsq, m, eps=1e-5):
    """Batch stats, biased variance, gamma=1, beta=0 (fresh torch BN module).
    Partials are over the bias-free conv output; the conv bias cancels in BN."""
    total = jnp.sum(col_sum, axis=0)        # (1, C)
    totsq = jnp.sum(col_sumsq, axis=0)      # (1, C)
    mean = total / m
    var = jnp.maximum(totsq / m - mean * mean, 0.0)
    scale = lax.rsqrt(var + eps)
    return scale, -mean * scale


# ---------------------------------------------------------------------------
# Residual-block forward (matches torch Residual.forward, training-mode BN)
# ---------------------------------------------------------------------------

def residual_forward(x_nchw, params, *, stride=1, use_1x1=False, eps=1e-5):
    N, Cin, H, W = x_nchw.shape
    c1, c2, scp = params["conv1"], params["conv2"], params["shortcut"]
    Cout = c1["w"].shape[-1]
    OH = (H - 1) // stride + 1              # 3x3, pad 1
    OW = (W - 1) // stride + 1
    M = N * OH * OW

    # Single layout change in: NCHW -> NHWC (channels on the lane dim).
    x_nhwc = jnp.transpose(x_nchw, (0, 2, 3, 1))

    # K1: conv1 (+ fused 1x1 shortcut); pad + bf16 cast happen in VMEM.
    if use_1x1:
        y1, s1, q1, res = conv1_and_shortcut(
            x_nhwc, c1["w"], scp["w"], scp["b"], stride=stride, OH=OH, OW=OW)
        res_rows = res.reshape(M, Cout)
    else:
        assert stride == 1 and Cin == Cout, "identity shortcut needs matching shapes"
        y1, s1, q1 = conv1_and_shortcut(x_nhwc, c1["w"], stride=stride, OH=OH, OW=OW)
        res_rows = x_nhwc.reshape(M, Cin)
    sc1, sh1 = _bn_scale_shift(s1, q1, M, eps)

    # K2: bn1 + relu + conv2 fused (y1 is consumed directly, no pad round trip).
    y2, s2, q2 = conv2_fused_bn1_relu(y1, sc1, sh1, c2["w"], OH=OH, OW=OW)
    sc2, sh2 = _bn_scale_shift(s2, q2, M, eps)

    # K3: bn2 + shortcut add + relu.
    out_rows = affine_add_relu(y2.reshape(M, Cout), res_rows, sc2, sh2)

    # Single layout change out: NHWC -> NCHW to match the torch interface.
    return jnp.transpose(out_rows.reshape(N, OH, OW, Cout), (0, 3, 1, 2))


# ---------------------------------------------------------------------------
# Parameters: torch-layout init, packed once (taps-major + bf16) for the kernels
# ---------------------------------------------------------------------------

def _conv_init(key, cout, cin, kh, kw):
    k_w, k_b = jax.random.split(key)
    bound = 1.0 / np.sqrt(cin * kh * kw)
    w = jax.random.uniform(k_w, (cout, cin, kh, kw), jnp.float32, -bound, bound)
    b = jax.random.uniform(k_b, (cout,), jnp.float32, -bound, bound)
    return w, b


def init_residual_params(key, cin, cout, use_1x1):
    k1, k2, k3 = jax.random.split(key, 3)
    p = {}
    p["w1"], p["b1"] = _conv_init(k1, cout, cin, 3, 3)
    p["w2"], p["b2"] = _conv_init(k2, cout, cout, 3, 3)
    if use_1x1:
        p["ws"], p["bs"] = _conv_init(k3, cout, cin, 1, 1)
    return p


def _pack_3x3(w):
    # torch (Cout, Cin, 3, 3) -> taps-major (3*3*Cin, Cout) bf16 matching the
    # in-kernel concat order (dy, dx, cin).  Done once at init.
    cout, cin, kh, kw = w.shape
    return (jnp.transpose(w, (2, 3, 1, 0))
            .reshape(kh * kw * cin, cout).astype(jnp.bfloat16))


def pack_residual_params(p):
    # NOTE: conv1/conv2 biases are intentionally not packed — a conv bias that
    # feeds a training-mode BatchNorm cancels exactly, so the kernels never add
    # it.  The 1x1 shortcut bias (no BN behind it) is kept.
    packed = {"conv1": {"w": _pack_3x3(p["w1"])},
              "conv2": {"w": _pack_3x3(p["w2"])},
              "shortcut": None}
    if "ws" in p:
        packed["shortcut"] = {
            "w": jnp.transpose(p["ws"][:, :, 0, 0], (1, 0)).astype(jnp.bfloat16),
            "b": p["bs"].reshape(1, -1).astype(jnp.float32)}
    return packed


# ---------------------------------------------------------------------------
# Pure-JAX f32 reference (training-mode BN) for correctness checking
# ---------------------------------------------------------------------------

def _bn_train_ref(y, eps=1e-5):
    m = jnp.mean(y, axis=(0, 2, 3), keepdims=True)
    v = jnp.var(y, axis=(0, 2, 3), keepdims=True)
    return (y - m) / jnp.sqrt(v + eps)


def residual_reference(x, p, *, stride, use_1x1, eps=1e-5):
    dn = ("NCHW", "OIHW", "NCHW")
    hi = lax.Precision.HIGHEST
    y1 = lax.conv_general_dilated(x, p["w1"], (stride, stride), ((1, 1), (1, 1)),
                                  dimension_numbers=dn, precision=hi)
    h1 = jnp.maximum(_bn_train_ref(y1 + p["b1"][None, :, None, None], eps), 0.0)
    y2 = lax.conv_general_dilated(h1, p["w2"], (1, 1), ((1, 1), (1, 1)),
                                  dimension_numbers=dn, precision=hi)
    y2 = _bn_train_ref(y2 + p["b2"][None, :, None, None], eps)
    if use_1x1:
        sc = lax.conv_general_dilated(x, p["ws"], (stride, stride), ((0, 0), (0, 0)),
                                      dimension_numbers=dn, precision=hi)
        sc = sc + p["bs"][None, :, None, None]
    else:
        sc = x
    return jnp.maximum(y2 + sc, 0.0)


if __name__ == "__main__":
    key = jax.random.PRNGKey(0)
    k_p1, k_p2, k_x = jax.random.split(key, 3)
    x = jax.random.normal(k_x, (2, 4, 16, 16), dtype=jnp.float32)

    # --- case 1: identity shortcut (stride 1, Cin == Cout) ---
    raw1 = init_residual_params(k_p1, 4, 4, use_1x1=False)
    prm1 = pack_residual_params(raw1)
    fwd1 = jax.jit(functools.partial(residual_forward, stride=1, use_1x1=False))
    out1 = jax.block_until_ready(fwd1(x, prm1))
    ref1 = residual_reference(x, raw1, stride=1, use_1x1=False)
    assert out1.shape == (2, 4, 16, 16), out1.shape
    assert bool(jnp.all(jnp.isfinite(out1)))
    assert float(jnp.max(jnp.abs(out1 - ref1))) < 0.25   # bf16-GEMM tolerance

    # --- case 2: 1x1-conv shortcut, stride 2, channel expansion ---
    raw2 = init_residual_params(k_p2, 4, 8, use_1x1=True)
    prm2 = pack_residual_params(raw2)
    fwd2 = jax.jit(functools.partial(residual_forward, stride=2, use_1x1=True))
    out2 = jax.block_until_ready(fwd2(x, prm2))
    ref2 = residual_reference(x, raw2, stride=2, use_1x1=True)
    assert out2.shape == (2, 8, 8, 8), out2.shape
    assert bool(jnp.all(jnp.isfinite(out2)))
    assert float(jnp.max(jnp.abs(out2 - ref2))) < 0.25

    print("KERNEL_OK")
</pallas_src>

<mosaic_0001>
module attributes {stable_mosaic.version = 11 : i64} {
  func.func @kernel(%arg0: i32, %arg1: memref<1x16x16x4xf32, #tpu.memory_space<vmem>>, %arg2: memref<36x4xbf16, #tpu.memory_space<vmem>>, %arg3: memref<1x256x4xf32, #tpu.memory_space<vmem>>, %arg4: memref<1x1x4xf32, #tpu.memory_space<vmem>>, %arg5: memref<1x1x4xf32, #tpu.memory_space<vmem>>, %arg6: memref<18x18x4xbf16, #tpu.memory_space<vmem>>) attributes {dimension_semantics = [#tpu.dimension_semantics<parallel>], iteration_bounds = array<i64: 2>, scalar_prefetch = 0 : i64, scratch_operands = 1 : i64, tpu.core_type = #tpu.core_type<tc>, window_params = [{transform_indices = @transform_0, window_bounds = array<i64: 1, 16, 16, 4>}, {pipeline_mode = #tpu.pipeline_mode<synchronous>, transform_indices = @transform_1, window_bounds = array<i64: 36, 4>}, {transform_indices = @transform_2, window_bounds = array<i64: 1, 256, 4>}, {transform_indices = @transform_3, window_bounds = array<i64: 1, 1, 4>}, {transform_indices = @transform_4, window_bounds = array<i64: 1, 1, 4>}]} {
    %cst = arith.constant 0.000000e+00 : bf16
    %0 = vector.broadcast %cst : bf16 to vector<18x18x4xbf16>
    %c0 = arith.constant 0 : index
    %c0_0 = arith.constant 0 : index
    %c0_1 = arith.constant 0 : index
    %1 = vector.load %arg6[%c0, %c0_0, %c0_1] : memref<18x18x4xbf16, #tpu.memory_space<vmem>>, vector<18x18x4xbf16>
    tpu.vector_store %arg6[%c0, %c0_0, %c0_1], %0 {strides = array<i32>} : memref<18x18x4xbf16, #tpu.memory_space<vmem>>, vector<18x18x4xbf16>,
    %c0_2 = arith.constant 0 : index
    %c0_3 = arith.constant 0 : index
    %c0_4 = arith.constant 0 : index
    %c0_5 = arith.constant 0 : index
    %2 = vector.load %arg1[%c0_2, %c0_3, %c0_4, %c0_5] : memref<1x16x16x4xf32, #tpu.memory_space<vmem>>, vector<1x16x16x4xf32>
    %3 = vector.shape_cast %2 : vector<1x16x16x4xf32> to vector<16x16x4xf32>
    %4 = arith.truncf %3 : vector<16x16x4xf32> to vector<16x16x4xbf16>
    %c1 = arith.constant 1 : index
    %c1_6 = arith.constant 1 : index
    %c0_7 = arith.constant 0 : index
    %5 = vector.load %arg6[%c1, %c1_6, %c0_7] : memref<18x18x4xbf16, #tpu.memory_space<vmem>>, vector<16x16x4xbf16>
    tpu.vector_store %arg6[%c1, %c1_6, %c0_7], %4 {strides = array<i32>} : memref<18x18x4xbf16, #tpu.memory_space<vmem>>, vector<16x16x4xbf16>,
    %c0_8 = arith.constant 0 : index
    %c0_9 = arith.constant 0 : index
    %6 = vector.load %arg2[%c0_8, %c0_9] : memref<36x4xbf16, #tpu.memory_space<vmem>>, vector<36x4xbf16>
    %c0_10 = arith.constant 0 : index
    %c0_11 = arith.constant 0 : index
    %c0_12 = arith.constant 0 : index
    %7 = vector.load %arg6[%c0_10, %c0_11, %c0_12] : memref<18x18x4xbf16, #tpu.memory_space<vmem>>, vector<16x16x4xbf16>
    %c0_13 = arith.constant 0 : index
    %c1_14 = arith.constant 1 : index
    %c0_15 = arith.constant 0 : index
    %8 = vector.load %arg6[%c0_13, %c1_14, %c0_15] : memref<18x18x4xbf16, #tpu.memory_space<vmem>>, vector<16x16x4xbf16>
    %c0_16 = arith.constant 0 : index
    %c2 = arith.constant 2 : index
    %c0_17 = arith.constant 0 : index
    %9 = vector.load %arg6[%c0_16, %c2, %c0_17] : memref<18x18x4xbf16, #tpu.memory_space<vmem>>, vector<16x16x4xbf16>
    %c1_18 = arith.constant 1 : index
    %c0_19 = arith.constant 0 : index
    %c0_20 = arith.constant 0 : index
    %10 = vector.load %arg6[%c1_18, %c0_19, %c0_20] : memref<18x18x4xbf16, #tpu.memory_space<vmem>>, vector<16x16x4xbf16>
    %c1_21 = arith.constant 1 : index
    %c1_22 = arith.constant 1 : index
    %c0_23 = arith.constant 0 : index
    %11 = vector.load %arg6[%c1_21, %c1_22, %c0_23] : memref<18x18x4xbf16, #tpu.memory_space<vmem>>, vector<16x16x4xbf16>
    %c1_24 = arith.constant 1 : index
    %c2_25 = arith.constant 2 : index
    %c0_26 = arith.constant 0 : index
    %12 = vector.load %arg6[%c1_24, %c2_25, %c0_26] : memref<18x18x4xbf16, #tpu.memory_space<vmem>>, vector<16x16x4xbf16>
    %c2_27 = arith.constant 2 : index
    %c0_28 = arith.constant 0 : index
    %c0_29 = arith.constant 0 : index
    %13 = vector.load %arg6[%c2_27, %c0_28, %c0_29] : memref<18x18x4xbf16, #tpu.memory_space<vmem>>, vector<16x16x4xbf16>
    %c2_30 = arith.constant 2 : index
    %c1_31 = arith.constant 1 : index
    %c0_32 = arith.constant 0 : index
    %14 = vector.load %arg6[%c2_30, %c1_31, %c0_32] : memref<18x18x4xbf16, #tpu.memory_space<vmem>>, vector<16x16x4xbf16>
    %c2_33 = arith.constant 2 : index
    %c2_34 = arith.constant 2 : index
    %c0_35 = arith.constant 0 : index
    %15 = vector.load %arg6[%c2_33, %c2_34, %c0_35] : memref<18x18x4xbf16, #tpu.memory_space<vmem>>, vector<16x16x4xbf16>
    %16 = tpu.concatenate %7, %8, %9, %10, %11, %12, %13, %14, %15 in 2 : vector<16x16x4xbf16>, vector<16x16x4xbf16>, vector<16x16x4xbf16>, vector<16x16x4xbf16>, vector<16x16x4xbf16>, vector<16x16x4xbf16>, vector<16x16x4xbf16>, vector<16x16x4xbf16>, vector<16x16x4xbf16> -> vector<16x16x36xbf16>
    %17 = vector.shape_cast %16 : vector<16x16x36xbf16> to vector<256x36xbf16>
    %cst_36 = arith.constant dense<0.000000e+00> : vector<256x4xf32>
    %18 = tpu.matmul %17, %6, %cst_36 {dimension_numbers = #tpu.dot_dimension_numbers<[1], [0], [0], [1], [0, 0, 1, 1], [], []>} : vector<256x36xbf16>, vector<36x4xbf16>, vector<256x4xf32> -> vector<256x4xf32>
    %c0_37 = arith.constant 0 : index
    %c0_38 = arith.constant 0 : index
    %c0_39 = arith.constant 0 : index
    %19 = vector.load %arg3[%c0_37, %c0_38, %c0_39] : memref<1x256x4xf32, #tpu.memory_space<vmem>>, vector<1x256x4xf32>
    %20 = vector.shape_cast %19 : vector<1x256x4xf32> to vector<256x4xf32>
    %21 = vector.shape_cast %18 : vector<256x4xf32> to vector<1x256x4xf32>
    tpu.vector_store %arg3[%c0_37, %c0_38, %c0_39], %21 {strides = array<i32>} : memref<1x256x4xf32, #tpu.memory_space<vmem>>, vector<1x256x4xf32>,
    %cst_40 = arith.constant dense<0.000000e+00> : vector<4xf32>
    %22 = vector.multi_reduction <add>, %18, %cst_40 [0] : vector<256x4xf32> to vector<4xf32>
    %23 = vector.shape_cast %22 : vector<4xf32> to vector<1x4xf32>
    %c0_41 = arith.constant 0 : index
    %c0_42 = arith.constant 0 : index
    %c0_43 = arith.constant 0 : index
    %24 = vector.load %arg4[%c0_41, %c0_42, %c0_43] : memref<1x1x4xf32, #tpu.memory_space<vmem>>, vector<1x1x4xf32>
    %25 = vector.shape_cast %24 : vector<1x1x4xf32> to vector<1x4xf32>
    %26 = vector.shape_cast %23 : vector<1x4xf32> to vector<1x1x4xf32>
    tpu.vector_store %arg4[%c0_41, %c0_42, %c0_43], %26 {strides = array<i32>} : memref<1x1x4xf32, #tpu.memory_space<vmem>>, vector<1x1x4xf32>,
    %27 = arith.mulf %18, %18 : vector<256x4xf32>
    %cst_44 = arith.constant dense<0.000000e+00> : vector<4xf32>
    %28 = vector.multi_reduction <add>, %27, %cst_44 [0] : vector<256x4xf32> to vector<4xf32>
    %29 = vector.shape_cast %28 : vector<4xf32> to vector<1x4xf32>
    %c0_45 = arith.constant 0 : index
    %c0_46 = arith.constant 0 : index
    %c0_47 = arith.constant 0 : index
    %30 = vector.load %arg5[%c0_45, %c0_46, %c0_47] : memref<1x1x4xf32, #tpu.memory_space<vmem>>, vector<1x1x4xf32>
    %31 = vector.shape_cast %30 : vector<1x1x4xf32> to vector<1x4xf32>
    %32 = vector.shape_cast %29 : vector<1x4xf32> to vector<1x1x4xf32>
    tpu.vector_store %arg5[%c0_45, %c0_46, %c0_47], %32 {strides = array<i32>} : memref<1x1x4xf32, #tpu.memory_space<vmem>>, vector<1x1x4xf32>,
    return
  }
  func.func @transform_0(%arg0: i32) -> (i32, i32, i32, i32) {
    %c0_i32 = arith.constant 0 : i32
    %c0_i32_0 = arith.constant 0 : i32
    %c0_i32_1 = arith.constant 0 : i32
    %c0_i32_2 = arith.constant 0 : i32
    return %arg0, %c0_i32, %c0_i32_0, %c0_i32_1 : i32, i32, i32, i32
  }
  func.func @transform_1(%arg0: i32) -> (i32, i32) {
    %c0_i32 = arith.constant 0 : i32
    %c0_i32_0 = arith.constant 0 : i32
    %c0_i32_1 = arith.constant 0 : i32
    return %c0_i32, %c0_i32_0 : i32, i32
  }
  func.func @transform_2(%arg0: i32) -> (i32, i32, i32) {
    %c0_i32 = arith.constant 0 : i32
    %c0_i32_0 = arith.constant 0 : i32
    %c0_i32_1 = arith.constant 0 : i32
    return %arg0, %c0_i32, %c0_i32_0 : i32, i32, i32
  }
  func.func @transform_3(%arg0: i32) -> (i32, i32, i32) {
    %c0_i32 = arith.constant 0 : i32
    %c0_i32_0 = arith.constant 0 : i32
    %c0_i32_1 = arith.constant 0 : i32
    return %arg0, %c0_i32, %c0_i32_0 : i32, i32, i32
  }
  func.func @transform_4(%arg0: i32) -> (i32, i32, i32) {
    %c0_i32 = arith.constant 0 : i32
    %c0_i32_0 = arith.constant 0 : i32
    %c0_i32_1 = arith.constant 0 : i32
    return %arg0, %c0_i32, %c0_i32_0 : i32, i32, i32
  }
}

module attributes {stable_mosaic.version = 11 : i64} {
  func.func @_affine_add_relu_kernel(%arg0: i32, %arg1: memref<512x4xf32, #tpu.memory_space<vmem>>, %arg2: memref<512x4xf32, #tpu.memory_space<vmem>>, %arg3: memref<1x4xf32, #tpu.memory_space<vmem>>, %arg4: memref<1x4xf32, #tpu.memory_space<vmem>>, %arg5: memref<512x4xf32, #tpu.memory_space<vmem>>) attributes {dimension_semantics = [#tpu.dimension_semantics<parallel>], iteration_bounds = array<i64: 1>, scalar_prefetch = 0 : i64, scratch_operands = 0 : i64, tpu.core_type = #tpu.core_type<tc>, window_params = [{transform_indices = @transform_0, window_bounds = array<i64: 512, 4>}, {transform_indices = @transform_1, window_bounds = array<i64: 512, 4>}, {pipeline_mode = #tpu.pipeline_mode<synchronous>, transform_indices = @transform_2, window_bounds = array<i64: 1, 4>}, {pipeline_mode = #tpu.pipeline_mode<synchronous>, transform_indices = @transform_3, window_bounds = array<i64: 1, 4>}, {transform_indices = @transform_4, window_bounds = array<i64: 512, 4>}]} {
    %c0 = arith.constant 0 : index
    %c0_0 = arith.constant 0 : index
    %0 = vector.load %arg1[%c0, %c0_0] : memref<512x4xf32, #tpu.memory_space<vmem>>, vector<512x4xf32>
    %c0_1 = arith.constant 0 : index
    %c0_2 = arith.constant 0 : index
    %1 = vector.load %arg3[%c0_1, %c0_2] : memref<1x4xf32, #tpu.memory_space<vmem>>, vector<1x4xf32>
    %2 = vector.broadcast %1 : vector<1x4xf32> to vector<512x4xf32>
    %3 = arith.mulf %0, %2 : vector<512x4xf32>
    %c0_3 = arith.constant 0 : index
    %c0_4 = arith.constant 0 : index
    %4 = vector.load %arg4[%c0_3, %c0_4] : memref<1x4xf32, #tpu.memory_space<vmem>>, vector<1x4xf32>
    %5 = vector.broadcast %4 : vector<1x4xf32> to vector<512x4xf32>
    %6 = arith.addf %3, %5 : vector<512x4xf32>
    %c0_5 = arith.constant 0 : index
    %c0_6 = arith.constant 0 : index
    %7 = vector.load %arg2[%c0_5, %c0_6] : memref<512x4xf32, #tpu.memory_space<vmem>>, vector<512x4xf32>
    %8 = arith.addf %6, %7 : vector<512x4xf32>
    %cst = arith.constant 0.000000e+00 : f32
    %9 = vector.broadcast %cst : f32 to vector<512x4xf32>
    %10 = arith.maximumf %8, %9 : vector<512x4xf32>
    %c0_7 = arith.constant 0 : index
    %c0_8 = arith.constant 0 : index
    %11 = vector.load %arg5[%c0_7, %c0_8] : memref<512x4xf32, #tpu.memory_space<vmem>>, vector<512x4xf32>
    tpu.vector_store %arg5[%c0_7, %c0_8], %10 {strides = array<i32>} : memref<512x4xf32, #tpu.memory_space<vmem>>, vector<512x4xf32>,
    return
  }
  func.func @transform_0(%arg0: i32) -> (i32, i32) {
    %c0_i32 = arith.constant 0 : i32
    %c0_i32_0 = arith.constant 0 : i32
    return %arg0, %c0_i32 : i32, i32
  }
  func.func @transform_1(%arg0: i32) -> (i32, i32) {
    %c0_i32 = arith.constant 0 : i32
    %c0_i32_0 = arith.constant 0 : i32
    return %arg0, %c0_i32 : i32, i32
  }
  func.func @transform_2(%arg0: i32) -> (i32, i32) {
    %c0_i32 = arith.constant 0 : i32
    %c0_i32_0 = arith.constant 0 : i32
    %c0_i32_1 = arith.constant 0 : i32
    return %c0_i32, %c0_i32_0 : i32, i32
  }
  func.func @transform_3(%arg0: i32) -> (i32, i32) {
    %c0_i32 = arith.constant 0 : i32
    %c0_i32_0 = arith.constant 0 : i32
    %c0_i32_1 = arith.constant 0 : i32
    return %c0_i32, %c0_i32_0 : i32, i32
  }
  func.func @transform_4(%arg0: i32) -> (i32, i32) {
    %c0_i32 = arith.constant 0 : i32
    %c0_i32_0 = arith.constant 0 : i32
    return %arg0, %c0_i32 : i32, i32
  }
}

module attributes {stable_mosaic.version = 11 : i64} {
  func.func @kernel(%arg0: i32, %arg1: memref<1x256x4xf32, #tpu.memory_space<vmem>>, %arg2: memref<1x4xf32, #tpu.memory_space<vmem>>, %arg3: memref<1x4xf32, #tpu.memory_space<vmem>>, %arg4: memref<36x4xbf16, #tpu.memory_space<vmem>>, %arg5: memref<1x256x4xf32, #tpu.memory_space<vmem>>, %arg6: memref<1x1x4xf32, #tpu.memory_space<vmem>>, %arg7: memref<1x1x4xf32, #tpu.memory_space<vmem>>, %arg8: memref<18x18x4xbf16, #tpu.memory_space<vmem>>) attributes {dimension_semantics = [#tpu.dimension_semantics<parallel>], iteration_bounds = array<i64: 2>, scalar_prefetch = 0 : i64, scratch_operands = 1 : i64, tpu.core_type = #tpu.core_type<tc>, window_params = [{transform_indices = @transform_0, window_bounds = array<i64: 1, 256, 4>}, {pipeline_mode = #tpu.pipeline_mode<synchronous>, transform_indices = @transform_1, window_bounds = array<i64: 1, 4>}, {pipeline_mode = #tpu.pipeline_mode<synchronous>, transform_indices = @transform_2, window_bounds = array<i64: 1, 4>}, {pipeline_mode = #tpu.pipeline_mode<synchronous>, transform_indices = @transform_3, window_bounds = array<i64: 36, 4>}, {transform_indices = @transform_4, window_bounds = array<i64: 1, 256, 4>}, {transform_indices = @transform_5, window_bounds = array<i64: 1, 1, 4>}, {transform_indices = @transform_6, window_bounds = array<i64: 1, 1, 4>}]} {
    %c0 = arith.constant 0 : index
    %c0_0 = arith.constant 0 : index
    %c0_1 = arith.constant 0 : index
    %0 = vector.load %arg1[%c0, %c0_0, %c0_1] : memref<1x256x4xf32, #tpu.memory_space<vmem>>, vector<1x256x4xf32>
    %1 = vector.shape_cast %0 : vector<1x256x4xf32> to vector<256x4xf32>
    %c0_2 = arith.constant 0 : index
    %c0_3 = arith.constant 0 : index
    %2 = vector.load %arg2[%c0_2, %c0_3] : memref<1x4xf32, #tpu.memory_space<vmem>>, vector<1x4xf32>
    %3 = vector.broadcast %2 : vector<1x4xf32> to vector<256x4xf32>
    %4 = arith.mulf %1, %3 : vector<256x4xf32>
    %c0_4 = arith.constant 0 : index
    %c0_5 = arith.constant 0 : index
    %5 = vector.load %arg3[%c0_4, %c0_5] : memref<1x4xf32, #tpu.memory_space<vmem>>, vector<1x4xf32>
    %6 = vector.broadcast %5 : vector<1x4xf32> to vector<256x4xf32>
    %7 = arith.addf %4, %6 : vector<256x4xf32>
    %cst = arith.constant 0.000000e+00 : f32
    %8 = vector.broadcast %cst : f32 to vector<256x4xf32>
    %9 = arith.maximumf %7, %8 : vector<256x4xf32>
    %cst_6 = arith.constant 0.000000e+00 : bf16
    %10 = vector.broadcast %cst_6 : bf16 to vector<18x18x4xbf16>
    %c0_7 = arith.constant 0 : index
    %c0_8 = arith.constant 0 : index
    %c0_9 = arith.constant 0 : index
    %11 = vector.load %arg8[%c0_7, %c0_8, %c0_9] : memref<18x18x4xbf16, #tpu.memory_space<vmem>>, vector<18x18x4xbf16>
    tpu.vector_store %arg8[%c0_7, %c0_8, %c0_9], %10 {strides = array<i32>} : memref<18x18x4xbf16, #tpu.memory_space<vmem>>, vector<18x18x4xbf16>,
    %12 = arith.truncf %9 : vector<256x4xf32> to vector<256x4xbf16>
    %13 = vector.shape_cast %12 : vector<256x4xbf16> to vector<16x16x4xbf16>
    %c1 = arith.constant 1 : index
    %c1_10 = arith.constant 1 : index
    %c0_11 = arith.constant 0 : index
    %14 = vector.load %arg8[%c1, %c1_10, %c0_11] : memref<18x18x4xbf16, #tpu.memory_space<vmem>>, vector<16x16x4xbf16>
    tpu.vector_store %arg8[%c1, %c1_10, %c0_11], %13 {strides = array<i32>} : memref<18x18x4xbf16, #tpu.memory_space<vmem>>, vector<16x16x4xbf16>,
    %c0_12 = arith.constant 0 : index
    %c0_13 = arith.constant 0 : index
    %15 = vector.load %arg4[%c0_12, %c0_13] : memref<36x4xbf16, #tpu.memory_space<vmem>>, vector<36x4xbf16>
    %c0_14 = arith.constant 0 : index
    %c0_15 = arith.constant 0 : index
    %c0_16 = arith.constant 0 : index
    %16 = vector.load %arg8[%c0_14, %c0_15, %c0_16] : memref<18x18x4xbf16, #tpu.memory_space<vmem>>, vector<16x16x4xbf16>
    %c0_17 = arith.constant 0 : index
    %c1_18 = arith.constant 1 : index
    %c0_19 = arith.constant 0 : index
    %17 = vector.load %arg8[%c0_17, %c1_18, %c0_19] : memref<18x18x4xbf16, #tpu.memory_space<vmem>>, vector<16x16x4xbf16>
    %c0_20 = arith.constant 0 : index
    %c2 = arith.constant 2 : index
    %c0_21 = arith.constant 0 : index
    %18 = vector.load %arg8[%c0_20, %c2, %c0_21] : memref<18x18x4xbf16, #tpu.memory_space<vmem>>, vector<16x16x4xbf16>
    %c1_22 = arith.constant 1 : index
    %c0_23 = arith.constant 0 : index
    %c0_24 = arith.constant 0 : index
    %19 = vector.load %arg8[%c1_22, %c0_23, %c0_24] : memref<18x18x4xbf16, #tpu.memory_space<vmem>>, vector<16x16x4xbf16>
    %c1_25 = arith.constant 1 : index
    %c1_26 = arith.constant 1 : index
    %c0_27 = arith.constant 0 : index
    %20 = vector.load %arg8[%c1_25, %c1_26, %c0_27] : memref<18x18x4xbf16, #tpu.memory_space<vmem>>, vector<16x16x4xbf16>
    %c1_28 = arith.constant 1 : index
    %c2_29 = arith.constant 2 : index
    %c0_30 = arith.constant 0 : index
    %21 = vector.load %arg8[%c1_28, %c2_29, %c0_30] : memref<18x18x4xbf16, #tpu.memory_space<vmem>>, vector<16x16x4xbf16>
    %c2_31 = arith.constant 2 : index
    %c0_32 = arith.constant 0 : index
    %c0_33 = arith.constant 0 : index
    %22 = vector.load %arg8[%c2_31, %c0_32, %c0_33] : memref<18x18x4xbf16, #tpu.memory_space<vmem>>, vector<16x16x4xbf16>
    %c2_34 = arith.constant 2 : index
    %c1_35 = arith.constant 1 : index
    %c0_36 = arith.constant 0 : index
    %23 = vector.load %arg8[%c2_34, %c1_35, %c0_36] : memref<18x18x4xbf16, #tpu.memory_space<vmem>>, vector<16x16x4xbf16>
    %c2_37 = arith.constant 2 : index
    %c2_38 = arith.constant 2 : index
    %c0_39 = arith.constant 0 : index
    %24 = vector.load %arg8[%c2_37, %c2_38, %c0_39] : memref<18x18x4xbf16, #tpu.memory_space<vmem>>, vector<16x16x4xbf16>
    %25 = tpu.concatenate %16, %17, %18, %19, %20, %21, %22, %23, %24 in 2 : vector<16x16x4xbf16>, vector<16x16x4xbf16>, vector<16x16x4xbf16>, vector<16x16x4xbf16>, vector<16x16x4xbf16>, vector<16x16x4xbf16>, vector<16x16x4xbf16>, vector<16x16x4xbf16>, vector<16x16x4xbf16> -> vector<16x16x36xbf16>
    %26 = vector.shape_cast %25 : vector<16x16x36xbf16> to vector<256x36xbf16>
    %cst_40 = arith.constant dense<0.000000e+00> : vector<256x4xf32>
    %27 = tpu.matmul %26, %15, %cst_40 {dimension_numbers = #tpu.dot_dimension_numbers<[1], [0], [0], [1], [0, 0, 1, 1], [], []>} : vector<256x36xbf16>, vector<36x4xbf16>, vector<256x4xf32> -> vector<256x4xf32>
    %c0_41 = arith.constant 0 : index
    %c0_42 = arith.constant 0 : index
    %c0_43 = arith.constant 0 : index
    %28 = vector.load %arg5[%c0_41, %c0_42, %c0_43] : memref<1x256x4xf32, #tpu.memory_space<vmem>>, vector<1x256x4xf32>
    %29 = vector.shape_cast %28 : vector<1x256x4xf32> to vector<256x4xf32>
    %30 = vector.shape_cast %27 : vector<256x4xf32> to vector<1x256x4xf32>
    tpu.vector_store %arg5[%c0_41, %c0_42, %c0_43], %30 {strides = array<i32>} : memref<1x256x4xf32, #tpu.memory_space<vmem>>, vector<1x256x4xf32>,
    %cst_44 = arith.constant dense<0.000000e+00> : vector<4xf32>
    %31 = vector.multi_reduction <add>, %27, %cst_44 [0] : vector<256x4xf32> to vector<4xf32>
    %32 = vector.shape_cast %31 : vector<4xf32> to vector<1x4xf32>
    %c0_45 = arith.constant 0 : index
    %c0_46 = arith.constant 0 : index
    %c0_47 = arith.constant 0 : index
    %33 = vector.load %arg6[%c0_45, %c0_46, %c0_47] : memref<1x1x4xf32, #tpu.memory_space<vmem>>, vector<1x1x4xf32>
    %34 = vector.shape_cast %33 : vector<1x1x4xf32> to vector<1x4xf32>
    %35 = vector.shape_cast %32 : vector<1x4xf32> to vector<1x1x4xf32>
    tpu.vector_store %arg6[%c0_45, %c0_46, %c0_47], %35 {strides = array<i32>} : memref<1x1x4xf32, #tpu.memory_space<vmem>>, vector<1x1x4xf32>,
    %36 = arith.mulf %27, %27 : vector<256x4xf32>
    %cst_48 = arith.constant dense<0.000000e+00> : vector<4xf32>
    %37 = vector.multi_reduction <add>, %36, %cst_48 [0] : vector<256x4xf32> to vector<4xf32>
    %38 = vector.shape_cast %37 : vector<4xf32> to vector<1x4xf32>
    %c0_49 = arith.constant 0 : index
    %c0_50 = arith.constant 0 : index
    %c0_51 = arith.constant 0 : index
    %39 = vector.load %arg7[%c0_49, %c0_50, %c0_51] : memref<1x1x4xf32, #tpu.memory_space<vmem>>, vector<1x1x4xf32>
    %40 = vector.shape_cast %39 : vector<1x1x4xf32> to vector<1x4xf32>
    %41 = vector.shape_cast %38 : vector<1x4xf32> to vector<1x1x4xf32>
    tpu.vector_store %arg7[%c0_49, %c0_50, %c0_51], %41 {strides = array<i32>} : memref<1x1x4xf32, #tpu.memory_space<vmem>>, vector<1x1x4xf32>,
    return
  }
  func.func @transform_0(%arg0: i32) -> (i32, i32, i32) {
    %c0_i32 = arith.constant 0 : i32
    %c0_i32_0 = arith.constant 0 : i32
    %c0_i32_1 = arith.constant 0 : i32
    return %arg0, %c0_i32, %c0_i32_0 : i32, i32, i32
  }
  func.func @transform_1(%arg0: i32) -> (i32, i32) {
    %c0_i32 = arith.constant 0 : i32
    %c0_i32_0 = arith.constant 0 : i32
    %c0_i32_1 = arith.constant 0 : i32
    return %c0_i32, %c0_i32_0 : i32, i32
  }
  func.func @transform_2(%arg0: i32) -> (i32, i32) {
    %c0_i32 = arith.constant 0 : i32
    %c0_i32_0 = arith.constant 0 : i32
    %c0_i32_1 = arith.constant 0 : i32
    return %c0_i32, %c0_i32_0 : i32, i32
  }
  func.func @transform_3(%arg0: i32) -> (i32, i32) {
    %c0_i32 = arith.constant 0 : i32
    %c0_i32_0 = arith.constant 0 : i32
    %c0_i32_1 = arith.constant 0 : i32
    return %c0_i32, %c0_i32_0 : i32, i32
  }
  func.func @transform_4(%arg0: i32) -> (i32, i32, i32) {
    %c0_i32 = arith.constant 0 : i32
    %c0_i32_0 = arith.constant 0 : i32
    %c0_i32_1 = arith.constant 0 : i32
    return %arg0, %c0_i32, %c0_i32_0 : i32, i32, i32
  }
  func.func @transform_5(%arg0: i32) -> (i32, i32, i32) {
    %c0_i32 = arith.constant 0 : i32
    %c0_i32_0 = arith.constant 0 : i32
    %c0_i32_1 = arith.constant 0 : i32
    return %arg0, %c0_i32, %c0_i32_0 : i32, i32, i32
  }
  func.func @transform_6(%arg0: i32) -> (i32, i32, i32) {
    %c0_i32 = arith.constant 0 : i32
    %c0_i32_0 = arith.constant 0 : i32
    %c0_i32_1 = arith.constant 0 : i32
    return %arg0, %c0_i32, %c0_i32_0 : i32, i32, i32
  }
}

</mosaic_0001>

<llo_original>
// kernel: residual_forward.5
$region0: #{residual_forward.5}
  #allocation0 [shape = 'u32[]', space=smem, size = 0x4, offset = 0x4, fixed_abs, tag = 'smem constant byte address 0x4 - core index']
  #allocation1 [shape = 'u32[144,128]{1,0:T(1,128)}', space=vmem, size = 0x12000, scoped, tag = 'internal scratch']
  %s0 = inlined_call_operand.vmem [shape: f32[512,4], index: 0, kind: input, shape index: {}]
  %s1 = inlined_call_operand.vmem [shape: f32[512,4], index: 1, kind: input, shape index: {}]
  %s2 = inlined_call_operand.vmem [shape: f32[1,4], index: 2, kind: input, shape index: {}]
  %s3 = inlined_call_operand.vmem [shape: f32[1,4], index: 3, kind: input, shape index: {}]
  %s4 = inlined_call_operand.vmem [shape: f32[512,4], index: 4, kind: output, shape index: {}]
  %s5 = sld [smem:[#allocation0]]
  $region26: #{residual_forward.5} parent=0
    _
  %s7 = ssub.s32 1, %s5
  %s8 = scalar_select 0, %s7, %s5
  // Predicated region
  $region2: #{residual_forward.5} parent=0 // pred_check
    _
  $region3: #{residual_forward.5} parent=0 // pred_check_branch
    %10 = sbr.rel (0) target = $region5
  $region4: #{residual_forward.5} parent=0 // pred_region
    _
  $region5: #{residual_forward.5} parent=0 // pred_fallthru
    _
  // Predicated region
  $region6: #{residual_forward.5} parent=0 // pred_check
    _
  $region7: #{residual_forward.5} parent=0 // pred_check_branch
    %12 = sbr.rel (0) target = $region9
  $region8: #{residual_forward.5} parent=0 // pred_region
    _
  $region9: #{residual_forward.5} parent=0 // pred_fallthru
    _
  // Predicated region
  $region10: #{residual_forward.5} parent=0 // pred_check
    _
  $region11: #{residual_forward.5} parent=0 // pred_check_branch
    %14 = sbr.rel (0) target = $region13
  $region12: #{residual_forward.5} parent=0 // pred_region
    _
  $region13: #{residual_forward.5} parent=0 // pred_fallthru
    _
  // Predicated region
  $region14: #{residual_forward.5} parent=0 // pred_check
    _
  $region15: #{residual_forward.5} parent=0 // pred_check_branch
    %16 = sbr.rel (0) target = $region17
  $region16: #{residual_forward.5} parent=0 // pred_region
    _
  $region17: #{residual_forward.5} parent=0 // pred_fallthru
    _
  %v17 = vld [vmem:[%s0] sm:$0xff]
  %v18 = vld [vmem:[%s0 + $0x8] sm:$0xff]
  %v19 = vld [vmem:[%s0 + $0x10] sm:$0xff]
  %v20 = vld [vmem:[%s0 + $0x18] sm:$0xff]
  %v21 = vld [vmem:[%s0 + $0x20] sm:$0xff]
  %v22 = vld [vmem:[%s0 + $0x28] sm:$0xff]
  %v23 = vld [vmem:[%s0 + $0x30] sm:$0xff]
  %v24 = vld [vmem:[%s0 + $0x38] sm:$0xff]
  %v25 = vld [vmem:[%s0 + $0x40] sm:$0xff]
  %v26 = vld [vmem:[%s0 + $0x48] sm:$0xff]
  %v27 = vld [vmem:[%s0 + $0x50] sm:$0xff]
  %v28 = vld [vmem:[%s0 + $0x58] sm:$0xff]
  %v29 = vld [vmem:[%s0 + $0x60] sm:$0xff]
  %v30 = vld [vmem:[%s0 + $0x68] sm:$0xff]
  %v31 = vld [vmem:[%s0 + $0x70] sm:$0xff]
  %v32 = vld [vmem:[%s0 + $0x78] sm:$0xff]
  %v33 = vld [vmem:[%s0 + $0x80] sm:$0xff]
  %v34 = vld [vmem:[%s0 + $0x88] sm:$0xff]
  %v35 = vld [vmem:[%s0 + $0x90] sm:$0xff]
  %v36 = vld [vmem:[%s0 + $0x98] sm:$0xff]
  %v37 = vld [vmem:[%s0 + $0xa0] sm:$0xff]
  %v38 = vld [vmem:[%s0 + $0xa8] sm:$0xff]
  %v39 = vld [vmem:[%s0 + $0xb0] sm:$0xff]
  %v40 = vld [vmem:[%s0 + $0xb8] sm:$0xff]
  %v41 = vld [vmem:[%s0 + $0xc0] sm:$0xff]
  %v42 = vld [vmem:[%s0 + $0xc8] sm:$0xff]
  %v43 = vld [vmem:[%s0 + $0xd0] sm:$0xff]
  %v44 = vld [vmem:[%s0 + $0xd8] sm:$0xff]
  %v45 = vld [vmem:[%s0 + $0xe0] sm:$0xff]
  %v46 = vld [vmem:[%s0 + $0xe8] sm:$0xff]
  %v47 = vld [vmem:[%s0 + $0xf0] sm:$0xff]
  %v48 = vld [vmem:[%s0 + $0xf8] sm:$0xff]
  %v49 = vld [vmem:[%s0 + $0x100] sm:$0xff]
  %v50 = vld [vmem:[%s0 + $0x108] sm:$0xff]
  %v51 = vld [vmem:[%s0 + $0x110] sm:$0xff]
  %v52 = vld [vmem:[%s0 + $0x118] sm:$0xff]
  %v53 = vld [vmem:[%s0 + $0x120] sm:$0xff]
  %v54 = vld [vmem:[%s0 + $0x128] sm:$0xff]
  %v55 = vld [vmem:[%s0 + $0x130] sm:$0xff]
  %v56 = vld [vmem:[%s0 + $0x138] sm:$0xff]
  %v57 = vld [vmem:[%s0 + $0x140] sm:$0xff]
  %v58 = vld [vmem:[%s0 + $0x148] sm:$0xff]
  %v59 = vld [vmem:[%s0 + $0x150] sm:$0xff]
  %v60 = vld [vmem:[%s0 + $0x158] sm:$0xff]
  %v61 = vld [vmem:[%s0 + $0x160] sm:$0xff]
  %v62 = vld [vmem:[%s0 + $0x168] sm:$0xff]
  %v63 = vld [vmem:[%s0 + $0x170] sm:$0xff]
  %v64 = vld [vmem:[%s0 + $0x178] sm:$0xff]
  %v65 = vld [vmem:[%s0 + $0x180] sm:$0xff]
  %v66 = vld [vmem:[%s0 + $0x188] sm:$0xff]
  %v67 = vld [vmem:[%s0 + $0x190] sm:$0xff]
  %v68 = vld [vmem:[%s0 + $0x198] sm:$0xff]
  %v69 = vld [vmem:[%s0 + $0x1a0] sm:$0xff]
  %v70 = vld [vmem:[%s0 + $0x1a8] sm:$0xff]
  %v71 = vld [vmem:[%s0 + $0x1b0] sm:$0xff]
  %v72 = vld [vmem:[%s0 + $0x1b8] sm:$0xff]
  %v73 = vld [vmem:[%s0 + $0x1c0] sm:$0xff]
  %v74 = vld [vmem:[%s0 + $0x1c8] sm:$0xff]
  %v75 = vld [vmem:[%s0 + $0x1d0] sm:$0xff]
  %v76 = vld [vmem:[%s0 + $0x1d8] sm:$0xff]
  %v77 = vld [vmem:[%s0 + $0x1e0] sm:$0xff]
  %v78 = vld [vmem:[%s0 + $0x1e8] sm:$0xff]
  %v79 = vld [vmem:[%s0 + $0x1f0] sm:$0xff]
  %v80 = vld [vmem:[%s0 + $0x1f8] sm:$0xff]
  %v81 = vld [vmem:[%s2] sm:$0x1]
  %v83 = vlaneseq
  %v84 = vshrl.u32 %v83, 7
  %v85 = vsub.s32 0, %v84
  %v86 = vrot.slane %v81, %v85
  %v88 = vmul.f32 %v17, %v86
  %v89 = vmul.f32 %v18, %v86
  %v90 = vmul.f32 %v19, %v86
  %v91 = vmul.f32 %v20, %v86
  %v92 = vmul.f32 %v21, %v86
  %v93 = vmul.f32 %v22, %v86
  %v94 = vmul.f32 %v23, %v86
  %v95 = vmul.f32 %v24, %v86
  %v96 = vmul.f32 %v25, %v86
  %v97 = vmul.f32 %v26, %v86
  %v98 = vmul.f32 %v27, %v86
  %v99 = vmul.f32 %v28, %v86
  %v100 = vmul.f32 %v29, %v86
  %v101 = vmul.f32 %v30, %v86
  %v102 = vmul.f32 %v31, %v86
  %v103 = vmul.f32 %v32, %v86
  %v104 = vmul.f32 %v33, %v86
  %v105 = vmul.f32 %v34, %v86
  %v106 = vmul.f32 %v35, %v86
  %v107 = vmul.f32 %v36, %v86
  %v108 = vmul.f32 %v37, %v86
  %v109 = vmul.f32 %v38, %v86
  %v110 = vmul.f32 %v39, %v86
  %v111 = vmul.f32 %v40, %v86
  %v112 = vmul.f32 %v41, %v86
  %v113 = vmul.f32 %v42, %v86
  %v114 = vmul.f32 %v43, %v86
  %v115 = vmul.f32 %v44, %v86
  %v116 = vmul.f32 %v45, %v86
  %v117 = vmul.f32 %v46, %v86
  %v118 = vmul.f32 %v47, %v86
  %v119 = vmul.f32 %v48, %v86
  %v120 = vmul.f32 %v49, %v86
  %v121 = vmul.f32 %v50, %v86
  %v122 = vmul.f32 %v51, %v86
  %v123 = vmul.f32 %v52, %v86
  %v124 = vmul.f32 %v53, %v86
  %v125 = vmul.f32 %v54, %v86
  %v126 = vmul.f32 %v55, %v86
  %v127 = vmul.f32 %v56, %v86
  %v128 = vmul.f32 %v57, %v86
  %v129 = vmul.f32 %v58, %v86
  %v130 = vmul.f32 %v59, %v86
  %v131 = vmul.f32 %v60, %v86
  %v132 = vmul.f32 %v61, %v86
  %v133 = vmul.f32 %v62, %v86
  %v134 = vmul.f32 %v63, %v86
  %v135 = vmul.f32 %v64, %v86
  %v136 = vmul.f32 %v65, %v86
  %v137 = vmul.f32 %v66, %v86
  %v138 = vmul.f32 %v67, %v86
  %v139 = vmul.f32 %v68, %v86
  %v140 = vmul.f32 %v69, %v86
  %v141 = vmul.f32 %v70, %v86
  %v142 = vmul.f32 %v71, %v86
  %v143 = vmul.f32 %v72, %v86
  %v144 = vmul.f32 %v73, %v86
  %v145 = vmul.f32 %v74, %v86
  %v146 = vmul.f32 %v75, %v86
  %v147 = vmul.f32 %v76, %v86
  %v148 = vmul.f32 %v77, %v86
  %v149 = vmul.f32 %v78, %v86
  %v150 = vmul.f32 %v79, %v86
  %v151 = vmul.f32 %v80, %v86
  %v152 = vld [vmem:[%s3] sm:$0x1]
  %v154 = vlaneseq
  %v155 = vshrl.u32 %v154, 7
  %v156 = vsub.s32 0, %v155
  %v157 = vrot.slane %v152, %v156
  %v159 = vadd.f32 %v88, %v157
  %v160 = vadd.f32 %v89, %v157
  %v161 = vadd.f32 %v90, %v157
  %v162 = vadd.f32 %v91, %v157
  %v163 = vadd.f32 %v92, %v157
  %v164 = vadd.f32 %v93, %v157
  %v165 = vadd.f32 %v94, %v157
  %v166 = vadd.f32 %v95, %v157
  %v167 = vadd.f32 %v96, %v157
  %v168 = vadd.f32 %v97, %v157
  %v169 = vadd.f32 %v98, %v157
  %v170 = vadd.f32 %v99, %v157
  %v171 = vadd.f32 %v100, %v157
  %v172 = vadd.f32 %v101, %v157
  %v173 = vadd.f32 %v102, %v157
  %v174 = vadd.f32 %v103, %v157
  %v175 = vadd.f32 %v104, %v157
  %v176 = vadd.f32 %v105, %v157
  %v177 = vadd.f32 %v106, %v157
  %v178 = vadd.f32 %v107, %v157
  %v179 = vadd.f32 %v108, %v157
  %v180 = vadd.f32 %v109, %v157
  %v181 = vadd.f32 %v110, %v157
  %v182 = vadd.f32 %v111, %v157
  %v183 = vadd.f32 %v112, %v157
  %v184 = vadd.f32 %v113, %v157
  %v185 = vadd.f32 %v114, %v157
  %v186 = vadd.f32 %v115, %v157
  %v187 = vadd.f32 %v116, %v157
  %v188 = vadd.f32 %v117, %v157
  %v189 = vadd.f32 %v118, %v157
  %v190 = vadd.f32 %v119, %v157
  %v191 = vadd.f32 %v120, %v157
  %v192 = vadd.f32 %v121, %v157
  %v193 = vadd.f32 %v122, %v157
  %v194 = vadd.f32 %v123, %v157
  %v195 = vadd.f32 %v124, %v157
  %v196 = vadd.f32 %v125, %v157
  %v197 = vadd.f32 %v126, %v157
  %v198 = vadd.f32 %v127, %v157
  %v199 = vadd.f32 %v128, %v157
  %v200 = vadd.f32 %v129, %v157
  %v201 = vadd.f32 %v130, %v157
  %v202 = vadd.f32 %v131, %v157
  %v203 = vadd.f32 %v132, %v157
  %v204 = vadd.f32 %v133, %v157
  %v205 = vadd.f32 %v134, %v157
  %v206 = vadd.f32 %v135, %v157
  %v207 = vadd.f32 %v136, %v157
  %v208 = vadd.f32 %v137, %v157
  %v209 = vadd.f32 %v138, %v157
  %v210 = vadd.f32 %v139, %v157
  %v211 = vadd.f32 %v140, %v157
  %v212 = vadd.f32 %v141, %v157
  %v213 = vadd.f32 %v142, %v157
  %v214 = vadd.f32 %v143, %v157
  %v215 = vadd.f32 %v144, %v157
  %v216 = vadd.f32 %v145, %v157
  %v217 = vadd.f32 %v146, %v157
  %v218 = vadd.f32 %v147, %v157
  %v219 = vadd.f32 %v148, %v157
  %v220 = vadd.f32 %v149, %v157
  %v221 = vadd.f32 %v150, %v157
  %v222 = vadd.f32 %v151, %v157
  %v223 = vld [vmem:[%s1] sm:$0xff]
  %v224 = vld [vmem:[%s1 + $0x8] sm:$0xff]
  %v225 = vld [vmem:[%s1 + $0x10] sm:$0xff]
  %v226 = vld [vmem:[%s1 + $0x18] sm:$0xff]
  %v227 = vld [vmem:[%s1 + $0x20] sm:$0xff]
  %v228 = vld [vmem:[%s1 + $0x28] sm:$0xff]
  %v229 = vld [vmem:[%s1 + $0x30] sm:$0xff]
  %v230 = vld [vmem:[%s1 + $0x38] sm:$0xff]
  %v231 = vld [vmem:[%s1 + $0x40] sm:$0xff]
  %v232 = vld [vmem:[%s1 + $0x48] sm:$0xff]
  %v233 = vld [vmem:[%s1 + $0x50] sm:$0xff]
  %v234 = vld [vmem:[%s1 + $0x58] sm:$0xff]
  %v235 = vld [vmem:[%s1 + $0x60] sm:$0xff]
  %v236 = vld [vmem:[%s1 + $0x68] sm:$0xff]
  %v237 = vld [vmem:[%s1 + $0x70] sm:$0xff]
  %v238 = vld [vmem:[%s1 + $0x78] sm:$0xff]
  %v239 = vld [vmem:[%s1 + $0x80] sm:$0xff]
  %v240 = vld [vmem:[%s1 + $0x88] sm:$0xff]
  %v241 = vld [vmem:[%s1 + $0x90] sm:$0xff]
  %v242 = vld [vmem:[%s1 + $0x98] sm:$0xff]
  %v243 = vld [vmem:[%s1 + $0xa0] sm:$0xff]
  %v244 = vld [vmem:[%s1 + $0xa8] sm:$0xff]
  %v245 = vld [vmem:[%s1 + $0xb0] sm:$0xff]
  %v246 = vld [vmem:[%s1 + $0xb8] sm:$0xff]
  %v247 = vld [vmem:[%s1 + $0xc0] sm:$0xff]
  %v248 = vld [vmem:[%s1 + $0xc8] sm:$0xff]
  %v249 = vld [vmem:[%s1 + $0xd0] sm:$0xff]
  %v250 = vld [vmem:[%s1 + $0xd8] sm:$0xff]
  %v251 = vld [vmem:[%s1 + $0xe0] sm:$0xff]
  %v252 = vld [vmem:[%s1 + $0xe8] sm:$0xff]
  %v253 = vld [vmem:[%s1 + $0xf0] sm:$0xff]
  %v254 = vld [vmem:[%s1 + $0xf8] sm:$0xff]
  %v255 = vld [vmem:[%s1 + $0x100] sm:$0xff]
  %v256 = vld [vmem:[%s1 + $0x108] sm:$0xff]
  %v257 = vld [vmem:[%s1 + $0x110] sm:$0xff]
  %v258 = vld [vmem:[%s1 + $0x118] sm:$0xff]
  %v259 = vld [vmem:[%s1 + $0x120] sm:$0xff]
  %v260 = vld [vmem:[%s1 + $0x128] sm:$0xff]
  %v261 = vld [vmem:[%s1 + $0x130] sm:$0xff]
  %v262 = vld [vmem:[%s1 + $0x138] sm:$0xff]
  %v263 = vld [vmem:[%s1 + $0x140] sm:$0xff]
  %v264 = vld [vmem:[%s1 + $0x148] sm:$0xff]
  %v265 = vld [vmem:[%s1 + $0x150] sm:$0xff]
  %v266 = vld [vmem:[%s1 + $0x158] sm:$0xff]
  %v267 = vld [vmem:[%s1 + $0x160] sm:$0xff]
  %v268 = vld [vmem:[%s1 + $0x168] sm:$0xff]
  %v269 = vld [vmem:[%s1 + $0x170] sm:$0xff]
  %v270 = vld [vmem:[%s1 + $0x178] sm:$0xff]
  %v271 = vld [vmem:[%s1 + $0x180] sm:$0xff]
  %v272 = vld [vmem:[%s1 + $0x188] sm:$0xff]
  %v273 = vld [vmem:[%s1 + $0x190] sm:$0xff]
  %v274 = vld [vmem:[%s1 + $0x198] sm:$0xff]
  %v275 = vld [vmem:[%s1 + $0x1a0] sm:$0xff]
  %v276 = vld [vmem:[%s1 + $0x1a8] sm:$0xff]
  %v277 = vld [vmem:[%s1 + $0x1b0] sm:$0xff]
  %v278 = vld [vmem:[%s1 + $0x1b8] sm:$0xff]
  %v279 = vld [vmem:[%s1 + $0x1c0] sm:$0xff]
  %v280 = vld [vmem:[%s1 + $0x1c8] sm:$0xff]
  %v281 = vld [vmem:[%s1 + $0x1d0] sm:$0xff]
  %v282 = vld [vmem:[%s1 + $0x1d8] sm:$0xff]
  %v283 = vld [vmem:[%s1 + $0x1e0] sm:$0xff]
  %v284 = vld [vmem:[%s1 + $0x1e8] sm:$0xff]
  %v285 = vld [vmem:[%s1 + $0x1f0] sm:$0xff]
  %v286 = vld [vmem:[%s1 + $0x1f8] sm:$0xff]
  %v287 = vadd.f32 %v159, %v223
  %v288 = vadd.f32 %v160, %v224
  %v289 = vadd.f32 %v161, %v225
  %v290 = vadd.f32 %v162, %v226
  %v291 = vadd.f32 %v163, %v227
  %v292 = vadd.f32 %v164, %v228
  %v293 = vadd.f32 %v165, %v229
  %v294 = vadd.f32 %v166, %v230
  %v295 = vadd.f32 %v167, %v231
  %v296 = vadd.f32 %v168, %v232
  %v297 = vadd.f32 %v169, %v233
  %v298 = vadd.f32 %v170, %v234
  %v299 = vadd.f32 %v171, %v235
  %v300 = vadd.f32 %v172, %v236
  %v301 = vadd.f32 %v173, %v237
  %v302 = vadd.f32 %v174, %v238
  %v303 = vadd.f32 %v175, %v239
  %v304 = vadd.f32 %v176, %v240
  %v305 = vadd.f32 %v177, %v241
  %v306 = vadd.f32 %v178, %v242
  %v307 = vadd.f32 %v179, %v243
  %v308 = vadd.f32 %v180, %v244
  %v309 = vadd.f32 %v181, %v245
  %v310 = vadd.f32 %v182, %v246
  %v311 = vadd.f32 %v183, %v247
  %v312 = vadd.f32 %v184, %v248
  %v313 = vadd.f32 %v185, %v249
  %v314 = vadd.f32 %v186, %v250
  %v315 = vadd.f32 %v187, %v251
  %v316 = vadd.f32 %v188, %v252
  %v317 = vadd.f32 %v189, %v253
  %v318 = vadd.f32 %v190, %v254
  %v319 = vadd.f32 %v191, %v255
  %v320 = vadd.f32 %v192, %v256
  %v321 = vadd.f32 %v193, %v257
  %v322 = vadd.f32 %v194, %v258
  %v323 = vadd.f32 %v195, %v259
  %v324 = vadd.f32 %v196, %v260
  %v325 = vadd.f32 %v197, %v261
  %v326 = vadd.f32 %v198, %v262
  %v327 = vadd.f32 %v199, %v263
  %v328 = vadd.f32 %v200, %v264
  %v329 = vadd.f32 %v201, %v265
  %v330 = vadd.f32 %v202, %v266
  %v331 = vadd.f32 %v203, %v267
  %v332 = vadd.f32 %v204, %v268
  %v333 = vadd.f32 %v205, %v269
  %v334 = vadd.f32 %v206, %v270
  %v335 = vadd.f32 %v207, %v271
  %v336 = vadd.f32 %v208, %v272
  %v337 = vadd.f32 %v209, %v273
  %v338 = vadd.f32 %v210, %v274
  %v339 = vadd.f32 %v211, %v275
  %v340 = vadd.f32 %v212, %v276
  %v341 = vadd.f32 %v213, %v277
  %v342 = vadd.f32 %v214, %v278
  %v343 = vadd.f32 %v215, %v279
  %v344 = vadd.f32 %v216, %v280
  %v345 = vadd.f32 %v217, %v281
  %v346 = vadd.f32 %v218, %v282
  %v347 = vadd.f32 %v219, %v283
  %v348 = vadd.f32 %v220, %v284
  %v349 = vadd.f32 %v221, %v285
  %v350 = vadd.f32 %v222, %v286
  %v351 = vmax.f32 %v287, 0.0
  %v352 = vmax.f32 %v288, 0.0
  %v353 = vmax.f32 %v289, 0.0
  %v354 = vmax.f32 %v290, 0.0
  %v355 = vmax.f32 %v291, 0.0
  %v356 = vmax.f32 %v292, 0.0
  %v357 = vmax.f32 %v293, 0.0
  %v358 = vmax.f32 %v294, 0.0
  %v359 = vmax.f32 %v295, 0.0
  %v360 = vmax.f32 %v296, 0.0
  %v361 = vmax.f32 %v297, 0.0
  %v362 = vmax.f32 %v298, 0.0
  %v363 = vmax.f32 %v299, 0.0
  %v364 = vmax.f32 %v300, 0.0
  %v365 = vmax.f32 %v301, 0.0
  %v366 = vmax.f32 %v302, 0.0
  %v367 = vmax.f32 %v303, 0.0
  %v368 = vmax.f32 %v304, 0.0
  %v369 = vmax.f32 %v305, 0.0
  %v370 = vmax.f32 %v306, 0.0
  %v371 = vmax.f32 %v307, 0.0
  %v372 = vmax.f32 %v308, 0.0
  %v373 = vmax.f32 %v309, 0.0
  %v374 = vmax.f32 %v310, 0.0
  %v375 = vmax.f32 %v311, 0.0
  %v376 = vmax.f32 %v312, 0.0
  %v377 = vmax.f32 %v313, 0.0
  %v378 = vmax.f32 %v314, 0.0
  %v379 = vmax.f32 %v315, 0.0
  %v380 = vmax.f32 %v316, 0.0
  %v381 = vmax.f32 %v317, 0.0
  %v382 = vmax.f32 %v318, 0.0
  %v383 = vmax.f32 %v319, 0.0
  %v384 = vmax.f32 %v320, 0.0
  %v385 = vmax.f32 %v321, 0.0
  %v386 = vmax.f32 %v322, 0.0
  %v387 = vmax.f32 %v323, 0.0
  %v388 = vmax.f32 %v324, 0.0
  %v389 = vmax.f32 %v325, 0.0
  %v390 = vmax.f32 %v326, 0.0
  %v391 = vmax.f32 %v327, 0.0
  %v392 = vmax.f32 %v328, 0.0
  %v393 = vmax.f32 %v329, 0.0
  %v394 = vmax.f32 %v330, 0.0
  %v395 = vmax.f32 %v331, 0.0
  %v396 = vmax.f32 %v332, 0.0
  %v397 = vmax.f32 %v333, 0.0
  %v398 = vmax.f32 %v334, 0.0
  %v399 = vmax.f32 %v335, 0.0
  %v400 = vmax.f32 %v336, 0.0
  %v401 = vmax.f32 %v337, 0.0
  %v402 = vmax.f32 %v338, 0.0
  %v403 = vmax.f32 %v339, 0.0
  %v404 = vmax.f32 %v340, 0.0
  %v405 = vmax.f32 %v341, 0.0
  %v406 = vmax.f32 %v342, 0.0
  %v407 = vmax.f32 %v343, 0.0
  %v408 = vmax.f32 %v344, 0.0
  %v409 = vmax.f32 %v345, 0.0
  %v410 = vmax.f32 %v346, 0.0
  %v411 = vmax.f32 %v347, 0.0
  %v412 = vmax.f32 %v348, 0.0
  %v413 = vmax.f32 %v349, 0.0
  %v414 = vmax.f32 %v350, 0.0
  %vm415 = vcmask 31744
  %416 = vst.msk [vmem:[%s4] sm:$0xff] %vm415, %v351
  %417 = vst.msk [vmem:[%s4 + $0x8] sm:$0xff] %vm415, %v352
  %418 = vst.msk [vmem:[%s4 + $0x10] sm:$0xff] %vm415, %v353
  %419 = vst.msk [vmem:[%s4 + $0x18] sm:$0xff] %vm415, %v354
  %420 = vst.msk [vmem:[%s4 + $0x20] sm:$0xff] %vm415, %v355
  %421 = vst.msk [vmem:[%s4 + $0x28] sm:$0xff] %vm415, %v356
  %422 = vst.msk [vmem:[%s4 + $0x30] sm:$0xff] %vm415, %v357
  %423 = vst.msk [vmem:[%s4 + $0x38] sm:$0xff] %vm415, %v358
  %424 = vst.msk [vmem:[%s4 + $0x40] sm:$0xff] %vm415, %v359
  %425 = vst.msk [vmem:[%s4 + $0x48] sm:$0xff] %vm415, %v360
  %426 = vst.msk [vmem:[%s4 + $0x50] sm:$0xff] %vm415, %v361
  %427 = vst.msk [vmem:[%s4 + $0x58] sm:$0xff] %vm415, %v362
  %428 = vst.msk [vmem:[%s4 + $0x60] sm:$0xff] %vm415, %v363
  %429 = vst.msk [vmem:[%s4 + $0x68] sm:$0xff] %vm415, %v364
  %430 = vst.msk [vmem:[%s4 + $0x70] sm:$0xff] %vm415, %v365
  %431 = vst.msk [vmem:[%s4 + $0x78] sm:$0xff] %vm415, %v366
  %432 = vst.msk [vmem:[%s4 + $0x80] sm:$0xff] %vm415, %v367
  %433 = vst.msk [vmem:[%s4 + $0x88] sm:$0xff] %vm415, %v368
  %434 = vst.msk [vmem:[%s4 + $0x90] sm:$0xff] %vm415, %v369
  %435 = vst.msk [vmem:[%s4 + $0x98] sm:$0xff] %vm415, %v370
  %436 = vst.msk [vmem:[%s4 + $0xa0] sm:$0xff] %vm415, %v371
  %437 = vst.msk [vmem:[%s4 + $0xa8] sm:$0xff] %vm415, %v372
  %438 = vst.msk [vmem:[%s4 + $0xb0] sm:$0xff] %vm415, %v373
  %439 = vst.msk [vmem:[%s4 + $0xb8] sm:$0xff] %vm415, %v374
  %440 = vst.msk [vmem:[%s4 + $0xc0] sm:$0xff] %vm415, %v375
  %441 = vst.msk [vmem:[%s4 + $0xc8] sm:$0xff] %vm415, %v376
  %442 = vst.msk [vmem:[%s4 + $0xd0] sm:$0xff] %vm415, %v377
  %443 = vst.msk [vmem:[%s4 + $0xd8] sm:$0xff] %vm415, %v378
  %444 = vst.msk [vmem:[%s4 + $0xe0] sm:$0xff] %vm415, %v379
  %445 = vst.msk [vmem:[%s4 + $0xe8] sm:$0xff] %vm415, %v380
  %446 = vst.msk [vmem:[%s4 + $0xf0] sm:$0xff] %vm415, %v381
  %447 = vst.msk [vmem:[%s4 + $0xf8] sm:$0xff] %vm415, %v382
  %448 = vst.msk [vmem:[%s4 + $0x100] sm:$0xff] %vm415, %v383
  %449 = vst.msk [vmem:[%s4 + $0x108] sm:$0xff] %vm415, %v384
  %450 = vst.msk [vmem:[%s4 + $0x110] sm:$0xff] %vm415, %v385
  %451 = vst.msk [vmem:[%s4 + $0x118] sm:$0xff] %vm415, %v386
  %452 = vst.msk [vmem:[%s4 + $0x120] sm:$0xff] %vm415, %v387
  %453 = vst.msk [vmem:[%s4 + $0x128] sm:$0xff] %vm415, %v388
  %454 = vst.msk [vmem:[%s4 + $0x130] sm:$0xff] %vm415, %v389
  %455 = vst.msk [vmem:[%s4 + $0x138] sm:$0xff] %vm415, %v390
  %456 = vst.msk [vmem:[%s4 + $0x140] sm:$0xff] %vm415, %v391
  %457 = vst.msk [vmem:[%s4 + $0x148] sm:$0xff] %vm415, %v392
  %458 = vst.msk [vmem:[%s4 + $0x150] sm:$0xff] %vm415, %v393
  %459 = vst.msk [vmem:[%s4 + $0x158] sm:$0xff] %vm415, %v394
  %460 = vst.msk [vmem:[%s4 + $0x160] sm:$0xff] %vm415, %v395
  %461 = vst.msk [vmem:[%s4 + $0x168] sm:$0xff] %vm415, %v396
  %462 = vst.msk [vmem:[%s4 + $0x170] sm:$0xff] %vm415, %v397
  %463 = vst.msk [vmem:[%s4 + $0x178] sm:$0xff] %vm415, %v398
  %464 = vst.msk [vmem:[%s4 + $0x180] sm:$0xff] %vm415, %v399
  %465 = vst.msk [vmem:[%s4 + $0x188] sm:$0xff] %vm415, %v400
  %466 = vst.msk [vmem:[%s4 + $0x190] sm:$0xff] %vm415, %v401
  %467 = vst.msk [vmem:[%s4 + $0x198] sm:$0xff] %vm415, %v402
  %468 = vst.msk [vmem:[%s4 + $0x1a0] sm:$0xff] %vm415, %v403
  %469 = vst.msk [vmem:[%s4 + $0x1a8] sm:$0xff] %vm415, %v404
  %470 = vst.msk [vmem:[%s4 + $0x1b0] sm:$0xff] %vm415, %v405
  %471 = vst.msk [vmem:[%s4 + $0x1b8] sm:$0xff] %vm415, %v406
  %472 = vst.msk [vmem:[%s4 + $0x1c0] sm:$0xff] %vm415, %v407
  %473 = vst.msk [vmem:[%s4 + $0x1c8] sm:$0xff] %vm415, %v408
  %474 = vst.msk [vmem:[%s4 + $0x1d0] sm:$0xff] %vm415, %v409
  %475 = vst.msk [vmem:[%s4 + $0x1d8] sm:$0xff] %vm415, %v410
  %476 = vst.msk [vmem:[%s4 + $0x1e0] sm:$0xff] %vm415, %v411
  %477 = vst.msk [vmem:[%s4 + $0x1e8] sm:$0xff] %vm415, %v412
  %478 = vst.msk [vmem:[%s4 + $0x1f0] sm:$0xff] %vm415, %v413
  %479 = vst.msk [vmem:[%s4 + $0x1f8] sm:$0xff] %vm415, %v414
  // Predicated region
  $region18: #{residual_forward.5} parent=0 // pred_check
    _
  $region19: #{residual_forward.5} parent=0 // pred_check_branch
    %481 = sbr.rel (0) target = $region21
  $region20: #{residual_forward.5} parent=0 // pred_region
    _
  $region21: #{residual_forward.5} parent=0 // pred_fallthru
    _
  // Predicated region
  $region22: #{residual_forward.5} parent=0 // pred_check
    _
  $region23: #{residual_forward.5} parent=0 // pred_check_branch
    %483 = sbr.rel (0) target = $region25
  $region24: #{residual_forward.5} parent=0 // pred_region
    _
  $region25: #{residual_forward.5} parent=0 // pred_fallthru
    _

// kernel: residual_forward.3
$region0: #{residual_forward.3}
  #allocation0 [shape = 'u32[]', space=smem, size = 0x4, offset = 0x4, fixed_abs, tag = 'smem constant byte address 0x4 - core index']
  #allocation1 [shape = 'u32[144,128]{1,0:T(1,128)}', space=vmem, size = 0x12000, scoped, tag = 'internal scratch']
  #allocation2 [shape = 'bf16[18,18,4]{2,1,0:T(8,128)(2,1)}', space=vmem, size = 0x1b000, scoped, tag = 'scratch operand']
  %s0 = inlined_call_operand.vmem [shape: f32[2,16,16,4], index: 0, kind: input, shape index: {}]
  %s1 = inlined_call_operand.vmem [shape: bf16[36,4], index: 1, kind: input, shape index: {}]
  %s2 = inlined_call_operand.vmem [shape: f32[2,256,4], index: 2, kind: output, shape index: {0}]
  %s3 = inlined_call_operand.vmem [shape: f32[2,1,4], index: 3, kind: output, shape index: {1}]
  %s4 = inlined_call_operand.vmem [shape: f32[2,1,4], index: 4, kind: output, shape index: {2}]
  %5 = xla_tuple %s2, %s3, %s4
  %s6 = sld [smem:[#allocation0]]
  $region57: #{residual_forward.3} parent=0
    _
  %s8 = ssub.s32 1, %s6
  %s9 = scalar_select 0, %s8, %s6
  loop: start=0, step=1, limit=4
  $region2: #{residual_forward.3} parent=0 // loop_pre_header
    _
  $region3: #{residual_forward.3} parent=0 // loop_header
    %s11 = sphi 0, %s15
    %p12 = scmp.ge.s32.totalorder %s11, 4
    %s21 = sphi 0, %s23
    %s24 = sphi 0, %s21
    %s25 = sphi 0, %s24
    %s41 = sphi 0, %s25
    %s45 = sphi 0, %s45
    %s47 = sphi 0, %s45
    %s48 = sphi 0, %s47
    %s62 = sphi 0, %s48
    %s68 = sphi 0, %s70
    %s71 = sphi 0, %s68
    %s72 = sphi 0, %s71
    %s88 = sphi 0, %s72
    %s94 = sphi 0, %s96
    %s97 = sphi 0, %s94
    %s98 = sphi 0, %s97
    %s114 = sphi 0, %s98
    %s120 = sphi 0, %s122
    %s123 = sphi 0, %s120
    %s124 = sphi 0, %s123
    %s140 = sphi 0, %s124
  $region4: #{residual_forward.3} parent=0 // loop_header_branch
    %14 = sbr.rel (%p12) target = $region8
  $region5: #{residual_forward.3} parent=0 // loop_body
    %s16 = ssub.s32 %s11, 1
    %s17 = ssub.s32 %s11, 2
    %s18 = sadd.s32 %s11, 1
    %s19 = ssub.s32 %s11, %s18
    %p20 = scmp.eq.s32.totalorder %s19, 0
    %s22 = sadd.s32 %s21, 1
    %s23 = scalar_select %p20, %s21, %s22
    %p26 = pneg %p20
    %p27 = scmp.eq.s32.totalorder %s11, 1
    %p28 = por %p26, %p27
    %p29 = scmp.ne.s32.totalorder %s21, %s24
    %p30 = scmp.eq.s32.totalorder %s11, 0
    %p31 = por %p29, %p30
    %p32 = scmp.ne.s32.totalorder %s21, %s24
    %p33 = scmp.eq.s32.totalorder %s16, 1
    %p34 = por %p32, %p33
    %p35 = scmp.ne.s32.totalorder %s24, %s25
    %p36 = scmp.eq.s32.totalorder %s16, 0
    %p37 = por %p35, %p36
    %p38 = scmp.ne.s32.totalorder %s24, %s25
    %p39 = scmp.eq.s32.totalorder %s17, 1
    %p40 = por %p38, %p39
    %p42 = scmp.ne.s32.totalorder %s25, %s41
    %p43 = scmp.eq.s32.totalorder %s17, 0
    %p44 = por %p42, %p43
    %s46 = sadd.s32 %s45, 1
    %p49 = scmp.eq.s32.totalorder %s11, 1
    %p50 = scmp.ne.s32.totalorder %s45, %s47
    %p51 = scmp.eq.s32.totalorder %s11, 0
    %p52 = por %p50, %p51
    %p53 = scmp.ne.s32.totalorder %s45, %s47
    %p54 = scmp.eq.s32.totalorder %s16, 1
    %p55 = por %p53, %p54
    %p56 = scmp.ne.s32.totalorder %s47, %s48
    %p57 = scmp.eq.s32.totalorder %s16, 0
    %p58 = por %p56, %p57
    %p59 = scmp.ne.s32.totalorder %s47, %s48
    %p60 = scmp.eq.s32.totalorder %s17, 1
    %p61 = por %p59, %p60
    %p63 = scmp.ne.s32.totalorder %s48, %s62
    %p64 = scmp.eq.s32.totalorder %s17, 0
    %p65 = por %p63, %p64
    %s66 = ssub.s32 %s11, %s18
    %p67 = scmp.eq.s32.totalorder %s66, 0
    %s69 = sadd.s32 %s68, 1
    %s70 = scalar_select %p67, %s68, %s69
    %p73 = pneg %p67
    %p74 = scmp.eq.s32.totalorder %s11, 1
    %p75 = por %p73, %p74
    %p76 = scmp.ne.s32.totalorder %s68, %s71
    %p77 = scmp.eq.s32.totalorder %s11, 0
    %p78 = por %p76, %p77
    %p79 = scmp.ne.s32.totalorder %s68, %s71
    %p80 = scmp.eq.s32.totalorder %s16, 1
    %p81 = por %p79, %p80
    %p82 = scmp.ne.s32.totalorder %s71, %s72
    %p83 = scmp.eq.s32.totalorder %s16, 0
    %p84 = por %p82, %p83
    %p85 = scmp.ne.s32.totalorder %s71, %s72
    %p86 = scmp.eq.s32.totalorder %s17, 1
    %p87 = por %p85, %p86
    %p89 = scmp.ne.s32.totalorder %s72, %s88
    %p90 = scmp.eq.s32.totalorder %s17, 0
    %p91 = por %p89, %p90
    %s92 = ssub.s32 %s11, %s18
    %p93 = scmp.eq.s32.totalorder %s92, 0
    %s95 = sadd.s32 %s94, 1
    %s96 = scalar_select %p93, %s94, %s95
    %p99 = pneg %p93
    %p100 = scmp.eq.s32.totalorder %s11, 1
    %p101 = por %p99, %p100
    %p102 = scmp.ne.s32.totalorder %s94, %s97
    %p103 = scmp.eq.s32.totalorder %s11, 0
    %p104 = por %p102, %p103
    %p105 = scmp.ne.s32.totalorder %s94, %s97
    %p106 = scmp.eq.s32.totalorder %s16, 1
    %p107 = por %p105, %p106
    %p108 = scmp.ne.s32.totalorder %s97, %s98
    %p109 = scmp.eq.s32.totalorder %s16, 0
    %p110 = por %p108, %p109
    %p111 = scmp.ne.s32.totalorder %s97, %s98
    %p112 = scmp.eq.s32.totalorder %s17, 1
    %p113 = por %p111, %p112
    %p115 = scmp.ne.s32.totalorder %s98, %s114
    %p116 = scmp.eq.s32.totalorder %s17, 0
    %p117 = por %p115, %p116
    %s118 = ssub.s32 %s11, %s18
    %p119 = scmp.eq.s32.totalorder %s118, 0
    %s121 = sadd.s32 %s120, 1
    %s122 = scalar_select %p119, %s120, %s121
    %p125 = pneg %p119
    %p126 = scmp.eq.s32.totalorder %s11, 1
    %p127 = por %p125, %p126
    %p128 = scmp.ne.s32.totalorder %s120, %s123
    %p129 = scmp.eq.s32.totalorder %s11, 0
    %p130 = por %p128, %p129
    %p131 = scmp.ne.s32.totalorder %s120, %s123
    %p132 = scmp.eq.s32.totalorder %s16, 1
    %p133 = por %p131, %p132
    %p134 = scmp.ne.s32.totalorder %s123, %s124
    %p135 = scmp.eq.s32.totalorder %s16, 0
    %p136 = por %p134, %p135
    %p137 = scmp.ne.s32.totalorder %s123, %s124
    %p138 = scmp.eq.s32.totalorder %s17, 1
    %p139 = por %p137, %p138
    %p141 = scmp.ne.s32.totalorder %s124, %s140
    %p142 = scmp.eq.s32.totalorder %s17, 0
    %p143 = por %p141, %p142
    %p144 = scmp.le.s32.totalorder 1, %s11
    %p145 = scmp.lt.s32.totalorder %s11, 3
    %p146 = pnand %p144, %p145
    %p147 = pneg %p146
    // Predicated region
    $region9: #{residual_forward.3} parent=5 // pred_check
      _
    $region10: #{residual_forward.3} parent=5 // pred_check_branch
      %149 = sbr.rel (%p146) target = $region12
    $region11: #{residual_forward.3} parent=5 // pred_region
      %s150 = ssub.s32 %s11, 1
      // Predicated region
      $region13: #{residual_forward.3} parent=11 // pred_check
        %p151 = pneg %p58
      $region14: #{residual_forward.3} parent=11 // pred_check_branch
        %153 = sbr.rel (%p151) target = $region16
      $region15: #{residual_forward.3} parent=11 // pred_region
        _
      $region16: #{residual_forward.3} parent=11 // pred_fallthru
        _
    $region12: #{residual_forward.3} parent=5 // pred_fallthru
      _
    %p154 = scmp.lt.s32.totalorder %s11, 2
    // Predicated region
    $region17: #{residual_forward.3} parent=5 // pred_check
      %p155 = pneg %p154
    $region18: #{residual_forward.3} parent=5 // pred_check_branch
      %157 = sbr.rel (%p155) target = $region20
    $region19: #{residual_forward.3} parent=5 // pred_region
      // Predicated region
      $region21: #{residual_forward.3} parent=19 // pred_check
        %p158 = pneg %p31
      $region22: #{residual_forward.3} parent=19 // pred_check_branch
        %160 = sbr.rel (%p158) target = $region24
      $region23: #{residual_forward.3} parent=19 // pred_region
        %p161 = scmp.lt.s32.totalorder %s11, 1
        %s162 = scalar_select %p161, %s11, 1
        %s163 = smul.addr %s162, 32
        %s164 = smul.addr %s163, 8
        %s165 = scalar_lea.vmem %s0, %s164
      $region24: #{residual_forward.3} parent=19 // pred_fallthru
        _
    $region20: #{residual_forward.3} parent=5 // pred_fallthru
      _
    %p166 = scmp.le.s32.totalorder 1, %s11
    %p167 = scmp.lt.s32.totalorder %s11, 3
    %p168 = pnand %p166, %p167
    %p169 = pneg %p168
    // Predicated region
    $region25: #{residual_forward.3} parent=5 // pred_check
      _
    $region26: #{residual_forward.3} parent=5 // pred_check_branch
      %171 = sbr.rel (%p168) target = $region28
    $region27: #{residual_forward.3} parent=5 // pred_region
      %s172 = ssub.s32 %s11, 1
      %p173 = scmp.lt.s32.totalorder %s16, 1
      %s174 = scalar_select %p173, %s16, 1
      %s175 = smul.addr %s174, 32
      %s176 = smul.addr %s175, 8
      %s177 = scalar_lea.vmem %s0, %s176
      %p178 = pneg %p37
      %p179 = pneg %p34
      %p180 = pneg %p58
      %p181 = pneg %p55
      %p182 = pneg %p84
      %p183 = pneg %p81
      %p184 = scmp.lt.s32.totalorder %s16, 1
      %s185 = scalar_select %p184, %s16, 1
      %s186 = smul.addr %s185, 32
      %s187 = smul.addr %s186, 8
      %s188 = scalar_lea.vmem %s2, %s187
      %p189 = pneg %p110
      %p190 = pneg %p107
      %p191 = scmp.lt.s32.totalorder %s16, 1
      %s192 = scalar_select %p191, %s16, 1
      %s193 = scalar_lea.vmem %s3, %s192
      %p194 = pneg %p136
      %p195 = pneg %p133
      %p196 = scmp.lt.s32.totalorder %s16, 1
      %s197 = scalar_select %p196, %s16, 1
      %s198 = scalar_lea.vmem %s4, %s197
      %p199 = scmp.lt.s32.totalorder %s16, 1
      %s200 = scalar_select %p199, %s16, 1
      %s201 = smul.addr %s200, 32
      %s202 = smul.addr %s201, 8
      %s203 = scalar_lea.vmem %s0, %s202
      %p204 = scmp.lt.s32.totalorder %s16, 1
      %s205 = scalar_select %p204, %s16, 1
      %s206 = smul.addr %s205, 32
      %s207 = smul.addr %s206, 8
      %s208 = scalar_lea.vmem %s2, %s207
      %p209 = scmp.lt.s32.totalorder %s16, 1
      %s210 = scalar_select %p209, %s16, 1
      %s211 = scalar_lea.vmem %s3, %s210
      %p212 = scmp.lt.s32.totalorder %s16, 1
      %s213 = scalar_select %p212, %s16, 1
      %s214 = scalar_lea.vmem %s4, %s213
      %vm216 = vcmask 27648
      %217 = vst.msk [vmem:[#allocation2] sm:$0xf] %vm216, 0
      %218 = vst.msk [vmem:[#allocation2 + $0x4] sm:$0xf] %vm216, 0
      %vm219 = vcmask 24576
      %220 = vst.msk [vmem:[#allocation2 + $0x8] sm:$0x1] %vm219, 0
      %221 = vst.msk [vmem:[#allocation2 + $0xc] sm:$0xf] %vm216, 0
      %222 = vst.msk [vmem:[#allocation2 + $0x10] sm:$0xf] %vm216, 0
      %223 = vst.msk [vmem:[#allocation2 + $0x14] sm:$0x1] %vm219, 0
      %224 = vst.msk [vmem:[#allocation2 + $0x18] sm:$0xf] %vm216, 0
      %225 = vst.msk [vmem:[#allocation2 + $0x1c] sm:$0xf] %vm216, 0
      %226 = vst.msk [vmem:[#allocation2 + $0x20] sm:$0x1] %vm219, 0
      %227 = vst.msk [vmem:[#allocation2 + $0x24] sm:$0xf] %vm216, 0
      %228 = vst.msk [vmem:[#allocation2 + $0x28] sm:$0xf] %vm216, 0
      %229 = vst.msk [vmem:[#allocation2 + $0x2c] sm:$0x1] %vm219, 0
      %230 = vst.msk [vmem:[#allocation2 + $0x30] sm:$0xf] %vm216, 0
      %231 = vst.msk [vmem:[#allocation2 + $0x34] sm:$0xf] %vm216, 0
      %232 = vst.msk [vmem:[#allocation2 + $0x38] sm:$0x1] %vm219, 0
      %233 = vst.msk [vmem:[#allocation2 + $0x3c] sm:$0xf] %vm216, 0
      %234 = vst.msk [vmem:[#allocation2 + $0x40] sm:$0xf] %vm216, 0
      %235 = vst.msk [vmem:[#allocation2 + $0x44] sm:$0x1] %vm219, 0
      %236 = vst.msk [vmem:[#allocation2 + $0x48] sm:$0xf] %vm216, 0
      %237 = vst.msk [vmem:[#allocation2 + $0x4c] sm:$0xf] %vm216, 0
      %238 = vst.msk [vmem:[#allocation2 + $0x50] sm:$0x1] %vm219, 0
      %239 = vst.msk [vmem:[#allocation2 + $0x54] sm:$0xf] %vm216, 0
      %240 = vst.msk [vmem:[#allocation2 + $0x58] sm:$0xf] %vm216, 0
      %241 = vst.msk [vmem:[#allocation2 + $0x5c] sm:$0x1] %vm219, 0
      %242 = vst.msk [vmem:[#allocation2 + $0x60] sm:$0xf] %vm216, 0
      %243 = vst.msk [vmem:[#allocation2 + $0x64] sm:$0xf] %vm216, 0
      %244 = vst.msk [vmem:[#allocation2 + $0x68] sm:$0x1] %vm219, 0
      %245 = vst.msk [vmem:[#allocation2 + $0x6c] sm:$0xf] %vm216, 0
      %246 = vst.msk [vmem:[#allocation2 + $0x70] sm:$0xf] %vm216, 0
      %247 = vst.msk [vmem:[#allocation2 + $0x74] sm:$0x1] %vm219, 0
      %248 = vst.msk [vmem:[#allocation2 + $0x78] sm:$0xf] %vm216, 0
      %249 = vst.msk [vmem:[#allocation2 + $0x7c] sm:$0xf] %vm216, 0
      %250 = vst.msk [vmem:[#allocation2 + $0x80] sm:$0x1] %vm219, 0
      %251 = vst.msk [vmem:[#allocation2 + $0x84] sm:$0xf] %vm216, 0
      %252 = vst.msk [vmem:[#allocation2 + $0x88] sm:$0xf] %vm216, 0
      %253 = vst.msk [vmem:[#allocation2 + $0x8c] sm:$0x1] %vm219, 0
      %254 = vst.msk [vmem:[#allocation2 + $0x90] sm:$0xf] %vm216, 0
      %255 = vst.msk [vmem:[#allocation2 + $0x94] sm:$0xf] %vm216, 0
      %256 = vst.msk [vmem:[#allocation2 + $0x98] sm:$0x1] %vm219, 0
      %257 = vst.msk [vmem:[#allocation2 + $0x9c] sm:$0xf] %vm216, 0
      %258 = vst.msk [vmem:[#allocation2 + $0xa0] sm:$0xf] %vm216, 0
      %259 = vst.msk [vmem:[#allocation2 + $0xa4] sm:$0x1] %vm219, 0
      %260 = vst.msk [vmem:[#allocation2 + $0xa8] sm:$0xf] %vm216, 0
      %261 = vst.msk [vmem:[#allocation2 + $0xac] sm:$0xf] %vm216, 0
      %262 = vst.msk [vmem:[#allocation2 + $0xb0] sm:$0x1] %vm219, 0
      %263 = vst.msk [vmem:[#allocation2 + $0xb4] sm:$0xf] %vm216, 0
      %264 = vst.msk [vmem:[#allocation2 + $0xb8] sm:$0xf] %vm216, 0
      %265 = vst.msk [vmem:[#allocation2 + $0xbc] sm:$0x1] %vm219, 0
      %266 = vst.msk [vmem:[#allocation2 + $0xc0] sm:$0xf] %vm216, 0
      %267 = vst.msk [vmem:[#allocation2 + $0xc4] sm:$0xf] %vm216, 0
      %268 = vst.msk [vmem:[#allocation2 + $0xc8] sm:$0x1] %vm219, 0
      %269 = vst.msk [vmem:[#allocation2 + $0xcc] sm:$0xf] %vm216, 0
      %270 = vst.msk [vmem:[#allocation2 + $0xd0] sm:$0xf] %vm216, 0
      %271 = vst.msk [vmem:[#allocation2 + $0xd4] sm:$0x1] %vm219, 0
      %v272 = vld [vmem:[%s203] sm:$0xff]
      %v273 = vld [vmem:[%s203 + $0x8] sm:$0xff]
      %v274 = vld [vmem:[%s203 + $0x10] sm:$0xff]
      %v275 = vld [vmem:[%s203 + $0x18] sm:$0xff]
      %v276 = vld [vmem:[%s203 + $0x20] sm:$0xff]
      %v277 = vld [vmem:[%s203 + $0x28] sm:$0xff]
      %v278 = vld [vmem:[%s203 + $0x30] sm:$0xff]
      %v279 = vld [vmem:[%s203 + $0x38] sm:$0xff]
      %v280 = vld [vmem:[%s203 + $0x40] sm:$0xff]
      %v281 = vld [vmem:[%s203 + $0x48] sm:$0xff]
      %v282 = vld [vmem:[%s203 + $0x50] sm:$0xff]
      %v283 = vld [vmem:[%s203 + $0x58] sm:$0xff]
      %v284 = vld [vmem:[%s203 + $0x60] sm:$0xff]
      %v285 = vld [vmem:[%s203 + $0x68] sm:$0xff]
      %v286 = vld [vmem:[%s203 + $0x70] sm:$0xff]
      %v287 = vld [vmem:[%s203 + $0x78] sm:$0xff]
      %v288 = vld [vmem:[%s203 + $0x80] sm:$0xff]
      %v289 = vld [vmem:[%s203 + $0x88] sm:$0xff]
      %v290 = vld [vmem:[%s203 + $0x90] sm:$0xff]
      %v291 = vld [vmem:[%s203 + $0x98] sm:$0xff]
      %v292 = vld [vmem:[%s203 + $0xa0] sm:$0xff]
      %v293 = vld [vmem:[%s203 + $0xa8] sm:$0xff]
      %v294 = vld [vmem:[%s203 + $0xb0] sm:$0xff]
      %v295 = vld [vmem:[%s203 + $0xb8] sm:$0xff]
      %v296 = vld [vmem:[%s203 + $0xc0] sm:$0xff]
      %v297 = vld [vmem:[%s203 + $0xc8] sm:$0xff]
      %v298 = vld [vmem:[%s203 + $0xd0] sm:$0xff]
      %v299 = vld [vmem:[%s203 + $0xd8] sm:$0xff]
      %v300 = vld [vmem:[%s203 + $0xe0] sm:$0xff]
      %v301 = vld [vmem:[%s203 + $0xe8] sm:$0xff]
      %v302 = vld [vmem:[%s203 + $0xf0] sm:$0xff]
      %v303 = vld [vmem:[%s203 + $0xf8] sm:$0xff]
      %v304 = vpack.c.bf16 %v273, %v272
      %v305 = vpack.c.bf16 %v275, %v274
      %v306 = vpack.c.bf16 %v277, %v276
      %v307 = vpack.c.bf16 %v279, %v278
      %v308 = vpack.c.bf16 %v281, %v280
      %v309 = vpack.c.bf16 %v283, %v282
      %v310 = vpack.c.bf16 %v285, %v284
      %v311 = vpack.c.bf16 %v287, %v286
      %v312 = vpack.c.bf16 %v289, %v288
      %v313 = vpack.c.bf16 %v291, %v290
      %v314 = vpack.c.bf16 %v293, %v292
      %v315 = vpack.c.bf16 %v295, %v294
      %v316 = vpack.c.bf16 %v297, %v296
      %v317 = vpack.c.bf16 %v299, %v298
      %v318 = vpack.c.bf16 %v301, %v300
      %v319 = vpack.c.bf16 %v303, %v302
      %v336 = vunpack.c.l.b16 %v304
      %v337 = vunpack.c.h.b16 %v304
      %v338 = vunpack.c.l.b16 %v305
      %v339 = vunpack.c.h.b16 %v305
      %v340 = vunpack.c.l.b16 %v306
      %v341 = vunpack.c.h.b16 %v306
      %v342 = vunpack.c.l.b16 %v307
      %v343 = vunpack.c.h.b16 %v307
      %v344 = vunpack.c.l.b16 %v308
      %v345 = vunpack.c.h.b16 %v308
      %v346 = vunpack.c.l.b16 %v309
      %v347 = vunpack.c.h.b16 %v309
      %v348 = vunpack.c.l.b16 %v310
      %v349 = vunpack.c.h.b16 %v310
      %v350 = vunpack.c.l.b16 %v311
      %v351 = vunpack.c.h.b16 %v311
      %v352 = vunpack.c.l.b16 %v312
      %v353 = vunpack.c.h.b16 %v312
      %v354 = vunpack.c.l.b16 %v313
      %v355 = vunpack.c.h.b16 %v313
      %v356 = vunpack.c.l.b16 %v314
      %v357 = vunpack.c.h.b16 %v314
      %v358 = vunpack.c.l.b16 %v315
      %v359 = vunpack.c.h.b16 %v315
      %v360 = vunpack.c.l.b16 %v316
      %v361 = vunpack.c.h.b16 %v316
      %v362 = vunpack.c.l.b16 %v317
      %v363 = vunpack.c.h.b16 %v317
      %v364 = vunpack.c.l.b16 %v318
      %v365 = vunpack.c.h.b16 %v318
      %v366 = vunpack.c.l.b16 %v319
      %v367 = vunpack.c.h.b16 %v319
      %v368 = vpack.c.b16 %v336, %v336
      %v369 = vpack.c.b16 %v337, %v337
      %v370 = vpack.c.b16 %v338, %v338
      %v371 = vpack.c.b16 %v339, %v339
      %v372 = vpack.c.b16 %v340, %v340
      %v373 = vpack.c.b16 %v341, %v341
      %v374 = vpack.c.b16 %v342, %v342
      %v375 = vpack.c.b16 %v343, %v343
      %v376 = vpack.c.b16 %v344, %v344
      %v377 = vpack.c.b16 %v345, %v345
      %v378 = vpack.c.b16 %v346, %v346
      %v379 = vpack.c.b16 %v347, %v347
      %v380 = vpack.c.b16 %v348, %v348
      %v381 = vpack.c.b16 %v349, %v349
      %v382 = vpack.c.b16 %v350, %v350
      %v383 = vpack.c.b16 %v351, %v351
      %v384 = vpack.c.b16 %v352, %v352
      %v385 = vpack.c.b16 %v353, %v353
      %v386 = vpack.c.b16 %v354, %v354
      %v387 = vpack.c.b16 %v355, %v355
      %v388 = vpack.c.b16 %v356, %v356
      %v389 = vpack.c.b16 %v357, %v357
      %v390 = vpack.c.b16 %v358, %v358
      %v391 = vpack.c.b16 %v359, %v359
      %v392 = vpack.c.b16 %v360, %v360
      %v393 = vpack.c.b16 %v361, %v361
      %v394 = vpack.c.b16 %v362, %v362
      %v395 = vpack.c.b16 %v363, %v363
      %v396 = vpack.c.b16 %v364, %v364
      %v397 = vpack.c.b16 %v365, %v365
      %v398 = vpack.c.b16 %v366, %v366
      %v399 = vpack.c.b16 %v367, %v367
      %vm400 = vsmask.f32 256
      %vm401 = vsmask.f32 4368
      %vm402 = vmor %vm400, %vm401
      %v404 = vshrl.u32 %v368, 16
      %v406 = vrot.slane %v404, 7
      %v407 = vshll.u32 %v368, 16
      %v409 = vor.u32 %v406, %v407
      %v410 = vrot.slane %v406, 4
      %v412 = vshrl.u32 %v369, 16
      %v414 = vrot.slane %v412, 7
      %v415 = vshll.u32 %v369, 16
      %v417 = vor.u32 %v414, %v415
      %v418 = vsel %vm402, %v410, %v417
      %v419 = vrot.slane %v414, 4
      %v421 = vshrl.u32 %v370, 16
      %v423 = vrot.slane %v421, 7
      %v424 = vshll.u32 %v370, 16
      %v426 = vor.u32 %v423, %v424
      %v427 = vrot.slane %v423, 4
      %v429 = vshrl.u32 %v371, 16
      %v431 = vrot.slane %v429, 7
      %v432 = vshll.u32 %v371, 16
      %v434 = vor.u32 %v431, %v432
      %v435 = vsel %vm402, %v427, %v434
      %v436 = vrot.slane %v431, 4
      %v438 = vshrl.u32 %v372, 16
      %v440 = vrot.slane %v438, 7
      %v441 = vshll.u32 %v372, 16
      %v443 = vor.u32 %v440, %v441
      %v444 = vrot.slane %v440, 4
      %v446 = vshrl.u32 %v373, 16
      %v448 = vrot.slane %v446, 7
      %v449 = vshll.u32 %v373, 16
      %v451 = vor.u32 %v448, %v449
      %v452 = vsel %vm402, %v444, %v451
      %v453 = vrot.slane %v448, 4
      %v455 = vshrl.u32 %v374, 16
      %v457 = vrot.slane %v455, 7
      %v458 = vshll.u32 %v374, 16
      %v460 = vor.u32 %v457, %v458
      %v461 = vrot.slane %v457, 4
      %v463 = vshrl.u32 %v375, 16
      %v465 = vrot.slane %v463, 7
      %v466 = vshll.u32 %v375, 16
      %v468 = vor.u32 %v465, %v466
      %v469 = vsel %vm402, %v461, %v468
      %v470 = vrot.slane %v465, 4
      %v472 = vshrl.u32 %v376, 16
      %v474 = vrot.slane %v472, 7
      %v475 = vshll.u32 %v376, 16
      %v477 = vor.u32 %v474, %v475
      %v478 = vrot.slane %v474, 4
      %v480 = vshrl.u32 %v377, 16
      %v482 = vrot.slane %v480, 7
      %v483 = vshll.u32 %v377, 16
      %v485 = vor.u32 %v482, %v483
      %v486 = vsel %vm402, %v478, %v485
      %v487 = vrot.slane %v482, 4
      %v489 = vshrl.u32 %v378, 16
      %v491 = vrot.slane %v489, 7
      %v492 = vshll.u32 %v378, 16
      %v494 = vor.u32 %v491, %v492
      %v495 = vrot.slane %v491, 4
      %v497 = vshrl.u32 %v379, 16
      %v499 = vrot.slane %v497, 7
      %v500 = vshll.u32 %v379, 16
      %v502 = vor.u32 %v499, %v500
      %v503 = vsel %vm402, %v495, %v502
      %v504 = vrot.slane %v499, 4
      %v506 = vshrl.u32 %v380, 16
      %v508 = vrot.slane %v506, 7
      %v509 = vshll.u32 %v380, 16
      %v511 = vor.u32 %v508, %v509
      %v512 = vrot.slane %v508, 4
      %v514 = vshrl.u32 %v381, 16
      %v516 = vrot.slane %v514, 7
      %v517 = vshll.u32 %v381, 16
      %v519 = vor.u32 %v516, %v517
      %v520 = vsel %vm402, %v512, %v519
      %v521 = vrot.slane %v516, 4
      %v523 = vshrl.u32 %v382, 16
      %v525 = vrot.slane %v523, 7
      %v526 = vshll.u32 %v382, 16
      %v528 = vor.u32 %v525, %v526
      %v529 = vrot.slane %v525, 4
      %v531 = vshrl.u32 %v383, 16
      %v533 = vrot.slane %v531, 7
      %v534 = vshll.u32 %v383, 16
      %v536 = vor.u32 %v533, %v534
      %v537 = vsel %vm402, %v529, %v536
      %v538 = vrot.slane %v533, 4
      %v540 = vshrl.u32 %v384, 16
      %v542 = vrot.slane %v540, 7
      %v543 = vshll.u32 %v384, 16
      %v545 = vor.u32 %v542, %v543
      %v546 = vrot.slane %v542, 4
      %v548 = vshrl.u32 %v385, 16
      %v550 = vrot.slane %v548, 7
      %v551 = vshll.u32 %v385, 16
      %v553 = vor.u32 %v550, %v551
      %v554 = vsel %vm402, %v546, %v553
      %v555 = vrot.slane %v550, 4
      %v557 = vshrl.u32 %v386, 16
      %v559 = vrot.slane %v557, 7
      %v560 = vshll.u32 %v386, 16
      %v562 = vor.u32 %v559, %v560
      %v563 = vrot.slane %v559, 4
      %v565 = vshrl.u32 %v387, 16
      %v567 = vrot.slane %v565, 7
      %v568 = vshll.u32 %v387, 16
      %v570 = vor.u32 %v567, %v568
      %v571 = vsel %vm402, %v563, %v570
      %v572 = vrot.slane %v567, 4
      %v574 = vshrl.u32 %v388, 16
      %v576 = vrot.slane %v574, 7
      %v577 = vshll.u32 %v388, 16
      %v579 = vor.u32 %v576, %v577
      %v580 = vrot.slane %v576, 4
      %v582 = vshrl.u32 %v389, 16
      %v584 = vrot.slane %v582, 7
      %v585 = vshll.u32 %v389, 16
      %v587 = vor.u32 %v584, %v585
      %v588 = vsel %vm402, %v580, %v587
      %v589 = vrot.slane %v584, 4
      %v591 = vshrl.u32 %v390, 16
      %v593 = vrot.slane %v591, 7
      %v594 = vshll.u32 %v390, 16
      %v596 = vor.u32 %v593, %v594
      %v597 = vrot.slane %v593, 4
      %v599 = vshrl.u32 %v391, 16
      %v601 = vrot.slane %v599, 7
      %v602 = vshll.u32 %v391, 16
      %v604 = vor.u32 %v601, %v602
      %v605 = vsel %vm402, %v597, %v604
      %v606 = vrot.slane %v601, 4
      %v608 = vshrl.u32 %v392, 16
      %v610 = vrot.slane %v608, 7
      %v611 = vshll.u32 %v392, 16
      %v613 = vor.u32 %v610, %v611
      %v614 = vrot.slane %v610, 4
      %v616 = vshrl.u32 %v393, 16
      %v618 = vrot.slane %v616, 7
      %v619 = vshll.u32 %v393, 16
      %v621 = vor.u32 %v618, %v619
      %v622 = vsel %vm402, %v614, %v621
      %v623 = vrot.slane %v618, 4
      %v625 = vshrl.u32 %v394, 16
      %v627 = vrot.slane %v625, 7
      %v628 = vshll.u32 %v394, 16
      %v630 = vor.u32 %v627, %v628
      %v631 = vrot.slane %v627, 4
      %v633 = vshrl.u32 %v395, 16
      %v635 = vrot.slane %v633, 7
      %v636 = vshll.u32 %v395, 16
      %v638 = vor.u32 %v635, %v636
      %v639 = vsel %vm402, %v631, %v638
      %v640 = vrot.slane %v635, 4
      %v642 = vshrl.u32 %v396, 16
      %v644 = vrot.slane %v642, 7
      %v645 = vshll.u32 %v396, 16
      %v647 = vor.u32 %v644, %v645
      %v648 = vrot.slane %v644, 4
      %v650 = vshrl.u32 %v397, 16
      %v652 = vrot.slane %v650, 7
      %v653 = vshll.u32 %v397, 16
      %v655 = vor.u32 %v652, %v653
      %v656 = vsel %vm402, %v648, %v655
      %v657 = vrot.slane %v652, 4
      %v659 = vshrl.u32 %v398, 16
      %v661 = vrot.slane %v659, 7
      %v662 = vshll.u32 %v398, 16
      %v664 = vor.u32 %v661, %v662
      %v665 = vrot.slane %v661, 4
      %v667 = vshrl.u32 %v399, 16
      %v669 = vrot.slane %v667, 7
      %v670 = vshll.u32 %v399, 16
      %v672 = vor.u32 %v669, %v670
      %v673 = vsel %vm402, %v665, %v672
      %v674 = vrot.slane %v669, 4
      %s723 = scalar_lea.vmem [#allocation2], 12
      %vm724 = vcmask 27648
      %vm725 = vsmask.f32 7938
      %vm726 = vmand %vm724, %vm725
      %v727 = vld [vmem:[%s723] sm:$0xf]
      %v728 = vsel %vm726, %v409, %v727
      %729 = vst [vmem:[%s723] sm:$0xf] %v728
      %730 = vst.msk [vmem:[%s723 + $0x4] sm:$0xf] %vm216, %v418
      %vm731 = vcmask 24576
      %vm732 = vmand %vm731, %vm400
      %v733 = vld [vmem:[%s723 + $0x8] sm:$0x1]
      %v734 = vsel %vm732, %v419, %v733
      %735 = vst [vmem:[%s723 + $0x8] sm:$0x1] %v734
      %v736 = vld [vmem:[%s723 + $0xc] sm:$0xf]
      %v737 = vsel %vm726, %v426, %v736
      %738 = vst [vmem:[%s723 + $0xc] sm:$0xf] %v737
      %739 = vst.msk [vmem:[%s723 + $0x10] sm:$0xf] %vm216, %v435
      %v740 = vld [vmem:[%s723 + $0x14] sm:$0x1]
      %v741 = vsel %vm732, %v436, %v740
      %742 = vst [vmem:[%s723 + $0x14] sm:$0x1] %v741
      %v743 = vld [vmem:[%s723 + $0x18] sm:$0xf]
      %v744 = vsel %vm726, %v443, %v743
      %745 = vst [vmem:[%s723 + $0x18] sm:$0xf] %v744
      %746 = vst.msk [vmem:[%s723 + $0x1c] sm:$0xf] %vm216, %v452
      %v747 = vld [vmem:[%s723 + $0x20] sm:$0x1]
      %v748 = vsel %vm732, %v453, %v747
      %749 = vst [vmem:[%s723 + $0x20] sm:$0x1] %v748
      %v750 = vld [vmem:[%s723 + $0x24] sm:$0xf]
      %v751 = vsel %vm726, %v460, %v750
      %752 = vst [vmem:[%s723 + $0x24] sm:$0xf] %v751
      %753 = vst.msk [vmem:[%s723 + $0x28] sm:$0xf] %vm216, %v469
      %v754 = vld [vmem:[%s723 + $0x2c] sm:$0x1]
      %v755 = vsel %vm732, %v470, %v754
      %756 = vst [vmem:[%s723 + $0x2c] sm:$0x1] %v755
      %v757 = vld [vmem:[%s723 + $0x30] sm:$0xf]
      %v758 = vsel %vm726, %v477, %v757
      %759 = vst [vmem:[%s723 + $0x30] sm:$0xf] %v758
      %760 = vst.msk [vmem:[%s723 + $0x34] sm:$0xf] %vm216, %v486
      %v761 = vld [vmem:[%s723 + $0x38] sm:$0x1]
      %v762 = vsel %vm732, %v487, %v761
      %763 = vst [vmem:[%s723 + $0x38] sm:$0x1] %v762
      %v764 = vld [vmem:[%s723 + $0x3c] sm:$0xf]
      %v765 = vsel %vm726, %v494, %v764
      %766 = vst [vmem:[%s723 + $0x3c] sm:$0xf] %v765
      %767 = vst.msk [vmem:[%s723 + $0x40] sm:$0xf] %vm216, %v503
      %v768 = vld [vmem:[%s723 + $0x44] sm:$0x1]
      %v769 = vsel %vm732, %v504, %v768
      %770 = vst [vmem:[%s723 + $0x44] sm:$0x1] %v769
      %v771 = vld [vmem:[%s723 + $0x48] sm:$0xf]
      %v772 = vsel %vm726, %v511, %v771
      %773 = vst [vmem:[%s723 + $0x48] sm:$0xf] %v772
      %774 = vst.msk [vmem:[%s723 + $0x4c] sm:$0xf] %vm216, %v520
      %v775 = vld [vmem:[%s723 + $0x50] sm:$0x1]
      %v776 = vsel %vm732, %v521, %v775
      %777 = vst [vmem:[%s723 + $0x50] sm:$0x1] %v776
      %v778 = vld [vmem:[%s723 + $0x54] sm:$0xf]
      %v779 = vsel %vm726, %v528, %v778
      %780 = vst [vmem:[%s723 + $0x54] sm:$0xf] %v779
      %781 = vst.msk [vmem:[%s723 + $0x58] sm:$0xf] %vm216, %v537
      %v782 = vld [vmem:[%s723 + $0x5c] sm:$0x1]
      %v783 = vsel %vm732, %v538, %v782
      %784 = vst [vmem:[%s723 + $0x5c] sm:$0x1] %v783
      %v785 = vld [vmem:[%s723 + $0x60] sm:$0xf]
      %v786 = vsel %vm726, %v545, %v785
      %787 = vst [vmem:[%s723 + $0x60] sm:$0xf] %v786
      %788 = vst.msk [vmem:[%s723 + $0x64] sm:$0xf] %vm216, %v554
      %v789 = vld [vmem:[%s723 + $0x68] sm:$0x1]
      %v790 = vsel %vm732, %v555, %v789
      %791 = vst [vmem:[%s723 + $0x68] sm:$0x1] %v790
      %v792 = vld [vmem:[%s723 + $0x6c] sm:$0xf]
      %v793 = vsel %vm726, %v562, %v792
      %794 = vst [vmem:[%s723 + $0x6c] sm:$0xf] %v793
      %795 = vst.msk [vmem:[%s723 + $0x70] sm:$0xf] %vm216, %v571
      %v796 = vld [vmem:[%s723 + $0x74] sm:$0x1]
      %v797 = vsel %vm732, %v572, %v796
      %798 = vst [vmem:[%s723 + $0x74] sm:$0x1] %v797
      %v799 = vld [vmem:[%s723 + $0x78] sm:$0xf]
      %v800 = vsel %vm726, %v579, %v799
      %801 = vst [vmem:[%s723 + $0x78] sm:$0xf] %v800
      %802 = vst.msk [vmem:[%s723 + $0x7c] sm:$0xf] %vm216, %v588
      %v803 = vld [vmem:[%s723 + $0x80] sm:$0x1]
      %v804 = vsel %vm732, %v589, %v803
      %805 = vst [vmem:[%s723 + $0x80] sm:$0x1] %v804
      %v806 = vld [vmem:[%s723 + $0x84] sm:$0xf]
      %v807 = vsel %vm726, %v596, %v806
      %808 = vst [vmem:[%s723 + $0x84] sm:$0xf] %v807
      %809 = vst.msk [vmem:[%s723 + $0x88] sm:$0xf] %vm216, %v605
      %v810 = vld [vmem:[%s723 + $0x8c] sm:$0x1]
      %v811 = vsel %vm732, %v606, %v810
      %812 = vst [vmem:[%s723 + $0x8c] sm:$0x1] %v811
      %v813 = vld [vmem:[%s723 + $0x90] sm:$0xf]
      %v814 = vsel %vm726, %v613, %v813
      %815 = vst [vmem:[%s723 + $0x90] sm:$0xf] %v814
      %816 = vst.msk [vmem:[%s723 + $0x94] sm:$0xf] %vm216, %v622
      %v817 = vld [vmem:[%s723 + $0x98] sm:$0x1]
      %v818 = vsel %vm732, %v623, %v817
      %819 = vst [vmem:[%s723 + $0x98] sm:$0x1] %v818
      %v820 = vld [vmem:[%s723 + $0x9c] sm:$0xf]
      %v821 = vsel %vm726, %v630, %v820
      %822 = vst [vmem:[%s723 + $0x9c] sm:$0xf] %v821
      %823 = vst.msk [vmem:[%s723 + $0xa0] sm:$0xf] %vm216, %v639
      %v824 = vld [vmem:[%s723 + $0xa4] sm:$0x1]
      %v825 = vsel %vm732, %v640, %v824
      %826 = vst [vmem:[%s723 + $0xa4] sm:$0x1] %v825
      %v827 = vld [vmem:[%s723 + $0xa8] sm:$0xf]
      %v828 = vsel %vm726, %v647, %v827
      %829 = vst [vmem:[%s723 + $0xa8] sm:$0xf] %v828
      %830 = vst.msk [vmem:[%s723 + $0xac] sm:$0xf] %vm216, %v656
      %v831 = vld [vmem:[%s723 + $0xb0] sm:$0x1]
      %v832 = vsel %vm732, %v657, %v831
      %833 = vst [vmem:[%s723 + $0xb0] sm:$0x1] %v832
      %v834 = vld [vmem:[%s723 + $0xb4] sm:$0xf]
      %v835 = vsel %vm726, %v664, %v834
      %836 = vst [vmem:[%s723 + $0xb4] sm:$0xf] %v835
      %837 = vst.msk [vmem:[%s723 + $0xb8] sm:$0xf] %vm216, %v673
      %v838 = vld [vmem:[%s723 + $0xbc] sm:$0x1]
      %v839 = vsel %vm732, %v674, %v838
      %840 = vst [vmem:[%s723 + $0xbc] sm:$0x1] %v839
      %v841 = vld [vmem:[%s1] sm:$0xf]
      %v842 = vld [vmem:[%s1 + $0x4] sm:$0xf]
      %v843 = vld [vmem:[%s1 + $0x8] sm:$0xf]
      %v844 = vld [vmem:[%s1 + $0xc] sm:$0xf]
      %v845 = vld [vmem:[%s1 + $0x10] sm:$0x3]
      %v846 = vld [vmem:[#allocation2] sm:$0xf]
      %v847 = vld [vmem:[#allocation2 + $0x4] sm:$0xf]
      %v848 = vld [vmem:[#allocation2 + $0xc] sm:$0xf]
      %v849 = vld [vmem:[#allocation2 + $0x10] sm:$0xf]
      %v850 = vld [vmem:[#allocation2 + $0x18] sm:$0xf]
      %v851 = vld [vmem:[#allocation2 + $0x1c] sm:$0xf]
      %v852 = vld [vmem:[#allocation2 + $0x24] sm:$0xf]
      %v853 = vld [vmem:[#allocation2 + $0x28] sm:$0xf]
      %v854 = vld [vmem:[#allocation2 + $0x30] sm:$0xf]
      %v855 = vld [vmem:[#allocation2 + $0x34] sm:$0xf]
      %v856 = vld [vmem:[#allocation2 + $0x3c] sm:$0xf]
      %v857 = vld [vmem:[#allocation2 + $0x40] sm:$0xf]
      %v858 = vld [vmem:[#allocation2 + $0x48] sm:$0xf]
      %v859 = vld [vmem:[#allocation2 + $0x4c] sm:$0xf]
      %v860 = vld [vmem:[#allocation2 + $0x54] sm:$0xf]
      %v861 = vld [vmem:[#allocation2 + $0x58] sm:$0xf]
      %v862 = vld [vmem:[#allocation2 + $0x60] sm:$0xf]
      %v863 = vld [vmem:[#allocation2 + $0x64] sm:$0xf]
      %v864 = vld [vmem:[#allocation2 + $0x6c] sm:$0xf]
      %v865 = vld [vmem:[#allocation2 + $0x70] sm:$0xf]
      %v866 = vld [vmem:[#allocation2 + $0x78] sm:$0xf]
      %v867 = vld [vmem:[#allocation2 + $0x7c] sm:$0xf]
      %v868 = vld [vmem:[#allocation2 + $0x84] sm:$0xf]
      %v869 = vld [vmem:[#allocation2 + $0x88] sm:$0xf]
      %v870 = vld [vmem:[#allocation2 + $0x90] sm:$0xf]
      %v871 = vld [vmem:[#allocation2 + $0x94] sm:$0xf]
      %v872 = vld [vmem:[#allocation2 + $0x9c] sm:$0xf]
      %v873 = vld [vmem:[#allocation2 + $0xa0] sm:$0xf]
      %v874 = vld [vmem:[#allocation2 + $0xa8] sm:$0xf]
      %v875 = vld [vmem:[#allocation2 + $0xac] sm:$0xf]
      %v876 = vld [vmem:[#allocation2 + $0xb4] sm:$0xf]
      %v877 = vld [vmem:[#allocation2 + $0xb8] sm:$0xf]
      %v878 = vld [vmem:[#allocation2 + $0x8] sm:$0x1]
      %v879 = vld [vmem:[#allocation2 + $0x14] sm:$0x1]
      %v880 = vld [vmem:[#allocation2 + $0x20] sm:$0x1]
      %v881 = vld [vmem:[#allocation2 + $0x2c] sm:$0x1]
      %v882 = vld [vmem:[#allocation2 + $0x38] sm:$0x1]
      %v883 = vld [vmem:[#allocation2 + $0x44] sm:$0x1]
      %v884 = vld [vmem:[#allocation2 + $0x50] sm:$0x1]
      %v885 = vld [vmem:[#allocation2 + $0x5c] sm:$0x1]
      %v886 = vld [vmem:[#allocation2 + $0x68] sm:$0x1]
      %v887 = vld [vmem:[#allocation2 + $0x74] sm:$0x1]
      %v888 = vld [vmem:[#allocation2 + $0x80] sm:$0x1]
      %v889 = vld [vmem:[#allocation2 + $0x8c] sm:$0x1]
      %v890 = vld [vmem:[#allocation2 + $0x98] sm:$0x1]
      %v891 = vld [vmem:[#allocation2 + $0xa4] sm:$0x1]
      %v892 = vld [vmem:[#allocation2 + $0xb0] sm:$0x1]
      %v893 = vld [vmem:[#allocation2 + $0xbc] sm:$0x1]
      %v894 = vld [vmem:[#allocation2] sm:$0xe]
      %v895 = vld [vmem:[#allocation2 + $0xc] sm:$0xe]
      %v896 = vld [vmem:[#allocation2 + $0x18] sm:$0xe]
      %v897 = vld [vmem:[#allocation2 + $0x24] sm:$0xe]
      %v898 = vld [vmem:[#allocation2 + $0x30] sm:$0xe]
      %v899 = vld [vmem:[#allocation2 + $0x3c] sm:$0xe]
      %v900 = vld [vmem:[#allocation2 + $0x48] sm:$0xe]
      %v901 = vld [vmem:[#allocation2 + $0x54] sm:$0xe]
      %v902 = vld [vmem:[#allocation2 + $0x60] sm:$0xe]
      %v903 = vld [vmem:[#allocation2 + $0x6c] sm:$0xe]
      %v904 = vld [vmem:[#allocation2 + $0x78] sm:$0xe]
      %v905 = vld [vmem:[#allocation2 + $0x84] sm:$0xe]
      %v906 = vld [vmem:[#allocation2 + $0x90] sm:$0xe]
      %v907 = vld [vmem:[#allocation2 + $0x9c] sm:$0xe]
      %v908 = vld [vmem:[#allocation2 + $0xa8] sm:$0xe]
      %v909 = vld [vmem:[#allocation2 + $0xb4] sm:$0xe]
      %v910 = vld [vmem:[%s723] sm:$0xf]
      %v911 = vld [vmem:[%s723 + $0x4] sm:$0xf]
      %v912 = vld [vmem:[%s723 + $0xc] sm:$0xf]
      %v913 = vld [vmem:[%s723 + $0x10] sm:$0xf]
      %v914 = vld [vmem:[%s723 + $0x18] sm:$0xf]
      %v915 = vld [vmem:[%s723 + $0x1c] sm:$0xf]
      %v916 = vld [vmem:[%s723 + $0x24] sm:$0xf]
      %v917 = vld [vmem:[%s723 + $0x28] sm:$0xf]
      %v918 = vld [vmem:[%s723 + $0x30] sm:$0xf]
      %v919 = vld [vmem:[%s723 + $0x34] sm:$0xf]
      %v920 = vld [vmem:[%s723 + $0x3c] sm:$0xf]
      %v921 = vld [vmem:[%s723 + $0x40] sm:$0xf]
      %v922 = vld [vmem:[%s723 + $0x48] sm:$0xf]
      %v923 = vld [vmem:[%s723 + $0x4c] sm:$0xf]
      %v924 = vld [vmem:[%s723 + $0x54] sm:$0xf]
      %v925 = vld [vmem:[%s723 + $0x58] sm:$0xf]
      %v926 = vld [vmem:[%s723 + $0x60] sm:$0xf]
      %v927 = vld [vmem:[%s723 + $0x64] sm:$0xf]
      %v928 = vld [vmem:[%s723 + $0x6c] sm:$0xf]
      %v929 = vld [vmem:[%s723 + $0x70] sm:$0xf]
      %v930 = vld [vmem:[%s723 + $0x78] sm:$0xf]
      %v931 = vld [vmem:[%s723 + $0x7c] sm:$0xf]
      %v932 = vld [vmem:[%s723 + $0x84] sm:$0xf]
      %v933 = vld [vmem:[%s723 + $0x88] sm:$0xf]
      %v934 = vld [vmem:[%s723 + $0x90] sm:$0xf]
      %v935 = vld [vmem:[%s723 + $0x94] sm:$0xf]
      %v936 = vld [vmem:[%s723 + $0x9c] sm:$0xf]
      %v937 = vld [vmem:[%s723 + $0xa0] sm:$0xf]
      %v938 = vld [vmem:[%s723 + $0xa8] sm:$0xf]
      %v939 = vld [vmem:[%s723 + $0xac] sm:$0xf]
      %v940 = vld [vmem:[%s723 + $0xb4] sm:$0xf]
      %v941 = vld [vmem:[%s723 + $0xb8] sm:$0xf]
      %v942 = vld [vmem:[%s723 + $0x8] sm:$0x1]
      %v943 = vld [vmem:[%s723 + $0x14] sm:$0x1]
      %v944 = vld [vmem:[%s723 + $0x20] sm:$0x1]
      %v945 = vld [vmem:[%s723 + $0x2c] sm:$0x1]
      %v946 = vld [vmem:[%s723 + $0x38] sm:$0x1]
      %v947 = vld [vmem:[%s723 + $0x44] sm:$0x1]
      %v948 = vld [vmem:[%s723 + $0x50] sm:$0x1]
      %v949 = vld [vmem:[%s723 + $0x5c] sm:$0x1]
      %v950 = vld [vmem:[%s723 + $0x68] sm:$0x1]
      %v951 = vld [vmem:[%s723 + $0x74] sm:$0x1]
      %v952 = vld [vmem:[%s723 + $0x80] sm:$0x1]
      %v953 = vld [vmem:[%s723 + $0x8c] sm:$0x1]
      %v954 = vld [vmem:[%s723 + $0x98] sm:$0x1]
      %v955 = vld [vmem:[%s723 + $0xa4] sm:$0x1]
      %v956 = vld [vmem:[%s723 + $0xb0] sm:$0x1]
      %v957 = vld [vmem:[%s723 + $0xbc] sm:$0x1]
      %v958 = vld [vmem:[%s723] sm:$0xe]
      %v959 = vld [vmem:[%s723 + $0xc] sm:$0xe]
      %v960 = vld [vmem:[%s723 + $0x18] sm:$0xe]
      %v961 = vld [vmem:[%s723 + $0x24] sm:$0xe]
      %v962 = vld [vmem:[%s723 + $0x30] sm:$0xe]
      %v963 = vld [vmem:[%s723 + $0x3c] sm:$0xe]
      %v964 = vld [vmem:[%s723 + $0x48] sm:$0xe]
      %v965 = vld [vmem:[%s723 + $0x54] sm:$0xe]
      %v966 = vld [vmem:[%s723 + $0x60] sm:$0xe]
      %v967 = vld [vmem:[%s723 + $0x6c] sm:$0xe]
      %v968 = vld [vmem:[%s723 + $0x78] sm:$0xe]
      %v969 = vld [vmem:[%s723 + $0x84] sm:$0xe]
      %v970 = vld [vmem:[%s723 + $0x90] sm:$0xe]
      %v971 = vld [vmem:[%s723 + $0x9c] sm:$0xe]
      %v972 = vld [vmem:[%s723 + $0xa8] sm:$0xe]
      %v973 = vld [vmem:[%s723 + $0xb4] sm:$0xe]
      %s974 = scalar_lea.vmem [#allocation2], 24
      %v975 = vld [vmem:[%s974] sm:$0xf]
      %v976 = vld [vmem:[%s974 + $0x4] sm:$0xf]
      %v977 = vld [vmem:[%s974 + $0xc] sm:$0xf]
      %v978 = vld [vmem:[%s974 + $0x10] sm:$0xf]
      %v979 = vld [vmem:[%s974 + $0x18] sm:$0xf]
      %v980 = vld [vmem:[%s974 + $0x1c] sm:$0xf]
      %v981 = vld [vmem:[%s974 + $0x24] sm:$0xf]
      %v982 = vld [vmem:[%s974 + $0x28] sm:$0xf]
      %v983 = vld [vmem:[%s974 + $0x30] sm:$0xf]
      %v984 = vld [vmem:[%s974 + $0x34] sm:$0xf]
      %v985 = vld [vmem:[%s974 + $0x3c] sm:$0xf]
      %v986 = vld [vmem:[%s974 + $0x40] sm:$0xf]
      %v987 = vld [vmem:[%s974 + $0x48] sm:$0xf]
      %v988 = vld [vmem:[%s974 + $0x4c] sm:$0xf]
      %v989 = vld [vmem:[%s974 + $0x54] sm:$0xf]
      %v990 = vld [vmem:[%s974 + $0x58] sm:$0xf]
      %v991 = vld [vmem:[%s974 + $0x60] sm:$0xf]
      %v992 = vld [vmem:[%s974 + $0x64] sm:$0xf]
      %v993 = vld [vmem:[%s974 + $0x6c] sm:$0xf]
      %v994 = vld [vmem:[%s974 + $0x70] sm:$0xf]
      %v995 = vld [vmem:[%s974 + $0x78] sm:$0xf]
      %v996 = vld [vmem:[%s974 + $0x7c] sm:$0xf]
      %v997 = vld [vmem:[%s974 + $0x84] sm:$0xf]
      %v998 = vld [vmem:[%s974 + $0x88] sm:$0xf]
      %v999 = vld [vmem:[%s974 + $0x90] sm:$0xf]
      %v1000 = vld [vmem:[%s974 + $0x94] sm:$0xf]
      %v1001 = vld [vmem:[%s974 + $0x9c] sm:$0xf]
      %v1002 = vld [vmem:[%s974 + $0xa0] sm:$0xf]
      %v1003 = vld [vmem:[%s974 + $0xa8] sm:$0xf]
      %v1004 = vld [vmem:[%s974 + $0xac] sm:$0xf]
      %v1005 = vld [vmem:[%s974 + $0xb4] sm:$0xf]
      %v1006 = vld [vmem:[%s974 + $0xb8] sm:$0xf]
      %v1007 = vld [vmem:[%s974 + $0x8] sm:$0x1]
      %v1008 = vld [vmem:[%s974 + $0x14] sm:$0x1]
      %v1009 = vld [vmem:[%s974 + $0x20] sm:$0x1]
      %v1010 = vld [vmem:[%s974 + $0x2c] sm:$0x1]
      %v1011 = vld [vmem:[%s974 + $0x38] sm:$0x1]
      %v1012 = vld [vmem:[%s974 + $0x44] sm:$0x1]
      %v1013 = vld [vmem:[%s974 + $0x50] sm:$0x1]
      %v1014 = vld [vmem:[%s974 + $0x5c] sm:$0x1]
      %v1015 = vld [vmem:[%s974 + $0x68] sm:$0x1]
      %v1016 = vld [vmem:[%s974 + $0x74] sm:$0x1]
      %v1017 = vld [vmem:[%s974 + $0x80] sm:$0x1]
      %v1018 = vld [vmem:[%s974 + $0x8c] sm:$0x1]
      %v1019 = vld [vmem:[%s974 + $0x98] sm:$0x1]
      %v1020 = vld [vmem:[%s974 + $0xa4] sm:$0x1]
      %v1021 = vld [vmem:[%s974 + $0xb0] sm:$0x1]
      %v1022 = vld [vmem:[%s974 + $0xbc] sm:$0x1]
      %v1023 = vld [vmem:[%s974] sm:$0xe]
      %v1024 = vld [vmem:[%s974 + $0xc] sm:$0xe]
      %v1025 = vld [vmem:[%s974 + $0x18] sm:$0xe]
      %v1026 = vld [vmem:[%s974 + $0x24] sm:$0xe]
      %v1027 = vld [vmem:[%s974 + $0x30] sm:$0xe]
      %v1028 = vld [vmem:[%s974 + $0x3c] sm:$0xe]
      %v1029 = vld [vmem:[%s974 + $0x48] sm:$0xe]
      %v1030 = vld [vmem:[%s974 + $0x54] sm:$0xe]
      %v1031 = vld [vmem:[%s974 + $0x60] sm:$0xe]
      %v1032 = vld [vmem:[%s974 + $0x6c] sm:$0xe]
      %v1033 = vld [vmem:[%s974 + $0x78] sm:$0xe]
      %v1034 = vld [vmem:[%s974 + $0x84] sm:$0xe]
      %v1035 = vld [vmem:[%s974 + $0x90] sm:$0xe]
      %v1036 = vld [vmem:[%s974 + $0x9c] sm:$0xe]
      %v1037 = vld [vmem:[%s974 + $0xa8] sm:$0xe]
      %v1038 = vld [vmem:[%s974 + $0xb4] sm:$0xe]
      %v1071 = vunpack.c.l.b16 %v846
      %v1072 = vunpack.c.l.b16 %v847
      %v1073 = vunpack.c.l.b16 %v848
      %v1074 = vunpack.c.l.b16 %v849
      %v1075 = vunpack.c.l.b16 %v850
      %v1076 = vunpack.c.l.b16 %v851
      %v1077 = vunpack.c.l.b16 %v852
      %v1078 = vunpack.c.l.b16 %v853
      %v1079 = vunpack.c.l.b16 %v854
      %v1080 = vunpack.c.l.b16 %v855
      %v1081 = vunpack.c.l.b16 %v856
      %v1082 = vunpack.c.l.b16 %v857
      %v1083 = vunpack.c.l.b16 %v858
      %v1084 = vunpack.c.l.b16 %v859
      %v1085 = vunpack.c.l.b16 %v860
      %v1086 = vunpack.c.l.b16 %v861
      %v1087 = vunpack.c.l.b16 %v862
      %v1088 = vunpack.c.l.b16 %v863
      %v1089 = vunpack.c.l.b16 %v864
      %v1090 = vunpack.c.l.b16 %v865
      %v1091 = vunpack.c.l.b16 %v866
      %v1092 = vunpack.c.l.b16 %v867
      %v1093 = vunpack.c.l.b16 %v868
      %v1094 = vunpack.c.l.b16 %v869
      %v1095 = vunpack.c.l.b16 %v870
      %v1096 = vunpack.c.l.b16 %v871
      %v1097 = vunpack.c.l.b16 %v872
      %v1098 = vunpack.c.l.b16 %v873
      %v1099 = vunpack.c.l.b16 %v874
      %v1100 = vunpack.c.l.b16 %v875
      %v1101 = vunpack.c.l.b16 %v876
      %v1102 = vunpack.c.l.b16 %v877
      %v1103 = vpack.c.b16 %v1072, %v1071
      %v1104 = vpack.c.b16 %v1074, %v1073
      %v1105 = vpack.c.b16 %v1076, %v1075
      %v1106 = vpack.c.b16 %v1078, %v1077
      %v1107 = vpack.c.b16 %v1080, %v1079
      %v1108 = vpack.c.b16 %v1082, %v1081
      %v1109 = vpack.c.b16 %v1084, %v1083
      %v1110 = vpack.c.b16 %v1086, %v1085
      %v1111 = vpack.c.b16 %v1088, %v1087
      %v1112 = vpack.c.b16 %v1090, %v1089
      %v1113 = vpack.c.b16 %v1092, %v1091
      %v1114 = vpack.c.b16 %v1094, %v1093
      %v1115 = vpack.c.b16 %v1096, %v1095
      %v1116 = vpack.c.b16 %v1098, %v1097
      %v1117 = vpack.c.b16 %v1100, %v1099
      %v1118 = vpack.c.b16 %v1102, %v1101
      %v1135 = vunpack.c.l.b16 %v878
      %v1136 = vunpack.c.l.b16 %v879
      %v1137 = vunpack.c.l.b16 %v880
      %v1138 = vunpack.c.l.b16 %v881
      %v1139 = vunpack.c.l.b16 %v882
      %v1140 = vunpack.c.l.b16 %v883
      %v1141 = vunpack.c.l.b16 %v884
      %v1142 = vunpack.c.l.b16 %v885
      %v1143 = vunpack.c.l.b16 %v886
      %v1144 = vunpack.c.l.b16 %v887
      %v1145 = vunpack.c.l.b16 %v888
      %v1146 = vunpack.c.l.b16 %v889
      %v1147 = vunpack.c.l.b16 %v890
      %v1148 = vunpack.c.l.b16 %v891
      %v1149 = vunpack.c.l.b16 %v892
      %v1150 = vunpack.c.l.b16 %v893
      %v1151 = vpack.c.b16 %v1135, %v1135
      %v1152 = vpack.c.b16 %v1136, %v1136
      %v1153 = vpack.c.b16 %v1137, %v1137
      %v1154 = vpack.c.b16 %v1138, %v1138
      %v1155 = vpack.c.b16 %v1139, %v1139
      %v1156 = vpack.c.b16 %v1140, %v1140
      %v1157 = vpack.c.b16 %v1141, %v1141
      %v1158 = vpack.c.b16 %v1142, %v1142
      %v1159 = vpack.c.b16 %v1143, %v1143
      %v1160 = vpack.c.b16 %v1144, %v1144
      %v1161 = vpack.c.b16 %v1145, %v1145
      %v1162 = vpack.c.b16 %v1146, %v1146
      %v1163 = vpack.c.b16 %v1147, %v1147
      %v1164 = vpack.c.b16 %v1148, %v1148
      %v1165 = vpack.c.b16 %v1149, %v1149
      %v1166 = vpack.c.b16 %v1150, %v1150
      %vm1167 = vsmask.f32 7424
      %v1169 = vshrl.u32 %v1103, 16
      %v1171 = vshll.u32 %v1103, 16
      %v1173 = vrot.slane %v1171, 1
      %v1174 = vor.u32 %v1169, %v1173
      %v1176 = vshll.u32 %v1151, 16
      %v1178 = vrot.slane %v1176, 1
      %v1179 = vsel %vm1167, %v1174, %v1178
      %v1181 = vshrl.u32 %v1104, 16
      %v1183 = vshll.u32 %v1104, 16
      %v1185 = vrot.slane %v1183, 1
      %v1186 = vor.u32 %v1181, %v1185
      %v1188 = vshll.u32 %v1152, 16
      %v1190 = vrot.slane %v1188, 1
      %v1191 = vsel %vm1167, %v1186, %v1190
      %v1193 = vshrl.u32 %v1105, 16
      %v1195 = vshll.u32 %v1105, 16
      %v1197 = vrot.slane %v1195, 1
      %v1198 = vor.u32 %v1193, %v1197
      %v1200 = vshll.u32 %v1153, 16
      %v1202 = vrot.slane %v1200, 1
      %v1203 = vsel %vm1167, %v1198, %v1202
      %v1205 = vshrl.u32 %v1106, 16
      %v1207 = vshll.u32 %v1106, 16
      %v1209 = vrot.slane %v1207, 1
      %v1210 = vor.u32 %v1205, %v1209
      %v1212 = vshll.u32 %v1154, 16
      %v1214 = vrot.slane %v1212, 1
      %v1215 = vsel %vm1167, %v1210, %v1214
      %v1217 = vshrl.u32 %v1107, 16
      %v1219 = vshll.u32 %v1107, 16
      %v1221 = vrot.slane %v1219, 1
      %v1222 = vor.u32 %v1217, %v1221
      %v1224 = vshll.u32 %v1155, 16
      %v1226 = vrot.slane %v1224, 1
      %v1227 = vsel %vm1167, %v1222, %v1226
      %v1229 = vshrl.u32 %v1108, 16
      %v1231 = vshll.u32 %v1108, 16
      %v1233 = vrot.slane %v1231, 1
      %v1234 = vor.u32 %v1229, %v1233
      %v1236 = vshll.u32 %v1156, 16
      %v1238 = vrot.slane %v1236, 1
      %v1239 = vsel %vm1167, %v1234, %v1238
      %v1241 = vshrl.u32 %v1109, 16
      %v1243 = vshll.u32 %v1109, 16
      %v1245 = vrot.slane %v1243, 1
      %v1246 = vor.u32 %v1241, %v1245
      %v1248 = vshll.u32 %v1157, 16
      %v1250 = vrot.slane %v1248, 1
      %v1251 = vsel %vm1167, %v1246, %v1250
      %v1253 = vshrl.u32 %v1110, 16
      %v1255 = vshll.u32 %v1110, 16
      %v1257 = vrot.slane %v1255, 1
      %v1258 = vor.u32 %v1253, %v1257
      %v1260 = vshll.u32 %v1158, 16
      %v1262 = vrot.slane %v1260, 1
      %v1263 = vsel %vm1167, %v1258, %v1262
      %v1265 = vshrl.u32 %v1111, 16
      %v1267 = vshll.u32 %v1111, 16
      %v1269 = vrot.slane %v1267, 1
      %v1270 = vor.u32 %v1265, %v1269
      %v1272 = vshll.u32 %v1159, 16
      %v1274 = vrot.slane %v1272, 1
      %v1275 = vsel %vm1167, %v1270, %v1274
      %v1277 = vshrl.u32 %v1112, 16
      %v1279 = vshll.u32 %v1112, 16
      %v1281 = vrot.slane %v1279, 1
      %v1282 = vor.u32 %v1277, %v1281
      %v1284 = vshll.u32 %v1160, 16
      %v1286 = vrot.slane %v1284, 1
      %v1287 = vsel %vm1167, %v1282, %v1286
      %v1289 = vshrl.u32 %v1113, 16
      %v1291 = vshll.u32 %v1113, 16
      %v1293 = vrot.slane %v1291, 1
      %v1294 = vor.u32 %v1289, %v1293
      %v1296 = vshll.u32 %v1161, 16
      %v1298 = vrot.slane %v1296, 1
      %v1299 = vsel %vm1167, %v1294, %v1298
      %v1301 = vshrl.u32 %v1114, 16
      %v1303 = vshll.u32 %v1114, 16
      %v1305 = vrot.slane %v1303, 1
      %v1306 = vor.u32 %v1301, %v1305
      %v1308 = vshll.u32 %v1162, 16
      %v1310 = vrot.slane %v1308, 1
      %v1311 = vsel %vm1167, %v1306, %v1310
      %v1313 = vshrl.u32 %v1115, 16
      %v1315 = vshll.u32 %v1115, 16
      %v1317 = vrot.slane %v1315, 1
      %v1318 = vor.u32 %v1313, %v1317
      %v1320 = vshll.u32 %v1163, 16
      %v1322 = vrot.slane %v1320, 1
      %v1323 = vsel %vm1167, %v1318, %v1322
      %v1325 = vshrl.u32 %v1116, 16
      %v1327 = vshll.u32 %v1116, 16
      %v1329 = vrot.slane %v1327, 1
      %v1330 = vor.u32 %v1325, %v1329
      %v1332 = vshll.u32 %v1164, 16
      %v1334 = vrot.slane %v1332, 1
      %v1335 = vsel %vm1167, %v1330, %v1334
      %v1337 = vshrl.u32 %v1117, 16
      %v1339 = vshll.u32 %v1117, 16
      %v1341 = vrot.slane %v1339, 1
      %v1342 = vor.u32 %v1337, %v1341
      %v1344 = vshll.u32 %v1165, 16
      %v1346 = vrot.slane %v1344, 1
      %v1347 = vsel %vm1167, %v1342, %v1346
      %v1349 = vshrl.u32 %v1118, 16
      %v1351 = vshll.u32 %v1118, 16
      %v1353 = vrot.slane %v1351, 1
      %v1354 = vor.u32 %v1349, %v1353
      %v1356 = vshll.u32 %v1166, 16
      %v1358 = vrot.slane %v1356, 1
      %v1359 = vsel %vm1167, %v1354, %v1358
      %1360 = vrot.lane.b32.xlu0 %v1179, 4
      %v1361 = vpop.permute.xlu0 %1360
      %1362 = vrot.lane.b32.xlu0 %v1191, 4
      %v1363 = vpop.permute.xlu0 %1362
      %1364 = vrot.lane.b32.xlu0 %v1203, 4
      %v1365 = vpop.permute.xlu0 %1364
      %1366 = vrot.lane.b32.xlu0 %v1215, 4
      %v1367 = vpop.permute.xlu0 %1366
      %1368 = vrot.lane.b32.xlu0 %v1227, 4
      %v1369 = vpop.permute.xlu0 %1368
      %1370 = vrot.lane.b32.xlu0 %v1239, 4
      %v1371 = vpop.permute.xlu0 %1370
      %1372 = vrot.lane.b32.xlu0 %v1251, 4
      %v1373 = vpop.permute.xlu0 %1372
      %1374 = vrot.lane.b32.xlu0 %v1263, 4
      %v1375 = vpop.permute.xlu0 %1374
      %1376 = vrot.lane.b32.xlu0 %v1275, 4
      %v1377 = vpop.permute.xlu0 %1376
      %1378 = vrot.lane.b32.xlu0 %v1287, 4
      %v1379 = vpop.permute.xlu0 %1378
      %1380 = vrot.lane.b32.xlu0 %v1299, 4
      %v1381 = vpop.permute.xlu0 %1380
      %1382 = vrot.lane.b32.xlu0 %v1311, 4
      %v1383 = vpop.permute.xlu0 %1382
      %1384 = vrot.lane.b32.xlu0 %v1323, 4
      %v1385 = vpop.permute.xlu0 %1384
      %1386 = vrot.lane.b32.xlu0 %v1335, 4
      %v1387 = vpop.permute.xlu0 %1386
      %1388 = vrot.lane.b32.xlu0 %v1347, 4
      %v1389 = vpop.permute.xlu0 %1388
      %1390 = vrot.lane.b32.xlu0 %v1359, 4
      %v1391 = vpop.permute.xlu0 %1390
      %v1408 = vunpack.c.l.b16 %v894
      %v1409 = vunpack.c.l.b16 %v895
      %v1410 = vunpack.c.l.b16 %v896
      %v1411 = vunpack.c.l.b16 %v897
      %v1412 = vunpack.c.l.b16 %v898
      %v1413 = vunpack.c.l.b16 %v899
      %v1414 = vunpack.c.l.b16 %v900
      %v1415 = vunpack.c.l.b16 %v901
      %v1416 = vunpack.c.l.b16 %v902
      %v1417 = vunpack.c.l.b16 %v903
      %v1418 = vunpack.c.l.b16 %v904
      %v1419 = vunpack.c.l.b16 %v905
      %v1420 = vunpack.c.l.b16 %v906
      %v1421 = vunpack.c.l.b16 %v907
      %v1422 = vunpack.c.l.b16 %v908
      %v1423 = vunpack.c.l.b16 %v909
      %v1424 = vpack.c.b16 %v1072, %v1408
      %v1425 = vpack.c.b16 %v1074, %v1409
      %v1426 = vpack.c.b16 %v1076, %v1410
      %v1427 = vpack.c.b16 %v1078, %v1411
      %v1428 = vpack.c.b16 %v1080, %v1412
      %v1429 = vpack.c.b16 %v1082, %v1413
      %v1430 = vpack.c.b16 %v1084, %v1414
      %v1431 = vpack.c.b16 %v1086, %v1415
      %v1432 = vpack.c.b16 %v1088, %v1416
      %v1433 = vpack.c.b16 %v1090, %v1417
      %v1434 = vpack.c.b16 %v1092, %v1418
      %v1435 = vpack.c.b16 %v1094, %v1419
      %v1436 = vpack.c.b16 %v1096, %v1420
      %v1437 = vpack.c.b16 %v1098, %v1421
      %v1438 = vpack.c.b16 %v1100, %v1422
      %v1439 = vpack.c.b16 %v1102, %v1423
      %vm1440 = vcmask 1046528
      %v1441 = vrot.slane %v1424, 1
      %v1442 = vrot.slane %v1151, 1
      %v1443 = vsel %vm1440, %v1441, %v1442
      %v1444 = vrot.slane %v1425, 1
      %v1445 = vrot.slane %v1152, 1
      %v1446 = vsel %vm1440, %v1444, %v1445
      %v1447 = vrot.slane %v1426, 1
      %v1448 = vrot.slane %v1153, 1
      %v1449 = vsel %vm1440, %v1447, %v1448
      %v1450 = vrot.slane %v1427, 1
      %v1451 = vrot.slane %v1154, 1
      %v1452 = vsel %vm1440, %v1450, %v1451
      %v1453 = vrot.slane %v1428, 1
      %v1454 = vrot.slane %v1155, 1
      %v1455 = vsel %vm1440, %v1453, %v1454
      %v1456 = vrot.slane %v1429, 1
      %v1457 = vrot.slane %v1156, 1
      %v1458 = vsel %vm1440, %v1456, %v1457
      %v1459 = vrot.slane %v1430, 1
      %v1460 = vrot.slane %v1157, 1
      %v1461 = vsel %vm1440, %v1459, %v1460
      %v1462 = vrot.slane %v1431, 1
      %v1463 = vrot.slane %v1158, 1
      %v1464 = vsel %vm1440, %v1462, %v1463
      %v1465 = vrot.slane %v1432, 1
      %v1466 = vrot.slane %v1159, 1
      %v1467 = vsel %vm1440, %v1465, %v1466
      %v1468 = vrot.slane %v1433, 1
      %v1469 = vrot.slane %v1160, 1
      %v1470 = vsel %vm1440, %v1468, %v1469
      %v1471 = vrot.slane %v1434, 1
      %v1472 = vrot.slane %v1161, 1
      %v1473 = vsel %vm1440, %v1471, %v1472
      %v1474 = vrot.slane %v1435, 1
      %v1475 = vrot.slane %v1162, 1
      %v1476 = vsel %vm1440, %v1474, %v1475
      %v1477 = vrot.slane %v1436, 1
      %v1478 = vrot.slane %v1163, 1
      %v1479 = vsel %vm1440, %v1477, %v1478
      %v1480 = vrot.slane %v1437, 1
      %v1481 = vrot.slane %v1164, 1
      %v1482 = vsel %vm1440, %v1480, %v1481
      %v1483 = vrot.slane %v1438, 1
      %v1484 = vrot.slane %v1165, 1
      %v1485 = vsel %vm1440, %v1483, %v1484
      %v1486 = vrot.slane %v1439, 1
      %v1487 = vrot.slane %v1166, 1
      %v1488 = vsel %vm1440, %v1486, %v1487
      %1489 = vrot.lane.b32.xlu0 %v1443, 8
      %v1490 = vpop.permute.xlu0 %1489
      %1491 = vrot.lane.b32.xlu0 %v1446, 8
      %v1492 = vpop.permute.xlu0 %1491
      %1493 = vrot.lane.b32.xlu0 %v1449, 8
      %v1494 = vpop.permute.xlu0 %1493
      %1495 = vrot.lane.b32.xlu0 %v1452, 8
      %v1496 = vpop.permute.xlu0 %1495
      %1497 = vrot.lane.b32.xlu0 %v1455, 8
      %v1498 = vpop.permute.xlu0 %1497
      %1499 = vrot.lane.b32.xlu0 %v1458, 8
      %v1500 = vpop.permute.xlu0 %1499
      %1501 = vrot.lane.b32.xlu0 %v1461, 8
      %v1502 = vpop.permute.xlu0 %1501
      %1503 = vrot.lane.b32.xlu0 %v1464, 8
      %v1504 = vpop.permute.xlu0 %1503
      %1505 = vrot.lane.b32.xlu0 %v1467, 8
      %v1506 = vpop.permute.xlu0 %1505
      %1507 = vrot.lane.b32.xlu0 %v1470, 8
      %v1508 = vpop.permute.xlu0 %1507
      %1509 = vrot.lane.b32.xlu0 %v1473, 8
      %v1510 = vpop.permute.xlu0 %1509
      %1511 = vrot.lane.b32.xlu0 %v1476, 8
      %v1512 = vpop.permute.xlu0 %1511
      %1513 = vrot.lane.b32.xlu0 %v1479, 8
      %v1514 = vpop.permute.xlu0 %1513
      %1515 = vrot.lane.b32.xlu0 %v1482, 8
      %v1516 = vpop.permute.xlu0 %1515
      %1517 = vrot.lane.b32.xlu0 %v1485, 8
      %v1518 = vpop.permute.xlu0 %1517
      %1519 = vrot.lane.b32.xlu0 %v1488, 8
      %v1520 = vpop.permute.xlu0 %1519
      %v1553 = vunpack.c.l.b16 %v910
      %v1554 = vunpack.c.l.b16 %v911
      %v1555 = vunpack.c.l.b16 %v912
      %v1556 = vunpack.c.l.b16 %v913
      %v1557 = vunpack.c.l.b16 %v914
      %v1558 = vunpack.c.l.b16 %v915
      %v1559 = vunpack.c.l.b16 %v916
      %v1560 = vunpack.c.l.b16 %v917
      %v1561 = vunpack.c.l.b16 %v918
      %v1562 = vunpack.c.l.b16 %v919
      %v1563 = vunpack.c.l.b16 %v920
      %v1564 = vunpack.c.l.b16 %v921
      %v1565 = vunpack.c.l.b16 %v922
      %v1566 = vunpack.c.l.b16 %v923
      %v1567 = vunpack.c.l.b16 %v924
      %v1568 = vunpack.c.l.b16 %v925
      %v1569 = vunpack.c.l.b16 %v926
      %v1570 = vunpack.c.l.b16 %v927
      %v1571 = vunpack.c.l.b16 %v928
      %v1572 = vunpack.c.l.b16 %v929
      %v1573 = vunpack.c.l.b16 %v930
      %v1574 = vunpack.c.l.b16 %v931
      %v1575 = vunpack.c.l.b16 %v932
      %v1576 = vunpack.c.l.b16 %v933
      %v1577 = vunpack.c.l.b16 %v934
      %v1578 = vunpack.c.l.b16 %v935
      %v1579 = vunpack.c.l.b16 %v936
      %v1580 = vunpack.c.l.b16 %v937
      %v1581 = vunpack.c.l.b16 %v938
      %v1582 = vunpack.c.l.b16 %v939
      %v1583 = vunpack.c.l.b16 %v940
      %v1584 = vunpack.c.l.b16 %v941
      %v1585 = vpack.c.b16 %v1554, %v1553
      %v1586 = vpack.c.b16 %v1556, %v1555
      %v1587 = vpack.c.b16 %v1558, %v1557
      %v1588 = vpack.c.b16 %v1560, %v1559
      %v1589 = vpack.c.b16 %v1562, %v1561
      %v1590 = vpack.c.b16 %v1564, %v1563
      %v1591 = vpack.c.b16 %v1566, %v1565
      %v1592 = vpack.c.b16 %v1568, %v1567
      %v1593 = vpack.c.b16 %v1570, %v1569
      %v1594 = vpack.c.b16 %v1572, %v1571
      %v1595 = vpack.c.b16 %v1574, %v1573
      %v1596 = vpack.c.b16 %v1576, %v1575
      %v1597 = vpack.c.b16 %v1578, %v1577
      %v1598 = vpack.c.b16 %v1580, %v1579
      %v1599 = vpack.c.b16 %v1582, %v1581
      %v1600 = vpack.c.b16 %v1584, %v1583
      %1601 = vrot.lane.b32.xlu0 %v1585, 12
      %v1602 = vpop.permute.xlu0 %1601
      %1603 = vrot.lane.b32.xlu0 %v1586, 12
      %v1604 = vpop.permute.xlu0 %1603
      %1605 = vrot.lane.b32.xlu0 %v1587, 12
      %v1606 = vpop.permute.xlu0 %1605
      %1607 = vrot.lane.b32.xlu0 %v1588, 12
      %v1608 = vpop.permute.xlu0 %1607
      %1609 = vrot.lane.b32.xlu0 %v1589, 12
      %v1610 = vpop.permute.xlu0 %1609
      %1611 = vrot.lane.b32.xlu0 %v1590, 12
      %v1612 = vpop.permute.xlu0 %1611
      %1613 = vrot.lane.b32.xlu0 %v1591, 12
      %v1614 = vpop.permute.xlu0 %1613
      %1615 = vrot.lane.b32.xlu0 %v1592, 12
      %v1616 = vpop.permute.xlu0 %1615
      %1617 = vrot.lane.b32.xlu0 %v1593, 12
      %v1618 = vpop.permute.xlu0 %1617
      %1619 = vrot.lane.b32.xlu0 %v1594, 12
      %v1620 = vpop.permute.xlu0 %1619
      %1621 = vrot.lane.b32.xlu0 %v1595, 12
      %v1622 = vpop.permute.xlu0 %1621
      %1623 = vrot.lane.b32.xlu0 %v1596, 12
      %v1624 = vpop.permute.xlu0 %1623
      %1625 = vrot.lane.b32.xlu0 %v1597, 12
      %v1626 = vpop.permute.xlu0 %1625
      %1627 = vrot.lane.b32.xlu0 %v1598, 12
      %v1628 = vpop.permute.xlu0 %1627
      %1629 = vrot.lane.b32.xlu0 %v1599, 12
      %v1630 = vpop.permute.xlu0 %1629
      %1631 = vrot.lane.b32.xlu0 %v1600, 12
      %v1632 = vpop.permute.xlu0 %1631
      %v1649 = vunpack.c.l.b16 %v942
      %v1650 = vunpack.c.l.b16 %v943
      %v1651 = vunpack.c.l.b16 %v944
      %v1652 = vunpack.c.l.b16 %v945
      %v1653 = vunpack.c.l.b16 %v946
      %v1654 = vunpack.c.l.b16 %v947
      %v1655 = vunpack.c.l.b16 %v948
      %v1656 = vunpack.c.l.b16 %v949
      %v1657 = vunpack.c.l.b16 %v950
      %v1658 = vunpack.c.l.b16 %v951
      %v1659 = vunpack.c.l.b16 %v952
      %v1660 = vunpack.c.l.b16 %v953
      %v1661 = vunpack.c.l.b16 %v954
      %v1662 = vunpack.c.l.b16 %v955
      %v1663 = vunpack.c.l.b16 %v956
      %v1664 = vunpack.c.l.b16 %v957
      %v1665 = vpack.c.b16 %v1649, %v1649
      %v1666 = vpack.c.b16 %v1650, %v1650
      %v1667 = vpack.c.b16 %v1651, %v1651
      %v1668 = vpack.c.b16 %v1652, %v1652
      %v1669 = vpack.c.b16 %v1653, %v1653
      %v1670 = vpack.c.b16 %v1654, %v1654
      %v1671 = vpack.c.b16 %v1655, %v1655
      %v1672 = vpack.c.b16 %v1656, %v1656
      %v1673 = vpack.c.b16 %v1657, %v1657
      %v1674 = vpack.c.b16 %v1658, %v1658
      %v1675 = vpack.c.b16 %v1659, %v1659
      %v1676 = vpack.c.b16 %v1660, %v1660
      %v1677 = vpack.c.b16 %v1661, %v1661
      %v1678 = vpack.c.b16 %v1662, %v1662
      %v1679 = vpack.c.b16 %v1663, %v1663
      %v1680 = vpack.c.b16 %v1664, %v1664
      %v1682 = vshrl.u32 %v1585, 16
      %v1684 = vshll.u32 %v1585, 16
      %v1686 = vrot.slane %v1684, 1
      %v1687 = vor.u32 %v1682, %v1686
      %v1689 = vshll.u32 %v1665, 16
      %v1691 = vrot.slane %v1689, 1
      %v1692 = vsel %vm1167, %v1687, %v1691
      %v1694 = vshrl.u32 %v1586, 16
      %v1696 = vshll.u32 %v1586, 16
      %v1698 = vrot.slane %v1696, 1
      %v1699 = vor.u32 %v1694, %v1698
      %v1701 = vshll.u32 %v1666, 16
      %v1703 = vrot.slane %v1701, 1
      %v1704 = vsel %vm1167, %v1699, %v1703
      %v1706 = vshrl.u32 %v1587, 16
      %v1708 = vshll.u32 %v1587, 16
      %v1710 = vrot.slane %v1708, 1
      %v1711 = vor.u32 %v1706, %v1710
      %v1713 = vshll.u32 %v1667, 16
      %v1715 = vrot.slane %v1713, 1
      %v1716 = vsel %vm1167, %v1711, %v1715
      %v1718 = vshrl.u32 %v1588, 16
      %v1720 = vshll.u32 %v1588, 16
      %v1722 = vrot.slane %v1720, 1
      %v1723 = vor.u32 %v1718, %v1722
      %v1725 = vshll.u32 %v1668, 16
      %v1727 = vrot.slane %v1725, 1
      %v1728 = vsel %vm1167, %v1723, %v1727
      %v1730 = vshrl.u32 %v1589, 16
      %v1732 = vshll.u32 %v1589, 16
      %v1734 = vrot.slane %v1732, 1
      %v1735 = vor.u32 %v1730, %v1734
      %v1737 = vshll.u32 %v1669, 16
      %v1739 = vrot.slane %v1737, 1
      %v1740 = vsel %vm1167, %v1735, %v1739
      %v1742 = vshrl.u32 %v1590, 16
      %v1744 = vshll.u32 %v1590, 16
      %v1746 = vrot.slane %v1744, 1
      %v1747 = vor.u32 %v1742, %v1746
      %v1749 = vshll.u32 %v1670, 16
      %v1751 = vrot.slane %v1749, 1
      %v1752 = vsel %vm1167, %v1747, %v1751
      %v1754 = vshrl.u32 %v1591, 16
      %v1756 = vshll.u32 %v1591, 16
      %v1758 = vrot.slane %v1756, 1
      %v1759 = vor.u32 %v1754, %v1758
      %v1761 = vshll.u32 %v1671, 16
      %v1763 = vrot.slane %v1761, 1
      %v1764 = vsel %vm1167, %v1759, %v1763
      %v1766 = vshrl.u32 %v1592, 16
      %v1768 = vshll.u32 %v1592, 16
      %v1770 = vrot.slane %v1768, 1
      %v1771 = vor.u32 %v1766, %v1770
      %v1773 = vshll.u32 %v1672, 16
      %v1775 = vrot.slane %v1773, 1
      %v1776 = vsel %vm1167, %v1771, %v1775
      %v1778 = vshrl.u32 %v1593, 16
      %v1780 = vshll.u32 %v1593, 16
      %v1782 = vrot.slane %v1780, 1
      %v1783 = vor.u32 %v1778, %v1782
      %v1785 = vshll.u32 %v1673, 16
      %v1787 = vrot.slane %v1785, 1
      %v1788 = vsel %vm1167, %v1783, %v1787
      %v1790 = vshrl.u32 %v1594, 16
      %v1792 = vshll.u32 %v1594, 16
      %v1794 = vrot.slane %v1792, 1
      %v1795 = vor.u32 %v1790, %v1794
      %v1797 = vshll.u32 %v1674, 16
      %v1799 = vrot.slane %v1797, 1
      %v1800 = vsel %vm1167, %v1795, %v1799
      %v1802 = vshrl.u32 %v1595, 16
      %v1804 = vshll.u32 %v1595, 16
      %v1806 = vrot.slane %v1804, 1
      %v1807 = vor.u32 %v1802, %v1806
      %v1809 = vshll.u32 %v1675, 16
      %v1811 = vrot.slane %v1809, 1
      %v1812 = vsel %vm1167, %v1807, %v1811
      %v1814 = vshrl.u32 %v1596, 16
      %v1816 = vshll.u32 %v1596, 16
      %v1818 = vrot.slane %v1816, 1
      %v1819 = vor.u32 %v1814, %v1818
      %v1821 = vshll.u32 %v1676, 16
      %v1823 = vrot.slane %v1821, 1
      %v1824 = vsel %vm1167, %v1819, %v1823
      %v1826 = vshrl.u32 %v1597, 16
      %v1828 = vshll.u32 %v1597, 16
      %v1830 = vrot.slane %v1828, 1
      %v1831 = vor.u32 %v1826, %v1830
      %v1833 = vshll.u32 %v1677, 16
      %v1835 = vrot.slane %v1833, 1
      %v1836 = vsel %vm1167, %v1831, %v1835
      %v1838 = vshrl.u32 %v1598, 16
      %v1840 = vshll.u32 %v1598, 16
      %v1842 = vrot.slane %v1840, 1
      %v1843 = vor.u32 %v1838, %v1842
      %v1845 = vshll.u32 %v1678, 16
      %v1847 = vrot.slane %v1845, 1
      %v1848 = vsel %vm1167, %v1843, %v1847
      %v1850 = vshrl.u32 %v1599, 16
      %v1852 = vshll.u32 %v1599, 16
      %v1854 = vrot.slane %v1852, 1
      %v1855 = vor.u32 %v1850, %v1854
      %v1857 = vshll.u32 %v1679, 16
      %v1859 = vrot.slane %v1857, 1
      %v1860 = vsel %vm1167, %v1855, %v1859
      %v1862 = vshrl.u32 %v1600, 16
      %v1864 = vshll.u32 %v1600, 16
      %v1866 = vrot.slane %v1864, 1
      %v1867 = vor.u32 %v1862, %v1866
      %v1869 = vshll.u32 %v1680, 16
      %v1871 = vrot.slane %v1869, 1
      %v1872 = vsel %vm1167, %v1867, %v1871
      %1873 = vrot.lane.b32.xlu0 %v1692, 16
      %v1874 = vpop.permute.xlu0 %1873
      %1875 = vrot.lane.b32.xlu0 %v1704, 16
      %v1876 = vpop.permute.xlu0 %1875
      %1877 = vrot.lane.b32.xlu0 %v1716, 16
      %v1878 = vpop.permute.xlu0 %1877
      %1879 = vrot.lane.b32.xlu0 %v1728, 16
      %v1880 = vpop.permute.xlu0 %1879
      %1881 = vrot.lane.b32.xlu0 %v1740, 16
      %v1882 = vpop.permute.xlu0 %1881
      %1883 = vrot.lane.b32.xlu0 %v1752, 16
      %v1884 = vpop.permute.xlu0 %1883
      %1885 = vrot.lane.b32.xlu0 %v1764, 16
      %v1886 = vpop.permute.xlu0 %1885
      %1887 = vrot.lane.b32.xlu0 %v1776, 16
      %v1888 = vpop.permute.xlu0 %1887
      %1889 = vrot.lane.b32.xlu0 %v1788, 16
      %v1890 = vpop.permute.xlu0 %1889
      %1891 = vrot.lane.b32.xlu0 %v1800, 16
      %v1892 = vpop.permute.xlu0 %1891
      %1893 = vrot.lane.b32.xlu0 %v1812, 16
      %v1894 = vpop.permute.xlu0 %1893
      %1895 = vrot.lane.b32.xlu0 %v1824, 16
      %v1896 = vpop.permute.xlu0 %1895
      %1897 = vrot.lane.b32.xlu0 %v1836, 16
      %v1898 = vpop.permute.xlu0 %1897
      %1899 = vrot.lane.b32.xlu0 %v1848, 16
      %v1900 = vpop.permute.xlu0 %1899
      %1901 = vrot.lane.b32.xlu0 %v1860, 16
      %v1902 = vpop.permute.xlu0 %1901
      %1903 = vrot.lane.b32.xlu0 %v1872, 16
      %v1904 = vpop.permute.xlu0 %1903
      %v1921 = vunpack.c.l.b16 %v958
      %v1922 = vunpack.c.l.b16 %v959
      %v1923 = vunpack.c.l.b16 %v960
      %v1924 = vunpack.c.l.b16 %v961
      %v1925 = vunpack.c.l.b16 %v962
      %v1926 = vunpack.c.l.b16 %v963
      %v1927 = vunpack.c.l.b16 %v964
      %v1928 = vunpack.c.l.b16 %v965
      %v1929 = vunpack.c.l.b16 %v966
      %v1930 = vunpack.c.l.b16 %v967
      %v1931 = vunpack.c.l.b16 %v968
      %v1932 = vunpack.c.l.b16 %v969
      %v1933 = vunpack.c.l.b16 %v970
      %v1934 = vunpack.c.l.b16 %v971
      %v1935 = vunpack.c.l.b16 %v972
      %v1936 = vunpack.c.l.b16 %v973
      %v1937 = vpack.c.b16 %v1554, %v1921
      %v1938 = vpack.c.b16 %v1556, %v1922
      %v1939 = vpack.c.b16 %v1558, %v1923
      %v1940 = vpack.c.b16 %v1560, %v1924
      %v1941 = vpack.c.b16 %v1562, %v1925
      %v1942 = vpack.c.b16 %v1564, %v1926
      %v1943 = vpack.c.b16 %v1566, %v1927
      %v1944 = vpack.c.b16 %v1568, %v1928
      %v1945 = vpack.c.b16 %v1570, %v1929
      %v1946 = vpack.c.b16 %v1572, %v1930
      %v1947 = vpack.c.b16 %v1574, %v1931
      %v1948 = vpack.c.b16 %v1576, %v1932
      %v1949 = vpack.c.b16 %v1578, %v1933
      %v1950 = vpack.c.b16 %v1580, %v1934
      %v1951 = vpack.c.b16 %v1582, %v1935
      %v1952 = vpack.c.b16 %v1584, %v1936
      %v1953 = vrot.slane %v1937, 1
      %v1954 = vrot.slane %v1665, 1
      %v1955 = vsel %vm1440, %v1953, %v1954
      %v1956 = vrot.slane %v1938, 1
      %v1957 = vrot.slane %v1666, 1
      %v1958 = vsel %vm1440, %v1956, %v1957
      %v1959 = vrot.slane %v1939, 1
      %v1960 = vrot.slane %v1667, 1
      %v1961 = vsel %vm1440, %v1959, %v1960
      %v1962 = vrot.slane %v1940, 1
      %v1963 = vrot.slane %v1668, 1
      %v1964 = vsel %vm1440, %v1962, %v1963
      %v1965 = vrot.slane %v1941, 1
      %v1966 = vrot.slane %v1669, 1
      %v1967 = vsel %vm1440, %v1965, %v1966
      %v1968 = vrot.slane %v1942, 1
      %v1969 = vrot.slane %v1670, 1
      %v1970 = vsel %vm1440, %v1968, %v1969
      %v1971 = vrot.slane %v1943, 1
      %v1972 = vrot.slane %v1671, 1
      %v1973 = vsel %vm1440, %v1971, %v1972
      %v1974 = vrot.slane %v1944, 1
      %v1975 = vrot.slane %v1672, 1
      %v1976 = vsel %vm1440, %v1974, %v1975
      %v1977 = vrot.slane %v1945, 1
      %v1978 = vrot.slane %v1673, 1
      %v1979 = vsel %vm1440, %v1977, %v1978
      %v1980 = vrot.slane %v1946, 1
      %v1981 = vrot.slane %v1674, 1
      %v1982 = vsel %vm1440, %v1980, %v1981
      %v1983 = vrot.slane %v1947, 1
      %v1984 = vrot.slane %v1675, 1
      %v1985 = vsel %vm1440, %v1983, %v1984
      %v1986 = vrot.slane %v1948, 1
      %v1987 = vrot.slane %v1676, 1
      %v1988 = vsel %vm1440, %v1986, %v1987
      %v1989 = vrot.slane %v1949, 1
      %v1990 = vrot.slane %v1677, 1
      %v1991 = vsel %vm1440, %v1989, %v1990
      %v1992 = vrot.slane %v1950, 1
      %v1993 = vrot.slane %v1678, 1
      %v1994 = vsel %vm1440, %v1992, %v1993
      %v1995 = vrot.slane %v1951, 1
      %v1996 = vrot.slane %v1679, 1
      %v1997 = vsel %vm1440, %v1995, %v1996
      %v1998 = vrot.slane %v1952, 1
      %v1999 = vrot.slane %v1680, 1
      %v2000 = vsel %vm1440, %v1998, %v1999
      %2001 = vrot.lane.b32.xlu0 %v1955, 20
      %v2002 = vpop.permute.xlu0 %2001
      %2003 = vrot.lane.b32.xlu0 %v1958, 20
      %v2004 = vpop.permute.xlu0 %2003
      %2005 = vrot.lane.b32.xlu0 %v1961, 20
      %v2006 = vpop.permute.xlu0 %2005
      %2007 = vrot.lane.b32.xlu0 %v1964, 20
      %v2008 = vpop.permute.xlu0 %2007
      %2009 = vrot.lane.b32.xlu0 %v1967, 20
      %v2010 = vpop.permute.xlu0 %2009
      %2011 = vrot.lane.b32.xlu0 %v1970, 20
      %v2012 = vpop.permute.xlu0 %2011
      %2013 = vrot.lane.b32.xlu0 %v1973, 20
      %v2014 = vpop.permute.xlu0 %2013
      %2015 = vrot.lane.b32.xlu0 %v1976, 20
      %v2016 = vpop.permute.xlu0 %2015
      %2017 = vrot.lane.b32.xlu0 %v1979, 20
      %v2018 = vpop.permute.xlu0 %2017
      %2019 = vrot.lane.b32.xlu0 %v1982, 20
      %v2020 = vpop.permute.xlu0 %2019
      %2021 = vrot.lane.b32.xlu0 %v1985, 20
      %v2022 = vpop.permute.xlu0 %2021
      %2023 = vrot.lane.b32.xlu0 %v1988, 20
      %v2024 = vpop.permute.xlu0 %2023
      %2025 = vrot.lane.b32.xlu0 %v1991, 20
      %v2026 = vpop.permute.xlu0 %2025
      %2027 = vrot.lane.b32.xlu0 %v1994, 20
      %v2028 = vpop.permute.xlu0 %2027
      %2029 = vrot.lane.b32.xlu0 %v1997, 20
      %v2030 = vpop.permute.xlu0 %2029
      %2031 = vrot.lane.b32.xlu0 %v2000, 20
      %v2032 = vpop.permute.xlu0 %2031
      %v2065 = vunpack.c.l.b16 %v975
      %v2066 = vunpack.c.l.b16 %v976
      %v2067 = vunpack.c.l.b16 %v977
      %v2068 = vunpack.c.l.b16 %v978
      %v2069 = vunpack.c.l.b16 %v979
      %v2070 = vunpack.c.l.b16 %v980
      %v2071 = vunpack.c.l.b16 %v981
      %v2072 = vunpack.c.l.b16 %v982
      %v2073 = vunpack.c.l.b16 %v983
      %v2074 = vunpack.c.l.b16 %v984
      %v2075 = vunpack.c.l.b16 %v985
      %v2076 = vunpack.c.l.b16 %v986
      %v2077 = vunpack.c.l.b16 %v987
      %v2078 = vunpack.c.l.b16 %v988
      %v2079 = vunpack.c.l.b16 %v989
      %v2080 = vunpack.c.l.b16 %v990
      %v2081 = vunpack.c.l.b16 %v991
      %v2082 = vunpack.c.l.b16 %v992
      %v2083 = vunpack.c.l.b16 %v993
      %v2084 = vunpack.c.l.b16 %v994
      %v2085 = vunpack.c.l.b16 %v995
      %v2086 = vunpack.c.l.b16 %v996
      %v2087 = vunpack.c.l.b16 %v997
      %v2088 = vunpack.c.l.b16 %v998
      %v2089 = vunpack.c.l.b16 %v999
      %v2090 = vunpack.c.l.b16 %v1000
      %v2091 = vunpack.c.l.b16 %v1001
      %v2092 = vunpack.c.l.b16 %v1002
      %v2093 = vunpack.c.l.b16 %v1003
      %v2094 = vunpack.c.l.b16 %v1004
      %v2095 = vunpack.c.l.b16 %v1005
      %v2096 = vunpack.c.l.b16 %v1006
      %v2097 = vpack.c.b16 %v2066, %v2065
      %v2098 = vpack.c.b16 %v2068, %v2067
      %v2099 = vpack.c.b16 %v2070, %v2069
      %v2100 = vpack.c.b16 %v2072, %v2071
      %v2101 = vpack.c.b16 %v2074, %v2073
      %v2102 = vpack.c.b16 %v2076, %v2075
      %v2103 = vpack.c.b16 %v2078, %v2077
      %v2104 = vpack.c.b16 %v2080, %v2079
      %v2105 = vpack.c.b16 %v2082, %v2081
      %v2106 = vpack.c.b16 %v2084, %v2083
      %v2107 = vpack.c.b16 %v2086, %v2085
      %v2108 = vpack.c.b16 %v2088, %v2087
      %v2109 = vpack.c.b16 %v2090, %v2089
      %v2110 = vpack.c.b16 %v2092, %v2091
      %v2111 = vpack.c.b16 %v2094, %v2093
      %v2112 = vpack.c.b16 %v2096, %v2095
      %2113 = vrot.lane.b32.xlu0 %v2097, 24
      %v2114 = vpop.permute.xlu0 %2113
      %2115 = vrot.lane.b32.xlu0 %v2098, 24
      %v2116 = vpop.permute.xlu0 %2115
      %2117 = vrot.lane.b32.xlu0 %v2099, 24
      %v2118 = vpop.permute.xlu0 %2117
      %2119 = vrot.lane.b32.xlu0 %v2100, 24
      %v2120 = vpop.permute.xlu0 %2119
      %2121 = vrot.lane.b32.xlu0 %v2101, 24
      %v2122 = vpop.permute.xlu0 %2121
      %2123 = vrot.lane.b32.xlu0 %v2102, 24
      %v2124 = vpop.permute.xlu0 %2123
      %2125 = vrot.lane.b32.xlu0 %v2103, 24
      %v2126 = vpop.permute.xlu0 %2125
      %2127 = vrot.lane.b32.xlu0 %v2104, 24
      %v2128 = vpop.permute.xlu0 %2127
      %2129 = vrot.lane.b32.xlu0 %v2105, 24
      %v2130 = vpop.permute.xlu0 %2129
      %2131 = vrot.lane.b32.xlu0 %v2106, 24
      %v2132 = vpop.permute.xlu0 %2131
      %2133 = vrot.lane.b32.xlu0 %v2107, 24
      %v2134 = vpop.permute.xlu0 %2133
      %2135 = vrot.lane.b32.xlu0 %v2108, 24
      %v2136 = vpop.permute.xlu0 %2135
      %2137 = vrot.lane.b32.xlu0 %v2109, 24
      %v2138 = vpop.permute.xlu0 %2137
      %2139 = vrot.lane.b32.xlu0 %v2110, 24
      %v2140 = vpop.permute.xlu0 %2139
      %2141 = vrot.lane.b32.xlu0 %v2111, 24
      %v2142 = vpop.permute.xlu0 %2141
      %2143 = vrot.lane.b32.xlu0 %v2112, 24
      %v2144 = vpop.permute.xlu0 %2143
      %v2161 = vunpack.c.l.b16 %v1007
      %v2162 = vunpack.c.l.b16 %v1008
      %v2163 = vunpack.c.l.b16 %v1009
      %v2164 = vunpack.c.l.b16 %v1010
      %v2165 = vunpack.c.l.b16 %v1011
      %v2166 = vunpack.c.l.b16 %v1012
      %v2167 = vunpack.c.l.b16 %v1013
      %v2168 = vunpack.c.l.b16 %v1014
      %v2169 = vunpack.c.l.b16 %v1015
      %v2170 = vunpack.c.l.b16 %v1016
      %v2171 = vunpack.c.l.b16 %v1017
      %v2172 = vunpack.c.l.b16 %v1018
      %v2173 = vunpack.c.l.b16 %v1019
      %v2174 = vunpack.c.l.b16 %v1020
      %v2175 = vunpack.c.l.b16 %v1021
      %v2176 = vunpack.c.l.b16 %v1022
      %v2177 = vpack.c.b16 %v2161, %v2161
      %v2178 = vpack.c.b16 %v2162, %v2162
      %v2179 = vpack.c.b16 %v2163, %v2163
      %v2180 = vpack.c.b16 %v2164, %v2164
      %v2181 = vpack.c.b16 %v2165, %v2165
      %v2182 = vpack.c.b16 %v2166, %v2166
      %v2183 = vpack.c.b16 %v2167, %v2167
      %v2184 = vpack.c.b16 %v2168, %v2168
      %v2185 = vpack.c.b16 %v2169, %v2169
      %v2186 = vpack.c.b16 %v2170, %v2170
      %v2187 = vpack.c.b16 %v2171, %v2171
      %v2188 = vpack.c.b16 %v2172, %v2172
      %v2189 = vpack.c.b16 %v2173, %v2173
      %v2190 = vpack.c.b16 %v2174, %v2174
      %v2191 = vpack.c.b16 %v2175, %v2175
      %v2192 = vpack.c.b16 %v2176, %v2176
      %v2194 = vshrl.u32 %v2097, 16
      %v2196 = vshll.u32 %v2097, 16
      %v2198 = vrot.slane %v2196, 1
      %v2199 = vor.u32 %v2194, %v2198
      %v2201 = vshll.u32 %v2177, 16
      %v2203 = vrot.slane %v2201, 1
      %v2204 = vsel %vm1167, %v2199, %v2203
      %v2206 = vshrl.u32 %v2098, 16
      %v2208 = vshll.u32 %v2098, 16
      %v2210 = vrot.slane %v2208, 1
      %v2211 = vor.u32 %v2206, %v2210
      %v2213 = vshll.u32 %v2178, 16
      %v2215 = vrot.slane %v2213, 1
      %v2216 = vsel %vm1167, %v2211, %v2215
      %v2218 = vshrl.u32 %v2099, 16
      %v2220 = vshll.u32 %v2099, 16
      %v2222 = vrot.slane %v2220, 1
      %v2223 = vor.u32 %v2218, %v2222
      %v2225 = vshll.u32 %v2179, 16
      %v2227 = vrot.slane %v2225, 1
      %v2228 = vsel %vm1167, %v2223, %v2227
      %v2230 = vshrl.u32 %v2100, 16
      %v2232 = vshll.u32 %v2100, 16
      %v2234 = vrot.slane %v2232, 1
      %v2235 = vor.u32 %v2230, %v2234
      %v2237 = vshll.u32 %v2180, 16
      %v2239 = vrot.slane %v2237, 1
      %v2240 = vsel %vm1167, %v2235, %v2239
      %v2242 = vshrl.u32 %v2101, 16
      %v2244 = vshll.u32 %v2101, 16
      %v2246 = vrot.slane %v2244, 1
      %v2247 = vor.u32 %v2242, %v2246
      %v2249 = vshll.u32 %v2181, 16
      %v2251 = vrot.slane %v2249, 1
      %v2252 = vsel %vm1167, %v2247, %v2251
      %v2254 = vshrl.u32 %v2102, 16
      %v2256 = vshll.u32 %v2102, 16
      %v2258 = vrot.slane %v2256, 1
      %v2259 = vor.u32 %v2254, %v2258
      %v2261 = vshll.u32 %v2182, 16
      %v2263 = vrot.slane %v2261, 1
      %v2264 = vsel %vm1167, %v2259, %v2263
      %v2266 = vshrl.u32 %v2103, 16
      %v2268 = vshll.u32 %v2103, 16
      %v2270 = vrot.slane %v2268, 1
      %v2271 = vor.u32 %v2266, %v2270
      %v2273 = vshll.u32 %v2183, 16
      %v2275 = vrot.slane %v2273, 1
      %v2276 = vsel %vm1167, %v2271, %v2275
      %v2278 = vshrl.u32 %v2104, 16
      %v2280 = vshll.u32 %v2104, 16
      %v2282 = vrot.slane %v2280, 1
      %v2283 = vor.u32 %v2278, %v2282
      %v2285 = vshll.u32 %v2184, 16
      %v2287 = vrot.slane %v2285, 1
      %v2288 = vsel %vm1167, %v2283, %v2287
      %v2290 = vshrl.u32 %v2105, 16
      %v2292 = vshll.u32 %v2105, 16
      %v2294 = vrot.slane %v2292, 1
      %v2295 = vor.u32 %v2290, %v2294
      %v2297 = vshll.u32 %v2185, 16
      %v2299 = vrot.slane %v2297, 1
      %v2300 = vsel %vm1167, %v2295, %v2299
      %v2302 = vshrl.u32 %v2106, 16
      %v2304 = vshll.u32 %v2106, 16
      %v2306 = vrot.slane %v2304, 1
      %v2307 = vor.u32 %v2302, %v2306
      %v2309 = vshll.u32 %v2186, 16
      %v2311 = vrot.slane %v2309, 1
      %v2312 = vsel %vm1167, %v2307, %v2311
      %v2314 = vshrl.u32 %v2107, 16
      %v2316 = vshll.u32 %v2107, 16
      %v2318 = vrot.slane %v2316, 1
      %v2319 = vor.u32 %v2314, %v2318
      %v2321 = vshll.u32 %v2187, 16
      %v2323 = vrot.slane %v2321, 1
      %v2324 = vsel %vm1167, %v2319, %v2323
      %v2326 = vshrl.u32 %v2108, 16
      %v2328 = vshll.u32 %v2108, 16
      %v2330 = vrot.slane %v2328, 1
      %v2331 = vor.u32 %v2326, %v2330
      %v2333 = vshll.u32 %v2188, 16
      %v2335 = vrot.slane %v2333, 1
      %v2336 = vsel %vm1167, %v2331, %v2335
      %v2338 = vshrl.u32 %v2109, 16
      %v2340 = vshll.u32 %v2109, 16
      %v2342 = vrot.slane %v2340, 1
      %v2343 = vor.u32 %v2338, %v2342
      %v2345 = vshll.u32 %v2189, 16
      %v2347 = vrot.slane %v2345, 1
      %v2348 = vsel %vm1167, %v2343, %v2347
      %v2350 = vshrl.u32 %v2110, 16
      %v2352 = vshll.u32 %v2110, 16
      %v2354 = vrot.slane %v2352, 1
      %v2355 = vor.u32 %v2350, %v2354
      %v2357 = vshll.u32 %v2190, 16
      %v2359 = vrot.slane %v2357, 1
      %v2360 = vsel %vm1167, %v2355, %v2359
      %v2362 = vshrl.u32 %v2111, 16
      %v2364 = vshll.u32 %v2111, 16
      %v2366 = vrot.slane %v2364, 1
      %v2367 = vor.u32 %v2362, %v2366
      %v2369 = vshll.u32 %v2191, 16
      %v2371 = vrot.slane %v2369, 1
      %v2372 = vsel %vm1167, %v2367, %v2371
      %v2374 = vshrl.u32 %v2112, 16
      %v2376 = vshll.u32 %v2112, 16
      %v2378 = vrot.slane %v2376, 1
      %v2379 = vor.u32 %v2374, %v2378
      %v2381 = vshll.u32 %v2192, 16
      %v2383 = vrot.slane %v2381, 1
      %v2384 = vsel %vm1167, %v2379, %v2383
      %2385 = vrot.lane.b32.xlu0 %v2204, 28
      %v2386 = vpop.permute.xlu0 %2385
      %2387 = vrot.lane.b32.xlu0 %v2216, 28
      %v2388 = vpop.permute.xlu0 %2387
      %2389 = vrot.lane.b32.xlu0 %v2228, 28
      %v2390 = vpop.permute.xlu0 %2389
      %2391 = vrot.lane.b32.xlu0 %v2240, 28
      %v2392 = vpop.permute.xlu0 %2391
      %2393 = vrot.lane.b32.xlu0 %v2252, 28
      %v2394 = vpop.permute.xlu0 %2393
      %2395 = vrot.lane.b32.xlu0 %v2264, 28
      %v2396 = vpop.permute.xlu0 %2395
      %2397 = vrot.lane.b32.xlu0 %v2276, 28
      %v2398 = vpop.permute.xlu0 %2397
      %2399 = vrot.lane.b32.xlu0 %v2288, 28
      %v2400 = vpop.permute.xlu0 %2399
      %2401 = vrot.lane.b32.xlu0 %v2300, 28
      %v2402 = vpop.permute.xlu0 %2401
      %2403 = vrot.lane.b32.xlu0 %v2312, 28
      %v2404 = vpop.permute.xlu0 %2403
      %2405 = vrot.lane.b32.xlu0 %v2324, 28
      %v2406 = vpop.permute.xlu0 %2405
      %2407 = vrot.lane.b32.xlu0 %v2336, 28
      %v2408 = vpop.permute.xlu0 %2407
      %2409 = vrot.lane.b32.xlu0 %v2348, 28
      %v2410 = vpop.permute.xlu0 %2409
      %2411 = vrot.lane.b32.xlu0 %v2360, 28
      %v2412 = vpop.permute.xlu0 %2411
      %2413 = vrot.lane.b32.xlu0 %v2372, 28
      %v2414 = vpop.permute.xlu0 %2413
      %2415 = vrot.lane.b32.xlu0 %v2384, 28
      %v2416 = vpop.permute.xlu0 %2415
      %v2433 = vunpack.c.l.b16 %v1023
      %v2434 = vunpack.c.l.b16 %v1024
      %v2435 = vunpack.c.l.b16 %v1025
      %v2436 = vunpack.c.l.b16 %v1026
      %v2437 = vunpack.c.l.b16 %v1027
      %v2438 = vunpack.c.l.b16 %v1028
      %v2439 = vunpack.c.l.b16 %v1029
      %v2440 = vunpack.c.l.b16 %v1030
      %v2441 = vunpack.c.l.b16 %v1031
      %v2442 = vunpack.c.l.b16 %v1032
      %v2443 = vunpack.c.l.b16 %v1033
      %v2444 = vunpack.c.l.b16 %v1034
      %v2445 = vunpack.c.l.b16 %v1035
      %v2446 = vunpack.c.l.b16 %v1036
      %v2447 = vunpack.c.l.b16 %v1037
      %v2448 = vunpack.c.l.b16 %v1038
      %v2449 = vpack.c.b16 %v2066, %v2433
      %v2450 = vpack.c.b16 %v2068, %v2434
      %v2451 = vpack.c.b16 %v2070, %v2435
      %v2452 = vpack.c.b16 %v2072, %v2436
      %v2453 = vpack.c.b16 %v2074, %v2437
      %v2454 = vpack.c.b16 %v2076, %v2438
      %v2455 = vpack.c.b16 %v2078, %v2439
      %v2456 = vpack.c.b16 %v2080, %v2440
      %v2457 = vpack.c.b16 %v2082, %v2441
      %v2458 = vpack.c.b16 %v2084, %v2442
      %v2459 = vpack.c.b16 %v2086, %v2443
      %v2460 = vpack.c.b16 %v2088, %v2444
      %v2461 = vpack.c.b16 %v2090, %v2445
      %v2462 = vpack.c.b16 %v2092, %v2446
      %v2463 = vpack.c.b16 %v2094, %v2447
      %v2464 = vpack.c.b16 %v2096, %v2448
      %v2465 = vrot.slane %v2449, 1
      %v2466 = vrot.slane %v2177, 1
      %v2467 = vsel %vm1440, %v2465, %v2466
      %v2468 = vrot.slane %v2450, 1
      %v2469 = vrot.slane %v2178, 1
      %v2470 = vsel %vm1440, %v2468, %v2469
      %v2471 = vrot.slane %v2451, 1
      %v2472 = vrot.slane %v2179, 1
      %v2473 = vsel %vm1440, %v2471, %v2472
      %v2474 = vrot.slane %v2452, 1
      %v2475 = vrot.slane %v2180, 1
      %v2476 = vsel %vm1440, %v2474, %v2475
      %v2477 = vrot.slane %v2453, 1
      %v2478 = vrot.slane %v2181, 1
      %v2479 = vsel %vm1440, %v2477, %v2478
      %v2480 = vrot.slane %v2454, 1
      %v2481 = vrot.slane %v2182, 1
      %v2482 = vsel %vm1440, %v2480, %v2481
      %v2483 = vrot.slane %v2455, 1
      %v2484 = vrot.slane %v2183, 1
      %v2485 = vsel %vm1440, %v2483, %v2484
      %v2486 = vrot.slane %v2456, 1
      %v2487 = vrot.slane %v2184, 1
      %v2488 = vsel %vm1440, %v2486, %v2487
      %v2489 = vrot.slane %v2457, 1
      %v2490 = vrot.slane %v2185, 1
      %v2491 = vsel %vm1440, %v2489, %v2490
      %v2492 = vrot.slane %v2458, 1
      %v2493 = vrot.slane %v2186, 1
      %v2494 = vsel %vm1440, %v2492, %v2493
      %v2495 = vrot.slane %v2459, 1
      %v2496 = vrot.slane %v2187, 1
      %v2497 = vsel %vm1440, %v2495, %v2496
      %v2498 = vrot.slane %v2460, 1
      %v2499 = vrot.slane %v2188, 1
      %v2500 = vsel %vm1440, %v2498, %v2499
      %v2501 = vrot.slane %v2461, 1
      %v2502 = vrot.slane %v2189, 1
      %v2503 = vsel %vm1440, %v2501, %v2502
      %v2504 = vrot.slane %v2462, 1
      %v2505 = vrot.slane %v2190, 1
      %v2506 = vsel %vm1440, %v2504, %v2505
      %v2507 = vrot.slane %v2463, 1
      %v2508 = vrot.slane %v2191, 1
      %v2509 = vsel %vm1440, %v2507, %v2508
      %v2510 = vrot.slane %v2464, 1
      %v2511 = vrot.slane %v2192, 1
      %v2512 = vsel %vm1440, %v2510, %v2511
      %2513 = vrot.lane.b32.xlu0 %v2467, 32
      %v2514 = vpop.permute.xlu0 %2513
      %2515 = vrot.lane.b32.xlu0 %v2470, 32
      %v2516 = vpop.permute.xlu0 %2515
      %2517 = vrot.lane.b32.xlu0 %v2473, 32
      %v2518 = vpop.permute.xlu0 %2517
      %2519 = vrot.lane.b32.xlu0 %v2476, 32
      %v2520 = vpop.permute.xlu0 %2519
      %2521 = vrot.lane.b32.xlu0 %v2479, 32
      %v2522 = vpop.permute.xlu0 %2521
      %2523 = vrot.lane.b32.xlu0 %v2482, 32
      %v2524 = vpop.permute.xlu0 %2523
      %2525 = vrot.lane.b32.xlu0 %v2485, 32
      %v2526 = vpop.permute.xlu0 %2525
      %2527 = vrot.lane.b32.xlu0 %v2488, 32
      %v2528 = vpop.permute.xlu0 %2527
      %2529 = vrot.lane.b32.xlu0 %v2491, 32
      %v2530 = vpop.permute.xlu0 %2529
      %2531 = vrot.lane.b32.xlu0 %v2494, 32
      %v2532 = vpop.permute.xlu0 %2531
      %2533 = vrot.lane.b32.xlu0 %v2497, 32
      %v2534 = vpop.permute.xlu0 %2533
      %2535 = vrot.lane.b32.xlu0 %v2500, 32
      %v2536 = vpop.permute.xlu0 %2535
      %2537 = vrot.lane.b32.xlu0 %v2503, 32
      %v2538 = vpop.permute.xlu0 %2537
      %2539 = vrot.lane.b32.xlu0 %v2506, 32
      %v2540 = vpop.permute.xlu0 %2539
      %2541 = vrot.lane.b32.xlu0 %v2509, 32
      %v2542 = vpop.permute.xlu0 %2541
      %2543 = vrot.lane.b32.xlu0 %v2512, 32
      %v2544 = vpop.permute.xlu0 %2543
      %vm2545 = vcmask 31744
      %v2547 = vsel %vm2545, %v1103, %v1361
      %v2549 = vsel %vm2545, %v1104, %v1363
      %v2551 = vsel %vm2545, %v1105, %v1365
      %v2553 = vsel %vm2545, %v1106, %v1367
      %v2555 = vsel %vm2545, %v1107, %v1369
      %v2557 = vsel %vm2545, %v1108, %v1371
      %v2559 = vsel %vm2545, %v1109, %v1373
      %v2561 = vsel %vm2545, %v1110, %v1375
      %v2563 = vsel %vm2545, %v1111, %v1377
      %v2565 = vsel %vm2545, %v1112, %v1379
      %v2567 = vsel %vm2545, %v1113, %v1381
      %v2569 = vsel %vm2545, %v1114, %v1383
      %v2571 = vsel %vm2545, %v1115, %v1385
      %v2573 = vsel %vm2545, %v1116, %v1387
      %v2575 = vsel %vm2545, %v1117, %v1389
      %v2577 = vsel %vm2545, %v1118, %v1391
      %vm2578 = vcmask 64512
      %v2580 = vsel %vm2578, %v2547, %v1490
      %v2582 = vsel %vm2578, %v2549, %v1492
      %v2584 = vsel %vm2578, %v2551, %v1494
      %v2586 = vsel %vm2578, %v2553, %v1496
      %v2588 = vsel %vm2578, %v2555, %v1498
      %v2590 = vsel %vm2578, %v2557, %v1500
      %v2592 = vsel %vm2578, %v2559, %v1502
      %v2594 = vsel %vm2578, %v2561, %v1504
      %v2596 = vsel %vm2578, %v2563, %v1506
      %v2598 = vsel %vm2578, %v2565, %v1508
      %v2600 = vsel %vm2578, %v2567, %v1510
      %v2602 = vsel %vm2578, %v2569, %v1512
      %v2604 = vsel %vm2578, %v2571, %v1514
      %v2606 = vsel %vm2578, %v2573, %v1516
      %v2608 = vsel %vm2578, %v2575, %v1518
      %v2610 = vsel %vm2578, %v2577, %v1520
      %vm2611 = vcmask 97280
      %v2613 = vsel %vm2611, %v2580, %v1602
      %v2615 = vsel %vm2611, %v2582, %v1604
      %v2617 = vsel %vm2611, %v2584, %v1606
      %v2619 = vsel %vm2611, %v2586, %v1608
      %v2621 = vsel %vm2611, %v2588, %v1610
      %v2623 = vsel %vm2611, %v2590, %v1612
      %v2625 = vsel %vm2611, %v2592, %v1614
      %v2627 = vsel %vm2611, %v2594, %v1616
      %v2629 = vsel %vm2611, %v2596, %v1618
      %v2631 = vsel %vm2611, %v2598, %v1620
      %v2633 = vsel %vm2611, %v2600, %v1622
      %v2635 = vsel %vm2611, %v2602, %v1624
      %v2637 = vsel %vm2611, %v2604, %v1626
      %v2639 = vsel %vm2611, %v2606, %v1628
      %v2641 = vsel %vm2611, %v2608, %v1630
      %v2643 = vsel %vm2611, %v2610, %v1632
      %vm2644 = vcmask 130048
      %v2646 = vsel %vm2644, %v2613, %v1874
      %v2648 = vsel %vm2644, %v2615, %v1876
      %v2650 = vsel %vm2644, %v2617, %v1878
      %v2652 = vsel %vm2644, %v2619, %v1880
      %v2654 = vsel %vm2644, %v2621, %v1882
      %v2656 = vsel %vm2644, %v2623, %v1884
      %v2658 = vsel %vm2644, %v2625, %v1886
      %v2660 = vsel %vm2644, %v2627, %v1888
      %v2662 = vsel %vm2644, %v2629, %v1890
      %v2664 = vsel %vm2644, %v2631, %v1892
      %v2666 = vsel %vm2644, %v2633, %v1894
      %v2668 = vsel %vm2644, %v2635, %v1896
      %v2670 = vsel %vm2644, %v2637, %v1898
      %v2672 = vsel %vm2644, %v2639, %v1900
      %v2674 = vsel %vm2644, %v2641, %v1902
      %v2676 = vsel %vm2644, %v2643, %v1904
      %vm2677 = vcmask 162816
      %v2679 = vsel %vm2677, %v2646, %v2002
      %v2681 = vsel %vm2677, %v2648, %v2004
      %v2683 = vsel %vm2677, %v2650, %v2006
      %v2685 = vsel %vm2677, %v2652, %v2008
      %v2687 = vsel %vm2677, %v2654, %v2010
      %v2689 = vsel %vm2677, %v2656, %v2012
      %v2691 = vsel %vm2677, %v2658, %v2014
      %v2693 = vsel %vm2677, %v2660, %v2016
      %v2695 = vsel %vm2677, %v2662, %v2018
      %v2697 = vsel %vm2677, %v2664, %v2020
      %v2699 = vsel %vm2677, %v2666, %v2022
      %v2701 = vsel %vm2677, %v2668, %v2024
      %v2703 = vsel %vm2677, %v2670, %v2026
      %v2705 = vsel %vm2677, %v2672, %v2028
      %v2707 = vsel %vm2677, %v2674, %v2030
      %v2709 = vsel %vm2677, %v2676, %v2032
      %vm2710 = vcmask 195584
      %v2712 = vsel %vm2710, %v2679, %v2114
      %v2714 = vsel %vm2710, %v2681, %v2116
      %v2716 = vsel %vm2710, %v2683, %v2118
      %v2718 = vsel %vm2710, %v2685, %v2120
      %v2720 = vsel %vm2710, %v2687, %v2122
      %v2722 = vsel %vm2710, %v2689, %v2124
      %v2724 = vsel %vm2710, %v2691, %v2126
      %v2726 = vsel %vm2710, %v2693, %v2128
      %v2728 = vsel %vm2710, %v2695, %v2130
      %v2730 = vsel %vm2710, %v2697, %v2132
      %v2732 = vsel %vm2710, %v2699, %v2134
      %v2734 = vsel %vm2710, %v2701, %v2136
      %v2736 = vsel %vm2710, %v2703, %v2138
      %v2738 = vsel %vm2710, %v2705, %v2140
      %v2740 = vsel %vm2710, %v2707, %v2142
      %v2742 = vsel %vm2710, %v2709, %v2144
      %vm2743 = vcmask 228352
      %v2745 = vsel %vm2743, %v2712, %v2386
      %v2747 = vsel %vm2743, %v2714, %v2388
      %v2749 = vsel %vm2743, %v2716, %v2390
      %v2751 = vsel %vm2743, %v2718, %v2392
      %v2753 = vsel %vm2743, %v2720, %v2394
      %v2755 = vsel %vm2743, %v2722, %v2396
      %v2757 = vsel %vm2743, %v2724, %v2398
      %v2759 = vsel %vm2743, %v2726, %v2400
      %v2761 = vsel %vm2743, %v2728, %v2402
      %v2763 = vsel %vm2743, %v2730, %v2404
      %v2765 = vsel %vm2743, %v2732, %v2406
      %v2767 = vsel %vm2743, %v2734, %v2408
      %v2769 = vsel %vm2743, %v2736, %v2410
      %v2771 = vsel %vm2743, %v2738, %v2412
      %v2773 = vsel %vm2743, %v2740, %v2414
      %v2775 = vsel %vm2743, %v2742, %v2416
      %vm2776 = vcmask 261120
      %v2778 = vsel %vm2776, %v2745, %v2514
      %v2780 = vsel %vm2776, %v2747, %v2516
      %v2782 = vsel %vm2776, %v2749, %v2518
      %v2784 = vsel %vm2776, %v2751, %v2520
      %v2786 = vsel %vm2776, %v2753, %v2522
      %v2788 = vsel %vm2776, %v2755, %v2524
      %v2790 = vsel %vm2776, %v2757, %v2526
      %v2792 = vsel %vm2776, %v2759, %v2528
      %v2794 = vsel %vm2776, %v2761, %v2530
      %v2796 = vsel %vm2776, %v2763, %v2532
      %v2798 = vsel %vm2776, %v2765, %v2534
      %v2800 = vsel %vm2776, %v2767, %v2536
      %v2802 = vsel %vm2776, %v2769, %v2538
      %v2804 = vsel %vm2776, %v2771, %v2540
      %v2806 = vsel %vm2776, %v2773, %v2542
      %v2808 = vsel %vm2776, %v2775, %v2544
      %v2814 = vunpack.c.l.b16 %v841
      %v2815 = vunpack.c.l.b16 %v842
      %v2816 = vunpack.c.l.b16 %v843
      %v2817 = vunpack.c.l.b16 %v844
      %v2818 = vunpack.c.l.b16 %v845
      %v2819 = vpack.c.b16 %v2815, %v2814
      %v2820 = vpack.c.b16 %v2817, %v2816
      %v2821 = vpack.c.b16 %v2818, %v2818
      %vm2824 = vcmask 293888
      %v2825 = vsel %vm2824, %v2778, 0
      %v2827 = vsel %vm2824, %v2780, 0
      %v2829 = vsel %vm2824, %v2782, 0
      %v2831 = vsel %vm2824, %v2784, 0
      %v2833 = vsel %vm2824, %v2786, 0
      %v2835 = vsel %vm2824, %v2788, 0
      %v2837 = vsel %vm2824, %v2790, 0
      %v2839 = vsel %vm2824, %v2792, 0
      %v2841 = vsel %vm2824, %v2794, 0
      %v2843 = vsel %vm2824, %v2796, 0
      %v2845 = vsel %vm2824, %v2798, 0
      %v2847 = vsel %vm2824, %v2800, 0
      %v2849 = vsel %vm2824, %v2802, 0
      %v2851 = vsel %vm2824, %v2804, 0
      %v2853 = vsel %vm2824, %v2806, 0
      %v2855 = vsel %vm2824, %v2808, 0
      %vm2857 = vcmask 1041408
      %v2859 = vsel %vm2857, %v2821, 0
      %2861 = vmatprep.subr.bf16.mxu0 0
      %2862 = vmatpush1.bf16.msra.mxu0 %v2819
      %2863 = vmatprep.subr.bf16.mxu0 0
      %2864 = vmatpush1.bf16.msra.mxu0 %v2820
      %2865 = vmatprep.subr.bf16.mxu0 0
      %2866 = vmatpush1.bf16.msra.mxu0 %v2859
      %2867 = vmatprep.subr.bf16.mxu0 0
      %2868 = vmatpush1.bf16.msra.mxu0 0
      %2869 = vmatprep.subr.bf16.mxu0 0
      %2870 = vmatpush1.bf16.msra.mxu0 0
      %2871 = vmatprep.subr.bf16.mxu0 0
      %2872 = vmatpush1.bf16.msra.mxu0 0
      %2873 = vmatprep.subr.bf16.mxu0 0
      %2874 = vmatpush1.bf16.msra.mxu0 0
      %2875 = vmatprep.subr.bf16.mxu0 0
      %2876 = vmatpush1.bf16.msra.mxu0 0
      %2877 = vmatprep.subr.bf16.mxu0 0
      %2878 = vmatpush1.bf16.msra.mxu0 0
      %2879 = vmatprep.subr.bf16.mxu0 0
      %2880 = vmatpush1.bf16.msra.mxu0 0
      %2881 = vmatprep.subr.bf16.mxu0 0
      %2882 = vmatpush1.bf16.msra.mxu0 0
      %2883 = vmatprep.subr.bf16.mxu0 0
      %2884 = vmatpush1.bf16.msra.mxu0 0
      %2885 = vmatprep.subr.bf16.mxu0 0
      %2886 = vmatpush1.bf16.msra.mxu0 0
      %2887 = vmatprep.subr.bf16.mxu0 0
      %2888 = vmatpush1.bf16.msra.mxu0 0
      %2889 = vmatprep.subr.bf16.mxu0 0
      %2890 = vmatpush1.bf16.msra.mxu0 0
      %2891 = vmatprep.subr.bf16.mxu0 0
      %2892 = vmatpush1.bf16.msra.mxu0 0
      %2893 = vmatprep.mubr.bf16.mxu0 0
      %2894 = vmatmul.mubr.bf16.gmra.mrb[0].mxu0 %v2825
      %v2895 = vpop.f32.mrb[0].mxu0
      %v2896 = vadd.f32 0.0, %v2895
      %v2897 = vpop.f32.mrb[0].mxu0
      %v2898 = vpop.f32.mrb[0].mxu0
      %v2899 = vadd.f32 0.0, %v2898
      %v2900 = vpop.f32.mrb[0].mxu0
      %2901 = vmatprep.mubr.bf16.mxu0 0
      %2902 = vmatmul.mubr.bf16.gmra.mrb[0].mxu0 %v2827
      %v2903 = vpop.f32.mrb[0].mxu0
      %v2904 = vadd.f32 0.0, %v2903
      %v2905 = vpop.f32.mrb[0].mxu0
      %v2906 = vpop.f32.mrb[0].mxu0
      %v2907 = vadd.f32 0.0, %v2906
      %v2908 = vpop.f32.mrb[0].mxu0
      %2909 = vmatprep.mubr.bf16.mxu0 0
      %2910 = vmatmul.mubr.bf16.gmra.mrb[0].mxu0 %v2829
      %v2911 = vpop.f32.mrb[0].mxu0
      %v2912 = vadd.f32 0.0, %v2911
      %v2913 = vpop.f32.mrb[0].mxu0
      %v2914 = vpop.f32.mrb[0].mxu0
      %v2915 = vadd.f32 0.0, %v2914
      %v2916 = vpop.f32.mrb[0].mxu0
      %2917 = vmatprep.mubr.bf16.mxu0 0
      %2918 = vmatmul.mubr.bf16.gmra.mrb[0].mxu0 %v2831
      %v2919 = vpop.f32.mrb[0].mxu0
      %v2920 = vadd.f32 0.0, %v2919
      %v2921 = vpop.f32.mrb[0].mxu0
      %v2922 = vpop.f32.mrb[0].mxu0
      %v2923 = vadd.f32 0.0, %v2922
      %v2924 = vpop.f32.mrb[0].mxu0
      %2925 = vmatprep.mubr.bf16.mxu0 0
      %2926 = vmatmul.mubr.bf16.gmra.mrb[0].mxu0 %v2833
      %v2927 = vpop.f32.mrb[0].mxu0
      %v2928 = vadd.f32 0.0, %v2927
      %v2929 = vpop.f32.mrb[0].mxu0
      %v2930 = vpop.f32.mrb[0].mxu0
      %v2931 = vadd.f32 0.0, %v2930
      %v2932 = vpop.f32.mrb[0].mxu0
      %2933 = vmatprep.mubr.bf16.mxu0 0
      %2934 = vmatmul.mubr.bf16.gmra.mrb[0].mxu0 %v2835
      %v2935 = vpop.f32.mrb[0].mxu0
      %v2936 = vadd.f32 0.0, %v2935
      %v2937 = vpop.f32.mrb[0].mxu0
      %v2938 = vpop.f32.mrb[0].mxu0
      %v2939 = vadd.f32 0.0, %v2938
      %v2940 = vpop.f32.mrb[0].mxu0
      %2941 = vmatprep.mubr.bf16.mxu0 0
      %2942 = vmatmul.mubr.bf16.gmra.mrb[0].mxu0 %v2837
      %v2943 = vpop.f32.mrb[0].mxu0
      %v2944 = vadd.f32 0.0, %v2943
      %v2945 = vpop.f32.mrb[0].mxu0
      %v2946 = vpop.f32.mrb[0].mxu0
      %v2947 = vadd.f32 0.0, %v2946
      %v2948 = vpop.f32.mrb[0].mxu0
      %2949 = vmatprep.mubr.bf16.mxu0 0
      %2950 = vmatmul.mubr.bf16.gmra.mrb[0].mxu0 %v2839
      %v2951 = vpop.f32.mrb[0].mxu0
      %v2952 = vadd.f32 0.0, %v2951
      %v2953 = vpop.f32.mrb[0].mxu0
      %v2954 = vpop.f32.mrb[0].mxu0
      %v2955 = vadd.f32 0.0, %v2954
      %v2956 = vpop.f32.mrb[0].mxu0
      %2957 = vmatprep.mubr.bf16.mxu0 0
      %2958 = vmatmul.mubr.bf16.gmra.mrb[0].mxu0 %v2841
      %v2959 = vpop.f32.mrb[0].mxu0
      %v2960 = vadd.f32 0.0, %v2959
      %v2961 = vpop.f32.mrb[0].mxu0
      %v2962 = vpop.f32.mrb[0].mxu0
      %v2963 = vadd.f32 0.0, %v2962
      %v2964 = vpop.f32.mrb[0].mxu0
      %2965 = vmatprep.mubr.bf16.mxu0 0
      %2966 = vmatmul.mubr.bf16.gmra.mrb[0].mxu0 %v2843
      %v2967 = vpop.f32.mrb[0].mxu0
      %v2968 = vadd.f32 0.0, %v2967
      %v2969 = vpop.f32.mrb[0].mxu0
      %v2970 = vpop.f32.mrb[0].mxu0
      %v2971 = vadd.f32 0.0, %v2970
      %v2972 = vpop.f32.mrb[0].mxu0
      %2973 = vmatprep.mubr.bf16.mxu0 0
      %2974 = vmatmul.mubr.bf16.gmra.mrb[0].mxu0 %v2845
      %v2975 = vpop.f32.mrb[0].mxu0
      %v2976 = vadd.f32 0.0, %v2975
      %v2977 = vpop.f32.mrb[0].mxu0
      %v2978 = vpop.f32.mrb[0].mxu0
      %v2979 = vadd.f32 0.0, %v2978
      %v2980 = vpop.f32.mrb[0].mxu0
      %2981 = vmatprep.mubr.bf16.mxu0 0
      %2982 = vmatmul.mubr.bf16.gmra.mrb[0].mxu0 %v2847
      %v2983 = vpop.f32.mrb[0].mxu0
      %v2984 = vadd.f32 0.0, %v2983
      %v2985 = vpop.f32.mrb[0].mxu0
      %v2986 = vpop.f32.mrb[0].mxu0
      %v2987 = vadd.f32 0.0, %v2986
      %v2988 = vpop.f32.mrb[0].mxu0
      %2989 = vmatprep.mubr.bf16.mxu0 0
      %2990 = vmatmul.mubr.bf16.gmra.mrb[0].mxu0 %v2849
      %v2991 = vpop.f32.mrb[0].mxu0
      %v2992 = vadd.f32 0.0, %v2991
      %v2993 = vpop.f32.mrb[0].mxu0
      %v2994 = vpop.f32.mrb[0].mxu0
      %v2995 = vadd.f32 0.0, %v2994
      %v2996 = vpop.f32.mrb[0].mxu0
      %2997 = vmatprep.mubr.bf16.mxu0 0
      %2998 = vmatmul.mubr.bf16.gmra.mrb[0].mxu0 %v2851
      %v2999 = vpop.f32.mrb[0].mxu0
      %v3000 = vadd.f32 0.0, %v2999
      %v3001 = vpop.f32.mrb[0].mxu0
      %v3002 = vpop.f32.mrb[0].mxu0
      %v3003 = vadd.f32 0.0, %v3002
      %v3004 = vpop.f32.mrb[0].mxu0
      %3005 = vmatprep.mubr.bf16.mxu0 0
      %3006 = vmatmul.mubr.bf16.gmra.mrb[0].mxu0 %v2853
      %v3007 = vpop.f32.mrb[0].mxu0
      %v3008 = vadd.f32 0.0, %v3007
      %v3009 = vpop.f32.mrb[0].mxu0
      %v3010 = vpop.f32.mrb[0].mxu0
      %v3011 = vadd.f32 0.0, %v3010
      %v3012 = vpop.f32.mrb[0].mxu0
      %3013 = vmatprep.mubr.bf16.mxu0 0
      %3014 = vmatmul.mubr.bf16.gmra.mrb[0].mxu0 %v2855
      %v3015 = vpop.f32.mrb[0].mxu0
      %v3016 = vadd.f32 0.0, %v3015
      %v3017 = vpop.f32.mrb[0].mxu0
      %v3018 = vpop.f32.mrb[0].mxu0
      %v3019 = vadd.f32 0.0, %v3018
      %v3020 = vpop.f32.mrb[0].mxu0
      %3021 = vdwg.mxu0
      %3022 = vst.msk [vmem:[%s208] sm:$0xff] %vm2545, %v2896
      %3023 = vst.msk [vmem:[%s208 + $0x8] sm:$0xff] %vm2545, %v2899
      %3024 = vst.msk [vmem:[%s208 + $0x10] sm:$0xff] %vm2545, %v2904
      %3025 = vst.msk [vmem:[%s208 + $0x18] sm:$0xff] %vm2545, %v2907
      %3026 = vst.msk [vmem:[%s208 + $0x20] sm:$0xff] %vm2545, %v2912
      %3027 = vst.msk [vmem:[%s208 + $0x28] sm:$0xff] %vm2545, %v2915
      %3028 = vst.msk [vmem:[%s208 + $0x30] sm:$0xff] %vm2545, %v2920
      %3029 = vst.msk [vmem:[%s208 + $0x38] sm:$0xff] %vm2545, %v2923
      %3030 = vst.msk [vmem:[%s208 + $0x40] sm:$0xff] %vm2545, %v2928
      %3031 = vst.msk [vmem:[%s208 + $0x48] sm:$0xff] %vm2545, %v2931
      %3032 = vst.msk [vmem:[%s208 + $0x50] sm:$0xff] %vm2545, %v2936
      %3033 = vst.msk [vmem:[%s208 + $0x58] sm:$0xff] %vm2545, %v2939
      %3034 = vst.msk [vmem:[%s208 + $0x60] sm:$0xff] %vm2545, %v2944
      %3035 = vst.msk [vmem:[%s208 + $0x68] sm:$0xff] %vm2545, %v2947
      %3036 = vst.msk [vmem:[%s208 + $0x70] sm:$0xff] %vm2545, %v2952
      %3037 = vst.msk [vmem:[%s208 + $0x78] sm:$0xff] %vm2545, %v2955
      %3038 = vst.msk [vmem:[%s208 + $0x80] sm:$0xff] %vm2545, %v2960
      %3039 = vst.msk [vmem:[%s208 + $0x88] sm:$0xff] %vm2545, %v2963
      %3040 = vst.msk [vmem:[%s208 + $0x90] sm:$0xff] %vm2545, %v2968
      %3041 = vst.msk [vmem:[%s208 + $0x98] sm:$0xff] %vm2545, %v2971
      %3042 = vst.msk [vmem:[%s208 + $0xa0] sm:$0xff] %vm2545, %v2976
      %3043 = vst.msk [vmem:[%s208 + $0xa8] sm:$0xff] %vm2545, %v2979
      %3044 = vst.msk [vmem:[%s208 + $0xb0] sm:$0xff] %vm2545, %v2984
      %3045 = vst.msk [vmem:[%s208 + $0xb8] sm:$0xff] %vm2545, %v2987
      %3046 = vst.msk [vmem:[%s208 + $0xc0] sm:$0xff] %vm2545, %v2992
      %3047 = vst.msk [vmem:[%s208 + $0xc8] sm:$0xff] %vm2545, %v2995
      %3048 = vst.msk [vmem:[%s208 + $0xd0] sm:$0xff] %vm2545, %v3000
      %3049 = vst.msk [vmem:[%s208 + $0xd8] sm:$0xff] %vm2545, %v3003
      %3050 = vst.msk [vmem:[%s208 + $0xe0] sm:$0xff] %vm2545, %v3008
      %3051 = vst.msk [vmem:[%s208 + $0xe8] sm:$0xff] %vm2545, %v3011
      %3052 = vst.msk [vmem:[%s208 + $0xf0] sm:$0xff] %vm2545, %v3016
      %3053 = vst.msk [vmem:[%s208 + $0xf8] sm:$0xff] %vm2545, %v3019
      %v3054 = vsel %vm2545, %v2896, 0.0
      %v3055 = vsel %vm2545, %v2899, 0.0
      %v3056 = vadd.f32 %v3054, %v3055
      %v3057 = vsel %vm2545, %v2904, 0.0
      %v3058 = vadd.f32 %v3056, %v3057
      %v3059 = vsel %vm2545, %v2907, 0.0
      %v3060 = vadd.f32 %v3058, %v3059
      %v3061 = vsel %vm2545, %v2912, 0.0
      %v3062 = vadd.f32 %v3060, %v3061
      %v3063 = vsel %vm2545, %v2915, 0.0
      %v3064 = vadd.f32 %v3062, %v3063
      %v3065 = vsel %vm2545, %v2920, 0.0
      %v3066 = vadd.f32 %v3064, %v3065
      %v3067 = vsel %vm2545, %v2923, 0.0
      %v3068 = vadd.f32 %v3066, %v3067
      %v3069 = vsel %vm2545, %v2928, 0.0
      %v3070 = vadd.f32 %v3068, %v3069
      %v3071 = vsel %vm2545, %v2931, 0.0
      %v3072 = vadd.f32 %v3070, %v3071
      %v3073 = vsel %vm2545, %v2936, 0.0
      %v3074 = vadd.f32 %v3072, %v3073
      %v3075 = vsel %vm2545, %v2939, 0.0
      %v3076 = vadd.f32 %v3074, %v3075
      %v3077 = vsel %vm2545, %v2944, 0.0
      %v3078 = vadd.f32 %v3076, %v3077
      %v3079 = vsel %vm2545, %v2947, 0.0
      %v3080 = vadd.f32 %v3078, %v3079
      %v3081 = vsel %vm2545, %v2952, 0.0
      %v3082 = vadd.f32 %v3080, %v3081
      %v3083 = vsel %vm2545, %v2955, 0.0
      %v3084 = vadd.f32 %v3082, %v3083
      %v3085 = vsel %vm2545, %v2960, 0.0
      %v3086 = vadd.f32 %v3084, %v3085
      %v3087 = vsel %vm2545, %v2963, 0.0
      %v3088 = vadd.f32 %v3086, %v3087
      %v3089 = vsel %vm2545, %v2968, 0.0
      %v3090 = vadd.f32 %v3088, %v3089
      %v3091 = vsel %vm2545, %v2971, 0.0
      %v3092 = vadd.f32 %v3090, %v3091
      %v3093 = vsel %vm2545, %v2976, 0.0
      %v3094 = vadd.f32 %v3092, %v3093
      %v3095 = vsel %vm2545, %v2979, 0.0
      %v3096 = vadd.f32 %v3094, %v3095
      %v3097 = vsel %vm2545, %v2984, 0.0
      %v3098 = vadd.f32 %v3096, %v3097
      %v3099 = vsel %vm2545, %v2987, 0.0
      %v3100 = vadd.f32 %v3098, %v3099
      %v3101 = vsel %vm2545, %v2992, 0.0
      %v3102 = vadd.f32 %v3100, %v3101
      %v3103 = vsel %vm2545, %v2995, 0.0
      %v3104 = vadd.f32 %v3102, %v3103
      %v3105 = vsel %vm2545, %v3000, 0.0
      %v3106 = vadd.f32 %v3104, %v3105
      %v3107 = vsel %vm2545, %v3003, 0.0
      %v3108 = vadd.f32 %v3106, %v3107
      %v3109 = vsel %vm2545, %v3008, 0.0
      %v3110 = vadd.f32 %v3108, %v3109
      %v3111 = vsel %vm2545, %v3011, 0.0
      %v3112 = vadd.f32 %v3110, %v3111
      %v3113 = vsel %vm2545, %v3016, 0.0
      %v3114 = vadd.f32 %v3112, %v3113
      %v3115 = vsel %vm2545, %v3019, 0.0
      %v3116 = vadd.f32 %v3114, %v3115
      %v3117 = vrot.slane %v3116, 4
      %v3118 = vadd.f32 %v3116, %v3117
      %v3119 = vrot.slane %v3118, 2
      %v3120 = vadd.f32 %v3118, %v3119
      %v3121 = vrot.slane %v3120, 1
      %v3122 = vadd.f32 %v3120, %v3121
      %3123 = vst.msk [vmem:[%s211] sm:$0x1] %vm219, %v3122
      %v3124 = vmul.f32 %v2896, %v2896
      %v3125 = vmul.f32 %v2899, %v2899
      %v3126 = vmul.f32 %v2904, %v2904
      %v3127 = vmul.f32 %v2907, %v2907
      %v3128 = vmul.f32 %v2912, %v2912
      %v3129 = vmul.f32 %v2915, %v2915
      %v3130 = vmul.f32 %v2920, %v2920
      %v3131 = vmul.f32 %v2923, %v2923
      %v3132 = vmul.f32 %v2928, %v2928
      %v3133 = vmul.f32 %v2931, %v2931
      %v3134 = vmul.f32 %v2936, %v2936
      %v3135 = vmul.f32 %v2939, %v2939
      %v3136 = vmul.f32 %v2944, %v2944
      %v3137 = vmul.f32 %v2947, %v2947
      %v3138 = vmul.f32 %v2952, %v2952
      %v3139 = vmul.f32 %v2955, %v2955
      %v3140 = vmul.f32 %v2960, %v2960
      %v3141 = vmul.f32 %v2963, %v2963
      %v3142 = vmul.f32 %v2968, %v2968
      %v3143 = vmul.f32 %v2971, %v2971
      %v3144 = vmul.f32 %v2976, %v2976
      %v3145 = vmul.f32 %v2979, %v2979
      %v3146 = vmul.f32 %v2984, %v2984
      %v3147 = vmul.f32 %v2987, %v2987
      %v3148 = vmul.f32 %v2992, %v2992
      %v3149 = vmul.f32 %v2995, %v2995
      %v3150 = vmul.f32 %v3000, %v3000
      %v3151 = vmul.f32 %v3003, %v3003
      %v3152 = vmul.f32 %v3008, %v3008
      %v3153 = vmul.f32 %v3011, %v3011
      %v3154 = vmul.f32 %v3016, %v3016
      %v3155 = vmul.f32 %v3019, %v3019
      %v3156 = vsel %vm2545, %v3124, 0.0
      %v3157 = vsel %vm2545, %v3125, 0.0
      %v3158 = vadd.f32 %v3156, %v3157
      %v3159 = vsel %vm2545, %v3126, 0.0
      %v3160 = vadd.f32 %v3158, %v3159
      %v3161 = vsel %vm2545, %v3127, 0.0
      %v3162 = vadd.f32 %v3160, %v3161
      %v3163 = vsel %vm2545, %v3128, 0.0
      %v3164 = vadd.f32 %v3162, %v3163
      %v3165 = vsel %vm2545, %v3129, 0.0
      %v3166 = vadd.f32 %v3164, %v3165
      %v3167 = vsel %vm2545, %v3130, 0.0
      %v3168 = vadd.f32 %v3166, %v3167
      %v3169 = vsel %vm2545, %v3131, 0.0
      %v3170 = vadd.f32 %v3168, %v3169
      %v3171 = vsel %vm2545, %v3132, 0.0
      %v3172 = vadd.f32 %v3170, %v3171
      %v3173 = vsel %vm2545, %v3133, 0.0
      %v3174 = vadd.f32 %v3172, %v3173
      %v3175 = vsel %vm2545, %v3134, 0.0
      %v3176 = vadd.f32 %v3174, %v3175
      %v3177 = vsel %vm2545, %v3135, 0.0
      %v3178 = vadd.f32 %v3176, %v3177
      %v3179 = vsel %vm2545, %v3136, 0.0
      %v3180 = vadd.f32 %v3178, %v3179
      %v3181 = vsel %vm2545, %v3137, 0.0
      %v3182 = vadd.f32 %v3180, %v3181
      %v3183 = vsel %vm2545, %v3138, 0.0
      %v3184 = vadd.f32 %v3182, %v3183
      %v3185 = vsel %vm2545, %v3139, 0.0
      %v3186 = vadd.f32 %v3184, %v3185
      %v3187 = vsel %vm2545, %v3140, 0.0
      %v3188 = vadd.f32 %v3186, %v3187
      %v3189 = vsel %vm2545, %v3141, 0.0
      %v3190 = vadd.f32 %v3188, %v3189
      %v3191 = vsel %vm2545, %v3142, 0.0
      %v3192 = vadd.f32 %v3190, %v3191
      %v3193 = vsel %vm2545, %v3143, 0.0
      %v3194 = vadd.f32 %v3192, %v3193
      %v3195 = vsel %vm2545, %v3144, 0.0
      %v3196 = vadd.f32 %v3194, %v3195
      %v3197 = vsel %vm2545, %v3145, 0.0
      %v3198 = vadd.f32 %v3196, %v3197
      %v3199 = vsel %vm2545, %v3146, 0.0
      %v3200 = vadd.f32 %v3198, %v3199
      %v3201 = vsel %vm2545, %v3147, 0.0
      %v3202 = vadd.f32 %v3200, %v3201
      %v3203 = vsel %vm2545, %v3148, 0.0
      %v3204 = vadd.f32 %v3202, %v3203
      %v3205 = vsel %vm2545, %v3149, 0.0
      %v3206 = vadd.f32 %v3204, %v3205
      %v3207 = vsel %vm2545, %v3150, 0.0
      %v3208 = vadd.f32 %v3206, %v3207
      %v3209 = vsel %vm2545, %v3151, 0.0
      %v3210 = vadd.f32 %v3208, %v3209
      %v3211 = vsel %vm2545, %v3152, 0.0
      %v3212 = vadd.f32 %v3210, %v3211
      %v3213 = vsel %vm2545, %v3153, 0.0
      %v3214 = vadd.f32 %v3212, %v3213
      %v3215 = vsel %vm2545, %v3154, 0.0
      %v3216 = vadd.f32 %v3214, %v3215
      %v3217 = vsel %vm2545, %v3155, 0.0
      %v3218 = vadd.f32 %v3216, %v3217
      %v3219 = vrot.slane %v3218, 4
      %v3220 = vadd.f32 %v3218, %v3219
      %v3221 = vrot.slane %v3220, 2
      %v3222 = vadd.f32 %v3220, %v3221
      %v3223 = vrot.slane %v3222, 1
      %v3224 = vadd.f32 %v3222, %v3223
      %3225 = vst.msk [vmem:[%s214] sm:$0x1] %vm219, %v3224
      %p3226 = scmp.lt.s32.totalorder %s16, 1
      %s3227 = scalar_select %p3226, %s16, 1
      %s3228 = smul.addr %s3227, 32
      %s3229 = smul.addr %s3228, 8
      %s3230 = scalar_lea.vmem %s2, %s3229
      %p3231 = scmp.lt.s32.totalorder %s16, 1
      %s3232 = scalar_select %p3231, %s16, 1
      %s3233 = scalar_lea.vmem %s3, %s3232
      %p3234 = scmp.lt.s32.totalorder %s16, 1
      %s3235 = scalar_select %p3234, %s16, 1
      %s3236 = scalar_lea.vmem %s4, %s3235
      // Predicated region
      $region29: #{residual_forward.3} parent=27 // pred_check
        %p3237 = pneg %p81
      $region30: #{residual_forward.3} parent=27 // pred_check_branch
        %3239 = sbr.rel (%p3237) target = $region32
      $region31: #{residual_forward.3} parent=27 // pred_region
        _
      $region32: #{residual_forward.3} parent=27 // pred_fallthru
        _
      // Predicated region
      $region33: #{residual_forward.3} parent=27 // pred_check
        %p3240 = pneg %p107
      $region34: #{residual_forward.3} parent=27 // pred_check_branch
        %3242 = sbr.rel (%p3240) target = $region36
      $region35: #{residual_forward.3} parent=27 // pred_region
        _
      $region36: #{residual_forward.3} parent=27 // pred_fallthru
        _
      // Predicated region
      $region37: #{residual_forward.3} parent=27 // pred_check
        %p3243 = pneg %p133
      $region38: #{residual_forward.3} parent=27 // pred_check_branch
        %3245 = sbr.rel (%p3243) target = $region40
      $region39: #{residual_forward.3} parent=27 // pred_region
        _
      $region40: #{residual_forward.3} parent=27 // pred_fallthru
        _
    $region28: #{residual_forward.3} parent=5 // pred_fallthru
      _
    %p3246 = scmp.le.s32.totalorder 2, %s11
    // Predicated region
    $region41: #{residual_forward.3} parent=5 // pred_check
      %p3247 = pneg %p3246
    $region42: #{residual_forward.3} parent=5 // pred_check_branch
      %3249 = sbr.rel (%p3247) target = $region44
    $region43: #{residual_forward.3} parent=5 // pred_region
      %s3250 = ssub.s32 %s11, 2
      // Predicated region
      $region45: #{residual_forward.3} parent=43 // pred_check
        %p3251 = pneg %p87
      $region46: #{residual_forward.3} parent=43 // pred_check_branch
        %3253 = sbr.rel (%p3251) target = $region48
      $region47: #{residual_forward.3} parent=43 // pred_region
        %p3254 = scmp.lt.s32.totalorder %s17, 1
        %s3255 = scalar_select %p3254, %s17, 1
        %s3256 = smul.addr %s3255, 32
        %s3257 = smul.addr %s3256, 8
        %s3258 = scalar_lea.vmem %s2, %s3257
      $region48: #{residual_forward.3} parent=43 // pred_fallthru
        _
      // Predicated region
      $region49: #{residual_forward.3} parent=43 // pred_check
        %p3259 = pneg %p113
      $region50: #{residual_forward.3} parent=43 // pred_check_branch
        %3261 = sbr.rel (%p3259) target = $region52
      $region51: #{residual_forward.3} parent=43 // pred_region
        %p3262 = scmp.lt.s32.totalorder %s17, 1
        %s3263 = scalar_select %p3262, %s17, 1
        %s3264 = scalar_lea.vmem %s3, %s3263
      $region52: #{residual_forward.3} parent=43 // pred_fallthru
        _
      // Predicated region
      $region53: #{residual_forward.3} parent=43 // pred_check
        %p3265 = pneg %p139
      $region54: #{residual_forward.3} parent=43 // pred_check_branch
        %3267 = sbr.rel (%p3265) target = $region56
      $region55: #{residual_forward.3} parent=43 // pred_region
        %p3268 = scmp.lt.s32.totalorder %s17, 1
        %s3269 = scalar_select %p3268, %s17, 1
        %s3270 = scalar_lea.vmem %s4, %s3269
      $region56: #{residual_forward.3} parent=43 // pred_fallthru
        _
    $region44: #{residual_forward.3} parent=5 // pred_fallthru
      _
  $region6: #{residual_forward.3} parent=0 // loop_footer
    %s15 = sadd.s32 1, %s11
  $region7: #{residual_forward.3} parent=0 // loop_footer_branch
    %10 = sbr.rel target = $region3
  $region8: #{residual_forward.3} parent=0 // loop_exit
    _

// kernel: residual_forward.4
$region0: #{residual_forward.4}
  #allocation0 [shape = 'u32[]', space=smem, size = 0x4, offset = 0x4, fixed_abs, tag = 'smem constant byte address 0x4 - core index']
  #allocation1 [shape = 'u32[144,128]{1,0:T(1,128)}', space=vmem, size = 0x12000, scoped, tag = 'internal scratch']
  #allocation2 [shape = 'bf16[18,18,4]{2,1,0:T(8,128)(2,1)}', space=vmem, size = 0x1b000, scoped, tag = 'scratch operand']
  %s0 = inlined_call_operand.vmem [shape: f32[2,256,4], index: 0, kind: input, shape index: {}]
  %s1 = inlined_call_operand.vmem [shape: f32[1,4], index: 1, kind: input, shape index: {}]
  %s2 = inlined_call_operand.vmem [shape: f32[1,4], index: 2, kind: input, shape index: {}]
  %s3 = inlined_call_operand.vmem [shape: bf16[36,4], index: 3, kind: input, shape index: {}]
  %s4 = inlined_call_operand.vmem [shape: f32[2,256,4], index: 4, kind: output, shape index: {0}]
  %s5 = inlined_call_operand.vmem [shape: f32[2,1,4], index: 5, kind: output, shape index: {1}]
  %s6 = inlined_call_operand.vmem [shape: f32[2,1,4], index: 6, kind: output, shape index: {2}]
  %7 = xla_tuple %s4, %s5, %s6
  %s8 = sld [smem:[#allocation0]]
  $region65: #{residual_forward.4} parent=0
    _
  %s10 = ssub.s32 1, %s8
  %s11 = scalar_select 0, %s10, %s8
  loop: start=0, step=1, limit=4
  $region2: #{residual_forward.4} parent=0 // loop_pre_header
    _
  $region3: #{residual_forward.4} parent=0 // loop_header
    %s13 = sphi 0, %s17
    %p14 = scmp.ge.s32.totalorder %s13, 4
    %s23 = sphi 0, %s25
    %s26 = sphi 0, %s23
    %s27 = sphi 0, %s26
    %s43 = sphi 0, %s27
    %s47 = sphi 0, %s47
    %s49 = sphi 0, %s47
    %s50 = sphi 0, %s49
    %s64 = sphi 0, %s50
    %s68 = sphi 0, %s68
    %s70 = sphi 0, %s68
    %s71 = sphi 0, %s70
    %s85 = sphi 0, %s71
    %s89 = sphi 0, %s89
    %s91 = sphi 0, %s89
    %s92 = sphi 0, %s91
    %s106 = sphi 0, %s92
    %s112 = sphi 0, %s114
    %s115 = sphi 0, %s112
    %s116 = sphi 0, %s115
    %s132 = sphi 0, %s116
    %s138 = sphi 0, %s140
    %s141 = sphi 0, %s138
    %s142 = sphi 0, %s141
    %s158 = sphi 0, %s142
    %s164 = sphi 0, %s166
    %s167 = sphi 0, %s164
    %s168 = sphi 0, %s167
    %s184 = sphi 0, %s168
  $region4: #{residual_forward.4} parent=0 // loop_header_branch
    %16 = sbr.rel (%p14) target = $region8
  $region5: #{residual_forward.4} parent=0 // loop_body
    %s18 = ssub.s32 %s13, 1
    %s19 = ssub.s32 %s13, 2
    %s20 = sadd.s32 %s13, 1
    %s21 = ssub.s32 %s13, %s20
    %p22 = scmp.eq.s32.totalorder %s21, 0
    %s24 = sadd.s32 %s23, 1
    %s25 = scalar_select %p22, %s23, %s24
    %p28 = pneg %p22
    %p29 = scmp.eq.s32.totalorder %s13, 1
    %p30 = por %p28, %p29
    %p31 = scmp.ne.s32.totalorder %s23, %s26
    %p32 = scmp.eq.s32.totalorder %s13, 0
    %p33 = por %p31, %p32
    %p34 = scmp.ne.s32.totalorder %s23, %s26
    %p35 = scmp.eq.s32.totalorder %s18, 1
    %p36 = por %p34, %p35
    %p37 = scmp.ne.s32.totalorder %s26, %s27
    %p38 = scmp.eq.s32.totalorder %s18, 0
    %p39 = por %p37, %p38
    %p40 = scmp.ne.s32.totalorder %s26, %s27
    %p41 = scmp.eq.s32.totalorder %s19, 1
    %p42 = por %p40, %p41
    %p44 = scmp.ne.s32.totalorder %s27, %s43
    %p45 = scmp.eq.s32.totalorder %s19, 0
    %p46 = por %p44, %p45
    %s48 = sadd.s32 %s47, 1
    %p51 = scmp.eq.s32.totalorder %s13, 1
    %p52 = scmp.ne.s32.totalorder %s47, %s49
    %p53 = scmp.eq.s32.totalorder %s13, 0
    %p54 = por %p52, %p53
    %p55 = scmp.ne.s32.totalorder %s47, %s49
    %p56 = scmp.eq.s32.totalorder %s18, 1
    %p57 = por %p55, %p56
    %p58 = scmp.ne.s32.totalorder %s49, %s50
    %p59 = scmp.eq.s32.totalorder %s18, 0
    %p60 = por %p58, %p59
    %p61 = scmp.ne.s32.totalorder %s49, %s50
    %p62 = scmp.eq.s32.totalorder %s19, 1
    %p63 = por %p61, %p62
    %p65 = scmp.ne.s32.totalorder %s50, %s64
    %p66 = scmp.eq.s32.totalorder %s19, 0
    %p67 = por %p65, %p66
    %s69 = sadd.s32 %s68, 1
    %p72 = scmp.eq.s32.totalorder %s13, 1
    %p73 = scmp.ne.s32.totalorder %s68, %s70
    %p74 = scmp.eq.s32.totalorder %s13, 0
    %p75 = por %p73, %p74
    %p76 = scmp.ne.s32.totalorder %s68, %s70
    %p77 = scmp.eq.s32.totalorder %s18, 1
    %p78 = por %p76, %p77
    %p79 = scmp.ne.s32.totalorder %s70, %s71
    %p80 = scmp.eq.s32.totalorder %s18, 0
    %p81 = por %p79, %p80
    %p82 = scmp.ne.s32.totalorder %s70, %s71
    %p83 = scmp.eq.s32.totalorder %s19, 1
    %p84 = por %p82, %p83
    %p86 = scmp.ne.s32.totalorder %s71, %s85
    %p87 = scmp.eq.s32.totalorder %s19, 0
    %p88 = por %p86, %p87
    %s90 = sadd.s32 %s89, 1
    %p93 = scmp.eq.s32.totalorder %s13, 1
    %p94 = scmp.ne.s32.totalorder %s89, %s91
    %p95 = scmp.eq.s32.totalorder %s13, 0
    %p96 = por %p94, %p95
    %p97 = scmp.ne.s32.totalorder %s89, %s91
    %p98 = scmp.eq.s32.totalorder %s18, 1
    %p99 = por %p97, %p98
    %p100 = scmp.ne.s32.totalorder %s91, %s92
    %p101 = scmp.eq.s32.totalorder %s18, 0
    %p102 = por %p100, %p101
    %p103 = scmp.ne.s32.totalorder %s91, %s92
    %p104 = scmp.eq.s32.totalorder %s19, 1
    %p105 = por %p103, %p104
    %p107 = scmp.ne.s32.totalorder %s92, %s106
    %p108 = scmp.eq.s32.totalorder %s19, 0
    %p109 = por %p107, %p108
    %s110 = ssub.s32 %s13, %s20
    %p111 = scmp.eq.s32.totalorder %s110, 0
    %s113 = sadd.s32 %s112, 1
    %s114 = scalar_select %p111, %s112, %s113
    %p117 = pneg %p111
    %p118 = scmp.eq.s32.totalorder %s13, 1
    %p119 = por %p117, %p118
    %p120 = scmp.ne.s32.totalorder %s112, %s115
    %p121 = scmp.eq.s32.totalorder %s13, 0
    %p122 = por %p120, %p121
    %p123 = scmp.ne.s32.totalorder %s112, %s115
    %p124 = scmp.eq.s32.totalorder %s18, 1
    %p125 = por %p123, %p124
    %p126 = scmp.ne.s32.totalorder %s115, %s116
    %p127 = scmp.eq.s32.totalorder %s18, 0
    %p128 = por %p126, %p127
    %p129 = scmp.ne.s32.totalorder %s115, %s116
    %p130 = scmp.eq.s32.totalorder %s19, 1
    %p131 = por %p129, %p130
    %p133 = scmp.ne.s32.totalorder %s116, %s132
    %p134 = scmp.eq.s32.totalorder %s19, 0
    %p135 = por %p133, %p134
    %s136 = ssub.s32 %s13, %s20
    %p137 = scmp.eq.s32.totalorder %s136, 0
    %s139 = sadd.s32 %s138, 1
    %s140 = scalar_select %p137, %s138, %s139
    %p143 = pneg %p137
    %p144 = scmp.eq.s32.totalorder %s13, 1
    %p145 = por %p143, %p144
    %p146 = scmp.ne.s32.totalorder %s138, %s141
    %p147 = scmp.eq.s32.totalorder %s13, 0
    %p148 = por %p146, %p147
    %p149 = scmp.ne.s32.totalorder %s138, %s141
    %p150 = scmp.eq.s32.totalorder %s18, 1
    %p151 = por %p149, %p150
    %p152 = scmp.ne.s32.totalorder %s141, %s142
    %p153 = scmp.eq.s32.totalorder %s18, 0
    %p154 = por %p152, %p153
    %p155 = scmp.ne.s32.totalorder %s141, %s142
    %p156 = scmp.eq.s32.totalorder %s19, 1
    %p157 = por %p155, %p156
    %p159 = scmp.ne.s32.totalorder %s142, %s158
    %p160 = scmp.eq.s32.totalorder %s19, 0
    %p161 = por %p159, %p160
    %s162 = ssub.s32 %s13, %s20
    %p163 = scmp.eq.s32.totalorder %s162, 0
    %s165 = sadd.s32 %s164, 1
    %s166 = scalar_select %p163, %s164, %s165
    %p169 = pneg %p163
    %p170 = scmp.eq.s32.totalorder %s13, 1
    %p171 = por %p169, %p170
    %p172 = scmp.ne.s32.totalorder %s164, %s167
    %p173 = scmp.eq.s32.totalorder %s13, 0
    %p174 = por %p172, %p173
    %p175 = scmp.ne.s32.totalorder %s164, %s167
    %p176 = scmp.eq.s32.totalorder %s18, 1
    %p177 = por %p175, %p176
    %p178 = scmp.ne.s32.totalorder %s167, %s168
    %p179 = scmp.eq.s32.totalorder %s18, 0
    %p180 = por %p178, %p179
    %p181 = scmp.ne.s32.totalorder %s167, %s168
    %p182 = scmp.eq.s32.totalorder %s19, 1
    %p183 = por %p181, %p182
    %p185 = scmp.ne.s32.totalorder %s168, %s184
    %p186 = scmp.eq.s32.totalorder %s19, 0
    %p187 = por %p185, %p186
    %p188 = scmp.le.s32.totalorder 1, %s13
    %p189 = scmp.lt.s32.totalorder %s13, 3
    %p190 = pnand %p188, %p189
    %p191 = pneg %p190
    // Predicated region
    $region9: #{residual_forward.4} parent=5 // pred_check
      _
    $region10: #{residual_forward.4} parent=5 // pred_check_branch
      %193 = sbr.rel (%p190) target = $region12
    $region11: #{residual_forward.4} parent=5 // pred_region
      %s194 = ssub.s32 %s13, 1
      // Predicated region
      $region13: #{residual_forward.4} parent=11 // pred_check
        %p195 = pneg %p60
      $region14: #{residual_forward.4} parent=11 // pred_check_branch
        %197 = sbr.rel (%p195) target = $region16
      $region15: #{residual_forward.4} parent=11 // pred_region
        _
      $region16: #{residual_forward.4} parent=11 // pred_fallthru
        _
      // Predicated region
      $region17: #{residual_forward.4} parent=11 // pred_check
        %p198 = pneg %p81
      $region18: #{residual_forward.4} parent=11 // pred_check_branch
        %200 = sbr.rel (%p198) target = $region20
      $region19: #{residual_forward.4} parent=11 // pred_region
        _
      $region20: #{residual_forward.4} parent=11 // pred_fallthru
        _
      // Predicated region
      $region21: #{residual_forward.4} parent=11 // pred_check
        %p201 = pneg %p102
      $region22: #{residual_forward.4} parent=11 // pred_check_branch
        %203 = sbr.rel (%p201) target = $region24
      $region23: #{residual_forward.4} parent=11 // pred_region
        _
      $region24: #{residual_forward.4} parent=11 // pred_fallthru
        _
    $region12: #{residual_forward.4} parent=5 // pred_fallthru
      _
    %p204 = scmp.lt.s32.totalorder %s13, 2
    // Predicated region
    $region25: #{residual_forward.4} parent=5 // pred_check
      %p205 = pneg %p204
    $region26: #{residual_forward.4} parent=5 // pred_check_branch
      %207 = sbr.rel (%p205) target = $region28
    $region27: #{residual_forward.4} parent=5 // pred_region
      // Predicated region
      $region29: #{residual_forward.4} parent=27 // pred_check
        %p208 = pneg %p33
      $region30: #{residual_forward.4} parent=27 // pred_check_branch
        %210 = sbr.rel (%p208) target = $region32
      $region31: #{residual_forward.4} parent=27 // pred_region
        %p211 = scmp.lt.s32.totalorder %s13, 1
        %s212 = scalar_select %p211, %s13, 1
        %s213 = smul.addr %s212, 32
        %s214 = smul.addr %s213, 8
        %s215 = scalar_lea.vmem %s0, %s214
      $region32: #{residual_forward.4} parent=27 // pred_fallthru
        _
    $region28: #{residual_forward.4} parent=5 // pred_fallthru
      _
    %p216 = scmp.le.s32.totalorder 1, %s13
    %p217 = scmp.lt.s32.totalorder %s13, 3
    %p218 = pnand %p216, %p217
    %p219 = pneg %p218
    // Predicated region
    $region33: #{residual_forward.4} parent=5 // pred_check
      _
    $region34: #{residual_forward.4} parent=5 // pred_check_branch
      %221 = sbr.rel (%p218) target = $region36
    $region35: #{residual_forward.4} parent=5 // pred_region
      %s222 = ssub.s32 %s13, 1
      %p223 = scmp.lt.s32.totalorder %s18, 1
      %s224 = scalar_select %p223, %s18, 1
      %s225 = smul.addr %s224, 32
      %s226 = smul.addr %s225, 8
      %s227 = scalar_lea.vmem %s0, %s226
      %p228 = pneg %p39
      %p229 = pneg %p36
      %p230 = pneg %p60
      %p231 = pneg %p57
      %p232 = pneg %p81
      %p233 = pneg %p78
      %p234 = pneg %p102
      %p235 = pneg %p99
      %p236 = pneg %p128
      %p237 = pneg %p125
      %p238 = scmp.lt.s32.totalorder %s18, 1
      %s239 = scalar_select %p238, %s18, 1
      %s240 = smul.addr %s239, 32
      %s241 = smul.addr %s240, 8
      %s242 = scalar_lea.vmem %s4, %s241
      %p243 = pneg %p154
      %p244 = pneg %p151
      %p245 = scmp.lt.s32.totalorder %s18, 1
      %s246 = scalar_select %p245, %s18, 1
      %s247 = scalar_lea.vmem %s5, %s246
      %p248 = pneg %p180
      %p249 = pneg %p177
      %p250 = scmp.lt.s32.totalorder %s18, 1
      %s251 = scalar_select %p250, %s18, 1
      %s252 = scalar_lea.vmem %s6, %s251
      %p253 = scmp.lt.s32.totalorder %s18, 1
      %s254 = scalar_select %p253, %s18, 1
      %s255 = smul.addr %s254, 32
      %s256 = smul.addr %s255, 8
      %s257 = scalar_lea.vmem %s0, %s256
      %p258 = scmp.lt.s32.totalorder %s18, 1
      %s259 = scalar_select %p258, %s18, 1
      %s260 = smul.addr %s259, 32
      %s261 = smul.addr %s260, 8
      %s262 = scalar_lea.vmem %s4, %s261
      %p263 = scmp.lt.s32.totalorder %s18, 1
      %s264 = scalar_select %p263, %s18, 1
      %s265 = scalar_lea.vmem %s5, %s264
      %p266 = scmp.lt.s32.totalorder %s18, 1
      %s267 = scalar_select %p266, %s18, 1
      %s268 = scalar_lea.vmem %s6, %s267
      %v270 = vld [vmem:[%s257] sm:$0xff]
      %v271 = vld [vmem:[%s257 + $0x8] sm:$0xff]
      %v272 = vld [vmem:[%s257 + $0x10] sm:$0xff]
      %v273 = vld [vmem:[%s257 + $0x18] sm:$0xff]
      %v274 = vld [vmem:[%s257 + $0x20] sm:$0xff]
      %v275 = vld [vmem:[%s257 + $0x28] sm:$0xff]
      %v276 = vld [vmem:[%s257 + $0x30] sm:$0xff]
      %v277 = vld [vmem:[%s257 + $0x38] sm:$0xff]
      %v278 = vld [vmem:[%s257 + $0x40] sm:$0xff]
      %v279 = vld [vmem:[%s257 + $0x48] sm:$0xff]
      %v280 = vld [vmem:[%s257 + $0x50] sm:$0xff]
      %v281 = vld [vmem:[%s257 + $0x58] sm:$0xff]
      %v282 = vld [vmem:[%s257 + $0x60] sm:$0xff]
      %v283 = vld [vmem:[%s257 + $0x68] sm:$0xff]
      %v284 = vld [vmem:[%s257 + $0x70] sm:$0xff]
      %v285 = vld [vmem:[%s257 + $0x78] sm:$0xff]
      %v286 = vld [vmem:[%s257 + $0x80] sm:$0xff]
      %v287 = vld [vmem:[%s257 + $0x88] sm:$0xff]
      %v288 = vld [vmem:[%s257 + $0x90] sm:$0xff]
      %v289 = vld [vmem:[%s257 + $0x98] sm:$0xff]
      %v290 = vld [vmem:[%s257 + $0xa0] sm:$0xff]
      %v291 = vld [vmem:[%s257 + $0xa8] sm:$0xff]
      %v292 = vld [vmem:[%s257 + $0xb0] sm:$0xff]
      %v293 = vld [vmem:[%s257 + $0xb8] sm:$0xff]
      %v294 = vld [vmem:[%s257 + $0xc0] sm:$0xff]
      %v295 = vld [vmem:[%s257 + $0xc8] sm:$0xff]
      %v296 = vld [vmem:[%s257 + $0xd0] sm:$0xff]
      %v297 = vld [vmem:[%s257 + $0xd8] sm:$0xff]
      %v298 = vld [vmem:[%s257 + $0xe0] sm:$0xff]
      %v299 = vld [vmem:[%s257 + $0xe8] sm:$0xff]
      %v300 = vld [vmem:[%s257 + $0xf0] sm:$0xff]
      %v301 = vld [vmem:[%s257 + $0xf8] sm:$0xff]
      %v302 = vld [vmem:[%s1] sm:$0x1]
      %v304 = vlaneseq
      %v305 = vshrl.u32 %v304, 7
      %v306 = vsub.s32 0, %v305
      %v307 = vrot.slane %v302, %v306
      %v309 = vmul.f32 %v270, %v307
      %v310 = vmul.f32 %v271, %v307
      %v311 = vmul.f32 %v272, %v307
      %v312 = vmul.f32 %v273, %v307
      %v313 = vmul.f32 %v274, %v307
      %v314 = vmul.f32 %v275, %v307
      %v315 = vmul.f32 %v276, %v307
      %v316 = vmul.f32 %v277, %v307
      %v317 = vmul.f32 %v278, %v307
      %v318 = vmul.f32 %v279, %v307
      %v319 = vmul.f32 %v280, %v307
      %v320 = vmul.f32 %v281, %v307
      %v321 = vmul.f32 %v282, %v307
      %v322 = vmul.f32 %v283, %v307
      %v323 = vmul.f32 %v284, %v307
      %v324 = vmul.f32 %v285, %v307
      %v325 = vmul.f32 %v286, %v307
      %v326 = vmul.f32 %v287, %v307
      %v327 = vmul.f32 %v288, %v307
      %v328 = vmul.f32 %v289, %v307
      %v329 = vmul.f32 %v290, %v307
      %v330 = vmul.f32 %v291, %v307
      %v331 = vmul.f32 %v292, %v307
      %v332 = vmul.f32 %v293, %v307
      %v333 = vmul.f32 %v294, %v307
      %v334 = vmul.f32 %v295, %v307
      %v335 = vmul.f32 %v296, %v307
      %v336 = vmul.f32 %v297, %v307
      %v337 = vmul.f32 %v298, %v307
      %v338 = vmul.f32 %v299, %v307
      %v339 = vmul.f32 %v300, %v307
      %v340 = vmul.f32 %v301, %v307
      %v341 = vld [vmem:[%s2] sm:$0x1]
      %v343 = vlaneseq
      %v344 = vshrl.u32 %v343, 7
      %v345 = vsub.s32 0, %v344
      %v346 = vrot.slane %v341, %v345
      %v348 = vadd.f32 %v309, %v346
      %v349 = vadd.f32 %v310, %v346
      %v350 = vadd.f32 %v311, %v346
      %v351 = vadd.f32 %v312, %v346
      %v352 = vadd.f32 %v313, %v346
      %v353 = vadd.f32 %v314, %v346
      %v354 = vadd.f32 %v315, %v346
      %v355 = vadd.f32 %v316, %v346
      %v356 = vadd.f32 %v317, %v346
      %v357 = vadd.f32 %v318, %v346
      %v358 = vadd.f32 %v319, %v346
      %v359 = vadd.f32 %v320, %v346
      %v360 = vadd.f32 %v321, %v346
      %v361 = vadd.f32 %v322, %v346
      %v362 = vadd.f32 %v323, %v346
      %v363 = vadd.f32 %v324, %v346
      %v364 = vadd.f32 %v325, %v346
      %v365 = vadd.f32 %v326, %v346
      %v366 = vadd.f32 %v327, %v346
      %v367 = vadd.f32 %v328, %v346
      %v368 = vadd.f32 %v329, %v346
      %v369 = vadd.f32 %v330, %v346
      %v370 = vadd.f32 %v331, %v346
      %v371 = vadd.f32 %v332, %v346
      %v372 = vadd.f32 %v333, %v346
      %v373 = vadd.f32 %v334, %v346
      %v374 = vadd.f32 %v335, %v346
      %v375 = vadd.f32 %v336, %v346
      %v376 = vadd.f32 %v337, %v346
      %v377 = vadd.f32 %v338, %v346
      %v378 = vadd.f32 %v339, %v346
      %v379 = vadd.f32 %v340, %v346
      %v380 = vmax.f32 %v348, 0.0
      %v381 = vmax.f32 %v349, 0.0
      %v382 = vmax.f32 %v350, 0.0
      %v383 = vmax.f32 %v351, 0.0
      %v384 = vmax.f32 %v352, 0.0
      %v385 = vmax.f32 %v353, 0.0
      %v386 = vmax.f32 %v354, 0.0
      %v387 = vmax.f32 %v355, 0.0
      %v388 = vmax.f32 %v356, 0.0
      %v389 = vmax.f32 %v357, 0.0
      %v390 = vmax.f32 %v358, 0.0
      %v391 = vmax.f32 %v359, 0.0
      %v392 = vmax.f32 %v360, 0.0
      %v393 = vmax.f32 %v361, 0.0
      %v394 = vmax.f32 %v362, 0.0
      %v395 = vmax.f32 %v363, 0.0
      %v396 = vmax.f32 %v364, 0.0
      %v397 = vmax.f32 %v365, 0.0
      %v398 = vmax.f32 %v366, 0.0
      %v399 = vmax.f32 %v367, 0.0
      %v400 = vmax.f32 %v368, 0.0
      %v401 = vmax.f32 %v369, 0.0
      %v402 = vmax.f32 %v370, 0.0
      %v403 = vmax.f32 %v371, 0.0
      %v404 = vmax.f32 %v372, 0.0
      %v405 = vmax.f32 %v373, 0.0
      %v406 = vmax.f32 %v374, 0.0
      %v407 = vmax.f32 %v375, 0.0
      %v408 = vmax.f32 %v376, 0.0
      %v409 = vmax.f32 %v377, 0.0
      %v410 = vmax.f32 %v378, 0.0
      %v411 = vmax.f32 %v379, 0.0
      %vm412 = vcmask 27648
      %413 = vst.msk [vmem:[#allocation2] sm:$0xf] %vm412, 0
      %414 = vst.msk [vmem:[#allocation2 + $0x4] sm:$0xf] %vm412, 0
      %vm415 = vcmask 24576
      %416 = vst.msk [vmem:[#allocation2 + $0x8] sm:$0x1] %vm415, 0
      %417 = vst.msk [vmem:[#allocation2 + $0xc] sm:$0xf] %vm412, 0
      %418 = vst.msk [vmem:[#allocation2 + $0x10] sm:$0xf] %vm412, 0
      %419 = vst.msk [vmem:[#allocation2 + $0x14] sm:$0x1] %vm415, 0
      %420 = vst.msk [vmem:[#allocation2 + $0x18] sm:$0xf] %vm412, 0
      %421 = vst.msk [vmem:[#allocation2 + $0x1c] sm:$0xf] %vm412, 0
      %422 = vst.msk [vmem:[#allocation2 + $0x20] sm:$0x1] %vm415, 0
      %423 = vst.msk [vmem:[#allocation2 + $0x24] sm:$0xf] %vm412, 0
      %424 = vst.msk [vmem:[#allocation2 + $0x28] sm:$0xf] %vm412, 0
      %425 = vst.msk [vmem:[#allocation2 + $0x2c] sm:$0x1] %vm415, 0
      %426 = vst.msk [vmem:[#allocation2 + $0x30] sm:$0xf] %vm412, 0
      %427 = vst.msk [vmem:[#allocation2 + $0x34] sm:$0xf] %vm412, 0
      %428 = vst.msk [vmem:[#allocation2 + $0x38] sm:$0x1] %vm415, 0
      %429 = vst.msk [vmem:[#allocation2 + $0x3c] sm:$0xf] %vm412, 0
      %430 = vst.msk [vmem:[#allocation2 + $0x40] sm:$0xf] %vm412, 0
      %431 = vst.msk [vmem:[#allocation2 + $0x44] sm:$0x1] %vm415, 0
      %432 = vst.msk [vmem:[#allocation2 + $0x48] sm:$0xf] %vm412, 0
      %433 = vst.msk [vmem:[#allocation2 + $0x4c] sm:$0xf] %vm412, 0
      %434 = vst.msk [vmem:[#allocation2 + $0x50] sm:$0x1] %vm415, 0
      %435 = vst.msk [vmem:[#allocation2 + $0x54] sm:$0xf] %vm412, 0
      %436 = vst.msk [vmem:[#allocation2 + $0x58] sm:$0xf] %vm412, 0
      %437 = vst.msk [vmem:[#allocation2 + $0x5c] sm:$0x1] %vm415, 0
      %438 = vst.msk [vmem:[#allocation2 + $0x60] sm:$0xf] %vm412, 0
      %439 = vst.msk [vmem:[#allocation2 + $0x64] sm:$0xf] %vm412, 0
      %440 = vst.msk [vmem:[#allocation2 + $0x68] sm:$0x1] %vm415, 0
      %441 = vst.msk [vmem:[#allocation2 + $0x6c] sm:$0xf] %vm412, 0
      %442 = vst.msk [vmem:[#allocation2 + $0x70] sm:$0xf] %vm412, 0
      %443 = vst.msk [vmem:[#allocation2 + $0x74] sm:$0x1] %vm415, 0
      %444 = vst.msk [vmem:[#allocation2 + $0x78] sm:$0xf] %vm412, 0
      %445 = vst.msk [vmem:[#allocation2 + $0x7c] sm:$0xf] %vm412, 0
      %446 = vst.msk [vmem:[#allocation2 + $0x80] sm:$0x1] %vm415, 0
      %447 = vst.msk [vmem:[#allocation2 + $0x84] sm:$0xf] %vm412, 0
      %448 = vst.msk [vmem:[#allocation2 + $0x88] sm:$0xf] %vm412, 0
      %449 = vst.msk [vmem:[#allocation2 + $0x8c] sm:$0x1] %vm415, 0
      %450 = vst.msk [vmem:[#allocation2 + $0x90] sm:$0xf] %vm412, 0
      %451 = vst.msk [vmem:[#allocation2 + $0x94] sm:$0xf] %vm412, 0
      %452 = vst.msk [vmem:[#allocation2 + $0x98] sm:$0x1] %vm415, 0
      %453 = vst.msk [vmem:[#allocation2 + $0x9c] sm:$0xf] %vm412, 0
      %454 = vst.msk [vmem:[#allocation2 + $0xa0] sm:$0xf] %vm412, 0
      %455 = vst.msk [vmem:[#allocation2 + $0xa4] sm:$0x1] %vm415, 0
      %456 = vst.msk [vmem:[#allocation2 + $0xa8] sm:$0xf] %vm412, 0
      %457 = vst.msk [vmem:[#allocation2 + $0xac] sm:$0xf] %vm412, 0
      %458 = vst.msk [vmem:[#allocation2 + $0xb0] sm:$0x1] %vm415, 0
      %459 = vst.msk [vmem:[#allocation2 + $0xb4] sm:$0xf] %vm412, 0
      %460 = vst.msk [vmem:[#allocation2 + $0xb8] sm:$0xf] %vm412, 0
      %461 = vst.msk [vmem:[#allocation2 + $0xbc] sm:$0x1] %vm415, 0
      %462 = vst.msk [vmem:[#allocation2 + $0xc0] sm:$0xf] %vm412, 0
      %463 = vst.msk [vmem:[#allocation2 + $0xc4] sm:$0xf] %vm412, 0
      %464 = vst.msk [vmem:[#allocation2 + $0xc8] sm:$0x1] %vm415, 0
      %465 = vst.msk [vmem:[#allocation2 + $0xcc] sm:$0xf] %vm412, 0
      %466 = vst.msk [vmem:[#allocation2 + $0xd0] sm:$0xf] %vm412, 0
      %467 = vst.msk [vmem:[#allocation2 + $0xd4] sm:$0x1] %vm415, 0
      %v468 = vpack.c.bf16 %v381, %v380
      %v469 = vpack.c.bf16 %v383, %v382
      %v470 = vpack.c.bf16 %v385, %v384
      %v471 = vpack.c.bf16 %v387, %v386
      %v472 = vpack.c.bf16 %v389, %v388
      %v473 = vpack.c.bf16 %v391, %v390
      %v474 = vpack.c.bf16 %v393, %v392
      %v475 = vpack.c.bf16 %v395, %v394
      %v476 = vpack.c.bf16 %v397, %v396
      %v477 = vpack.c.bf16 %v399, %v398
      %v478 = vpack.c.bf16 %v401, %v400
      %v479 = vpack.c.bf16 %v403, %v402
      %v480 = vpack.c.bf16 %v405, %v404
      %v481 = vpack.c.bf16 %v407, %v406
      %v482 = vpack.c.bf16 %v409, %v408
      %v483 = vpack.c.bf16 %v411, %v410
      %v500 = vunpack.c.l.b16 %v468
      %v501 = vunpack.c.h.b16 %v468
      %v502 = vunpack.c.l.b16 %v469
      %v503 = vunpack.c.h.b16 %v469
      %v504 = vunpack.c.l.b16 %v470
      %v505 = vunpack.c.h.b16 %v470
      %v506 = vunpack.c.l.b16 %v471
      %v507 = vunpack.c.h.b16 %v471
      %v508 = vunpack.c.l.b16 %v472
      %v509 = vunpack.c.h.b16 %v472
      %v510 = vunpack.c.l.b16 %v473
      %v511 = vunpack.c.h.b16 %v473
      %v512 = vunpack.c.l.b16 %v474
      %v513 = vunpack.c.h.b16 %v474
      %v514 = vunpack.c.l.b16 %v475
      %v515 = vunpack.c.h.b16 %v475
      %v516 = vunpack.c.l.b16 %v476
      %v517 = vunpack.c.h.b16 %v476
      %v518 = vunpack.c.l.b16 %v477
      %v519 = vunpack.c.h.b16 %v477
      %v520 = vunpack.c.l.b16 %v478
      %v521 = vunpack.c.h.b16 %v478
      %v522 = vunpack.c.l.b16 %v479
      %v523 = vunpack.c.h.b16 %v479
      %v524 = vunpack.c.l.b16 %v480
      %v525 = vunpack.c.h.b16 %v480
      %v526 = vunpack.c.l.b16 %v481
      %v527 = vunpack.c.h.b16 %v481
      %v528 = vunpack.c.l.b16 %v482
      %v529 = vunpack.c.h.b16 %v482
      %v530 = vunpack.c.l.b16 %v483
      %v531 = vunpack.c.h.b16 %v483
      %v532 = vpack.c.b16 %v500, %v500
      %v533 = vpack.c.b16 %v501, %v501
      %v534 = vpack.c.b16 %v502, %v502
      %v535 = vpack.c.b16 %v503, %v503
      %v536 = vpack.c.b16 %v504, %v504
      %v537 = vpack.c.b16 %v505, %v505
      %v538 = vpack.c.b16 %v506, %v506
      %v539 = vpack.c.b16 %v507, %v507
      %v540 = vpack.c.b16 %v508, %v508
      %v541 = vpack.c.b16 %v509, %v509
      %v542 = vpack.c.b16 %v510, %v510
      %v543 = vpack.c.b16 %v511, %v511
      %v544 = vpack.c.b16 %v512, %v512
      %v545 = vpack.c.b16 %v513, %v513
      %v546 = vpack.c.b16 %v514, %v514
      %v547 = vpack.c.b16 %v515, %v515
      %v548 = vpack.c.b16 %v516, %v516
      %v549 = vpack.c.b16 %v517, %v517
      %v550 = vpack.c.b16 %v518, %v518
      %v551 = vpack.c.b16 %v519, %v519
      %v552 = vpack.c.b16 %v520, %v520
      %v553 = vpack.c.b16 %v521, %v521
      %v554 = vpack.c.b16 %v522, %v522
      %v555 = vpack.c.b16 %v523, %v523
      %v556 = vpack.c.b16 %v524, %v524
      %v557 = vpack.c.b16 %v525, %v525
      %v558 = vpack.c.b16 %v526, %v526
      %v559 = vpack.c.b16 %v527, %v527
      %v560 = vpack.c.b16 %v528, %v528
      %v561 = vpack.c.b16 %v529, %v529
      %v562 = vpack.c.b16 %v530, %v530
      %v563 = vpack.c.b16 %v531, %v531
      %vm564 = vsmask.f32 256
      %vm565 = vsmask.f32 4368
      %vm566 = vmor %vm564, %vm565
      %v568 = vshrl.u32 %v532, 16
      %v570 = vrot.slane %v568, 7
      %v571 = vshll.u32 %v532, 16
      %v573 = vor.u32 %v570, %v571
      %v574 = vrot.slane %v570, 4
      %v576 = vshrl.u32 %v533, 16
      %v578 = vrot.slane %v576, 7
      %v579 = vshll.u32 %v533, 16
      %v581 = vor.u32 %v578, %v579
      %v582 = vsel %vm566, %v574, %v581
      %v583 = vrot.slane %v578, 4
      %v585 = vshrl.u32 %v534, 16
      %v587 = vrot.slane %v585, 7
      %v588 = vshll.u32 %v534, 16
      %v590 = vor.u32 %v587, %v588
      %v591 = vrot.slane %v587, 4
      %v593 = vshrl.u32 %v535, 16
      %v595 = vrot.slane %v593, 7
      %v596 = vshll.u32 %v535, 16
      %v598 = vor.u32 %v595, %v596
      %v599 = vsel %vm566, %v591, %v598
      %v600 = vrot.slane %v595, 4
      %v602 = vshrl.u32 %v536, 16
      %v604 = vrot.slane %v602, 7
      %v605 = vshll.u32 %v536, 16
      %v607 = vor.u32 %v604, %v605
      %v608 = vrot.slane %v604, 4
      %v610 = vshrl.u32 %v537, 16
      %v612 = vrot.slane %v610, 7
      %v613 = vshll.u32 %v537, 16
      %v615 = vor.u32 %v612, %v613
      %v616 = vsel %vm566, %v608, %v615
      %v617 = vrot.slane %v612, 4
      %v619 = vshrl.u32 %v538, 16
      %v621 = vrot.slane %v619, 7
      %v622 = vshll.u32 %v538, 16
      %v624 = vor.u32 %v621, %v622
      %v625 = vrot.slane %v621, 4
      %v627 = vshrl.u32 %v539, 16
      %v629 = vrot.slane %v627, 7
      %v630 = vshll.u32 %v539, 16
      %v632 = vor.u32 %v629, %v630
      %v633 = vsel %vm566, %v625, %v632
      %v634 = vrot.slane %v629, 4
      %v636 = vshrl.u32 %v540, 16
      %v638 = vrot.slane %v636, 7
      %v639 = vshll.u32 %v540, 16
      %v641 = vor.u32 %v638, %v639
      %v642 = vrot.slane %v638, 4
      %v644 = vshrl.u32 %v541, 16
      %v646 = vrot.slane %v644, 7
      %v647 = vshll.u32 %v541, 16
      %v649 = vor.u32 %v646, %v647
      %v650 = vsel %vm566, %v642, %v649
      %v651 = vrot.slane %v646, 4
      %v653 = vshrl.u32 %v542, 16
      %v655 = vrot.slane %v653, 7
      %v656 = vshll.u32 %v542, 16
      %v658 = vor.u32 %v655, %v656
      %v659 = vrot.slane %v655, 4
      %v661 = vshrl.u32 %v543, 16
      %v663 = vrot.slane %v661, 7
      %v664 = vshll.u32 %v543, 16
      %v666 = vor.u32 %v663, %v664
      %v667 = vsel %vm566, %v659, %v666
      %v668 = vrot.slane %v663, 4
      %v670 = vshrl.u32 %v544, 16
      %v672 = vrot.slane %v670, 7
      %v673 = vshll.u32 %v544, 16
      %v675 = vor.u32 %v672, %v673
      %v676 = vrot.slane %v672, 4
      %v678 = vshrl.u32 %v545, 16
      %v680 = vrot.slane %v678, 7
      %v681 = vshll.u32 %v545, 16
      %v683 = vor.u32 %v680, %v681
      %v684 = vsel %vm566, %v676, %v683
      %v685 = vrot.slane %v680, 4
      %v687 = vshrl.u32 %v546, 16
      %v689 = vrot.slane %v687, 7
      %v690 = vshll.u32 %v546, 16
      %v692 = vor.u32 %v689, %v690
      %v693 = vrot.slane %v689, 4
      %v695 = vshrl.u32 %v547, 16
      %v697 = vrot.slane %v695, 7
      %v698 = vshll.u32 %v547, 16
      %v700 = vor.u32 %v697, %v698
      %v701 = vsel %vm566, %v693, %v700
      %v702 = vrot.slane %v697, 4
      %v704 = vshrl.u32 %v548, 16
      %v706 = vrot.slane %v704, 7
      %v707 = vshll.u32 %v548, 16
      %v709 = vor.u32 %v706, %v707
      %v710 = vrot.slane %v706, 4
      %v712 = vshrl.u32 %v549, 16
      %v714 = vrot.slane %v712, 7
      %v715 = vshll.u32 %v549, 16
      %v717 = vor.u32 %v714, %v715
      %v718 = vsel %vm566, %v710, %v717
      %v719 = vrot.slane %v714, 4
      %v721 = vshrl.u32 %v550, 16
      %v723 = vrot.slane %v721, 7
      %v724 = vshll.u32 %v550, 16
      %v726 = vor.u32 %v723, %v724
      %v727 = vrot.slane %v723, 4
      %v729 = vshrl.u32 %v551, 16
      %v731 = vrot.slane %v729, 7
      %v732 = vshll.u32 %v551, 16
      %v734 = vor.u32 %v731, %v732
      %v735 = vsel %vm566, %v727, %v734
      %v736 = vrot.slane %v731, 4
      %v738 = vshrl.u32 %v552, 16
      %v740 = vrot.slane %v738, 7
      %v741 = vshll.u32 %v552, 16
      %v743 = vor.u32 %v740, %v741
      %v744 = vrot.slane %v740, 4
      %v746 = vshrl.u32 %v553, 16
      %v748 = vrot.slane %v746, 7
      %v749 = vshll.u32 %v553, 16
      %v751 = vor.u32 %v748, %v749
      %v752 = vsel %vm566, %v744, %v751
      %v753 = vrot.slane %v748, 4
      %v755 = vshrl.u32 %v554, 16
      %v757 = vrot.slane %v755, 7
      %v758 = vshll.u32 %v554, 16
      %v760 = vor.u32 %v757, %v758
      %v761 = vrot.slane %v757, 4
      %v763 = vshrl.u32 %v555, 16
      %v765 = vrot.slane %v763, 7
      %v766 = vshll.u32 %v555, 16
      %v768 = vor.u32 %v765, %v766
      %v769 = vsel %vm566, %v761, %v768
      %v770 = vrot.slane %v765, 4
      %v772 = vshrl.u32 %v556, 16
      %v774 = vrot.slane %v772, 7
      %v775 = vshll.u32 %v556, 16
      %v777 = vor.u32 %v774, %v775
      %v778 = vrot.slane %v774, 4
      %v780 = vshrl.u32 %v557, 16
      %v782 = vrot.slane %v780, 7
      %v783 = vshll.u32 %v557, 16
      %v785 = vor.u32 %v782, %v783
      %v786 = vsel %vm566, %v778, %v785
      %v787 = vrot.slane %v782, 4
      %v789 = vshrl.u32 %v558, 16
      %v791 = vrot.slane %v789, 7
      %v792 = vshll.u32 %v558, 16
      %v794 = vor.u32 %v791, %v792
      %v795 = vrot.slane %v791, 4
      %v797 = vshrl.u32 %v559, 16
      %v799 = vrot.slane %v797, 7
      %v800 = vshll.u32 %v559, 16
      %v802 = vor.u32 %v799, %v800
      %v803 = vsel %vm566, %v795, %v802
      %v804 = vrot.slane %v799, 4
      %v806 = vshrl.u32 %v560, 16
      %v808 = vrot.slane %v806, 7
      %v809 = vshll.u32 %v560, 16
      %v811 = vor.u32 %v808, %v809
      %v812 = vrot.slane %v808, 4
      %v814 = vshrl.u32 %v561, 16
      %v816 = vrot.slane %v814, 7
      %v817 = vshll.u32 %v561, 16
      %v819 = vor.u32 %v816, %v817
      %v820 = vsel %vm566, %v812, %v819
      %v821 = vrot.slane %v816, 4
      %v823 = vshrl.u32 %v562, 16
      %v825 = vrot.slane %v823, 7
      %v826 = vshll.u32 %v562, 16
      %v828 = vor.u32 %v825, %v826
      %v829 = vrot.slane %v825, 4
      %v831 = vshrl.u32 %v563, 16
      %v833 = vrot.slane %v831, 7
      %v834 = vshll.u32 %v563, 16
      %v836 = vor.u32 %v833, %v834
      %v837 = vsel %vm566, %v829, %v836
      %v838 = vrot.slane %v833, 4
      %s887 = scalar_lea.vmem [#allocation2], 12
      %vm888 = vcmask 27648
      %vm889 = vsmask.f32 7938
      %vm890 = vmand %vm888, %vm889
      %v891 = vld [vmem:[%s887] sm:$0xf]
      %v892 = vsel %vm890, %v573, %v891
      %893 = vst [vmem:[%s887] sm:$0xf] %v892
      %894 = vst.msk [vmem:[%s887 + $0x4] sm:$0xf] %vm412, %v582
      %vm895 = vcmask 24576
      %vm896 = vmand %vm895, %vm564
      %v897 = vld [vmem:[%s887 + $0x8] sm:$0x1]
      %v898 = vsel %vm896, %v583, %v897
      %899 = vst [vmem:[%s887 + $0x8] sm:$0x1] %v898
      %v900 = vld [vmem:[%s887 + $0xc] sm:$0xf]
      %v901 = vsel %vm890, %v590, %v900
      %902 = vst [vmem:[%s887 + $0xc] sm:$0xf] %v901
      %903 = vst.msk [vmem:[%s887 + $0x10] sm:$0xf] %vm412, %v599
      %v904 = vld [vmem:[%s887 + $0x14] sm:$0x1]
      %v905 = vsel %vm896, %v600, %v904
      %906 = vst [vmem:[%s887 + $0x14] sm:$0x1] %v905
      %v907 = vld [vmem:[%s887 + $0x18] sm:$0xf]
      %v908 = vsel %vm890, %v607, %v907
      %909 = vst [vmem:[%s887 + $0x18] sm:$0xf] %v908
      %910 = vst.msk [vmem:[%s887 + $0x1c] sm:$0xf] %vm412, %v616
      %v911 = vld [vmem:[%s887 + $0x20] sm:$0x1]
      %v912 = vsel %vm896, %v617, %v911
      %913 = vst [vmem:[%s887 + $0x20] sm:$0x1] %v912
      %v914 = vld [vmem:[%s887 + $0x24] sm:$0xf]
      %v915 = vsel %vm890, %v624, %v914
      %916 = vst [vmem:[%s887 + $0x24] sm:$0xf] %v915
      %917 = vst.msk [vmem:[%s887 + $0x28] sm:$0xf] %vm412, %v633
      %v918 = vld [vmem:[%s887 + $0x2c] sm:$0x1]
      %v919 = vsel %vm896, %v634, %v918
      %920 = vst [vmem:[%s887 + $0x2c] sm:$0x1] %v919
      %v921 = vld [vmem:[%s887 + $0x30] sm:$0xf]
      %v922 = vsel %vm890, %v641, %v921
      %923 = vst [vmem:[%s887 + $0x30] sm:$0xf] %v922
      %924 = vst.msk [vmem:[%s887 + $0x34] sm:$0xf] %vm412, %v650
      %v925 = vld [vmem:[%s887 + $0x38] sm:$0x1]
      %v926 = vsel %vm896, %v651, %v925
      %927 = vst [vmem:[%s887 + $0x38] sm:$0x1] %v926
      %v928 = vld [vmem:[%s887 + $0x3c] sm:$0xf]
      %v929 = vsel %vm890, %v658, %v928
      %930 = vst [vmem:[%s887 + $0x3c] sm:$0xf] %v929
      %931 = vst.msk [vmem:[%s887 + $0x40] sm:$0xf] %vm412, %v667
      %v932 = vld [vmem:[%s887 + $0x44] sm:$0x1]
      %v933 = vsel %vm896, %v668, %v932
      %934 = vst [vmem:[%s887 + $0x44] sm:$0x1] %v933
      %v935 = vld [vmem:[%s887 + $0x48] sm:$0xf]
      %v936 = vsel %vm890, %v675, %v935
      %937 = vst [vmem:[%s887 + $0x48] sm:$0xf] %v936
      %938 = vst.msk [vmem:[%s887 + $0x4c] sm:$0xf] %vm412, %v684
      %v939 = vld [vmem:[%s887 + $0x50] sm:$0x1]
      %v940 = vsel %vm896, %v685, %v939
      %941 = vst [vmem:[%s887 + $0x50] sm:$0x1] %v940
      %v942 = vld [vmem:[%s887 + $0x54] sm:$0xf]
      %v943 = vsel %vm890, %v692, %v942
      %944 = vst [vmem:[%s887 + $0x54] sm:$0xf] %v943
      %945 = vst.msk [vmem:[%s887 + $0x58] sm:$0xf] %vm412, %v701
      %v946 = vld [vmem:[%s887 + $0x5c] sm:$0x1]
      %v947 = vsel %vm896, %v702, %v946
      %948 = vst [vmem:[%s887 + $0x5c] sm:$0x1] %v947
      %v949 = vld [vmem:[%s887 + $0x60] sm:$0xf]
      %v950 = vsel %vm890, %v709, %v949
      %951 = vst [vmem:[%s887 + $0x60] sm:$0xf] %v950
      %952 = vst.msk [vmem:[%s887 + $0x64] sm:$0xf] %vm412, %v718
      %v953 = vld [vmem:[%s887 + $0x68] sm:$0x1]
      %v954 = vsel %vm896, %v719, %v953
      %955 = vst [vmem:[%s887 + $0x68] sm:$0x1] %v954
      %v956 = vld [vmem:[%s887 + $0x6c] sm:$0xf]
      %v957 = vsel %vm890, %v726, %v956
      %958 = vst [vmem:[%s887 + $0x6c] sm:$0xf] %v957
      %959 = vst.msk [vmem:[%s887 + $0x70] sm:$0xf] %vm412, %v735
      %v960 = vld [vmem:[%s887 + $0x74] sm:$0x1]
      %v961 = vsel %vm896, %v736, %v960
      %962 = vst [vmem:[%s887 + $0x74] sm:$0x1] %v961
      %v963 = vld [vmem:[%s887 + $0x78] sm:$0xf]
      %v964 = vsel %vm890, %v743, %v963
      %965 = vst [vmem:[%s887 + $0x78] sm:$0xf] %v964
      %966 = vst.msk [vmem:[%s887 + $0x7c] sm:$0xf] %vm412, %v752
      %v967 = vld [vmem:[%s887 + $0x80] sm:$0x1]
      %v968 = vsel %vm896, %v753, %v967
      %969 = vst [vmem:[%s887 + $0x80] sm:$0x1] %v968
      %v970 = vld [vmem:[%s887 + $0x84] sm:$0xf]
      %v971 = vsel %vm890, %v760, %v970
      %972 = vst [vmem:[%s887 + $0x84] sm:$0xf] %v971
      %973 = vst.msk [vmem:[%s887 + $0x88] sm:$0xf] %vm412, %v769
      %v974 = vld [vmem:[%s887 + $0x8c] sm:$0x1]
      %v975 = vsel %vm896, %v770, %v974
      %976 = vst [vmem:[%s887 + $0x8c] sm:$0x1] %v975
      %v977 = vld [vmem:[%s887 + $0x90] sm:$0xf]
      %v978 = vsel %vm890, %v777, %v977
      %979 = vst [vmem:[%s887 + $0x90] sm:$0xf] %v978
      %980 = vst.msk [vmem:[%s887 + $0x94] sm:$0xf] %vm412, %v786
      %v981 = vld [vmem:[%s887 + $0x98] sm:$0x1]
      %v982 = vsel %vm896, %v787, %v981
      %983 = vst [vmem:[%s887 + $0x98] sm:$0x1] %v982
      %v984 = vld [vmem:[%s887 + $0x9c] sm:$0xf]
      %v985 = vsel %vm890, %v794, %v984
      %986 = vst [vmem:[%s887 + $0x9c] sm:$0xf] %v985
      %987 = vst.msk [vmem:[%s887 + $0xa0] sm:$0xf] %vm412, %v803
      %v988 = vld [vmem:[%s887 + $0xa4] sm:$0x1]
      %v989 = vsel %vm896, %v804, %v988
      %990 = vst [vmem:[%s887 + $0xa4] sm:$0x1] %v989
      %v991 = vld [vmem:[%s887 + $0xa8] sm:$0xf]
      %v992 = vsel %vm890, %v811, %v991
      %993 = vst [vmem:[%s887 + $0xa8] sm:$0xf] %v992
      %994 = vst.msk [vmem:[%s887 + $0xac] sm:$0xf] %vm412, %v820
      %v995 = vld [vmem:[%s887 + $0xb0] sm:$0x1]
      %v996 = vsel %vm896, %v821, %v995
      %997 = vst [vmem:[%s887 + $0xb0] sm:$0x1] %v996
      %v998 = vld [vmem:[%s887 + $0xb4] sm:$0xf]
      %v999 = vsel %vm890, %v828, %v998
      %1000 = vst [vmem:[%s887 + $0xb4] sm:$0xf] %v999
      %1001 = vst.msk [vmem:[%s887 + $0xb8] sm:$0xf] %vm412, %v837
      %v1002 = vld [vmem:[%s887 + $0xbc] sm:$0x1]
      %v1003 = vsel %vm896, %v838, %v1002
      %1004 = vst [vmem:[%s887 + $0xbc] sm:$0x1] %v1003
      %v1005 = vld [vmem:[%s3] sm:$0xf]
      %v1006 = vld [vmem:[%s3 + $0x4] sm:$0xf]
      %v1007 = vld [vmem:[%s3 + $0x8] sm:$0xf]
      %v1008 = vld [vmem:[%s3 + $0xc] sm:$0xf]
      %v1009 = vld [vmem:[%s3 + $0x10] sm:$0x3]
      %v1010 = vld [vmem:[#allocation2] sm:$0xf]
      %v1011 = vld [vmem:[#allocation2 + $0x4] sm:$0xf]
      %v1012 = vld [vmem:[#allocation2 + $0xc] sm:$0xf]
      %v1013 = vld [vmem:[#allocation2 + $0x10] sm:$0xf]
      %v1014 = vld [vmem:[#allocation2 + $0x18] sm:$0xf]
      %v1015 = vld [vmem:[#allocation2 + $0x1c] sm:$0xf]
      %v1016 = vld [vmem:[#allocation2 + $0x24] sm:$0xf]
      %v1017 = vld [vmem:[#allocation2 + $0x28] sm:$0xf]
      %v1018 = vld [vmem:[#allocation2 + $0x30] sm:$0xf]
      %v1019 = vld [vmem:[#allocation2 + $0x34] sm:$0xf]
      %v1020 = vld [vmem:[#allocation2 + $0x3c] sm:$0xf]
      %v1021 = vld [vmem:[#allocation2 + $0x40] sm:$0xf]
      %v1022 = vld [vmem:[#allocation2 + $0x48] sm:$0xf]
      %v1023 = vld [vmem:[#allocation2 + $0x4c] sm:$0xf]
      %v1024 = vld [vmem:[#allocation2 + $0x54] sm:$0xf]
      %v1025 = vld [vmem:[#allocation2 + $0x58] sm:$0xf]
      %v1026 = vld [vmem:[#allocation2 + $0x60] sm:$0xf]
      %v1027 = vld [vmem:[#allocation2 + $0x64] sm:$0xf]
      %v1028 = vld [vmem:[#allocation2 + $0x6c] sm:$0xf]
      %v1029 = vld [vmem:[#allocation2 + $0x70] sm:$0xf]
      %v1030 = vld [vmem:[#allocation2 + $0x78] sm:$0xf]
      %v1031 = vld [vmem:[#allocation2 + $0x7c] sm:$0xf]
      %v1032 = vld [vmem:[#allocation2 + $0x84] sm:$0xf]
      %v1033 = vld [vmem:[#allocation2 + $0x88] sm:$0xf]
      %v1034 = vld [vmem:[#allocation2 + $0x90] sm:$0xf]
      %v1035 = vld [vmem:[#allocation2 + $0x94] sm:$0xf]
      %v1036 = vld [vmem:[#allocation2 + $0x9c] sm:$0xf]
      %v1037 = vld [vmem:[#allocation2 + $0xa0] sm:$0xf]
      %v1038 = vld [vmem:[#allocation2 + $0xa8] sm:$0xf]
      %v1039 = vld [vmem:[#allocation2 + $0xac] sm:$0xf]
      %v1040 = vld [vmem:[#allocation2 + $0xb4] sm:$0xf]
      %v1041 = vld [vmem:[#allocation2 + $0xb8] sm:$0xf]
      %v1042 = vld [vmem:[#allocation2 + $0x8] sm:$0x1]
      %v1043 = vld [vmem:[#allocation2 + $0x14] sm:$0x1]
      %v1044 = vld [vmem:[#allocation2 + $0x20] sm:$0x1]
      %v1045 = vld [vmem:[#allocation2 + $0x2c] sm:$0x1]
      %v1046 = vld [vmem:[#allocation2 + $0x38] sm:$0x1]
      %v1047 = vld [vmem:[#allocation2 + $0x44] sm:$0x1]
      %v1048 = vld [vmem:[#allocation2 + $0x50] sm:$0x1]
      %v1049 = vld [vmem:[#allocation2 + $0x5c] sm:$0x1]
      %v1050 = vld [vmem:[#allocation2 + $0x68] sm:$0x1]
      %v1051 = vld [vmem:[#allocation2 + $0x74] sm:$0x1]
      %v1052 = vld [vmem:[#allocation2 + $0x80] sm:$0x1]
      %v1053 = vld [vmem:[#allocation2 + $0x8c] sm:$0x1]
      %v1054 = vld [vmem:[#allocation2 + $0x98] sm:$0x1]
      %v1055 = vld [vmem:[#allocation2 + $0xa4] sm:$0x1]
      %v1056 = vld [vmem:[#allocation2 + $0xb0] sm:$0x1]
      %v1057 = vld [vmem:[#allocation2 + $0xbc] sm:$0x1]
      %v1058 = vld [vmem:[#allocation2] sm:$0xe]
      %v1059 = vld [vmem:[#allocation2 + $0xc] sm:$0xe]
      %v1060 = vld [vmem:[#allocation2 + $0x18] sm:$0xe]
      %v1061 = vld [vmem:[#allocation2 + $0x24] sm:$0xe]
      %v1062 = vld [vmem:[#allocation2 + $0x30] sm:$0xe]
      %v1063 = vld [vmem:[#allocation2 + $0x3c] sm:$0xe]
      %v1064 = vld [vmem:[#allocation2 + $0x48] sm:$0xe]
      %v1065 = vld [vmem:[#allocation2 + $0x54] sm:$0xe]
      %v1066 = vld [vmem:[#allocation2 + $0x60] sm:$0xe]
      %v1067 = vld [vmem:[#allocation2 + $0x6c] sm:$0xe]
      %v1068 = vld [vmem:[#allocation2 + $0x78] sm:$0xe]
      %v1069 = vld [vmem:[#allocation2 + $0x84] sm:$0xe]
      %v1070 = vld [vmem:[#allocation2 + $0x90] sm:$0xe]
      %v1071 = vld [vmem:[#allocation2 + $0x9c] sm:$0xe]
      %v1072 = vld [vmem:[#allocation2 + $0xa8] sm:$0xe]
      %v1073 = vld [vmem:[#allocation2 + $0xb4] sm:$0xe]
      %v1074 = vld [vmem:[%s887] sm:$0xf]
      %v1075 = vld [vmem:[%s887 + $0x4] sm:$0xf]
      %v1076 = vld [vmem:[%s887 + $0xc] sm:$0xf]
      %v1077 = vld [vmem:[%s887 + $0x10] sm:$0xf]
      %v1078 = vld [vmem:[%s887 + $0x18] sm:$0xf]
      %v1079 = vld [vmem:[%s887 + $0x1c] sm:$0xf]
      %v1080 = vld [vmem:[%s887 + $0x24] sm:$0xf]
      %v1081 = vld [vmem:[%s887 + $0x28] sm:$0xf]
      %v1082 = vld [vmem:[%s887 + $0x30] sm:$0xf]
      %v1083 = vld [vmem:[%s887 + $0x34] sm:$0xf]
      %v1084 = vld [vmem:[%s887 + $0x3c] sm:$0xf]
      %v1085 = vld [vmem:[%s887 + $0x40] sm:$0xf]
      %v1086 = vld [vmem:[%s887 + $0x48] sm:$0xf]
      %v1087 = vld [vmem:[%s887 + $0x4c] sm:$0xf]
      %v1088 = vld [vmem:[%s887 + $0x54] sm:$0xf]
      %v1089 = vld [vmem:[%s887 + $0x58] sm:$0xf]
      %v1090 = vld [vmem:[%s887 + $0x60] sm:$0xf]
      %v1091 = vld [vmem:[%s887 + $0x64] sm:$0xf]
      %v1092 = vld [vmem:[%s887 + $0x6c] sm:$0xf]
      %v1093 = vld [vmem:[%s887 + $0x70] sm:$0xf]
      %v1094 = vld [vmem:[%s887 + $0x78] sm:$0xf]
      %v1095 = vld [vmem:[%s887 + $0x7c] sm:$0xf]
      %v1096 = vld [vmem:[%s887 + $0x84] sm:$0xf]
      %v1097 = vld [vmem:[%s887 + $0x88] sm:$0xf]
      %v1098 = vld [vmem:[%s887 + $0x90] sm:$0xf]
      %v1099 = vld [vmem:[%s887 + $0x94] sm:$0xf]
      %v1100 = vld [vmem:[%s887 + $0x9c] sm:$0xf]
      %v1101 = vld [vmem:[%s887 + $0xa0] sm:$0xf]
      %v1102 = vld [vmem:[%s887 + $0xa8] sm:$0xf]
      %v1103 = vld [vmem:[%s887 + $0xac] sm:$0xf]
      %v1104 = vld [vmem:[%s887 + $0xb4] sm:$0xf]
      %v1105 = vld [vmem:[%s887 + $0xb8] sm:$0xf]
      %v1106 = vld [vmem:[%s887 + $0x8] sm:$0x1]
      %v1107 = vld [vmem:[%s887 + $0x14] sm:$0x1]
      %v1108 = vld [vmem:[%s887 + $0x20] sm:$0x1]
      %v1109 = vld [vmem:[%s887 + $0x2c] sm:$0x1]
      %v1110 = vld [vmem:[%s887 + $0x38] sm:$0x1]
      %v1111 = vld [vmem:[%s887 + $0x44] sm:$0x1]
      %v1112 = vld [vmem:[%s887 + $0x50] sm:$0x1]
      %v1113 = vld [vmem:[%s887 + $0x5c] sm:$0x1]
      %v1114 = vld [vmem:[%s887 + $0x68] sm:$0x1]
      %v1115 = vld [vmem:[%s887 + $0x74] sm:$0x1]
      %v1116 = vld [vmem:[%s887 + $0x80] sm:$0x1]
      %v1117 = vld [vmem:[%s887 + $0x8c] sm:$0x1]
      %v1118 = vld [vmem:[%s887 + $0x98] sm:$0x1]
      %v1119 = vld [vmem:[%s887 + $0xa4] sm:$0x1]
      %v1120 = vld [vmem:[%s887 + $0xb0] sm:$0x1]
      %v1121 = vld [vmem:[%s887 + $0xbc] sm:$0x1]
      %v1122 = vld [vmem:[%s887] sm:$0xe]
      %v1123 = vld [vmem:[%s887 + $0xc] sm:$0xe]
      %v1124 = vld [vmem:[%s887 + $0x18] sm:$0xe]
      %v1125 = vld [vmem:[%s887 + $0x24] sm:$0xe]
      %v1126 = vld [vmem:[%s887 + $0x30] sm:$0xe]
      %v1127 = vld [vmem:[%s887 + $0x3c] sm:$0xe]
      %v1128 = vld [vmem:[%s887 + $0x48] sm:$0xe]
      %v1129 = vld [vmem:[%s887 + $0x54] sm:$0xe]
      %v1130 = vld [vmem:[%s887 + $0x60] sm:$0xe]
      %v1131 = vld [vmem:[%s887 + $0x6c] sm:$0xe]
      %v1132 = vld [vmem:[%s887 + $0x78] sm:$0xe]
      %v1133 = vld [vmem:[%s887 + $0x84] sm:$0xe]
      %v1134 = vld [vmem:[%s887 + $0x90] sm:$0xe]
      %v1135 = vld [vmem:[%s887 + $0x9c] sm:$0xe]
      %v1136 = vld [vmem:[%s887 + $0xa8] sm:$0xe]
      %v1137 = vld [vmem:[%s887 + $0xb4] sm:$0xe]
      %s1138 = scalar_lea.vmem [#allocation2], 24
      %v1139 = vld [vmem:[%s1138] sm:$0xf]
      %v1140 = vld [vmem:[%s1138 + $0x4] sm:$0xf]
      %v1141 = vld [vmem:[%s1138 + $0xc] sm:$0xf]
      %v1142 = vld [vmem:[%s1138 + $0x10] sm:$0xf]
      %v1143 = vld [vmem:[%s1138 + $0x18] sm:$0xf]
      %v1144 = vld [vmem:[%s1138 + $0x1c] sm:$0xf]
      %v1145 = vld [vmem:[%s1138 + $0x24] sm:$0xf]
      %v1146 = vld [vmem:[%s1138 + $0x28] sm:$0xf]
      %v1147 = vld [vmem:[%s1138 + $0x30] sm:$0xf]
      %v1148 = vld [vmem:[%s1138 + $0x34] sm:$0xf]
      %v1149 = vld [vmem:[%s1138 + $0x3c] sm:$0xf]
      %v1150 = vld [vmem:[%s1138 + $0x40] sm:$0xf]
      %v1151 = vld [vmem:[%s1138 + $0x48] sm:$0xf]
      %v1152 = vld [vmem:[%s1138 + $0x4c] sm:$0xf]
      %v1153 = vld [vmem:[%s1138 + $0x54] sm:$0xf]
      %v1154 = vld [vmem:[%s1138 + $0x58] sm:$0xf]
      %v1155 = vld [vmem:[%s1138 + $0x60] sm:$0xf]
      %v1156 = vld [vmem:[%s1138 + $0x64] sm:$0xf]
      %v1157 = vld [vmem:[%s1138 + $0x6c] sm:$0xf]
      %v1158 = vld [vmem:[%s1138 + $0x70] sm:$0xf]
      %v1159 = vld [vmem:[%s1138 + $0x78] sm:$0xf]
      %v1160 = vld [vmem:[%s1138 + $0x7c] sm:$0xf]
      %v1161 = vld [vmem:[%s1138 + $0x84] sm:$0xf]
      %v1162 = vld [vmem:[%s1138 + $0x88] sm:$0xf]
      %v1163 = vld [vmem:[%s1138 + $0x90] sm:$0xf]
      %v1164 = vld [vmem:[%s1138 + $0x94] sm:$0xf]
      %v1165 = vld [vmem:[%s1138 + $0x9c] sm:$0xf]
      %v1166 = vld [vmem:[%s1138 + $0xa0] sm:$0xf]
      %v1167 = vld [vmem:[%s1138 + $0xa8] sm:$0xf]
      %v1168 = vld [vmem:[%s1138 + $0xac] sm:$0xf]
      %v1169 = vld [vmem:[%s1138 + $0xb4] sm:$0xf]
      %v1170 = vld [vmem:[%s1138 + $0xb8] sm:$0xf]
      %v1171 = vld [vmem:[%s1138 + $0x8] sm:$0x1]
      %v1172 = vld [vmem:[%s1138 + $0x14] sm:$0x1]
      %v1173 = vld [vmem:[%s1138 + $0x20] sm:$0x1]
      %v1174 = vld [vmem:[%s1138 + $0x2c] sm:$0x1]
      %v1175 = vld [vmem:[%s1138 + $0x38] sm:$0x1]
      %v1176 = vld [vmem:[%s1138 + $0x44] sm:$0x1]
      %v1177 = vld [vmem:[%s1138 + $0x50] sm:$0x1]
      %v1178 = vld [vmem:[%s1138 + $0x5c] sm:$0x1]
      %v1179 = vld [vmem:[%s1138 + $0x68] sm:$0x1]
      %v1180 = vld [vmem:[%s1138 + $0x74] sm:$0x1]
      %v1181 = vld [vmem:[%s1138 + $0x80] sm:$0x1]
      %v1182 = vld [vmem:[%s1138 + $0x8c] sm:$0x1]
      %v1183 = vld [vmem:[%s1138 + $0x98] sm:$0x1]
      %v1184 = vld [vmem:[%s1138 + $0xa4] sm:$0x1]
      %v1185 = vld [vmem:[%s1138 + $0xb0] sm:$0x1]
      %v1186 = vld [vmem:[%s1138 + $0xbc] sm:$0x1]
      %v1187 = vld [vmem:[%s1138] sm:$0xe]
      %v1188 = vld [vmem:[%s1138 + $0xc] sm:$0xe]
      %v1189 = vld [vmem:[%s1138 + $0x18] sm:$0xe]
      %v1190 = vld [vmem:[%s1138 + $0x24] sm:$0xe]
      %v1191 = vld [vmem:[%s1138 + $0x30] sm:$0xe]
      %v1192 = vld [vmem:[%s1138 + $0x3c] sm:$0xe]
      %v1193 = vld [vmem:[%s1138 + $0x48] sm:$0xe]
      %v1194 = vld [vmem:[%s1138 + $0x54] sm:$0xe]
      %v1195 = vld [vmem:[%s1138 + $0x60] sm:$0xe]
      %v1196 = vld [vmem:[%s1138 + $0x6c] sm:$0xe]
      %v1197 = vld [vmem:[%s1138 + $0x78] sm:$0xe]
      %v1198 = vld [vmem:[%s1138 + $0x84] sm:$0xe]
      %v1199 = vld [vmem:[%s1138 + $0x90] sm:$0xe]
      %v1200 = vld [vmem:[%s1138 + $0x9c] sm:$0xe]
      %v1201 = vld [vmem:[%s1138 + $0xa8] sm:$0xe]
      %v1202 = vld [vmem:[%s1138 + $0xb4] sm:$0xe]
      %v1235 = vunpack.c.l.b16 %v1010
      %v1236 = vunpack.c.l.b16 %v1011
      %v1237 = vunpack.c.l.b16 %v1012
      %v1238 = vunpack.c.l.b16 %v1013
      %v1239 = vunpack.c.l.b16 %v1014
      %v1240 = vunpack.c.l.b16 %v1015
      %v1241 = vunpack.c.l.b16 %v1016
      %v1242 = vunpack.c.l.b16 %v1017
      %v1243 = vunpack.c.l.b16 %v1018
      %v1244 = vunpack.c.l.b16 %v1019
      %v1245 = vunpack.c.l.b16 %v1020
      %v1246 = vunpack.c.l.b16 %v1021
      %v1247 = vunpack.c.l.b16 %v1022
      %v1248 = vunpack.c.l.b16 %v1023
      %v1249 = vunpack.c.l.b16 %v1024
      %v1250 = vunpack.c.l.b16 %v1025
      %v1251 = vunpack.c.l.b16 %v1026
      %v1252 = vunpack.c.l.b16 %v1027
      %v1253 = vunpack.c.l.b16 %v1028
      %v1254 = vunpack.c.l.b16 %v1029
      %v1255 = vunpack.c.l.b16 %v1030
      %v1256 = vunpack.c.l.b16 %v1031
      %v1257 = vunpack.c.l.b16 %v1032
      %v1258 = vunpack.c.l.b16 %v1033
      %v1259 = vunpack.c.l.b16 %v1034
      %v1260 = vunpack.c.l.b16 %v1035
      %v1261 = vunpack.c.l.b16 %v1036
      %v1262 = vunpack.c.l.b16 %v1037
      %v1263 = vunpack.c.l.b16 %v1038
      %v1264 = vunpack.c.l.b16 %v1039
      %v1265 = vunpack.c.l.b16 %v1040
      %v1266 = vunpack.c.l.b16 %v1041
      %v1267 = vpack.c.b16 %v1236, %v1235
      %v1268 = vpack.c.b16 %v1238, %v1237
      %v1269 = vpack.c.b16 %v1240, %v1239
      %v1270 = vpack.c.b16 %v1242, %v1241
      %v1271 = vpack.c.b16 %v1244, %v1243
      %v1272 = vpack.c.b16 %v1246, %v1245
      %v1273 = vpack.c.b16 %v1248, %v1247
      %v1274 = vpack.c.b16 %v1250, %v1249
      %v1275 = vpack.c.b16 %v1252, %v1251
      %v1276 = vpack.c.b16 %v1254, %v1253
      %v1277 = vpack.c.b16 %v1256, %v1255
      %v1278 = vpack.c.b16 %v1258, %v1257
      %v1279 = vpack.c.b16 %v1260, %v1259
      %v1280 = vpack.c.b16 %v1262, %v1261
      %v1281 = vpack.c.b16 %v1264, %v1263
      %v1282 = vpack.c.b16 %v1266, %v1265
      %v1299 = vunpack.c.l.b16 %v1042
      %v1300 = vunpack.c.l.b16 %v1043
      %v1301 = vunpack.c.l.b16 %v1044
      %v1302 = vunpack.c.l.b16 %v1045
      %v1303 = vunpack.c.l.b16 %v1046
      %v1304 = vunpack.c.l.b16 %v1047
      %v1305 = vunpack.c.l.b16 %v1048
      %v1306 = vunpack.c.l.b16 %v1049
      %v1307 = vunpack.c.l.b16 %v1050
      %v1308 = vunpack.c.l.b16 %v1051
      %v1309 = vunpack.c.l.b16 %v1052
      %v1310 = vunpack.c.l.b16 %v1053
      %v1311 = vunpack.c.l.b16 %v1054
      %v1312 = vunpack.c.l.b16 %v1055
      %v1313 = vunpack.c.l.b16 %v1056
      %v1314 = vunpack.c.l.b16 %v1057
      %v1315 = vpack.c.b16 %v1299, %v1299
      %v1316 = vpack.c.b16 %v1300, %v1300
      %v1317 = vpack.c.b16 %v1301, %v1301
      %v1318 = vpack.c.b16 %v1302, %v1302
      %v1319 = vpack.c.b16 %v1303, %v1303
      %v1320 = vpack.c.b16 %v1304, %v1304
      %v1321 = vpack.c.b16 %v1305, %v1305
      %v1322 = vpack.c.b16 %v1306, %v1306
      %v1323 = vpack.c.b16 %v1307, %v1307
      %v1324 = vpack.c.b16 %v1308, %v1308
      %v1325 = vpack.c.b16 %v1309, %v1309
      %v1326 = vpack.c.b16 %v1310, %v1310
      %v1327 = vpack.c.b16 %v1311, %v1311
      %v1328 = vpack.c.b16 %v1312, %v1312
      %v1329 = vpack.c.b16 %v1313, %v1313
      %v1330 = vpack.c.b16 %v1314, %v1314
      %vm1331 = vsmask.f32 7424
      %v1333 = vshrl.u32 %v1267, 16
      %v1335 = vshll.u32 %v1267, 16
      %v1337 = vrot.slane %v1335, 1
      %v1338 = vor.u32 %v1333, %v1337
      %v1340 = vshll.u32 %v1315, 16
      %v1342 = vrot.slane %v1340, 1
      %v1343 = vsel %vm1331, %v1338, %v1342
      %v1345 = vshrl.u32 %v1268, 16
      %v1347 = vshll.u32 %v1268, 16
      %v1349 = vrot.slane %v1347, 1
      %v1350 = vor.u32 %v1345, %v1349
      %v1352 = vshll.u32 %v1316, 16
      %v1354 = vrot.slane %v1352, 1
      %v1355 = vsel %vm1331, %v1350, %v1354
      %v1357 = vshrl.u32 %v1269, 16
      %v1359 = vshll.u32 %v1269, 16
      %v1361 = vrot.slane %v1359, 1
      %v1362 = vor.u32 %v1357, %v1361
      %v1364 = vshll.u32 %v1317, 16
      %v1366 = vrot.slane %v1364, 1
      %v1367 = vsel %vm1331, %v1362, %v1366
      %v1369 = vshrl.u32 %v1270, 16
      %v1371 = vshll.u32 %v1270, 16
      %v1373 = vrot.slane %v1371, 1
      %v1374 = vor.u32 %v1369, %v1373
      %v1376 = vshll.u32 %v1318, 16
      %v1378 = vrot.slane %v1376, 1
      %v1379 = vsel %vm1331, %v1374, %v1378
      %v1381 = vshrl.u32 %v1271, 16
      %v1383 = vshll.u32 %v1271, 16
      %v1385 = vrot.slane %v1383, 1
      %v1386 = vor.u32 %v1381, %v1385
      %v1388 = vshll.u32 %v1319, 16
      %v1390 = vrot.slane %v1388, 1
      %v1391 = vsel %vm1331, %v1386, %v1390
      %v1393 = vshrl.u32 %v1272, 16
      %v1395 = vshll.u32 %v1272, 16
      %v1397 = vrot.slane %v1395, 1
      %v1398 = vor.u32 %v1393, %v1397
      %v1400 = vshll.u32 %v1320, 16
      %v1402 = vrot.slane %v1400, 1
      %v1403 = vsel %vm1331, %v1398, %v1402
      %v1405 = vshrl.u32 %v1273, 16
      %v1407 = vshll.u32 %v1273, 16
      %v1409 = vrot.slane %v1407, 1
      %v1410 = vor.u32 %v1405, %v1409
      %v1412 = vshll.u32 %v1321, 16
      %v1414 = vrot.slane %v1412, 1
      %v1415 = vsel %vm1331, %v1410, %v1414
      %v1417 = vshrl.u32 %v1274, 16
      %v1419 = vshll.u32 %v1274, 16
      %v1421 = vrot.slane %v1419, 1
      %v1422 = vor.u32 %v1417, %v1421
      %v1424 = vshll.u32 %v1322, 16
      %v1426 = vrot.slane %v1424, 1
      %v1427 = vsel %vm1331, %v1422, %v1426
      %v1429 = vshrl.u32 %v1275, 16
      %v1431 = vshll.u32 %v1275, 16
      %v1433 = vrot.slane %v1431, 1
      %v1434 = vor.u32 %v1429, %v1433
      %v1436 = vshll.u32 %v1323, 16
      %v1438 = vrot.slane %v1436, 1
      %v1439 = vsel %vm1331, %v1434, %v1438
      %v1441 = vshrl.u32 %v1276, 16
      %v1443 = vshll.u32 %v1276, 16
      %v1445 = vrot.slane %v1443, 1
      %v1446 = vor.u32 %v1441, %v1445
      %v1448 = vshll.u32 %v1324, 16
      %v1450 = vrot.slane %v1448, 1
      %v1451 = vsel %vm1331, %v1446, %v1450
      %v1453 = vshrl.u32 %v1277, 16
      %v1455 = vshll.u32 %v1277, 16
      %v1457 = vrot.slane %v1455, 1
      %v1458 = vor.u32 %v1453, %v1457
      %v1460 = vshll.u32 %v1325, 16
      %v1462 = vrot.slane %v1460, 1
      %v1463 = vsel %vm1331, %v1458, %v1462
      %v1465 = vshrl.u32 %v1278, 16
      %v1467 = vshll.u32 %v1278, 16
      %v1469 = vrot.slane %v1467, 1
      %v1470 = vor.u32 %v1465, %v1469
      %v1472 = vshll.u32 %v1326, 16
      %v1474 = vrot.slane %v1472, 1
      %v1475 = vsel %vm1331, %v1470, %v1474
      %v1477 = vshrl.u32 %v1279, 16
      %v1479 = vshll.u32 %v1279, 16
      %v1481 = vrot.slane %v1479, 1
      %v1482 = vor.u32 %v1477, %v1481
      %v1484 = vshll.u32 %v1327, 16
      %v1486 = vrot.slane %v1484, 1
      %v1487 = vsel %vm1331, %v1482, %v1486
      %v1489 = vshrl.u32 %v1280, 16
      %v1491 = vshll.u32 %v1280, 16
      %v1493 = vrot.slane %v1491, 1
      %v1494 = vor.u32 %v1489, %v1493
      %v1496 = vshll.u32 %v1328, 16
      %v1498 = vrot.slane %v1496, 1
      %v1499 = vsel %vm1331, %v1494, %v1498
      %v1501 = vshrl.u32 %v1281, 16
      %v1503 = vshll.u32 %v1281, 16
      %v1505 = vrot.slane %v1503, 1
      %v1506 = vor.u32 %v1501, %v1505
      %v1508 = vshll.u32 %v1329, 16
      %v1510 = vrot.slane %v1508, 1
      %v1511 = vsel %vm1331, %v1506, %v1510
      %v1513 = vshrl.u32 %v1282, 16
      %v1515 = vshll.u32 %v1282, 16
      %v1517 = vrot.slane %v1515, 1
      %v1518 = vor.u32 %v1513, %v1517
      %v1520 = vshll.u32 %v1330, 16
      %v1522 = vrot.slane %v1520, 1
      %v1523 = vsel %vm1331, %v1518, %v1522
      %1524 = vrot.lane.b32.xlu0 %v1343, 4
      %v1525 = vpop.permute.xlu0 %1524
      %1526 = vrot.lane.b32.xlu0 %v1355, 4
      %v1527 = vpop.permute.xlu0 %1526
      %1528 = vrot.lane.b32.xlu0 %v1367, 4
      %v1529 = vpop.permute.xlu0 %1528
      %1530 = vrot.lane.b32.xlu0 %v1379, 4
      %v1531 = vpop.permute.xlu0 %1530
      %1532 = vrot.lane.b32.xlu0 %v1391, 4
      %v1533 = vpop.permute.xlu0 %1532
      %1534 = vrot.lane.b32.xlu0 %v1403, 4
      %v1535 = vpop.permute.xlu0 %1534
      %1536 = vrot.lane.b32.xlu0 %v1415, 4
      %v1537 = vpop.permute.xlu0 %1536
      %1538 = vrot.lane.b32.xlu0 %v1427, 4
      %v1539 = vpop.permute.xlu0 %1538
      %1540 = vrot.lane.b32.xlu0 %v1439, 4
      %v1541 = vpop.permute.xlu0 %1540
      %1542 = vrot.lane.b32.xlu0 %v1451, 4
      %v1543 = vpop.permute.xlu0 %1542
      %1544 = vrot.lane.b32.xlu0 %v1463, 4
      %v1545 = vpop.permute.xlu0 %1544
      %1546 = vrot.lane.b32.xlu0 %v1475, 4
      %v1547 = vpop.permute.xlu0 %1546
      %1548 = vrot.lane.b32.xlu0 %v1487, 4
      %v1549 = vpop.permute.xlu0 %1548
      %1550 = vrot.lane.b32.xlu0 %v1499, 4
      %v1551 = vpop.permute.xlu0 %1550
      %1552 = vrot.lane.b32.xlu0 %v1511, 4
      %v1553 = vpop.permute.xlu0 %1552
      %1554 = vrot.lane.b32.xlu0 %v1523, 4
      %v1555 = vpop.permute.xlu0 %1554
      %v1572 = vunpack.c.l.b16 %v1058
      %v1573 = vunpack.c.l.b16 %v1059
      %v1574 = vunpack.c.l.b16 %v1060
      %v1575 = vunpack.c.l.b16 %v1061
      %v1576 = vunpack.c.l.b16 %v1062
      %v1577 = vunpack.c.l.b16 %v1063
      %v1578 = vunpack.c.l.b16 %v1064
      %v1579 = vunpack.c.l.b16 %v1065
      %v1580 = vunpack.c.l.b16 %v1066
      %v1581 = vunpack.c.l.b16 %v1067
      %v1582 = vunpack.c.l.b16 %v1068
      %v1583 = vunpack.c.l.b16 %v1069
      %v1584 = vunpack.c.l.b16 %v1070
      %v1585 = vunpack.c.l.b16 %v1071
      %v1586 = vunpack.c.l.b16 %v1072
      %v1587 = vunpack.c.l.b16 %v1073
      %v1588 = vpack.c.b16 %v1236, %v1572
      %v1589 = vpack.c.b16 %v1238, %v1573
      %v1590 = vpack.c.b16 %v1240, %v1574
      %v1591 = vpack.c.b16 %v1242, %v1575
      %v1592 = vpack.c.b16 %v1244, %v1576
      %v1593 = vpack.c.b16 %v1246, %v1577
      %v1594 = vpack.c.b16 %v1248, %v1578
      %v1595 = vpack.c.b16 %v1250, %v1579
      %v1596 = vpack.c.b16 %v1252, %v1580
      %v1597 = vpack.c.b16 %v1254, %v1581
      %v1598 = vpack.c.b16 %v1256, %v1582
      %v1599 = vpack.c.b16 %v1258, %v1583
      %v1600 = vpack.c.b16 %v1260, %v1584
      %v1601 = vpack.c.b16 %v1262, %v1585
      %v1602 = vpack.c.b16 %v1264, %v1586
      %v1603 = vpack.c.b16 %v1266, %v1587
      %vm1604 = vcmask 1046528
      %v1605 = vrot.slane %v1588, 1
      %v1606 = vrot.slane %v1315, 1
      %v1607 = vsel %vm1604, %v1605, %v1606
      %v1608 = vrot.slane %v1589, 1
      %v1609 = vrot.slane %v1316, 1
      %v1610 = vsel %vm1604, %v1608, %v1609
      %v1611 = vrot.slane %v1590, 1
      %v1612 = vrot.slane %v1317, 1
      %v1613 = vsel %vm1604, %v1611, %v1612
      %v1614 = vrot.slane %v1591, 1
      %v1615 = vrot.slane %v1318, 1
      %v1616 = vsel %vm1604, %v1614, %v1615
      %v1617 = vrot.slane %v1592, 1
      %v1618 = vrot.slane %v1319, 1
      %v1619 = vsel %vm1604, %v1617, %v1618
      %v1620 = vrot.slane %v1593, 1
      %v1621 = vrot.slane %v1320, 1
      %v1622 = vsel %vm1604, %v1620, %v1621
      %v1623 = vrot.slane %v1594, 1
      %v1624 = vrot.slane %v1321, 1
      %v1625 = vsel %vm1604, %v1623, %v1624
      %v1626 = vrot.slane %v1595, 1
      %v1627 = vrot.slane %v1322, 1
      %v1628 = vsel %vm1604, %v1626, %v1627
      %v1629 = vrot.slane %v1596, 1
      %v1630 = vrot.slane %v1323, 1
      %v1631 = vsel %vm1604, %v1629, %v1630
      %v1632 = vrot.slane %v1597, 1
      %v1633 = vrot.slane %v1324, 1
      %v1634 = vsel %vm1604, %v1632, %v1633
      %v1635 = vrot.slane %v1598, 1
      %v1636 = vrot.slane %v1325, 1
      %v1637 = vsel %vm1604, %v1635, %v1636
      %v1638 = vrot.slane %v1599, 1
      %v1639 = vrot.slane %v1326, 1
      %v1640 = vsel %vm1604, %v1638, %v1639
      %v1641 = vrot.slane %v1600, 1
      %v1642 = vrot.slane %v1327, 1
      %v1643 = vsel %vm1604, %v1641, %v1642
      %v1644 = vrot.slane %v1601, 1
      %v1645 = vrot.slane %v1328, 1
      %v1646 = vsel %vm1604, %v1644, %v1645
      %v1647 = vrot.slane %v1602, 1
      %v1648 = vrot.slane %v1329, 1
      %v1649 = vsel %vm1604, %v1647, %v1648
      %v1650 = vrot.slane %v1603, 1
      %v1651 = vrot.slane %v1330, 1
      %v1652 = vsel %vm1604, %v1650, %v1651
      %1653 = vrot.lane.b32.xlu0 %v1607, 8
      %v1654 = vpop.permute.xlu0 %1653
      %1655 = vrot.lane.b32.xlu0 %v1610, 8
      %v1656 = vpop.permute.xlu0 %1655
      %1657 = vrot.lane.b32.xlu0 %v1613, 8
      %v1658 = vpop.permute.xlu0 %1657
      %1659 = vrot.lane.b32.xlu0 %v1616, 8
      %v1660 = vpop.permute.xlu0 %1659
      %1661 = vrot.lane.b32.xlu0 %v1619, 8
      %v1662 = vpop.permute.xlu0 %1661
      %1663 = vrot.lane.b32.xlu0 %v1622, 8
      %v1664 = vpop.permute.xlu0 %1663
      %1665 = vrot.lane.b32.xlu0 %v1625, 8
      %v1666 = vpop.permute.xlu0 %1665
      %1667 = vrot.lane.b32.xlu0 %v1628, 8
      %v1668 = vpop.permute.xlu0 %1667
      %1669 = vrot.lane.b32.xlu0 %v1631, 8
      %v1670 = vpop.permute.xlu0 %1669
      %1671 = vrot.lane.b32.xlu0 %v1634, 8
      %v1672 = vpop.permute.xlu0 %1671
      %1673 = vrot.lane.b32.xlu0 %v1637, 8
      %v1674 = vpop.permute.xlu0 %1673
      %1675 = vrot.lane.b32.xlu0 %v1640, 8
      %v1676 = vpop.permute.xlu0 %1675
      %1677 = vrot.lane.b32.xlu0 %v1643, 8
      %v1678 = vpop.permute.xlu0 %1677
      %1679 = vrot.lane.b32.xlu0 %v1646, 8
      %v1680 = vpop.permute.xlu0 %1679
      %1681 = vrot.lane.b32.xlu0 %v1649, 8
      %v1682 = vpop.permute.xlu0 %1681
      %1683 = vrot.lane.b32.xlu0 %v1652, 8
      %v1684 = vpop.permute.xlu0 %1683
      %v1717 = vunpack.c.l.b16 %v1074
      %v1718 = vunpack.c.l.b16 %v1075
      %v1719 = vunpack.c.l.b16 %v1076
      %v1720 = vunpack.c.l.b16 %v1077
      %v1721 = vunpack.c.l.b16 %v1078
      %v1722 = vunpack.c.l.b16 %v1079
      %v1723 = vunpack.c.l.b16 %v1080
      %v1724 = vunpack.c.l.b16 %v1081
      %v1725 = vunpack.c.l.b16 %v1082
      %v1726 = vunpack.c.l.b16 %v1083
      %v1727 = vunpack.c.l.b16 %v1084
      %v1728 = vunpack.c.l.b16 %v1085
      %v1729 = vunpack.c.l.b16 %v1086
      %v1730 = vunpack.c.l.b16 %v1087
      %v1731 = vunpack.c.l.b16 %v1088
      %v1732 = vunpack.c.l.b16 %v1089
      %v1733 = vunpack.c.l.b16 %v1090
      %v1734 = vunpack.c.l.b16 %v1091
      %v1735 = vunpack.c.l.b16 %v1092
      %v1736 = vunpack.c.l.b16 %v1093
      %v1737 = vunpack.c.l.b16 %v1094
      %v1738 = vunpack.c.l.b16 %v1095
      %v1739 = vunpack.c.l.b16 %v1096
      %v1740 = vunpack.c.l.b16 %v1097
      %v1741 = vunpack.c.l.b16 %v1098
      %v1742 = vunpack.c.l.b16 %v1099
      %v1743 = vunpack.c.l.b16 %v1100
      %v1744 = vunpack.c.l.b16 %v1101
      %v1745 = vunpack.c.l.b16 %v1102
      %v1746 = vunpack.c.l.b16 %v1103
      %v1747 = vunpack.c.l.b16 %v1104
      %v1748 = vunpack.c.l.b16 %v1105
      %v1749 = vpack.c.b16 %v1718, %v1717
      %v1750 = vpack.c.b16 %v1720, %v1719
      %v1751 = vpack.c.b16 %v1722, %v1721
      %v1752 = vpack.c.b16 %v1724, %v1723
      %v1753 = vpack.c.b16 %v1726, %v1725
      %v1754 = vpack.c.b16 %v1728, %v1727
      %v1755 = vpack.c.b16 %v1730, %v1729
      %v1756 = vpack.c.b16 %v1732, %v1731
      %v1757 = vpack.c.b16 %v1734, %v1733
      %v1758 = vpack.c.b16 %v1736, %v1735
      %v1759 = vpack.c.b16 %v1738, %v1737
      %v1760 = vpack.c.b16 %v1740, %v1739
      %v1761 = vpack.c.b16 %v1742, %v1741
      %v1762 = vpack.c.b16 %v1744, %v1743
      %v1763 = vpack.c.b16 %v1746, %v1745
      %v1764 = vpack.c.b16 %v1748, %v1747
      %1765 = vrot.lane.b32.xlu0 %v1749, 12
      %v1766 = vpop.permute.xlu0 %1765
      %1767 = vrot.lane.b32.xlu0 %v1750, 12
      %v1768 = vpop.permute.xlu0 %1767
      %1769 = vrot.lane.b32.xlu0 %v1751, 12
      %v1770 = vpop.permute.xlu0 %1769
      %1771 = vrot.lane.b32.xlu0 %v1752, 12
      %v1772 = vpop.permute.xlu0 %1771
      %1773 = vrot.lane.b32.xlu0 %v1753, 12
      %v1774 = vpop.permute.xlu0 %1773
      %1775 = vrot.lane.b32.xlu0 %v1754, 12
      %v1776 = vpop.permute.xlu0 %1775
      %1777 = vrot.lane.b32.xlu0 %v1755, 12
      %v1778 = vpop.permute.xlu0 %1777
      %1779 = vrot.lane.b32.xlu0 %v1756, 12
      %v1780 = vpop.permute.xlu0 %1779
      %1781 = vrot.lane.b32.xlu0 %v1757, 12
      %v1782 = vpop.permute.xlu0 %1781
      %1783 = vrot.lane.b32.xlu0 %v1758, 12
      %v1784 = vpop.permute.xlu0 %1783
      %1785 = vrot.lane.b32.xlu0 %v1759, 12
      %v1786 = vpop.permute.xlu0 %1785
      %1787 = vrot.lane.b32.xlu0 %v1760, 12
      %v1788 = vpop.permute.xlu0 %1787
      %1789 = vrot.lane.b32.xlu0 %v1761, 12
      %v1790 = vpop.permute.xlu0 %1789
      %1791 = vrot.lane.b32.xlu0 %v1762, 12
      %v1792 = vpop.permute.xlu0 %1791
      %1793 = vrot.lane.b32.xlu0 %v1763, 12
      %v1794 = vpop.permute.xlu0 %1793
      %1795 = vrot.lane.b32.xlu0 %v1764, 12
      %v1796 = vpop.permute.xlu0 %1795
      %v1813 = vunpack.c.l.b16 %v1106
      %v1814 = vunpack.c.l.b16 %v1107
      %v1815 = vunpack.c.l.b16 %v1108
      %v1816 = vunpack.c.l.b16 %v1109
      %v1817 = vunpack.c.l.b16 %v1110
      %v1818 = vunpack.c.l.b16 %v1111
      %v1819 = vunpack.c.l.b16 %v1112
      %v1820 = vunpack.c.l.b16 %v1113
      %v1821 = vunpack.c.l.b16 %v1114
      %v1822 = vunpack.c.l.b16 %v1115
      %v1823 = vunpack.c.l.b16 %v1116
      %v1824 = vunpack.c.l.b16 %v1117
      %v1825 = vunpack.c.l.b16 %v1118
      %v1826 = vunpack.c.l.b16 %v1119
      %v1827 = vunpack.c.l.b16 %v1120
      %v1828 = vunpack.c.l.b16 %v1121
      %v1829 = vpack.c.b16 %v1813, %v1813
      %v1830 = vpack.c.b16 %v1814, %v1814
      %v1831 = vpack.c.b16 %v1815, %v1815
      %v1832 = vpack.c.b16 %v1816, %v1816
      %v1833 = vpack.c.b16 %v1817, %v1817
      %v1834 = vpack.c.b16 %v1818, %v1818
      %v1835 = vpack.c.b16 %v1819, %v1819
      %v1836 = vpack.c.b16 %v1820, %v1820
      %v1837 = vpack.c.b16 %v1821, %v1821
      %v1838 = vpack.c.b16 %v1822, %v1822
      %v1839 = vpack.c.b16 %v1823, %v1823
      %v1840 = vpack.c.b16 %v1824, %v1824
      %v1841 = vpack.c.b16 %v1825, %v1825
      %v1842 = vpack.c.b16 %v1826, %v1826
      %v1843 = vpack.c.b16 %v1827, %v1827
      %v1844 = vpack.c.b16 %v1828, %v1828
      %v1846 = vshrl.u32 %v1749, 16
      %v1848 = vshll.u32 %v1749, 16
      %v1850 = vrot.slane %v1848, 1
      %v1851 = vor.u32 %v1846, %v1850
      %v1853 = vshll.u32 %v1829, 16
      %v1855 = vrot.slane %v1853, 1
      %v1856 = vsel %vm1331, %v1851, %v1855
      %v1858 = vshrl.u32 %v1750, 16
      %v1860 = vshll.u32 %v1750, 16
      %v1862 = vrot.slane %v1860, 1
      %v1863 = vor.u32 %v1858, %v1862
      %v1865 = vshll.u32 %v1830, 16
      %v1867 = vrot.slane %v1865, 1
      %v1868 = vsel %vm1331, %v1863, %v1867
      %v1870 = vshrl.u32 %v1751, 16
      %v1872 = vshll.u32 %v1751, 16
      %v1874 = vrot.slane %v1872, 1
      %v1875 = vor.u32 %v1870, %v1874
      %v1877 = vshll.u32 %v1831, 16
      %v1879 = vrot.slane %v1877, 1
      %v1880 = vsel %vm1331, %v1875, %v1879
      %v1882 = vshrl.u32 %v1752, 16
      %v1884 = vshll.u32 %v1752, 16
      %v1886 = vrot.slane %v1884, 1
      %v1887 = vor.u32 %v1882, %v1886
      %v1889 = vshll.u32 %v1832, 16
      %v1891 = vrot.slane %v1889, 1
      %v1892 = vsel %vm1331, %v1887, %v1891
      %v1894 = vshrl.u32 %v1753, 16
      %v1896 = vshll.u32 %v1753, 16
      %v1898 = vrot.slane %v1896, 1
      %v1899 = vor.u32 %v1894, %v1898
      %v1901 = vshll.u32 %v1833, 16
      %v1903 = vrot.slane %v1901, 1
      %v1904 = vsel %vm1331, %v1899, %v1903
      %v1906 = vshrl.u32 %v1754, 16
      %v1908 = vshll.u32 %v1754, 16
      %v1910 = vrot.slane %v1908, 1
      %v1911 = vor.u32 %v1906, %v1910
      %v1913 = vshll.u32 %v1834, 16
      %v1915 = vrot.slane %v1913, 1
      %v1916 = vsel %vm1331, %v1911, %v1915
      %v1918 = vshrl.u32 %v1755, 16
      %v1920 = vshll.u32 %v1755, 16
      %v1922 = vrot.slane %v1920, 1
      %v1923 = vor.u32 %v1918, %v1922
      %v1925 = vshll.u32 %v1835, 16
      %v1927 = vrot.slane %v1925, 1
      %v1928 = vsel %vm1331, %v1923, %v1927
      %v1930 = vshrl.u32 %v1756, 16
      %v1932 = vshll.u32 %v1756, 16
      %v1934 = vrot.slane %v1932, 1
      %v1935 = vor.u32 %v1930, %v1934
      %v1937 = vshll.u32 %v1836, 16
      %v1939 = vrot.slane %v1937, 1
      %v1940 = vsel %vm1331, %v1935, %v1939
      %v1942 = vshrl.u32 %v1757, 16
      %v1944 = vshll.u32 %v1757, 16
      %v1946 = vrot.slane %v1944, 1
      %v1947 = vor.u32 %v1942, %v1946
      %v1949 = vshll.u32 %v1837, 16
      %v1951 = vrot.slane %v1949, 1
      %v1952 = vsel %vm1331, %v1947, %v1951
      %v1954 = vshrl.u32 %v1758, 16
      %v1956 = vshll.u32 %v1758, 16
      %v1958 = vrot.slane %v1956, 1
      %v1959 = vor.u32 %v1954, %v1958
      %v1961 = vshll.u32 %v1838, 16
      %v1963 = vrot.slane %v1961, 1
      %v1964 = vsel %vm1331, %v1959, %v1963
      %v1966 = vshrl.u32 %v1759, 16
      %v1968 = vshll.u32 %v1759, 16
      %v1970 = vrot.slane %v1968, 1
      %v1971 = vor.u32 %v1966, %v1970
      %v1973 = vshll.u32 %v1839, 16
      %v1975 = vrot.slane %v1973, 1
      %v1976 = vsel %vm1331, %v1971, %v1975
      %v1978 = vshrl.u32 %v1760, 16
      %v1980 = vshll.u32 %v1760, 16
      %v1982 = vrot.slane %v1980, 1
      %v1983 = vor.u32 %v1978, %v1982
      %v1985 = vshll.u32 %v1840, 16
      %v1987 = vrot.slane %v1985, 1
      %v1988 = vsel %vm1331, %v1983, %v1987
      %v1990 = vshrl.u32 %v1761, 16
      %v1992 = vshll.u32 %v1761, 16
      %v1994 = vrot.slane %v1992, 1
      %v1995 = vor.u32 %v1990, %v1994
      %v1997 = vshll.u32 %v1841, 16
      %v1999 = vrot.slane %v1997, 1
      %v2000 = vsel %vm1331, %v1995, %v1999
      %v2002 = vshrl.u32 %v1762, 16
      %v2004 = vshll.u32 %v1762, 16
      %v2006 = vrot.slane %v2004, 1
      %v2007 = vor.u32 %v2002, %v2006
      %v2009 = vshll.u32 %v1842, 16
      %v2011 = vrot.slane %v2009, 1
      %v2012 = vsel %vm1331, %v2007, %v2011
      %v2014 = vshrl.u32 %v1763, 16
      %v2016 = vshll.u32 %v1763, 16
      %v2018 = vrot.slane %v2016, 1
      %v2019 = vor.u32 %v2014, %v2018
      %v2021 = vshll.u32 %v1843, 16
      %v2023 = vrot.slane %v2021, 1
      %v2024 = vsel %vm1331, %v2019, %v2023
      %v2026 = vshrl.u32 %v1764, 16
      %v2028 = vshll.u32 %v1764, 16
      %v2030 = vrot.slane %v2028, 1
      %v2031 = vor.u32 %v2026, %v2030
      %v2033 = vshll.u32 %v1844, 16
      %v2035 = vrot.slane %v2033, 1
      %v2036 = vsel %vm1331, %v2031, %v2035
      %2037 = vrot.lane.b32.xlu0 %v1856, 16
      %v2038 = vpop.permute.xlu0 %2037
      %2039 = vrot.lane.b32.xlu0 %v1868, 16
      %v2040 = vpop.permute.xlu0 %2039
      %2041 = vrot.lane.b32.xlu0 %v1880, 16
      %v2042 = vpop.permute.xlu0 %2041
      %2043 = vrot.lane.b32.xlu0 %v1892, 16
      %v2044 = vpop.permute.xlu0 %2043
      %2045 = vrot.lane.b32.xlu0 %v1904, 16
      %v2046 = vpop.permute.xlu0 %2045
      %2047 = vrot.lane.b32.xlu0 %v1916, 16
      %v2048 = vpop.permute.xlu0 %2047
      %2049 = vrot.lane.b32.xlu0 %v1928, 16
      %v2050 = vpop.permute.xlu0 %2049
      %2051 = vrot.lane.b32.xlu0 %v1940, 16
      %v2052 = vpop.permute.xlu0 %2051
      %2053 = vrot.lane.b32.xlu0 %v1952, 16
      %v2054 = vpop.permute.xlu0 %2053
      %2055 = vrot.lane.b32.xlu0 %v1964, 16
      %v2056 = vpop.permute.xlu0 %2055
      %2057 = vrot.lane.b32.xlu0 %v1976, 16
      %v2058 = vpop.permute.xlu0 %2057
      %2059 = vrot.lane.b32.xlu0 %v1988, 16
      %v2060 = vpop.permute.xlu0 %2059
      %2061 = vrot.lane.b32.xlu0 %v2000, 16
      %v2062 = vpop.permute.xlu0 %2061
      %2063 = vrot.lane.b32.xlu0 %v2012, 16
      %v2064 = vpop.permute.xlu0 %2063
      %2065 = vrot.lane.b32.xlu0 %v2024, 16
      %v2066 = vpop.permute.xlu0 %2065
      %2067 = vrot.lane.b32.xlu0 %v2036, 16
      %v2068 = vpop.permute.xlu0 %2067
      %v2085 = vunpack.c.l.b16 %v1122
      %v2086 = vunpack.c.l.b16 %v1123
      %v2087 = vunpack.c.l.b16 %v1124
      %v2088 = vunpack.c.l.b16 %v1125
      %v2089 = vunpack.c.l.b16 %v1126
      %v2090 = vunpack.c.l.b16 %v1127
      %v2091 = vunpack.c.l.b16 %v1128
      %v2092 = vunpack.c.l.b16 %v1129
      %v2093 = vunpack.c.l.b16 %v1130
      %v2094 = vunpack.c.l.b16 %v1131
      %v2095 = vunpack.c.l.b16 %v1132
      %v2096 = vunpack.c.l.b16 %v1133
      %v2097 = vunpack.c.l.b16 %v1134
      %v2098 = vunpack.c.l.b16 %v1135
      %v2099 = vunpack.c.l.b16 %v1136
      %v2100 = vunpack.c.l.b16 %v1137
      %v2101 = vpack.c.b16 %v1718, %v2085
      %v2102 = vpack.c.b16 %v1720, %v2086
      %v2103 = vpack.c.b16 %v1722, %v2087
      %v2104 = vpack.c.b16 %v1724, %v2088
      %v2105 = vpack.c.b16 %v1726, %v2089
      %v2106 = vpack.c.b16 %v1728, %v2090
      %v2107 = vpack.c.b16 %v1730, %v2091
      %v2108 = vpack.c.b16 %v1732, %v2092
      %v2109 = vpack.c.b16 %v1734, %v2093
      %v2110 = vpack.c.b16 %v1736, %v2094
      %v2111 = vpack.c.b16 %v1738, %v2095
      %v2112 = vpack.c.b16 %v1740, %v2096
      %v2113 = vpack.c.b16 %v1742, %v2097
      %v2114 = vpack.c.b16 %v1744, %v2098
      %v2115 = vpack.c.b16 %v1746, %v2099
      %v2116 = vpack.c.b16 %v1748, %v2100
      %v2117 = vrot.slane %v2101, 1
      %v2118 = vrot.slane %v1829, 1
      %v2119 = vsel %vm1604, %v2117, %v2118
      %v2120 = vrot.slane %v2102, 1
      %v2121 = vrot.slane %v1830, 1
      %v2122 = vsel %vm1604, %v2120, %v2121
      %v2123 = vrot.slane %v2103, 1
      %v2124 = vrot.slane %v1831, 1
      %v2125 = vsel %vm1604, %v2123, %v2124
      %v2126 = vrot.slane %v2104, 1
      %v2127 = vrot.slane %v1832, 1
      %v2128 = vsel %vm1604, %v2126, %v2127
      %v2129 = vrot.slane %v2105, 1
      %v2130 = vrot.slane %v1833, 1
      %v2131 = vsel %vm1604, %v2129, %v2130
      %v2132 = vrot.slane %v2106, 1
      %v2133 = vrot.slane %v1834, 1
      %v2134 = vsel %vm1604, %v2132, %v2133
      %v2135 = vrot.slane %v2107, 1
      %v2136 = vrot.slane %v1835, 1
      %v2137 = vsel %vm1604, %v2135, %v2136
      %v2138 = vrot.slane %v2108, 1
      %v2139 = vrot.slane %v1836, 1
      %v2140 = vsel %vm1604, %v2138, %v2139
      %v2141 = vrot.slane %v2109, 1
      %v2142 = vrot.slane %v1837, 1
      %v2143 = vsel %vm1604, %v2141, %v2142
      %v2144 = vrot.slane %v2110, 1
      %v2145 = vrot.slane %v1838, 1
      %v2146 = vsel %vm1604, %v2144, %v2145
      %v2147 = vrot.slane %v2111, 1
      %v2148 = vrot.slane %v1839, 1
      %v2149 = vsel %vm1604, %v2147, %v2148
      %v2150 = vrot.slane %v2112, 1
      %v2151 = vrot.slane %v1840, 1
      %v2152 = vsel %vm1604, %v2150, %v2151
      %v2153 = vrot.slane %v2113, 1
      %v2154 = vrot.slane %v1841, 1
      %v2155 = vsel %vm1604, %v2153, %v2154
      %v2156 = vrot.slane %v2114, 1
      %v2157 = vrot.slane %v1842, 1
      %v2158 = vsel %vm1604, %v2156, %v2157
      %v2159 = vrot.slane %v2115, 1
      %v2160 = vrot.slane %v1843, 1
      %v2161 = vsel %vm1604, %v2159, %v2160
      %v2162 = vrot.slane %v2116, 1
      %v2163 = vrot.slane %v1844, 1
      %v2164 = vsel %vm1604, %v2162, %v2163
      %2165 = vrot.lane.b32.xlu0 %v2119, 20
      %v2166 = vpop.permute.xlu0 %2165
      %2167 = vrot.lane.b32.xlu0 %v2122, 20
      %v2168 = vpop.permute.xlu0 %2167
      %2169 = vrot.lane.b32.xlu0 %v2125, 20
      %v2170 = vpop.permute.xlu0 %2169
      %2171 = vrot.lane.b32.xlu0 %v2128, 20
      %v2172 = vpop.permute.xlu0 %2171
      %2173 = vrot.lane.b32.xlu0 %v2131, 20
      %v2174 = vpop.permute.xlu0 %2173
      %2175 = vrot.lane.b32.xlu0 %v2134, 20
      %v2176 = vpop.permute.xlu0 %2175
      %2177 = vrot.lane.b32.xlu0 %v2137, 20
      %v2178 = vpop.permute.xlu0 %2177
      %2179 = vrot.lane.b32.xlu0 %v2140, 20
      %v2180 = vpop.permute.xlu0 %2179
      %2181 = vrot.lane.b32.xlu0 %v2143, 20
      %v2182 = vpop.permute.xlu0 %2181
      %2183 = vrot.lane.b32.xlu0 %v2146, 20
      %v2184 = vpop.permute.xlu0 %2183
      %2185 = vrot.lane.b32.xlu0 %v2149, 20
      %v2186 = vpop.permute.xlu0 %2185
      %2187 = vrot.lane.b32.xlu0 %v2152, 20
      %v2188 = vpop.permute.xlu0 %2187
      %2189 = vrot.lane.b32.xlu0 %v2155, 20
      %v2190 = vpop.permute.xlu0 %2189
      %2191 = vrot.lane.b32.xlu0 %v2158, 20
      %v2192 = vpop.permute.xlu0 %2191
      %2193 = vrot.lane.b32.xlu0 %v2161, 20
      %v2194 = vpop.permute.xlu0 %2193
      %2195 = vrot.lane.b32.xlu0 %v2164, 20
      %v2196 = vpop.permute.xlu0 %2195
      %v2229 = vunpack.c.l.b16 %v1139
      %v2230 = vunpack.c.l.b16 %v1140
      %v2231 = vunpack.c.l.b16 %v1141
      %v2232 = vunpack.c.l.b16 %v1142
      %v2233 = vunpack.c.l.b16 %v1143
      %v2234 = vunpack.c.l.b16 %v1144
      %v2235 = vunpack.c.l.b16 %v1145
      %v2236 = vunpack.c.l.b16 %v1146
      %v2237 = vunpack.c.l.b16 %v1147
      %v2238 = vunpack.c.l.b16 %v1148
      %v2239 = vunpack.c.l.b16 %v1149
      %v2240 = vunpack.c.l.b16 %v1150
      %v2241 = vunpack.c.l.b16 %v1151
      %v2242 = vunpack.c.l.b16 %v1152
      %v2243 = vunpack.c.l.b16 %v1153
      %v2244 = vunpack.c.l.b16 %v1154
      %v2245 = vunpack.c.l.b16 %v1155
      %v2246 = vunpack.c.l.b16 %v1156
      %v2247 = vunpack.c.l.b16 %v1157
      %v2248 = vunpack.c.l.b16 %v1158
      %v2249 = vunpack.c.l.b16 %v1159
      %v2250 = vunpack.c.l.b16 %v1160
      %v2251 = vunpack.c.l.b16 %v1161
      %v2252 = vunpack.c.l.b16 %v1162
      %v2253 = vunpack.c.l.b16 %v1163
      %v2254 = vunpack.c.l.b16 %v1164
      %v2255 = vunpack.c.l.b16 %v1165
      %v2256 = vunpack.c.l.b16 %v1166
      %v2257 = vunpack.c.l.b16 %v1167
      %v2258 = vunpack.c.l.b16 %v1168
      %v2259 = vunpack.c.l.b16 %v1169
      %v2260 = vunpack.c.l.b16 %v1170
      %v2261 = vpack.c.b16 %v2230, %v2229
      %v2262 = vpack.c.b16 %v2232, %v2231
      %v2263 = vpack.c.b16 %v2234, %v2233
      %v2264 = vpack.c.b16 %v2236, %v2235
      %v2265 = vpack.c.b16 %v2238, %v2237
      %v2266 = vpack.c.b16 %v2240, %v2239
      %v2267 = vpack.c.b16 %v2242, %v2241
      %v2268 = vpack.c.b16 %v2244, %v2243
      %v2269 = vpack.c.b16 %v2246, %v2245
      %v2270 = vpack.c.b16 %v2248, %v2247
      %v2271 = vpack.c.b16 %v2250, %v2249
      %v2272 = vpack.c.b16 %v2252, %v2251
      %v2273 = vpack.c.b16 %v2254, %v2253
      %v2274 = vpack.c.b16 %v2256, %v2255
      %v2275 = vpack.c.b16 %v2258, %v2257
      %v2276 = vpack.c.b16 %v2260, %v2259
      %2277 = vrot.lane.b32.xlu0 %v2261, 24
      %v2278 = vpop.permute.xlu0 %2277
      %2279 = vrot.lane.b32.xlu0 %v2262, 24
      %v2280 = vpop.permute.xlu0 %2279
      %2281 = vrot.lane.b32.xlu0 %v2263, 24
      %v2282 = vpop.permute.xlu0 %2281
      %2283 = vrot.lane.b32.xlu0 %v2264, 24
      %v2284 = vpop.permute.xlu0 %2283
      %2285 = vrot.lane.b32.xlu0 %v2265, 24
      %v2286 = vpop.permute.xlu0 %2285
      %2287 = vrot.lane.b32.xlu0 %v2266, 24
      %v2288 = vpop.permute.xlu0 %2287
      %2289 = vrot.lane.b32.xlu0 %v2267, 24
      %v2290 = vpop.permute.xlu0 %2289
      %2291 = vrot.lane.b32.xlu0 %v2268, 24
      %v2292 = vpop.permute.xlu0 %2291
      %2293 = vrot.lane.b32.xlu0 %v2269, 24
      %v2294 = vpop.permute.xlu0 %2293
      %2295 = vrot.lane.b32.xlu0 %v2270, 24
      %v2296 = vpop.permute.xlu0 %2295
      %2297 = vrot.lane.b32.xlu0 %v2271, 24
      %v2298 = vpop.permute.xlu0 %2297
      %2299 = vrot.lane.b32.xlu0 %v2272, 24
      %v2300 = vpop.permute.xlu0 %2299
      %2301 = vrot.lane.b32.xlu0 %v2273, 24
      %v2302 = vpop.permute.xlu0 %2301
      %2303 = vrot.lane.b32.xlu0 %v2274, 24
      %v2304 = vpop.permute.xlu0 %2303
      %2305 = vrot.lane.b32.xlu0 %v2275, 24
      %v2306 = vpop.permute.xlu0 %2305
      %2307 = vrot.lane.b32.xlu0 %v2276, 24
      %v2308 = vpop.permute.xlu0 %2307
      %v2325 = vunpack.c.l.b16 %v1171
      %v2326 = vunpack.c.l.b16 %v1172
      %v2327 = vunpack.c.l.b16 %v1173
      %v2328 = vunpack.c.l.b16 %v1174
      %v2329 = vunpack.c.l.b16 %v1175
      %v2330 = vunpack.c.l.b16 %v1176
      %v2331 = vunpack.c.l.b16 %v1177
      %v2332 = vunpack.c.l.b16 %v1178
      %v2333 = vunpack.c.l.b16 %v1179
      %v2334 = vunpack.c.l.b16 %v1180
      %v2335 = vunpack.c.l.b16 %v1181
      %v2336 = vunpack.c.l.b16 %v1182
      %v2337 = vunpack.c.l.b16 %v1183
      %v2338 = vunpack.c.l.b16 %v1184
      %v2339 = vunpack.c.l.b16 %v1185
      %v2340 = vunpack.c.l.b16 %v1186
      %v2341 = vpack.c.b16 %v2325, %v2325
      %v2342 = vpack.c.b16 %v2326, %v2326
      %v2343 = vpack.c.b16 %v2327, %v2327
      %v2344 = vpack.c.b16 %v2328, %v2328
      %v2345 = vpack.c.b16 %v2329, %v2329
      %v2346 = vpack.c.b16 %v2330, %v2330
      %v2347 = vpack.c.b16 %v2331, %v2331
      %v2348 = vpack.c.b16 %v2332, %v2332
      %v2349 = vpack.c.b16 %v2333, %v2333
      %v2350 = vpack.c.b16 %v2334, %v2334
      %v2351 = vpack.c.b16 %v2335, %v2335
      %v2352 = vpack.c.b16 %v2336, %v2336
      %v2353 = vpack.c.b16 %v2337, %v2337
      %v2354 = vpack.c.b16 %v2338, %v2338
      %v2355 = vpack.c.b16 %v2339, %v2339
      %v2356 = vpack.c.b16 %v2340, %v2340
      %v2358 = vshrl.u32 %v2261, 16
      %v2360 = vshll.u32 %v2261, 16
      %v2362 = vrot.slane %v2360, 1
      %v2363 = vor.u32 %v2358, %v2362
      %v2365 = vshll.u32 %v2341, 16
      %v2367 = vrot.slane %v2365, 1
      %v2368 = vsel %vm1331, %v2363, %v2367
      %v2370 = vshrl.u32 %v2262, 16
      %v2372 = vshll.u32 %v2262, 16
      %v2374 = vrot.slane %v2372, 1
      %v2375 = vor.u32 %v2370, %v2374
      %v2377 = vshll.u32 %v2342, 16
      %v2379 = vrot.slane %v2377, 1
      %v2380 = vsel %vm1331, %v2375, %v2379
      %v2382 = vshrl.u32 %v2263, 16
      %v2384 = vshll.u32 %v2263, 16
      %v2386 = vrot.slane %v2384, 1
      %v2387 = vor.u32 %v2382, %v2386
      %v2389 = vshll.u32 %v2343, 16
      %v2391 = vrot.slane %v2389, 1
      %v2392 = vsel %vm1331, %v2387, %v2391
      %v2394 = vshrl.u32 %v2264, 16
      %v2396 = vshll.u32 %v2264, 16
      %v2398 = vrot.slane %v2396, 1
      %v2399 = vor.u32 %v2394, %v2398
      %v2401 = vshll.u32 %v2344, 16
      %v2403 = vrot.slane %v2401, 1
      %v2404 = vsel %vm1331, %v2399, %v2403
      %v2406 = vshrl.u32 %v2265, 16
      %v2408 = vshll.u32 %v2265, 16
      %v2410 = vrot.slane %v2408, 1
      %v2411 = vor.u32 %v2406, %v2410
      %v2413 = vshll.u32 %v2345, 16
      %v2415 = vrot.slane %v2413, 1
      %v2416 = vsel %vm1331, %v2411, %v2415
      %v2418 = vshrl.u32 %v2266, 16
      %v2420 = vshll.u32 %v2266, 16
      %v2422 = vrot.slane %v2420, 1
      %v2423 = vor.u32 %v2418, %v2422
      %v2425 = vshll.u32 %v2346, 16
      %v2427 = vrot.slane %v2425, 1
      %v2428 = vsel %vm1331, %v2423, %v2427
      %v2430 = vshrl.u32 %v2267, 16
      %v2432 = vshll.u32 %v2267, 16
      %v2434 = vrot.slane %v2432, 1
      %v2435 = vor.u32 %v2430, %v2434
      %v2437 = vshll.u32 %v2347, 16
      %v2439 = vrot.slane %v2437, 1
      %v2440 = vsel %vm1331, %v2435, %v2439
      %v2442 = vshrl.u32 %v2268, 16
      %v2444 = vshll.u32 %v2268, 16
      %v2446 = vrot.slane %v2444, 1
      %v2447 = vor.u32 %v2442, %v2446
      %v2449 = vshll.u32 %v2348, 16
      %v2451 = vrot.slane %v2449, 1
      %v2452 = vsel %vm1331, %v2447, %v2451
      %v2454 = vshrl.u32 %v2269, 16
      %v2456 = vshll.u32 %v2269, 16
      %v2458 = vrot.slane %v2456, 1
      %v2459 = vor.u32 %v2454, %v2458
      %v2461 = vshll.u32 %v2349, 16
      %v2463 = vrot.slane %v2461, 1
      %v2464 = vsel %vm1331, %v2459, %v2463
      %v2466 = vshrl.u32 %v2270, 16
      %v2468 = vshll.u32 %v2270, 16
      %v2470 = vrot.slane %v2468, 1
      %v2471 = vor.u32 %v2466, %v2470
      %v2473 = vshll.u32 %v2350, 16
      %v2475 = vrot.slane %v2473, 1
      %v2476 = vsel %vm1331, %v2471, %v2475
      %v2478 = vshrl.u32 %v2271, 16
      %v2480 = vshll.u32 %v2271, 16
      %v2482 = vrot.slane %v2480, 1
      %v2483 = vor.u32 %v2478, %v2482
      %v2485 = vshll.u32 %v2351, 16
      %v2487 = vrot.slane %v2485, 1
      %v2488 = vsel %vm1331, %v2483, %v2487
      %v2490 = vshrl.u32 %v2272, 16
      %v2492 = vshll.u32 %v2272, 16
      %v2494 = vrot.slane %v2492, 1
      %v2495 = vor.u32 %v2490, %v2494
      %v2497 = vshll.u32 %v2352, 16
      %v2499 = vrot.slane %v2497, 1
      %v2500 = vsel %vm1331, %v2495, %v2499
      %v2502 = vshrl.u32 %v2273, 16
      %v2504 = vshll.u32 %v2273, 16
      %v2506 = vrot.slane %v2504, 1
      %v2507 = vor.u32 %v2502, %v2506
      %v2509 = vshll.u32 %v2353, 16
      %v2511 = vrot.slane %v2509, 1
      %v2512 = vsel %vm1331, %v2507, %v2511
      %v2514 = vshrl.u32 %v2274, 16
      %v2516 = vshll.u32 %v2274, 16
      %v2518 = vrot.slane %v2516, 1
      %v2519 = vor.u32 %v2514, %v2518
      %v2521 = vshll.u32 %v2354, 16
      %v2523 = vrot.slane %v2521, 1
      %v2524 = vsel %vm1331, %v2519, %v2523
      %v2526 = vshrl.u32 %v2275, 16
      %v2528 = vshll.u32 %v2275, 16
      %v2530 = vrot.slane %v2528, 1
      %v2531 = vor.u32 %v2526, %v2530
      %v2533 = vshll.u32 %v2355, 16
      %v2535 = vrot.slane %v2533, 1
      %v2536 = vsel %vm1331, %v2531, %v2535
      %v2538 = vshrl.u32 %v2276, 16
      %v2540 = vshll.u32 %v2276, 16
      %v2542 = vrot.slane %v2540, 1
      %v2543 = vor.u32 %v2538, %v2542
      %v2545 = vshll.u32 %v2356, 16
      %v2547 = vrot.slane %v2545, 1
      %v2548 = vsel %vm1331, %v2543, %v2547
      %2549 = vrot.lane.b32.xlu0 %v2368, 28
      %v2550 = vpop.permute.xlu0 %2549
      %2551 = vrot.lane.b32.xlu0 %v2380, 28
      %v2552 = vpop.permute.xlu0 %2551
      %2553 = vrot.lane.b32.xlu0 %v2392, 28
      %v2554 = vpop.permute.xlu0 %2553
      %2555 = vrot.lane.b32.xlu0 %v2404, 28
      %v2556 = vpop.permute.xlu0 %2555
      %2557 = vrot.lane.b32.xlu0 %v2416, 28
      %v2558 = vpop.permute.xlu0 %2557
      %2559 = vrot.lane.b32.xlu0 %v2428, 28
      %v2560 = vpop.permute.xlu0 %2559
      %2561 = vrot.lane.b32.xlu0 %v2440, 28
      %v2562 = vpop.permute.xlu0 %2561
      %2563 = vrot.lane.b32.xlu0 %v2452, 28
      %v2564 = vpop.permute.xlu0 %2563
      %2565 = vrot.lane.b32.xlu0 %v2464, 28
      %v2566 = vpop.permute.xlu0 %2565
      %2567 = vrot.lane.b32.xlu0 %v2476, 28
      %v2568 = vpop.permute.xlu0 %2567
      %2569 = vrot.lane.b32.xlu0 %v2488, 28
      %v2570 = vpop.permute.xlu0 %2569
      %2571 = vrot.lane.b32.xlu0 %v2500, 28
      %v2572 = vpop.permute.xlu0 %2571
      %2573 = vrot.lane.b32.xlu0 %v2512, 28
      %v2574 = vpop.permute.xlu0 %2573
      %2575 = vrot.lane.b32.xlu0 %v2524, 28
      %v2576 = vpop.permute.xlu0 %2575
      %2577 = vrot.lane.b32.xlu0 %v2536, 28
      %v2578 = vpop.permute.xlu0 %2577
      %2579 = vrot.lane.b32.xlu0 %v2548, 28
      %v2580 = vpop.permute.xlu0 %2579
      %v2597 = vunpack.c.l.b16 %v1187
      %v2598 = vunpack.c.l.b16 %v1188
      %v2599 = vunpack.c.l.b16 %v1189
      %v2600 = vunpack.c.l.b16 %v1190
      %v2601 = vunpack.c.l.b16 %v1191
      %v2602 = vunpack.c.l.b16 %v1192
      %v2603 = vunpack.c.l.b16 %v1193
      %v2604 = vunpack.c.l.b16 %v1194
      %v2605 = vunpack.c.l.b16 %v1195
      %v2606 = vunpack.c.l.b16 %v1196
      %v2607 = vunpack.c.l.b16 %v1197
      %v2608 = vunpack.c.l.b16 %v1198
      %v2609 = vunpack.c.l.b16 %v1199
      %v2610 = vunpack.c.l.b16 %v1200
      %v2611 = vunpack.c.l.b16 %v1201
      %v2612 = vunpack.c.l.b16 %v1202
      %v2613 = vpack.c.b16 %v2230, %v2597
      %v2614 = vpack.c.b16 %v2232, %v2598
      %v2615 = vpack.c.b16 %v2234, %v2599
      %v2616 = vpack.c.b16 %v2236, %v2600
      %v2617 = vpack.c.b16 %v2238, %v2601
      %v2618 = vpack.c.b16 %v2240, %v2602
      %v2619 = vpack.c.b16 %v2242, %v2603
      %v2620 = vpack.c.b16 %v2244, %v2604
      %v2621 = vpack.c.b16 %v2246, %v2605
      %v2622 = vpack.c.b16 %v2248, %v2606
      %v2623 = vpack.c.b16 %v2250, %v2607
      %v2624 = vpack.c.b16 %v2252, %v2608
      %v2625 = vpack.c.b16 %v2254, %v2609
      %v2626 = vpack.c.b16 %v2256, %v2610
      %v2627 = vpack.c.b16 %v2258, %v2611
      %v2628 = vpack.c.b16 %v2260, %v2612
      %v2629 = vrot.slane %v2613, 1
      %v2630 = vrot.slane %v2341, 1
      %v2631 = vsel %vm1604, %v2629, %v2630
      %v2632 = vrot.slane %v2614, 1
      %v2633 = vrot.slane %v2342, 1
      %v2634 = vsel %vm1604, %v2632, %v2633
      %v2635 = vrot.slane %v2615, 1
      %v2636 = vrot.slane %v2343, 1
      %v2637 = vsel %vm1604, %v2635, %v2636
      %v2638 = vrot.slane %v2616, 1
      %v2639 = vrot.slane %v2344, 1
      %v2640 = vsel %vm1604, %v2638, %v2639
      %v2641 = vrot.slane %v2617, 1
      %v2642 = vrot.slane %v2345, 1
      %v2643 = vsel %vm1604, %v2641, %v2642
      %v2644 = vrot.slane %v2618, 1
      %v2645 = vrot.slane %v2346, 1
      %v2646 = vsel %vm1604, %v2644, %v2645
      %v2647 = vrot.slane %v2619, 1
      %v2648 = vrot.slane %v2347, 1
      %v2649 = vsel %vm1604, %v2647, %v2648
      %v2650 = vrot.slane %v2620, 1
      %v2651 = vrot.slane %v2348, 1
      %v2652 = vsel %vm1604, %v2650, %v2651
      %v2653 = vrot.slane %v2621, 1
      %v2654 = vrot.slane %v2349, 1
      %v2655 = vsel %vm1604, %v2653, %v2654
      %v2656 = vrot.slane %v2622, 1
      %v2657 = vrot.slane %v2350, 1
      %v2658 = vsel %vm1604, %v2656, %v2657
      %v2659 = vrot.slane %v2623, 1
      %v2660 = vrot.slane %v2351, 1
      %v2661 = vsel %vm1604, %v2659, %v2660
      %v2662 = vrot.slane %v2624, 1
      %v2663 = vrot.slane %v2352, 1
      %v2664 = vsel %vm1604, %v2662, %v2663
      %v2665 = vrot.slane %v2625, 1
      %v2666 = vrot.slane %v2353, 1
      %v2667 = vsel %vm1604, %v2665, %v2666
      %v2668 = vrot.slane %v2626, 1
      %v2669 = vrot.slane %v2354, 1
      %v2670 = vsel %vm1604, %v2668, %v2669
      %v2671 = vrot.slane %v2627, 1
      %v2672 = vrot.slane %v2355, 1
      %v2673 = vsel %vm1604, %v2671, %v2672
      %v2674 = vrot.slane %v2628, 1
      %v2675 = vrot.slane %v2356, 1
      %v2676 = vsel %vm1604, %v2674, %v2675
      %2677 = vrot.lane.b32.xlu0 %v2631, 32
      %v2678 = vpop.permute.xlu0 %2677
      %2679 = vrot.lane.b32.xlu0 %v2634, 32
      %v2680 = vpop.permute.xlu0 %2679
      %2681 = vrot.lane.b32.xlu0 %v2637, 32
      %v2682 = vpop.permute.xlu0 %2681
      %2683 = vrot.lane.b32.xlu0 %v2640, 32
      %v2684 = vpop.permute.xlu0 %2683
      %2685 = vrot.lane.b32.xlu0 %v2643, 32
      %v2686 = vpop.permute.xlu0 %2685
      %2687 = vrot.lane.b32.xlu0 %v2646, 32
      %v2688 = vpop.permute.xlu0 %2687
      %2689 = vrot.lane.b32.xlu0 %v2649, 32
      %v2690 = vpop.permute.xlu0 %2689
      %2691 = vrot.lane.b32.xlu0 %v2652, 32
      %v2692 = vpop.permute.xlu0 %2691
      %2693 = vrot.lane.b32.xlu0 %v2655, 32
      %v2694 = vpop.permute.xlu0 %2693
      %2695 = vrot.lane.b32.xlu0 %v2658, 32
      %v2696 = vpop.permute.xlu0 %2695
      %2697 = vrot.lane.b32.xlu0 %v2661, 32
      %v2698 = vpop.permute.xlu0 %2697
      %2699 = vrot.lane.b32.xlu0 %v2664, 32
      %v2700 = vpop.permute.xlu0 %2699
      %2701 = vrot.lane.b32.xlu0 %v2667, 32
      %v2702 = vpop.permute.xlu0 %2701
      %2703 = vrot.lane.b32.xlu0 %v2670, 32
      %v2704 = vpop.permute.xlu0 %2703
      %2705 = vrot.lane.b32.xlu0 %v2673, 32
      %v2706 = vpop.permute.xlu0 %2705
      %2707 = vrot.lane.b32.xlu0 %v2676, 32
      %v2708 = vpop.permute.xlu0 %2707
      %vm2709 = vcmask 31744
      %v2711 = vsel %vm2709, %v1267, %v1525
      %v2713 = vsel %vm2709, %v1268, %v1527
      %v2715 = vsel %vm2709, %v1269, %v1529
      %v2717 = vsel %vm2709, %v1270, %v1531
      %v2719 = vsel %vm2709, %v1271, %v1533
      %v2721 = vsel %vm2709, %v1272, %v1535
      %v2723 = vsel %vm2709, %v1273, %v1537
      %v2725 = vsel %vm2709, %v1274, %v1539
      %v2727 = vsel %vm2709, %v1275, %v1541
      %v2729 = vsel %vm2709, %v1276, %v1543
      %v2731 = vsel %vm2709, %v1277, %v1545
      %v2733 = vsel %vm2709, %v1278, %v1547
      %v2735 = vsel %vm2709, %v1279, %v1549
      %v2737 = vsel %vm2709, %v1280, %v1551
      %v2739 = vsel %vm2709, %v1281, %v1553
      %v2741 = vsel %vm2709, %v1282, %v1555
      %vm2742 = vcmask 64512
      %v2744 = vsel %vm2742, %v2711, %v1654
      %v2746 = vsel %vm2742, %v2713, %v1656
      %v2748 = vsel %vm2742, %v2715, %v1658
      %v2750 = vsel %vm2742, %v2717, %v1660
      %v2752 = vsel %vm2742, %v2719, %v1662
      %v2754 = vsel %vm2742, %v2721, %v1664
      %v2756 = vsel %vm2742, %v2723, %v1666
      %v2758 = vsel %vm2742, %v2725, %v1668
      %v2760 = vsel %vm2742, %v2727, %v1670
      %v2762 = vsel %vm2742, %v2729, %v1672
      %v2764 = vsel %vm2742, %v2731, %v1674
      %v2766 = vsel %vm2742, %v2733, %v1676
      %v2768 = vsel %vm2742, %v2735, %v1678
      %v2770 = vsel %vm2742, %v2737, %v1680
      %v2772 = vsel %vm2742, %v2739, %v1682
      %v2774 = vsel %vm2742, %v2741, %v1684
      %vm2775 = vcmask 97280
      %v2777 = vsel %vm2775, %v2744, %v1766
      %v2779 = vsel %vm2775, %v2746, %v1768
      %v2781 = vsel %vm2775, %v2748, %v1770
      %v2783 = vsel %vm2775, %v2750, %v1772
      %v2785 = vsel %vm2775, %v2752, %v1774
      %v2787 = vsel %vm2775, %v2754, %v1776
      %v2789 = vsel %vm2775, %v2756, %v1778
      %v2791 = vsel %vm2775, %v2758, %v1780
      %v2793 = vsel %vm2775, %v2760, %v1782
      %v2795 = vsel %vm2775, %v2762, %v1784
      %v2797 = vsel %vm2775, %v2764, %v1786
      %v2799 = vsel %vm2775, %v2766, %v1788
      %v2801 = vsel %vm2775, %v2768, %v1790
      %v2803 = vsel %vm2775, %v2770, %v1792
      %v2805 = vsel %vm2775, %v2772, %v1794
      %v2807 = vsel %vm2775, %v2774, %v1796
      %vm2808 = vcmask 130048
      %v2810 = vsel %vm2808, %v2777, %v2038
      %v2812 = vsel %vm2808, %v2779, %v2040
      %v2814 = vsel %vm2808, %v2781, %v2042
      %v2816 = vsel %vm2808, %v2783, %v2044
      %v2818 = vsel %vm2808, %v2785, %v2046
      %v2820 = vsel %vm2808, %v2787, %v2048
      %v2822 = vsel %vm2808, %v2789, %v2050
      %v2824 = vsel %vm2808, %v2791, %v2052
      %v2826 = vsel %vm2808, %v2793, %v2054
      %v2828 = vsel %vm2808, %v2795, %v2056
      %v2830 = vsel %vm2808, %v2797, %v2058
      %v2832 = vsel %vm2808, %v2799, %v2060
      %v2834 = vsel %vm2808, %v2801, %v2062
      %v2836 = vsel %vm2808, %v2803, %v2064
      %v2838 = vsel %vm2808, %v2805, %v2066
      %v2840 = vsel %vm2808, %v2807, %v2068
      %vm2841 = vcmask 162816
      %v2843 = vsel %vm2841, %v2810, %v2166
      %v2845 = vsel %vm2841, %v2812, %v2168
      %v2847 = vsel %vm2841, %v2814, %v2170
      %v2849 = vsel %vm2841, %v2816, %v2172
      %v2851 = vsel %vm2841, %v2818, %v2174
      %v2853 = vsel %vm2841, %v2820, %v2176
      %v2855 = vsel %vm2841, %v2822, %v2178
      %v2857 = vsel %vm2841, %v2824, %v2180
      %v2859 = vsel %vm2841, %v2826, %v2182
      %v2861 = vsel %vm2841, %v2828, %v2184
      %v2863 = vsel %vm2841, %v2830, %v2186
      %v2865 = vsel %vm2841, %v2832, %v2188
      %v2867 = vsel %vm2841, %v2834, %v2190
      %v2869 = vsel %vm2841, %v2836, %v2192
      %v2871 = vsel %vm2841, %v2838, %v2194
      %v2873 = vsel %vm2841, %v2840, %v2196
      %vm2874 = vcmask 195584
      %v2876 = vsel %vm2874, %v2843, %v2278
      %v2878 = vsel %vm2874, %v2845, %v2280
      %v2880 = vsel %vm2874, %v2847, %v2282
      %v2882 = vsel %vm2874, %v2849, %v2284
      %v2884 = vsel %vm2874, %v2851, %v2286
      %v2886 = vsel %vm2874, %v2853, %v2288
      %v2888 = vsel %vm2874, %v2855, %v2290
      %v2890 = vsel %vm2874, %v2857, %v2292
      %v2892 = vsel %vm2874, %v2859, %v2294
      %v2894 = vsel %vm2874, %v2861, %v2296
      %v2896 = vsel %vm2874, %v2863, %v2298
      %v2898 = vsel %vm2874, %v2865, %v2300
      %v2900 = vsel %vm2874, %v2867, %v2302
      %v2902 = vsel %vm2874, %v2869, %v2304
      %v2904 = vsel %vm2874, %v2871, %v2306
      %v2906 = vsel %vm2874, %v2873, %v2308
      %vm2907 = vcmask 228352
      %v2909 = vsel %vm2907, %v2876, %v2550
      %v2911 = vsel %vm2907, %v2878, %v2552
      %v2913 = vsel %vm2907, %v2880, %v2554
      %v2915 = vsel %vm2907, %v2882, %v2556
      %v2917 = vsel %vm2907, %v2884, %v2558
      %v2919 = vsel %vm2907, %v2886, %v2560
      %v2921 = vsel %vm2907, %v2888, %v2562
      %v2923 = vsel %vm2907, %v2890, %v2564
      %v2925 = vsel %vm2907, %v2892, %v2566
      %v2927 = vsel %vm2907, %v2894, %v2568
      %v2929 = vsel %vm2907, %v2896, %v2570
      %v2931 = vsel %vm2907, %v2898, %v2572
      %v2933 = vsel %vm2907, %v2900, %v2574
      %v2935 = vsel %vm2907, %v2902, %v2576
      %v2937 = vsel %vm2907, %v2904, %v2578
      %v2939 = vsel %vm2907, %v2906, %v2580
      %vm2940 = vcmask 261120
      %v2942 = vsel %vm2940, %v2909, %v2678
      %v2944 = vsel %vm2940, %v2911, %v2680
      %v2946 = vsel %vm2940, %v2913, %v2682
      %v2948 = vsel %vm2940, %v2915, %v2684
      %v2950 = vsel %vm2940, %v2917, %v2686
      %v2952 = vsel %vm2940, %v2919, %v2688
      %v2954 = vsel %vm2940, %v2921, %v2690
      %v2956 = vsel %vm2940, %v2923, %v2692
      %v2958 = vsel %vm2940, %v2925, %v2694
      %v2960 = vsel %vm2940, %v2927, %v2696
      %v2962 = vsel %vm2940, %v2929, %v2698
      %v2964 = vsel %vm2940, %v2931, %v2700
      %v2966 = vsel %vm2940, %v2933, %v2702
      %v2968 = vsel %vm2940, %v2935, %v2704
      %v2970 = vsel %vm2940, %v2937, %v2706
      %v2972 = vsel %vm2940, %v2939, %v2708
      %v2978 = vunpack.c.l.b16 %v1005
      %v2979 = vunpack.c.l.b16 %v1006
      %v2980 = vunpack.c.l.b16 %v1007
      %v2981 = vunpack.c.l.b16 %v1008
      %v2982 = vunpack.c.l.b16 %v1009
      %v2983 = vpack.c.b16 %v2979, %v2978
      %v2984 = vpack.c.b16 %v2981, %v2980
      %v2985 = vpack.c.b16 %v2982, %v2982
      %vm2988 = vcmask 293888
      %v2989 = vsel %vm2988, %v2942, 0
      %v2991 = vsel %vm2988, %v2944, 0
      %v2993 = vsel %vm2988, %v2946, 0
      %v2995 = vsel %vm2988, %v2948, 0
      %v2997 = vsel %vm2988, %v2950, 0
      %v2999 = vsel %vm2988, %v2952, 0
      %v3001 = vsel %vm2988, %v2954, 0
      %v3003 = vsel %vm2988, %v2956, 0
      %v3005 = vsel %vm2988, %v2958, 0
      %v3007 = vsel %vm2988, %v2960, 0
      %v3009 = vsel %vm2988, %v2962, 0
      %v3011 = vsel %vm2988, %v2964, 0
      %v3013 = vsel %vm2988, %v2966, 0
      %v3015 = vsel %vm2988, %v2968, 0
      %v3017 = vsel %vm2988, %v2970, 0
      %v3019 = vsel %vm2988, %v2972, 0
      %vm3021 = vcmask 1041408
      %v3023 = vsel %vm3021, %v2985, 0
      %3025 = vmatprep.subr.bf16.mxu0 0
      %3026 = vmatpush1.bf16.msra.mxu0 %v2983
      %3027 = vmatprep.subr.bf16.mxu0 0
      %3028 = vmatpush1.bf16.msra.mxu0 %v2984
      %3029 = vmatprep.subr.bf16.mxu0 0
      %3030 = vmatpush1.bf16.msra.mxu0 %v3023
      %3031 = vmatprep.subr.bf16.mxu0 0
      %3032 = vmatpush1.bf16.msra.mxu0 0
      %3033 = vmatprep.subr.bf16.mxu0 0
      %3034 = vmatpush1.bf16.msra.mxu0 0
      %3035 = vmatprep.subr.bf16.mxu0 0
      %3036 = vmatpush1.bf16.msra.mxu0 0
      %3037 = vmatprep.subr.bf16.mxu0 0
      %3038 = vmatpush1.bf16.msra.mxu0 0
      %3039 = vmatprep.subr.bf16.mxu0 0
      %3040 = vmatpush1.bf16.msra.mxu0 0
      %3041 = vmatprep.subr.bf16.mxu0 0
      %3042 = vmatpush1.bf16.msra.mxu0 0
      %3043 = vmatprep.subr.bf16.mxu0 0
      %3044 = vmatpush1.bf16.msra.mxu0 0
      %3045 = vmatprep.subr.bf16.mxu0 0
      %3046 = vmatpush1.bf16.msra.mxu0 0
      %3047 = vmatprep.subr.bf16.mxu0 0
      %3048 = vmatpush1.bf16.msra.mxu0 0
      %3049 = vmatprep.subr.bf16.mxu0 0
      %3050 = vmatpush1.bf16.msra.mxu0 0
      %3051 = vmatprep.subr.bf16.mxu0 0
      %3052 = vmatpush1.bf16.msra.mxu0 0
      %3053 = vmatprep.subr.bf16.mxu0 0
      %3054 = vmatpush1.bf16.msra.mxu0 0
      %3055 = vmatprep.subr.bf16.mxu0 0
      %3056 = vmatpush1.bf16.msra.mxu0 0
      %3057 = vmatprep.mubr.bf16.mxu0 0
      %3058 = vmatmul.mubr.bf16.gmra.mrb[0].mxu0 %v2989
      %v3059 = vpop.f32.mrb[0].mxu0
      %v3060 = vadd.f32 0.0, %v3059
      %v3061 = vpop.f32.mrb[0].mxu0
      %v3062 = vpop.f32.mrb[0].mxu0
      %v3063 = vadd.f32 0.0, %v3062
      %v3064 = vpop.f32.mrb[0].mxu0
      %3065 = vmatprep.mubr.bf16.mxu0 0
      %3066 = vmatmul.mubr.bf16.gmra.mrb[0].mxu0 %v2991
      %v3067 = vpop.f32.mrb[0].mxu0
      %v3068 = vadd.f32 0.0, %v3067
      %v3069 = vpop.f32.mrb[0].mxu0
      %v3070 = vpop.f32.mrb[0].mxu0
      %v3071 = vadd.f32 0.0, %v3070
      %v3072 = vpop.f32.mrb[0].mxu0
      %3073 = vmatprep.mubr.bf16.mxu0 0
      %3074 = vmatmul.mubr.bf16.gmra.mrb[0].mxu0 %v2993
      %v3075 = vpop.f32.mrb[0].mxu0
      %v3076 = vadd.f32 0.0, %v3075
      %v3077 = vpop.f32.mrb[0].mxu0
      %v3078 = vpop.f32.mrb[0].mxu0
      %v3079 = vadd.f32 0.0, %v3078
      %v3080 = vpop.f32.mrb[0].mxu0
      %3081 = vmatprep.mubr.bf16.mxu0 0
      %3082 = vmatmul.mubr.bf16.gmra.mrb[0].mxu0 %v2995
      %v3083 = vpop.f32.mrb[0].mxu0
      %v3084 = vadd.f32 0.0, %v3083
      %v3085 = vpop.f32.mrb[0].mxu0
      %v3086 = vpop.f32.mrb[0].mxu0
      %v3087 = vadd.f32 0.0, %v3086
      %v3088 = vpop.f32.mrb[0].mxu0
      %3089 = vmatprep.mubr.bf16.mxu0 0
      %3090 = vmatmul.mubr.bf16.gmra.mrb[0].mxu0 %v2997
      %v3091 = vpop.f32.mrb[0].mxu0
      %v3092 = vadd.f32 0.0, %v3091
      %v3093 = vpop.f32.mrb[0].mxu0
      %v3094 = vpop.f32.mrb[0].mxu0
      %v3095 = vadd.f32 0.0, %v3094
      %v3096 = vpop.f32.mrb[0].mxu0
      %3097 = vmatprep.mubr.bf16.mxu0 0
      %3098 = vmatmul.mubr.bf16.gmra.mrb[0].mxu0 %v2999
      %v3099 = vpop.f32.mrb[0].mxu0
      %v3100 = vadd.f32 0.0, %v3099
      %v3101 = vpop.f32.mrb[0].mxu0
      %v3102 = vpop.f32.mrb[0].mxu0
      %v3103 = vadd.f32 0.0, %v3102
      %v3104 = vpop.f32.mrb[0].mxu0
      %3105 = vmatprep.mubr.bf16.mxu0 0
      %3106 = vmatmul.mubr.bf16.gmra.mrb[0].mxu0 %v3001
      %v3107 = vpop.f32.mrb[0].mxu0
      %v3108 = vadd.f32 0.0, %v3107
      %v3109 = vpop.f32.mrb[0].mxu0
      %v3110 = vpop.f32.mrb[0].mxu0
      %v3111 = vadd.f32 0.0, %v3110
      %v3112 = vpop.f32.mrb[0].mxu0
      %3113 = vmatprep.mubr.bf16.mxu0 0
      %3114 = vmatmul.mubr.bf16.gmra.mrb[0].mxu0 %v3003
      %v3115 = vpop.f32.mrb[0].mxu0
      %v3116 = vadd.f32 0.0, %v3115
      %v3117 = vpop.f32.mrb[0].mxu0
      %v3118 = vpop.f32.mrb[0].mxu0
      %v3119 = vadd.f32 0.0, %v3118
      %v3120 = vpop.f32.mrb[0].mxu0
      %3121 = vmatprep.mubr.bf16.mxu0 0
      %3122 = vmatmul.mubr.bf16.gmra.mrb[0].mxu0 %v3005
      %v3123 = vpop.f32.mrb[0].mxu0
      %v3124 = vadd.f32 0.0, %v3123
      %v3125 = vpop.f32.mrb[0].mxu0
      %v3126 = vpop.f32.mrb[0].mxu0
      %v3127 = vadd.f32 0.0, %v3126
      %v3128 = vpop.f32.mrb[0].mxu0
      %3129 = vmatprep.mubr.bf16.mxu0 0
      %3130 = vmatmul.mubr.bf16.gmra.mrb[0].mxu0 %v3007
      %v3131 = vpop.f32.mrb[0].mxu0
      %v3132 = vadd.f32 0.0, %v3131
      %v3133 = vpop.f32.mrb[0].mxu0
      %v3134 = vpop.f32.mrb[0].mxu0
      %v3135 = vadd.f32 0.0, %v3134
      %v3136 = vpop.f32.mrb[0].mxu0
      %3137 = vmatprep.mubr.bf16.mxu0 0
      %3138 = vmatmul.mubr.bf16.gmra.mrb[0].mxu0 %v3009
      %v3139 = vpop.f32.mrb[0].mxu0
      %v3140 = vadd.f32 0.0, %v3139
      %v3141 = vpop.f32.mrb[0].mxu0
      %v3142 = vpop.f32.mrb[0].mxu0
      %v3143 = vadd.f32 0.0, %v3142
      %v3144 = vpop.f32.mrb[0].mxu0
      %3145 = vmatprep.mubr.bf16.mxu0 0
      %3146 = vmatmul.mubr.bf16.gmra.mrb[0].mxu0 %v3011
      %v3147 = vpop.f32.mrb[0].mxu0
      %v3148 = vadd.f32 0.0, %v3147
      %v3149 = vpop.f32.mrb[0].mxu0
      %v3150 = vpop.f32.mrb[0].mxu0
      %v3151 = vadd.f32 0.0, %v3150
      %v3152 = vpop.f32.mrb[0].mxu0
      %3153 = vmatprep.mubr.bf16.mxu0 0
      %3154 = vmatmul.mubr.bf16.gmra.mrb[0].mxu0 %v3013
      %v3155 = vpop.f32.mrb[0].mxu0
      %v3156 = vadd.f32 0.0, %v3155
      %v3157 = vpop.f32.mrb[0].mxu0
      %v3158 = vpop.f32.mrb[0].mxu0
      %v3159 = vadd.f32 0.0, %v3158
      %v3160 = vpop.f32.mrb[0].mxu0
      %3161 = vmatprep.mubr.bf16.mxu0 0
      %3162 = vmatmul.mubr.bf16.gmra.mrb[0].mxu0 %v3015
      %v3163 = vpop.f32.mrb[0].mxu0
      %v3164 = vadd.f32 0.0, %v3163
      %v3165 = vpop.f32.mrb[0].mxu0
      %v3166 = vpop.f32.mrb[0].mxu0
      %v3167 = vadd.f32 0.0, %v3166
      %v3168 = vpop.f32.mrb[0].mxu0
      %3169 = vmatprep.mubr.bf16.mxu0 0
      %3170 = vmatmul.mubr.bf16.gmra.mrb[0].mxu0 %v3017
      %v3171 = vpop.f32.mrb[0].mxu0
      %v3172 = vadd.f32 0.0, %v3171
      %v3173 = vpop.f32.mrb[0].mxu0
      %v3174 = vpop.f32.mrb[0].mxu0
      %v3175 = vadd.f32 0.0, %v3174
      %v3176 = vpop.f32.mrb[0].mxu0
      %3177 = vmatprep.mubr.bf16.mxu0 0
      %3178 = vmatmul.mubr.bf16.gmra.mrb[0].mxu0 %v3019
      %v3179 = vpop.f32.mrb[0].mxu0
      %v3180 = vadd.f32 0.0, %v3179
      %v3181 = vpop.f32.mrb[0].mxu0
      %v3182 = vpop.f32.mrb[0].mxu0
      %v3183 = vadd.f32 0.0, %v3182
      %v3184 = vpop.f32.mrb[0].mxu0
      %3185 = vdwg.mxu0
      %3186 = vst.msk [vmem:[%s262] sm:$0xff] %vm2709, %v3060
      %3187 = vst.msk [vmem:[%s262 + $0x8] sm:$0xff] %vm2709, %v3063
      %3188 = vst.msk [vmem:[%s262 + $0x10] sm:$0xff] %vm2709, %v3068
      %3189 = vst.msk [vmem:[%s262 + $0x18] sm:$0xff] %vm2709, %v3071
      %3190 = vst.msk [vmem:[%s262 + $0x20] sm:$0xff] %vm2709, %v3076
      %3191 = vst.msk [vmem:[%s262 + $0x28] sm:$0xff] %vm2709, %v3079
      %3192 = vst.msk [vmem:[%s262 + $0x30] sm:$0xff] %vm2709, %v3084
      %3193 = vst.msk [vmem:[%s262 + $0x38] sm:$0xff] %vm2709, %v3087
      %3194 = vst.msk [vmem:[%s262 + $0x40] sm:$0xff] %vm2709, %v3092
      %3195 = vst.msk [vmem:[%s262 + $0x48] sm:$0xff] %vm2709, %v3095
      %3196 = vst.msk [vmem:[%s262 + $0x50] sm:$0xff] %vm2709, %v3100
      %3197 = vst.msk [vmem:[%s262 + $0x58] sm:$0xff] %vm2709, %v3103
      %3198 = vst.msk [vmem:[%s262 + $0x60] sm:$0xff] %vm2709, %v3108
      %3199 = vst.msk [vmem:[%s262 + $0x68] sm:$0xff] %vm2709, %v3111
      %3200 = vst.msk [vmem:[%s262 + $0x70] sm:$0xff] %vm2709, %v3116
      %3201 = vst.msk [vmem:[%s262 + $0x78] sm:$0xff] %vm2709, %v3119
      %3202 = vst.msk [vmem:[%s262 + $0x80] sm:$0xff] %vm2709, %v3124
      %3203 = vst.msk [vmem:[%s262 + $0x88] sm:$0xff] %vm2709, %v3127
      %3204 = vst.msk [vmem:[%s262 + $0x90] sm:$0xff] %vm2709, %v3132
      %3205 = vst.msk [vmem:[%s262 + $0x98] sm:$0xff] %vm2709, %v3135
      %3206 = vst.msk [vmem:[%s262 + $0xa0] sm:$0xff] %vm2709, %v3140
      %3207 = vst.msk [vmem:[%s262 + $0xa8] sm:$0xff] %vm2709, %v3143
      %3208 = vst.msk [vmem:[%s262 + $0xb0] sm:$0xff] %vm2709, %v3148
      %3209 = vst.msk [vmem:[%s262 + $0xb8] sm:$0xff] %vm2709, %v3151
      %3210 = vst.msk [vmem:[%s262 + $0xc0] sm:$0xff] %vm2709, %v3156
      %3211 = vst.msk [vmem:[%s262 + $0xc8] sm:$0xff] %vm2709, %v3159
      %3212 = vst.msk [vmem:[%s262 + $0xd0] sm:$0xff] %vm2709, %v3164
      %3213 = vst.msk [vmem:[%s262 + $0xd8] sm:$0xff] %vm2709, %v3167
      %3214 = vst.msk [vmem:[%s262 + $0xe0] sm:$0xff] %vm2709, %v3172
      %3215 = vst.msk [vmem:[%s262 + $0xe8] sm:$0xff] %vm2709, %v3175
      %3216 = vst.msk [vmem:[%s262 + $0xf0] sm:$0xff] %vm2709, %v3180
      %3217 = vst.msk [vmem:[%s262 + $0xf8] sm:$0xff] %vm2709, %v3183
      %v3218 = vsel %vm2709, %v3060, 0.0
      %v3219 = vsel %vm2709, %v3063, 0.0
      %v3220 = vadd.f32 %v3218, %v3219
      %v3221 = vsel %vm2709, %v3068, 0.0
      %v3222 = vadd.f32 %v3220, %v3221
      %v3223 = vsel %vm2709, %v3071, 0.0
      %v3224 = vadd.f32 %v3222, %v3223
      %v3225 = vsel %vm2709, %v3076, 0.0
      %v3226 = vadd.f32 %v3224, %v3225
      %v3227 = vsel %vm2709, %v3079, 0.0
      %v3228 = vadd.f32 %v3226, %v3227
      %v3229 = vsel %vm2709, %v3084, 0.0
      %v3230 = vadd.f32 %v3228, %v3229
      %v3231 = vsel %vm2709, %v3087, 0.0
      %v3232 = vadd.f32 %v3230, %v3231
      %v3233 = vsel %vm2709, %v3092, 0.0
      %v3234 = vadd.f32 %v3232, %v3233
      %v3235 = vsel %vm2709, %v3095, 0.0
      %v3236 = vadd.f32 %v3234, %v3235
      %v3237 = vsel %vm2709, %v3100, 0.0
      %v3238 = vadd.f32 %v3236, %v3237
      %v3239 = vsel %vm2709, %v3103, 0.0
      %v3240 = vadd.f32 %v3238, %v3239
      %v3241 = vsel %vm2709, %v3108, 0.0
      %v3242 = vadd.f32 %v3240, %v3241
      %v3243 = vsel %vm2709, %v3111, 0.0
      %v3244 = vadd.f32 %v3242, %v3243
      %v3245 = vsel %vm2709, %v3116, 0.0
      %v3246 = vadd.f32 %v3244, %v3245
      %v3247 = vsel %vm2709, %v3119, 0.0
      %v3248 = vadd.f32 %v3246, %v3247
      %v3249 = vsel %vm2709, %v3124, 0.0
      %v3250 = vadd.f32 %v3248, %v3249
      %v3251 = vsel %vm2709, %v3127, 0.0
      %v3252 = vadd.f32 %v3250, %v3251
      %v3253 = vsel %vm2709, %v3132, 0.0
      %v3254 = vadd.f32 %v3252, %v3253
      %v3255 = vsel %vm2709, %v3135, 0.0
      %v3256 = vadd.f32 %v3254, %v3255
      %v3257 = vsel %vm2709, %v3140, 0.0
      %v3258 = vadd.f32 %v3256, %v3257
      %v3259 = vsel %vm2709, %v3143, 0.0
      %v3260 = vadd.f32 %v3258, %v3259
      %v3261 = vsel %vm2709, %v3148, 0.0
      %v3262 = vadd.f32 %v3260, %v3261
      %v3263 = vsel %vm2709, %v3151, 0.0
      %v3264 = vadd.f32 %v3262, %v3263
      %v3265 = vsel %vm2709, %v3156, 0.0
      %v3266 = vadd.f32 %v3264, %v3265
      %v3267 = vsel %vm2709, %v3159, 0.0
      %v3268 = vadd.f32 %v3266, %v3267
      %v3269 = vsel %vm2709, %v3164, 0.0
      %v3270 = vadd.f32 %v3268, %v3269
      %v3271 = vsel %vm2709, %v3167, 0.0
      %v3272 = vadd.f32 %v3270, %v3271
      %v3273 = vsel %vm2709, %v3172, 0.0
      %v3274 = vadd.f32 %v3272, %v3273
      %v3275 = vsel %vm2709, %v3175, 0.0
      %v3276 = vadd.f32 %v3274, %v3275
      %v3277 = vsel %vm2709, %v3180, 0.0
      %v3278 = vadd.f32 %v3276, %v3277
      %v3279 = vsel %vm2709, %v3183, 0.0
      %v3280 = vadd.f32 %v3278, %v3279
      %v3281 = vrot.slane %v3280, 4
      %v3282 = vadd.f32 %v3280, %v3281
      %v3283 = vrot.slane %v3282, 2
      %v3284 = vadd.f32 %v3282, %v3283
      %v3285 = vrot.slane %v3284, 1
      %v3286 = vadd.f32 %v3284, %v3285
      %3287 = vst.msk [vmem:[%s265] sm:$0x1] %vm415, %v3286
      %v3288 = vmul.f32 %v3060, %v3060
      %v3289 = vmul.f32 %v3063, %v3063
      %v3290 = vmul.f32 %v3068, %v3068
      %v3291 = vmul.f32 %v3071, %v3071
      %v3292 = vmul.f32 %v3076, %v3076
      %v3293 = vmul.f32 %v3079, %v3079
      %v3294 = vmul.f32 %v3084, %v3084
      %v3295 = vmul.f32 %v3087, %v3087
      %v3296 = vmul.f32 %v3092, %v3092
      %v3297 = vmul.f32 %v3095, %v3095
      %v3298 = vmul.f32 %v3100, %v3100
      %v3299 = vmul.f32 %v3103, %v3103
      %v3300 = vmul.f32 %v3108, %v3108
      %v3301 = vmul.f32 %v3111, %v3111
      %v3302 = vmul.f32 %v3116, %v3116
      %v3303 = vmul.f32 %v3119, %v3119
      %v3304 = vmul.f32 %v3124, %v3124
      %v3305 = vmul.f32 %v3127, %v3127
      %v3306 = vmul.f32 %v3132, %v3132
      %v3307 = vmul.f32 %v3135, %v3135
      %v3308 = vmul.f32 %v3140, %v3140
      %v3309 = vmul.f32 %v3143, %v3143
      %v3310 = vmul.f32 %v3148, %v3148
      %v3311 = vmul.f32 %v3151, %v3151
      %v3312 = vmul.f32 %v3156, %v3156
      %v3313 = vmul.f32 %v3159, %v3159
      %v3314 = vmul.f32 %v3164, %v3164
      %v3315 = vmul.f32 %v3167, %v3167
      %v3316 = vmul.f32 %v3172, %v3172
      %v3317 = vmul.f32 %v3175, %v3175
      %v3318 = vmul.f32 %v3180, %v3180
      %v3319 = vmul.f32 %v3183, %v3183
      %v3320 = vsel %vm2709, %v3288, 0.0
      %v3321 = vsel %vm2709, %v3289, 0.0
      %v3322 = vadd.f32 %v3320, %v3321
      %v3323 = vsel %vm2709, %v3290, 0.0
      %v3324 = vadd.f32 %v3322, %v3323
      %v3325 = vsel %vm2709, %v3291, 0.0
      %v3326 = vadd.f32 %v3324, %v3325
      %v3327 = vsel %vm2709, %v3292, 0.0
      %v3328 = vadd.f32 %v3326, %v3327
      %v3329 = vsel %vm2709, %v3293, 0.0
      %v3330 = vadd.f32 %v3328, %v3329
      %v3331 = vsel %vm2709, %v3294, 0.0
      %v3332 = vadd.f32 %v3330, %v3331
      %v3333 = vsel %vm2709, %v3295, 0.0
      %v3334 = vadd.f32 %v3332, %v3333
      %v3335 = vsel %vm2709, %v3296, 0.0
      %v3336 = vadd.f32 %v3334, %v3335
      %v3337 = vsel %vm2709, %v3297, 0.0
      %v3338 = vadd.f32 %v3336, %v3337
      %v3339 = vsel %vm2709, %v3298, 0.0
      %v3340 = vadd.f32 %v3338, %v3339
      %v3341 = vsel %vm2709, %v3299, 0.0
      %v3342 = vadd.f32 %v3340, %v3341
      %v3343 = vsel %vm2709, %v3300, 0.0
      %v3344 = vadd.f32 %v3342, %v3343
      %v3345 = vsel %vm2709, %v3301, 0.0
      %v3346 = vadd.f32 %v3344, %v3345
      %v3347 = vsel %vm2709, %v3302, 0.0
      %v3348 = vadd.f32 %v3346, %v3347
      %v3349 = vsel %vm2709, %v3303, 0.0
      %v3350 = vadd.f32 %v3348, %v3349
      %v3351 = vsel %vm2709, %v3304, 0.0
      %v3352 = vadd.f32 %v3350, %v3351
      %v3353 = vsel %vm2709, %v3305, 0.0
      %v3354 = vadd.f32 %v3352, %v3353
      %v3355 = vsel %vm2709, %v3306, 0.0
      %v3356 = vadd.f32 %v3354, %v3355
      %v3357 = vsel %vm2709, %v3307, 0.0
      %v3358 = vadd.f32 %v3356, %v3357
      %v3359 = vsel %vm2709, %v3308, 0.0
      %v3360 = vadd.f32 %v3358, %v3359
      %v3361 = vsel %vm2709, %v3309, 0.0
      %v3362 = vadd.f32 %v3360, %v3361
      %v3363 = vsel %vm2709, %v3310, 0.0
      %v3364 = vadd.f32 %v3362, %v3363
      %v3365 = vsel %vm2709, %v3311, 0.0
      %v3366 = vadd.f32 %v3364, %v3365
      %v3367 = vsel %vm2709, %v3312, 0.0
      %v3368 = vadd.f32 %v3366, %v3367
      %v3369 = vsel %vm2709, %v3313, 0.0
      %v3370 = vadd.f32 %v3368, %v3369
      %v3371 = vsel %vm2709, %v3314, 0.0
      %v3372 = vadd.f32 %v3370, %v3371
      %v3373 = vsel %vm2709, %v3315, 0.0
      %v3374 = vadd.f32 %v3372, %v3373
      %v3375 = vsel %vm2709, %v3316, 0.0
      %v3376 = vadd.f32 %v3374, %v3375
      %v3377 = vsel %vm2709, %v3317, 0.0
      %v3378 = vadd.f32 %v3376, %v3377
      %v3379 = vsel %vm2709, %v3318, 0.0
      %v3380 = vadd.f32 %v3378, %v3379
      %v3381 = vsel %vm2709, %v3319, 0.0
      %v3382 = vadd.f32 %v3380, %v3381
      %v3383 = vrot.slane %v3382, 4
      %v3384 = vadd.f32 %v3382, %v3383
      %v3385 = vrot.slane %v3384, 2
      %v3386 = vadd.f32 %v3384, %v3385
      %v3387 = vrot.slane %v3386, 1
      %v3388 = vadd.f32 %v3386, %v3387
      %3389 = vst.msk [vmem:[%s268] sm:$0x1] %vm415, %v3388
      %p3390 = scmp.lt.s32.totalorder %s18, 1
      %s3391 = scalar_select %p3390, %s18, 1
      %s3392 = smul.addr %s3391, 32
      %s3393 = smul.addr %s3392, 8
      %s3394 = scalar_lea.vmem %s4, %s3393
      %p3395 = scmp.lt.s32.totalorder %s18, 1
      %s3396 = scalar_select %p3395, %s18, 1
      %s3397 = scalar_lea.vmem %s5, %s3396
      %p3398 = scmp.lt.s32.totalorder %s18, 1
      %s3399 = scalar_select %p3398, %s18, 1
      %s3400 = scalar_lea.vmem %s6, %s3399
      // Predicated region
      $region37: #{residual_forward.4} parent=35 // pred_check
        %p3401 = pneg %p125
      $region38: #{residual_forward.4} parent=35 // pred_check_branch
        %3403 = sbr.rel (%p3401) target = $region40
      $region39: #{residual_forward.4} parent=35 // pred_region
        _
      $region40: #{residual_forward.4} parent=35 // pred_fallthru
        _
      // Predicated region
      $region41: #{residual_forward.4} parent=35 // pred_check
        %p3404 = pneg %p151
      $region42: #{residual_forward.4} parent=35 // pred_check_branch
        %3406 = sbr.rel (%p3404) target = $region44
      $region43: #{residual_forward.4} parent=35 // pred_region
        _
      $region44: #{residual_forward.4} parent=35 // pred_fallthru
        _
      // Predicated region
      $region45: #{residual_forward.4} parent=35 // pred_check
        %p3407 = pneg %p177
      $region46: #{residual_forward.4} parent=35 // pred_check_branch
        %3409 = sbr.rel (%p3407) target = $region48
      $region47: #{residual_forward.4} parent=35 // pred_region
        _
      $region48: #{residual_forward.4} parent=35 // pred_fallthru
        _
    $region36: #{residual_forward.4} parent=5 // pred_fallthru
      _
    %p3410 = scmp.le.s32.totalorder 2, %s13
    // Predicated region
    $region49: #{residual_forward.4} parent=5 // pred_check
      %p3411 = pneg %p3410
    $region50: #{residual_forward.4} parent=5 // pred_check_branch
      %3413 = sbr.rel (%p3411) target = $region52
    $region51: #{residual_forward.4} parent=5 // pred_region
      %s3414 = ssub.s32 %s13, 2
      // Predicated region
      $region53: #{residual_forward.4} parent=51 // pred_check
        %p3415 = pneg %p131
      $region54: #{residual_forward.4} parent=51 // pred_check_branch
        %3417 = sbr.rel (%p3415) target = $region56
      $region55: #{residual_forward.4} parent=51 // pred_region
        %p3418 = scmp.lt.s32.totalorder %s19, 1
        %s3419 = scalar_select %p3418, %s19, 1
        %s3420 = smul.addr %s3419, 32
        %s3421 = smul.addr %s3420, 8
        %s3422 = scalar_lea.vmem %s4, %s3421
      $region56: #{residual_forward.4} parent=51 // pred_fallthru
        _
      // Predicated region
      $region57: #{residual_forward.4} parent=51 // pred_check
        %p3423 = pneg %p157
      $region58: #{residual_forward.4} parent=51 // pred_check_branch
        %3425 = sbr.rel (%p3423) target = $region60
      $region59: #{residual_forward.4} parent=51 // pred_region
        %p3426 = scmp.lt.s32.totalorder %s19, 1
        %s3427 = scalar_select %p3426, %s19, 1
        %s3428 = scalar_lea.vmem %s5, %s3427
      $region60: #{residual_forward.4} parent=51 // pred_fallthru
        _
      // Predicated region
      $region61: #{residual_forward.4} parent=51 // pred_check
        %p3429 = pneg %p183
      $region62: #{residual_forward.4} parent=51 // pred_check_branch
        %3431 = sbr.rel (%p3429) target = $region64
      $region63: #{residual_forward.4} parent=51 // pred_region
        %p3432 = scmp.lt.s32.totalorder %s19, 1
        %s3433 = scalar_select %p3432, %s19, 1
        %s3434 = scalar_lea.vmem %s6, %s3433
      $region64: #{residual_forward.4} parent=51 // pred_fallthru
        _
    $region52: #{residual_forward.4} parent=5 // pred_fallthru
      _
  $region6: #{residual_forward.4} parent=0 // loop_footer
    %s17 = sadd.s32 1, %s13
  $region7: #{residual_forward.4} parent=0 // loop_footer_branch
    %12 = sbr.rel target = $region3
  $region8: #{residual_forward.4} parent=0 // loop_exit
    _

</llo_original>
